<compile_context>
chip_gen: v5e
topology: v5e:2x2
jax: 0.10.0
libtpu: 0.0.40
codegen_flags: <defaults>
</compile_context>

<pallas_src>
import functools

import jax
import jax.numpy as jnp
from jax import lax
from jax.experimental import pallas as pl
from jax.experimental.pallas import tpu as pltpu

# lane-padded model dims
PATCH_PAD = 128        # patch*patch*C (=48) zero-padded to lane width
EMBED = 128
HIDDEN = 128
HEAD_PAD = 128         # 4 box + num_classes scores, padded to lane width
MAX_TOKEN_TILE = 512   # token (M) tile upper bound (mem-bound kernels)
IOU_TILE_R = 256
IOU_TILE_C = 512
NMS_ROW_BLK = 16       # dense sublane row blocks streamed into NMS
# 32 MiB is safe on every generation (v5e/v6e 128 MiB, v7x 64 MiB physical).
VMEM_LIMIT = 32 * 1024 * 1024


def _round_up(n, m):
    return ((n + m - 1) // m) * m


def _tile_and_pad(n, max_tile=MAX_TOKEN_TILE, min_tile=128):
    # largest 128-multiple tile <= max_tile that still yields a >=2-step grid
    # (so "parallel" semantics can shard across v7x's two TensorCores).
    tile = max_tile
    while tile > min_tile and _round_up(n, tile) // tile < 2:
        tile //= 2
    return tile, _round_up(n, tile)


# ----------------------------- Pallas kernels -----------------------------

def _backbone_kernel(x_ref, pew_ref, peb_ref, w1_ref, b1_ref, w2_ref, b2_ref,
                     dw_ref, db_ref, feat_ref, head_ref):
    # fused: patch-embed + residual GELU-MLP + detection head, weights resident
    x = x_ref[...]                                                  # (T,128) bf16
    h0 = jnp.dot(x, pew_ref[...],
                 preferred_element_type=jnp.float32) + peb_ref[...]
    h = jnp.dot(h0.astype(jnp.bfloat16), w1_ref[...],
                preferred_element_type=jnp.float32) + b1_ref[...]
    h = jax.nn.gelu(h)
    h2 = jnp.dot(h.astype(jnp.bfloat16), w2_ref[...],
                 preferred_element_type=jnp.float32) + b2_ref[...]
    feat = (h0 + h2).astype(jnp.bfloat16)                           # residual
    feat_ref[...] = feat
    # detection head on data already in VMEM (free MXU work, saves an HBM
    # write+read of the whole feature slab); raw logits, bf16 writeback.
    head = jnp.dot(feat, dw_ref[...],
                   preferred_element_type=jnp.float32) + db_ref[...]
    head_ref[...] = head.astype(head_ref.dtype)


def backbone_fused(patches, params, tile):
    tp, d = patches.shape                    # tp % tile == 0, d == 128
    tok = lambda i: (i, 0)
    rep = lambda i: (0, 0)                   # weights stay resident across grid
    weights = (params["pe_w"], params["pe_b"], params["mlp_w1"],
               params["mlp_b1"], params["mlp_w2"], params["mlp_b2"],
               params["det_w"], params["det_b"])
    return pl.pallas_call(
        _backbone_kernel,
        out_shape=(jax.ShapeDtypeStruct((tp, EMBED), jnp.bfloat16),
                   jax.ShapeDtypeStruct((tp, HEAD_PAD), jnp.bfloat16)),
        grid=(tp // tile,),
        in_specs=[pl.BlockSpec((tile, d), tok)] +
                 [pl.BlockSpec(w.shape, rep) for w in weights],
        out_specs=(pl.BlockSpec((tile, EMBED), tok),
                   pl.BlockSpec((tile, HEAD_PAD), tok)),
        compiler_params=pltpu.CompilerParams(
            dimension_semantics=("parallel",),
            vmem_limit_bytes=VMEM_LIMIT),
    )(patches, *weights)


def _det_head_kernel(x_ref, w_ref, b_ref, o_ref):
    y = jnp.dot(x_ref[...], w_ref[...],
                preferred_element_type=jnp.float32) + b_ref[...]
    o_ref[...] = y.astype(o_ref.dtype)       # raw bf16 logits, lane-dense slab


def det_head_fused(feats, det_w, det_b, tile):
    nf, d = feats.shape
    tok = lambda i: (i, 0)
    rep = lambda i: (0, 0)
    return pl.pallas_call(
        _det_head_kernel,
        out_shape=jax.ShapeDtypeStruct((nf, HEAD_PAD), jnp.bfloat16),
        grid=(nf // tile,),
        in_specs=[pl.BlockSpec((tile, d), tok),
                  pl.BlockSpec(det_w.shape, rep),
                  pl.BlockSpec(det_b.shape, rep)],
        out_specs=pl.BlockSpec((tile, HEAD_PAD), tok),
        compiler_params=pltpu.CompilerParams(
            dimension_semantics=("parallel",),
            vmem_limit_bytes=VMEM_LIMIT),
    )(feats, det_w, det_b)


def _iou_mask_kernel(br_ref, bc_ref, o_ref, *, iou_threshold):
    # thresholded, upper-triangle-masked pairwise-IoU -> bf16 0/1 mask
    i = pl.program_id(0)
    j = pl.program_id(1)
    br = br_ref[...]                          # (TR, 128): boxes, coords cols 0-3
    bc = bc_ref[...]                          # (8, TC): coordinate-row layout
    x11, y11, x12, y12 = br[:, 0:1], br[:, 1:2], br[:, 2:3], br[:, 3:4]
    x21, y21, x22, y22 = bc[0:1, :], bc[1:2, :], bc[2:3, :], bc[3:4, :]
    iw = jnp.maximum(jnp.minimum(x12, x22) - jnp.maximum(x11, x21), 0.0)
    ih = jnp.maximum(jnp.minimum(y12, y22) - jnp.maximum(y11, y21), 0.0)
    inter = iw * ih
    a1 = jnp.maximum(x12 - x11, 0.0) * jnp.maximum(y12 - y11, 0.0)
    a2 = jnp.maximum(x22 - x21, 0.0) * jnp.maximum(y22 - y21, 0.0)
    iou = inter / (a1 + a2 - inter + 1e-7)    # exact division (threshold parity)
    row_g = i * IOU_TILE_R + lax.broadcasted_iota(jnp.int32, iou.shape, 0)
    col_g = j * IOU_TILE_C + lax.broadcasted_iota(jnp.int32, iou.shape, 1)
    mask = (iou > iou_threshold) & (col_g > row_g)
    o_ref[...] = jnp.where(mask, 1.0, 0.0).astype(o_ref.dtype)


def pairwise_iou_mask(boxes_rows, boxes_cols, iou_threshold):
    np_ = boxes_rows.shape[0]                 # padded to multiple of IOU_TILE_C
    kernel = functools.partial(_iou_mask_kernel,
                               iou_threshold=float(iou_threshold))
    return pl.pallas_call(
        kernel,
        out_shape=jax.ShapeDtypeStruct((np_, np_), jnp.bfloat16),
        grid=(np_ // IOU_TILE_R, np_ // IOU_TILE_C),
        in_specs=[pl.BlockSpec((IOU_TILE_R, 128), lambda i, j: (i, 0)),
                  pl.BlockSpec((8, IOU_TILE_C), lambda i, j: (0, j))],
        out_specs=pl.BlockSpec((IOU_TILE_R, IOU_TILE_C), lambda i, j: (i, j)),
        compiler_params=pltpu.CompilerParams(
            dimension_semantics=("parallel", "parallel"),
            vmem_limit_bytes=VMEM_LIMIT),
    )(boxes_rows, boxes_cols)


def _nms_kernel(nvalid_ref, mask_ref, cand_ref, keep_ref, *, row_blk):
    # streaming greedy NMS over score-sorted candidates:
    #  - suppression-mask rows arrive as (row_blk, N) pipelined tiles
    #  - keep mask is the grid-resident (1, N) output (accumulator pattern)
    #  - loop bounded by the dynamic number of valid candidates
    b = pl.program_id(0)
    n = keep_ref.shape[1]

    @pl.when(b == 0)
    def _():
        keep_ref[...] = cand_ref[...]

    start = b * row_blk

    @pl.when(start < nvalid_ref[0])
    def _():
        rows = mask_ref[...].astype(jnp.float32)          # dense (row_blk, N)
        rel = lax.broadcasted_iota(jnp.int32, (1, n), 1) - start
        keep = keep_ref[...]
        for j in range(row_blk):                          # unrolled inner loop
            keep_j = jnp.max(jnp.where(rel == j, keep, 0.0),
                             axis=1, keepdims=True)       # (1,1): keep[start+j]
            keep = keep * (1.0 - rows[j:j + 1, :] * keep_j)
        keep_ref[...] = keep


def nms_pallas(mask, cand, n_valid):
    np_ = mask.shape[0]
    kernel = functools.partial(_nms_kernel, row_blk=NMS_ROW_BLK)
    return pl.pallas_call(
        kernel,
        out_shape=jax.ShapeDtypeStruct((1, np_), jnp.float32),
        grid_spec=pltpu.PrefetchScalarGridSpec(
            num_scalar_prefetch=1,
            grid=(np_ // NMS_ROW_BLK,),
            in_specs=[pl.BlockSpec((NMS_ROW_BLK, np_), lambda b, nv: (b, 0)),
                      pl.BlockSpec((1, np_), lambda b, nv: (0, 0))],
            out_specs=pl.BlockSpec((1, np_), lambda b, nv: (0, 0))),
        compiler_params=pltpu.CompilerParams(
            dimension_semantics=("arbitrary",),
            vmem_limit_bytes=VMEM_LIMIT),
    )(n_valid, mask, cand)


# ------------------------------- glue code --------------------------------

def extract_overlapping_crops(image_chw, crop, stride):
    """Static-shape analogue of extract_overlapping_crops_and_boxes."""
    c, h, w = image_chw.shape
    crops = []
    for y in range(0, h - crop + 1, stride):
        for x in range(0, w - crop + 1, stride):
            crops.append(image_chw[:, y:y + crop, x:x + crop])
    return jnp.stack(crops, axis=0)            # (Ncrops, C, crop, crop)
    # TODO(synk): for large images, index the NHWC image directly from the
    # backbone kernel (scalar-prefetched crop-offset table) instead of
    # materializing ~4x-duplicated crops + im2col copies in HBM.


def init_params(key, num_classes=8):
    ks = jax.random.split(key, 4)
    s = 0.02

    def w(k, shape):
        return (s * jax.random.normal(k, shape, jnp.float32)).astype(jnp.bfloat16)

    return {
        "pe_w": w(ks[0], (PATCH_PAD, EMBED)),
        "pe_b": jnp.zeros((1, EMBED), jnp.float32),
        "mlp_w1": w(ks[1], (EMBED, HIDDEN)),
        "mlp_b1": jnp.zeros((1, HIDDEN), jnp.float32),
        "mlp_w2": w(ks[2], (HIDDEN, EMBED)),
        "mlp_b2": jnp.zeros((1, EMBED), jnp.float32),
        "det_w": w(ks[3], (EMBED, HEAD_PAD)),
        "det_b": jnp.zeros((1, HEAD_PAD), jnp.float32),
    }


@functools.partial(jax.jit, static_argnames=("crop", "stride", "patch",
                                             "num_classes",
                                             "confidence_threshold",
                                             "iou_threshold", "id_bg"))
def object_detection_forward(image, params, *, crop=16, stride=8, patch=4,
                             num_classes=8, confidence_threshold=0.5,
                             iou_threshold=0.5, id_bg=-1):
    # 1) overlapping crops (image is CHW, as in the torch forward)
    crops = extract_overlapping_crops(image, crop, stride)       # (Nc, C, h, w)
    crops = jnp.transpose(crops, (0, 2, 3, 1))                   # NHWC
    nc, h, w, c = crops.shape

    # 2) backbone + fused det head on the lvl0 (per-patch) tokens
    gh, gw = h // patch, w // patch
    n_tokens = nc * gh * gw
    patches = crops.reshape(nc, gh, patch, gw, patch, c)
    patches = patches.transpose(0, 1, 3, 2, 4, 5).reshape(n_tokens,
                                                          patch * patch * c)
    tile, tp = _tile_and_pad(n_tokens)
    patches = jnp.pad(patches, ((0, tp - n_tokens),
                                (0, PATCH_PAD - patches.shape[1])))
    emb_p, head0_p = backbone_fused(patches.astype(jnp.bfloat16), params, tile)
    emb = emb_p[:n_tokens].reshape(nc, gh, gw, EMBED)            # bf16, stays bf16
    head0 = head0_p[:n_tokens]                                   # (n_tokens, 128)

    # 3) multi-scale features (stand-in for merge_feature_maps: 3 pyramid levels)
    # TODO(synk): merge_feature_maps re-stitches crop features into a global map;
    # here the multi-scale per-crop tokens are concatenated directly (grouped by
    # pyramid level).
    d = EMBED
    lvl1 = emb.reshape(nc, gh // 2, 2, gw // 2, 2, d)
    lvl1 = lvl1.mean(axis=(2, 4), dtype=jnp.float32).astype(jnp.bfloat16)
    lvl1 = lvl1.reshape(-1, d)
    lvl2 = emb.mean(axis=(1, 2), dtype=jnp.float32).astype(jnp.bfloat16)
    pooled = jnp.concatenate([lvl1, lvl2.reshape(-1, d)], axis=0)
    n_pooled = pooled.shape[0]

    # small separate head call on the pooled lvl1/lvl2 tokens only
    ptile, pp = _tile_and_pad(n_pooled)
    pooled = jnp.pad(pooled, ((0, pp - n_pooled), (0, 0)))
    head12 = det_head_fused(pooled, params["det_w"], params["det_b"],
                            ptile)[:n_pooled]

    # 4) per-token predictions: sigmoid only on the 4 box columns / max logit
    pred_logits = jnp.concatenate([head0, head12], axis=0)       # (N, 128) bf16
    n_feats = pred_logits.shape[0]
    boxes = jax.nn.sigmoid(pred_logits[:, :4].astype(jnp.float32))
    cls_logits = pred_logits[:, 4:4 + num_classes].astype(jnp.float32)
    scores = jax.nn.sigmoid(cls_logits.max(-1))
    labels = cls_logits.argmax(-1)
    detectors_index = jnp.arange(n_feats, dtype=jnp.int32)

    object_mask = labels != id_bg            # matches torch semantics (id_bg=-1)
    score_mask = scores > confidence_threshold
    valid = object_mask & score_mask

    # 5) NMS: sort by score (XLA), tiled thresholded-IoU mask + streaming greedy
    order = jnp.argsort(-jnp.where(valid, scores, -jnp.inf))
    boxes_sorted = boxes[order]
    cand_sorted = valid[order].astype(jnp.float32)
    n_valid = jnp.sum(valid, dtype=jnp.int32).reshape((1,))

    np_ = _round_up(n_feats, IOU_TILE_C)
    boxes_rows = jnp.pad(boxes_sorted, ((0, np_ - n_feats), (0, 128 - 4)))
    boxes_cols = jnp.pad(boxes_sorted.T, ((0, 8 - 4), (0, np_ - n_feats)))
    cand_p = jnp.pad(cand_sorted, (0, np_ - n_feats)).reshape(1, np_)

    mask = pairwise_iou_mask(boxes_rows, boxes_cols, iou_threshold)  # (np_,np_)
    keep_sorted = nms_pallas(mask, cand_p, n_valid)[0, :n_feats] > 0.5
    keep = jnp.zeros((n_feats,), dtype=bool).at[order].set(keep_sorted)

    # TODO(synk): torch returns dynamically-sized gathered tensors; fixed-size
    # outputs with a boolean keep mask are returned instead (no dynamic shapes
    # on TPU).
    boxes_out = jnp.where(keep[:, None], boxes, 0.0)
    scores_out = jnp.where(keep, scores, 0.0)
    labels_out = jnp.where(keep, labels, -1)
    detectors_out = jnp.where(keep, detectors_index, -1)
    return boxes_out, scores_out, labels_out, detectors_out, keep


if __name__ == "__main__":
    key = jax.random.PRNGKey(0)
    pkey, ikey = jax.random.split(key)
    params = init_params(pkey)

    # small CHW image consistent with the torch forward (h, w = image.shape[1:3])
    image = jax.random.normal(ikey, (3, 32, 32), jnp.float32)

    out = object_detection_forward(image, params)
    out = jax.block_until_ready(out)
    boxes, scores, labels, det_idx, keep = out
    assert boxes.shape[1] == 4 and scores.shape == labels.shape == keep.shape
    print("KERNEL_OK")
</pallas_src>

<mosaic_0001>
module attributes {stable_mosaic.version = 11 : i64} {
  func.func @_backbone_kernel(%arg0: i32, %arg1: memref<128x128xbf16, #tpu.memory_space<vmem>>, %arg2: memref<128x128xbf16, #tpu.memory_space<vmem>>, %arg3: memref<1x128xf32, #tpu.memory_space<vmem>>, %arg4: memref<128x128xbf16, #tpu.memory_space<vmem>>, %arg5: memref<1x128xf32, #tpu.memory_space<vmem>>, %arg6: memref<128x128xbf16, #tpu.memory_space<vmem>>, %arg7: memref<1x128xf32, #tpu.memory_space<vmem>>, %arg8: memref<128x128xbf16, #tpu.memory_space<vmem>>, %arg9: memref<1x128xf32, #tpu.memory_space<vmem>>, %arg10: memref<128x128xbf16, #tpu.memory_space<vmem>>, %arg11: memref<128x128xbf16, #tpu.memory_space<vmem>>) attributes {dimension_semantics = [#tpu.dimension_semantics<parallel>], iteration_bounds = array<i64: 2>, scalar_prefetch = 0 : i64, scratch_operands = 0 : i64, tpu.core_type = #tpu.core_type<tc>, window_params = [{transform_indices = @transform_0, window_bounds = array<i64: 128, 128>}, {pipeline_mode = #tpu.pipeline_mode<synchronous>, transform_indices = @transform_1, window_bounds = array<i64: 128, 128>}, {pipeline_mode = #tpu.pipeline_mode<synchronous>, transform_indices = @transform_2, window_bounds = array<i64: 1, 128>}, {pipeline_mode = #tpu.pipeline_mode<synchronous>, transform_indices = @transform_3, window_bounds = array<i64: 128, 128>}, {pipeline_mode = #tpu.pipeline_mode<synchronous>, transform_indices = @transform_4, window_bounds = array<i64: 1, 128>}, {pipeline_mode = #tpu.pipeline_mode<synchronous>, transform_indices = @transform_5, window_bounds = array<i64: 128, 128>}, {pipeline_mode = #tpu.pipeline_mode<synchronous>, transform_indices = @transform_6, window_bounds = array<i64: 1, 128>}, {pipeline_mode = #tpu.pipeline_mode<synchronous>, transform_indices = @transform_7, window_bounds = array<i64: 128, 128>}, {pipeline_mode = #tpu.pipeline_mode<synchronous>, transform_indices = @transform_8, window_bounds = array<i64: 1, 128>}, {transform_indices = @transform_9, window_bounds = array<i64: 128, 128>}, {transform_indices = @transform_10, window_bounds = array<i64: 128, 128>}]} {
    %c0 = arith.constant 0 : index
    %c0_0 = arith.constant 0 : index
    %0 = vector.load %arg1[%c0, %c0_0] : memref<128x128xbf16, #tpu.memory_space<vmem>>, vector<128x128xbf16>
    %c0_1 = arith.constant 0 : index
    %c0_2 = arith.constant 0 : index
    %1 = vector.load %arg2[%c0_1, %c0_2] : memref<128x128xbf16, #tpu.memory_space<vmem>>, vector<128x128xbf16>
    %cst = arith.constant dense<0.000000e+00> : vector<128x128xf32>
    %2 = tpu.matmul %0, %1, %cst {dimension_numbers = #tpu.dot_dimension_numbers<[1], [0], [0], [1], [0, 0, 1, 1], [], []>} : vector<128x128xbf16>, vector<128x128xbf16>, vector<128x128xf32> -> vector<128x128xf32>
    %c0_3 = arith.constant 0 : index
    %c0_4 = arith.constant 0 : index
    %3 = vector.load %arg3[%c0_3, %c0_4] : memref<1x128xf32, #tpu.memory_space<vmem>>, vector<1x128xf32>
    %4 = vector.broadcast %3 : vector<1x128xf32> to vector<128x128xf32>
    %5 = arith.addf %2, %4 : vector<128x128xf32>
    %6 = arith.truncf %5 : vector<128x128xf32> to vector<128x128xbf16>
    %c0_5 = arith.constant 0 : index
    %c0_6 = arith.constant 0 : index
    %7 = vector.load %arg4[%c0_5, %c0_6] : memref<128x128xbf16, #tpu.memory_space<vmem>>, vector<128x128xbf16>
    %cst_7 = arith.constant dense<0.000000e+00> : vector<128x128xf32>
    %8 = tpu.matmul %6, %7, %cst_7 {dimension_numbers = #tpu.dot_dimension_numbers<[1], [0], [0], [1], [0, 0, 1, 1], [], []>} : vector<128x128xbf16>, vector<128x128xbf16>, vector<128x128xf32> -> vector<128x128xf32>
    %c0_8 = arith.constant 0 : index
    %c0_9 = arith.constant 0 : index
    %9 = vector.load %arg5[%c0_8, %c0_9] : memref<1x128xf32, #tpu.memory_space<vmem>>, vector<1x128xf32>
    %10 = vector.broadcast %9 : vector<1x128xf32> to vector<128x128xf32>
    %11 = arith.addf %8, %10 : vector<128x128xf32>
    %12 = arith.mulf %11, %11 : vector<128x128xf32>
    %13 = arith.mulf %11, %12 : vector<128x128xf32>
    %cst_10 = arith.constant 4.471500e-02 : f32
    %14 = vector.broadcast %cst_10 : f32 to vector<128x128xf32>
    %15 = arith.mulf %14, %13 : vector<128x128xf32>
    %16 = arith.addf %11, %15 : vector<128x128xf32>
    %cst_11 = arith.constant 0.797884583 : f32
    %17 = vector.broadcast %cst_11 : f32 to vector<128x128xf32>
    %18 = arith.mulf %17, %16 : vector<128x128xf32>
    %19 = math.tanh %18 : vector<128x128xf32>
    %cst_12 = arith.constant 1.000000e+00 : f32
    %20 = vector.broadcast %cst_12 : f32 to vector<128x128xf32>
    %21 = arith.addf %20, %19 : vector<128x128xf32>
    %cst_13 = arith.constant 5.000000e-01 : f32
    %22 = vector.broadcast %cst_13 : f32 to vector<128x128xf32>
    %23 = arith.mulf %22, %21 : vector<128x128xf32>
    %24 = arith.mulf %11, %23 : vector<128x128xf32>
    %25 = arith.truncf %24 : vector<128x128xf32> to vector<128x128xbf16>
    %c0_14 = arith.constant 0 : index
    %c0_15 = arith.constant 0 : index
    %26 = vector.load %arg6[%c0_14, %c0_15] : memref<128x128xbf16, #tpu.memory_space<vmem>>, vector<128x128xbf16>
    %cst_16 = arith.constant dense<0.000000e+00> : vector<128x128xf32>
    %27 = tpu.matmul %25, %26, %cst_16 {dimension_numbers = #tpu.dot_dimension_numbers<[1], [0], [0], [1], [0, 0, 1, 1], [], []>} : vector<128x128xbf16>, vector<128x128xbf16>, vector<128x128xf32> -> vector<128x128xf32>
    %c0_17 = arith.constant 0 : index
    %c0_18 = arith.constant 0 : index
    %28 = vector.load %arg7[%c0_17, %c0_18] : memref<1x128xf32, #tpu.memory_space<vmem>>, vector<1x128xf32>
    %29 = vector.broadcast %28 : vector<1x128xf32> to vector<128x128xf32>
    %30 = arith.addf %27, %29 : vector<128x128xf32>
    %31 = arith.addf %5, %30 : vector<128x128xf32>
    %32 = arith.truncf %31 : vector<128x128xf32> to vector<128x128xbf16>
    %c0_19 = arith.constant 0 : index
    %c0_20 = arith.constant 0 : index
    %33 = vector.load %arg10[%c0_19, %c0_20] : memref<128x128xbf16, #tpu.memory_space<vmem>>, vector<128x128xbf16>
    tpu.vector_store %arg10[%c0_19, %c0_20], %32 {strides = array<i32>} : memref<128x128xbf16, #tpu.memory_space<vmem>>, vector<128x128xbf16>,
    %c0_21 = arith.constant 0 : index
    %c0_22 = arith.constant 0 : index
    %34 = vector.load %arg8[%c0_21, %c0_22] : memref<128x128xbf16, #tpu.memory_space<vmem>>, vector<128x128xbf16>
    %cst_23 = arith.constant dense<0.000000e+00> : vector<128x128xf32>
    %35 = tpu.matmul %32, %34, %cst_23 {dimension_numbers = #tpu.dot_dimension_numbers<[1], [0], [0], [1], [0, 0, 1, 1], [], []>} : vector<128x128xbf16>, vector<128x128xbf16>, vector<128x128xf32> -> vector<128x128xf32>
    %c0_24 = arith.constant 0 : index
    %c0_25 = arith.constant 0 : index
    %36 = vector.load %arg9[%c0_24, %c0_25] : memref<1x128xf32, #tpu.memory_space<vmem>>, vector<1x128xf32>
    %37 = vector.broadcast %36 : vector<1x128xf32> to vector<128x128xf32>
    %38 = arith.addf %35, %37 : vector<128x128xf32>
    %39 = arith.truncf %38 : vector<128x128xf32> to vector<128x128xbf16>
    %c0_26 = arith.constant 0 : index
    %c0_27 = arith.constant 0 : index
    %40 = vector.load %arg11[%c0_26, %c0_27] : memref<128x128xbf16, #tpu.memory_space<vmem>>, vector<128x128xbf16>
    tpu.vector_store %arg11[%c0_26, %c0_27], %39 {strides = array<i32>} : memref<128x128xbf16, #tpu.memory_space<vmem>>, vector<128x128xbf16>,
    return
  }
  func.func @transform_0(%arg0: i32) -> (i32, i32) {
    %c0_i32 = arith.constant 0 : i32
    %c0_i32_0 = arith.constant 0 : i32
    return %arg0, %c0_i32 : i32, i32
  }
  func.func @transform_1(%arg0: i32) -> (i32, i32) {
    %c0_i32 = arith.constant 0 : i32
    %c0_i32_0 = arith.constant 0 : i32
    %c0_i32_1 = arith.constant 0 : i32
    return %c0_i32, %c0_i32_0 : i32, i32
  }
  func.func @transform_2(%arg0: i32) -> (i32, i32) {
    %c0_i32 = arith.constant 0 : i32
    %c0_i32_0 = arith.constant 0 : i32
    %c0_i32_1 = arith.constant 0 : i32
    return %c0_i32, %c0_i32_0 : i32, i32
  }
  func.func @transform_3(%arg0: i32) -> (i32, i32) {
    %c0_i32 = arith.constant 0 : i32
    %c0_i32_0 = arith.constant 0 : i32
    %c0_i32_1 = arith.constant 0 : i32
    return %c0_i32, %c0_i32_0 : i32, i32
  }
  func.func @transform_4(%arg0: i32) -> (i32, i32) {
    %c0_i32 = arith.constant 0 : i32
    %c0_i32_0 = arith.constant 0 : i32
    %c0_i32_1 = arith.constant 0 : i32
    return %c0_i32, %c0_i32_0 : i32, i32
  }
  func.func @transform_5(%arg0: i32) -> (i32, i32) {
    %c0_i32 = arith.constant 0 : i32
    %c0_i32_0 = arith.constant 0 : i32
    %c0_i32_1 = arith.constant 0 : i32
    return %c0_i32, %c0_i32_0 : i32, i32
  }
  func.func @transform_6(%arg0: i32) -> (i32, i32) {
    %c0_i32 = arith.constant 0 : i32
    %c0_i32_0 = arith.constant 0 : i32
    %c0_i32_1 = arith.constant 0 : i32
    return %c0_i32, %c0_i32_0 : i32, i32
  }
  func.func @transform_7(%arg0: i32) -> (i32, i32) {
    %c0_i32 = arith.constant 0 : i32
    %c0_i32_0 = arith.constant 0 : i32
    %c0_i32_1 = arith.constant 0 : i32
    return %c0_i32, %c0_i32_0 : i32, i32
  }
  func.func @transform_8(%arg0: i32) -> (i32, i32) {
    %c0_i32 = arith.constant 0 : i32
    %c0_i32_0 = arith.constant 0 : i32
    %c0_i32_1 = arith.constant 0 : i32
    return %c0_i32, %c0_i32_0 : i32, i32
  }
  func.func @transform_9(%arg0: i32) -> (i32, i32) {
    %c0_i32 = arith.constant 0 : i32
    %c0_i32_0 = arith.constant 0 : i32
    return %arg0, %c0_i32 : i32, i32
  }
  func.func @transform_10(%arg0: i32) -> (i32, i32) {
    %c0_i32 = arith.constant 0 : i32
    %c0_i32_0 = arith.constant 0 : i32
    return %arg0, %c0_i32 : i32, i32
  }
}

module attributes {stable_mosaic.version = 11 : i64} {
  func.func @_det_head_kernel(%arg0: i32, %arg1: memref<128x128xbf16, #tpu.memory_space<vmem>>, %arg2: memref<128x128xbf16, #tpu.memory_space<vmem>>, %arg3: memref<1x128xf32, #tpu.memory_space<vmem>>, %arg4: memref<128x128xbf16, #tpu.memory_space<vmem>>) attributes {dimension_semantics = [#tpu.dimension_semantics<parallel>], iteration_bounds = array<i64: 1>, scalar_prefetch = 0 : i64, scratch_operands = 0 : i64, tpu.core_type = #tpu.core_type<tc>, window_params = [{transform_indices = @transform_0, window_bounds = array<i64: 128, 128>}, {pipeline_mode = #tpu.pipeline_mode<synchronous>, transform_indices = @transform_1, window_bounds = array<i64: 128, 128>}, {pipeline_mode = #tpu.pipeline_mode<synchronous>, transform_indices = @transform_2, window_bounds = array<i64: 1, 128>}, {transform_indices = @transform_3, window_bounds = array<i64: 128, 128>}]} {
    %c0 = arith.constant 0 : index
    %c0_0 = arith.constant 0 : index
    %0 = vector.load %arg1[%c0, %c0_0] : memref<128x128xbf16, #tpu.memory_space<vmem>>, vector<128x128xbf16>
    %c0_1 = arith.constant 0 : index
    %c0_2 = arith.constant 0 : index
    %1 = vector.load %arg2[%c0_1, %c0_2] : memref<128x128xbf16, #tpu.memory_space<vmem>>, vector<128x128xbf16>
    %cst = arith.constant dense<0.000000e+00> : vector<128x128xf32>
    %2 = tpu.matmul %0, %1, %cst {dimension_numbers = #tpu.dot_dimension_numbers<[1], [0], [0], [1], [0, 0, 1, 1], [], []>} : vector<128x128xbf16>, vector<128x128xbf16>, vector<128x128xf32> -> vector<128x128xf32>
    %c0_3 = arith.constant 0 : index
    %c0_4 = arith.constant 0 : index
    %3 = vector.load %arg3[%c0_3, %c0_4] : memref<1x128xf32, #tpu.memory_space<vmem>>, vector<1x128xf32>
    %4 = vector.broadcast %3 : vector<1x128xf32> to vector<128x128xf32>
    %5 = arith.addf %2, %4 : vector<128x128xf32>
    %6 = arith.truncf %5 : vector<128x128xf32> to vector<128x128xbf16>
    %c0_5 = arith.constant 0 : index
    %c0_6 = arith.constant 0 : index
    %7 = vector.load %arg4[%c0_5, %c0_6] : memref<128x128xbf16, #tpu.memory_space<vmem>>, vector<128x128xbf16>
    tpu.vector_store %arg4[%c0_5, %c0_6], %6 {strides = array<i32>} : memref<128x128xbf16, #tpu.memory_space<vmem>>, vector<128x128xbf16>,
    return
  }
  func.func @transform_0(%arg0: i32) -> (i32, i32) {
    %c0_i32 = arith.constant 0 : i32
    %c0_i32_0 = arith.constant 0 : i32
    return %arg0, %c0_i32 : i32, i32
  }
  func.func @transform_1(%arg0: i32) -> (i32, i32) {
    %c0_i32 = arith.constant 0 : i32
    %c0_i32_0 = arith.constant 0 : i32
    %c0_i32_1 = arith.constant 0 : i32
    return %c0_i32, %c0_i32_0 : i32, i32
  }
  func.func @transform_2(%arg0: i32) -> (i32, i32) {
    %c0_i32 = arith.constant 0 : i32
    %c0_i32_0 = arith.constant 0 : i32
    %c0_i32_1 = arith.constant 0 : i32
    return %c0_i32, %c0_i32_0 : i32, i32
  }
  func.func @transform_3(%arg0: i32) -> (i32, i32) {
    %c0_i32 = arith.constant 0 : i32
    %c0_i32_0 = arith.constant 0 : i32
    return %arg0, %c0_i32 : i32, i32
  }
}

module attributes {stable_mosaic.version = 11 : i64} {
  func.func @_nms_kernel(%arg0: i32, %arg1: memref<1xi32, #tpu.memory_space<smem>>, %arg2: memref<16x512xbf16, #tpu.memory_space<vmem>>, %arg3: memref<1x512xf32, #tpu.memory_space<vmem>>, %arg4: memref<1x512xf32, #tpu.memory_space<vmem>>) attributes {dimension_semantics = [#tpu.dimension_semantics<arbitrary>], iteration_bounds = array<i64: 32>, scalar_prefetch = 1 : i64, scratch_operands = 0 : i64, tpu.core_type = #tpu.core_type<tc>, window_params = [{transform_indices = @transform_0, window_bounds = array<i64: 16, 512>}, {pipeline_mode = #tpu.pipeline_mode<synchronous>, transform_indices = @transform_1, window_bounds = array<i64: 1, 512>}, {pipeline_mode = #tpu.pipeline_mode<synchronous>, transform_indices = @transform_2, window_bounds = array<i64: 1, 512>}]} {
    %c0_i32 = arith.constant 0 : i32
    %0 = arith.cmpi eq, %arg0, %c0_i32 : i32
    %1 = arith.extui %0 : i1 to i32
    %c0_i32_0 = arith.constant 0 : i32
    %2 = arith.cmpi ne, %1, %c0_i32_0 : i32
    scf.if %2 {
      %c0_2 = arith.constant 0 : index
      %c0_3 = arith.constant 0 : index
      %8 = vector.load %arg3[%c0_2, %c0_3] : memref<1x512xf32, #tpu.memory_space<vmem>>, vector<1x512xf32>
      %c0_4 = arith.constant 0 : index
      %c0_5 = arith.constant 0 : index
      %9 = vector.load %arg4[%c0_4, %c0_5] : memref<1x512xf32, #tpu.memory_space<vmem>>, vector<1x512xf32>
      tpu.vector_store %arg4[%c0_4, %c0_5], %8 {strides = array<i32>} : memref<1x512xf32, #tpu.memory_space<vmem>>, vector<1x512xf32>,
    } else {
    }
    %c16_i32 = arith.constant 16 : i32
    %3 = arith.muli %arg0, %c16_i32 : i32
    %c0 = arith.constant 0 : index
    %4 = memref.load %arg1[%c0] : memref<1xi32, #tpu.memory_space<smem>>
    %5 = arith.cmpi slt, %3, %4 : i32
    %6 = arith.extui %5 : i1 to i32
    %c0_i32_1 = arith.constant 0 : i32
    %7 = arith.cmpi ne, %6, %c0_i32_1 : i32
    scf.if %7 {
      %c0_2 = arith.constant 0 : index
      %c0_3 = arith.constant 0 : index
      %8 = vector.load %arg2[%c0_2, %c0_3] : memref<16x512xbf16, #tpu.memory_space<vmem>>, vector<16x512xbf16>
      %9 = arith.extf %8 : vector<16x512xbf16> to vector<16x512xf32>
      %10 = tpu.iota {dimensions = array<i32: 1>} : vector<1x512xi32>
      %11 = vector.broadcast %3 : i32 to vector<1x512xi32>
      %12 = arith.subi %10, %11 : vector<1x512xi32>
      %c0_4 = arith.constant 0 : index
      %c0_5 = arith.constant 0 : index
      %13 = vector.load %arg4[%c0_4, %c0_5] : memref<1x512xf32, #tpu.memory_space<vmem>>, vector<1x512xf32>
      %c0_i32_6 = arith.constant 0 : i32
      %14 = vector.broadcast %c0_i32_6 : i32 to vector<1x512xi32>
      %15 = arith.cmpi eq, %12, %14 : vector<1x512xi32>
      %cst = arith.constant 0.000000e+00 : f32
      %16 = vector.broadcast %cst : f32 to vector<1x512xf32>
      %17 = arith.select %15, %13, %16 : vector<1x512xi1>, vector<1x512xf32>
      %cst_7 = arith.constant dense<0xFF800000> : vector<1xf32>
      %18 = vector.multi_reduction <maximumf>, %17, %cst_7 [1] : vector<1x512xf32> to vector<1xf32>
      %19 = vector.shape_cast %18 : vector<1xf32> to vector<1x1xf32>
      %20 = vector.extract_strided_slice %9 {offsets = [0, 0], sizes = [1, 512], strides = [1, 1]} : vector<16x512xf32> to vector<1x512xf32>
      %21 = vector.broadcast %19 : vector<1x1xf32> to vector<1x512xf32>
      %22 = arith.mulf %20, %21 : vector<1x512xf32>
      %cst_8 = arith.constant 1.000000e+00 : f32
      %23 = vector.broadcast %cst_8 : f32 to vector<1x512xf32>
      %24 = arith.subf %23, %22 : vector<1x512xf32>
      %25 = arith.mulf %13, %24 : vector<1x512xf32>
      %c1_i32 = arith.constant 1 : i32
      %26 = vector.broadcast %c1_i32 : i32 to vector<1x512xi32>
      %27 = arith.cmpi eq, %12, %26 : vector<1x512xi32>
      %cst_9 = arith.constant 0.000000e+00 : f32
      %28 = vector.broadcast %cst_9 : f32 to vector<1x512xf32>
      %29 = arith.select %27, %25, %28 : vector<1x512xi1>, vector<1x512xf32>
      %cst_10 = arith.constant dense<0xFF800000> : vector<1xf32>
      %30 = vector.multi_reduction <maximumf>, %29, %cst_10 [1] : vector<1x512xf32> to vector<1xf32>
      %31 = vector.shape_cast %30 : vector<1xf32> to vector<1x1xf32>
      %32 = vector.extract_strided_slice %9 {offsets = [1, 0], sizes = [1, 512], strides = [1, 1]} : vector<16x512xf32> to vector<1x512xf32>
      %33 = vector.broadcast %31 : vector<1x1xf32> to vector<1x512xf32>
      %34 = arith.mulf %32, %33 : vector<1x512xf32>
      %cst_11 = arith.constant 1.000000e+00 : f32
      %35 = vector.broadcast %cst_11 : f32 to vector<1x512xf32>
      %36 = arith.subf %35, %34 : vector<1x512xf32>
      %37 = arith.mulf %25, %36 : vector<1x512xf32>
      %c2_i32 = arith.constant 2 : i32
      %38 = vector.broadcast %c2_i32 : i32 to vector<1x512xi32>
      %39 = arith.cmpi eq, %12, %38 : vector<1x512xi32>
      %cst_12 = arith.constant 0.000000e+00 : f32
      %40 = vector.broadcast %cst_12 : f32 to vector<1x512xf32>
      %41 = arith.select %39, %37, %40 : vector<1x512xi1>, vector<1x512xf32>
      %cst_13 = arith.constant dense<0xFF800000> : vector<1xf32>
      %42 = vector.multi_reduction <maximumf>, %41, %cst_13 [1] : vector<1x512xf32> to vector<1xf32>
      %43 = vector.shape_cast %42 : vector<1xf32> to vector<1x1xf32>
      %44 = vector.extract_strided_slice %9 {offsets = [2, 0], sizes = [1, 512], strides = [1, 1]} : vector<16x512xf32> to vector<1x512xf32>
      %45 = vector.broadcast %43 : vector<1x1xf32> to vector<1x512xf32>
      %46 = arith.mulf %44, %45 : vector<1x512xf32>
      %cst_14 = arith.constant 1.000000e+00 : f32
      %47 = vector.broadcast %cst_14 : f32 to vector<1x512xf32>
      %48 = arith.subf %47, %46 : vector<1x512xf32>
      %49 = arith.mulf %37, %48 : vector<1x512xf32>
      %c3_i32 = arith.constant 3 : i32
      %50 = vector.broadcast %c3_i32 : i32 to vector<1x512xi32>
      %51 = arith.cmpi eq, %12, %50 : vector<1x512xi32>
      %cst_15 = arith.constant 0.000000e+00 : f32
      %52 = vector.broadcast %cst_15 : f32 to vector<1x512xf32>
      %53 = arith.select %51, %49, %52 : vector<1x512xi1>, vector<1x512xf32>
      %cst_16 = arith.constant dense<0xFF800000> : vector<1xf32>
      %54 = vector.multi_reduction <maximumf>, %53, %cst_16 [1] : vector<1x512xf32> to vector<1xf32>
      %55 = vector.shape_cast %54 : vector<1xf32> to vector<1x1xf32>
      %56 = vector.extract_strided_slice %9 {offsets = [3, 0], sizes = [1, 512], strides = [1, 1]} : vector<16x512xf32> to vector<1x512xf32>
      %57 = vector.broadcast %55 : vector<1x1xf32> to vector<1x512xf32>
      %58 = arith.mulf %56, %57 : vector<1x512xf32>
      %cst_17 = arith.constant 1.000000e+00 : f32
      %59 = vector.broadcast %cst_17 : f32 to vector<1x512xf32>
      %60 = arith.subf %59, %58 : vector<1x512xf32>
      %61 = arith.mulf %49, %60 : vector<1x512xf32>
      %c4_i32 = arith.constant 4 : i32
      %62 = vector.broadcast %c4_i32 : i32 to vector<1x512xi32>
      %63 = arith.cmpi eq, %12, %62 : vector<1x512xi32>
      %cst_18 = arith.constant 0.000000e+00 : f32
      %64 = vector.broadcast %cst_18 : f32 to vector<1x512xf32>
      %65 = arith.select %63, %61, %64 : vector<1x512xi1>, vector<1x512xf32>
      %cst_19 = arith.constant dense<0xFF800000> : vector<1xf32>
      %66 = vector.multi_reduction <maximumf>, %65, %cst_19 [1] : vector<1x512xf32> to vector<1xf32>
      %67 = vector.shape_cast %66 : vector<1xf32> to vector<1x1xf32>
      %68 = vector.extract_strided_slice %9 {offsets = [4, 0], sizes = [1, 512], strides = [1, 1]} : vector<16x512xf32> to vector<1x512xf32>
      %69 = vector.broadcast %67 : vector<1x1xf32> to vector<1x512xf32>
      %70 = arith.mulf %68, %69 : vector<1x512xf32>
      %cst_20 = arith.constant 1.000000e+00 : f32
      %71 = vector.broadcast %cst_20 : f32 to vector<1x512xf32>
      %72 = arith.subf %71, %70 : vector<1x512xf32>
      %73 = arith.mulf %61, %72 : vector<1x512xf32>
      %c5_i32 = arith.constant 5 : i32
      %74 = vector.broadcast %c5_i32 : i32 to vector<1x512xi32>
      %75 = arith.cmpi eq, %12, %74 : vector<1x512xi32>
      %cst_21 = arith.constant 0.000000e+00 : f32
      %76 = vector.broadcast %cst_21 : f32 to vector<1x512xf32>
      %77 = arith.select %75, %73, %76 : vector<1x512xi1>, vector<1x512xf32>
      %cst_22 = arith.constant dense<0xFF800000> : vector<1xf32>
      %78 = vector.multi_reduction <maximumf>, %77, %cst_22 [1] : vector<1x512xf32> to vector<1xf32>
      %79 = vector.shape_cast %78 : vector<1xf32> to vector<1x1xf32>
      %80 = vector.extract_strided_slice %9 {offsets = [5, 0], sizes = [1, 512], strides = [1, 1]} : vector<16x512xf32> to vector<1x512xf32>
      %81 = vector.broadcast %79 : vector<1x1xf32> to vector<1x512xf32>
      %82 = arith.mulf %80, %81 : vector<1x512xf32>
      %cst_23 = arith.constant 1.000000e+00 : f32
      %83 = vector.broadcast %cst_23 : f32 to vector<1x512xf32>
      %84 = arith.subf %83, %82 : vector<1x512xf32>
      %85 = arith.mulf %73, %84 : vector<1x512xf32>
      %c6_i32 = arith.constant 6 : i32
      %86 = vector.broadcast %c6_i32 : i32 to vector<1x512xi32>
      %87 = arith.cmpi eq, %12, %86 : vector<1x512xi32>
      %cst_24 = arith.constant 0.000000e+00 : f32
      %88 = vector.broadcast %cst_24 : f32 to vector<1x512xf32>
      %89 = arith.select %87, %85, %88 : vector<1x512xi1>, vector<1x512xf32>
      %cst_25 = arith.constant dense<0xFF800000> : vector<1xf32>
      %90 = vector.multi_reduction <maximumf>, %89, %cst_25 [1] : vector<1x512xf32> to vector<1xf32>
      %91 = vector.shape_cast %90 : vector<1xf32> to vector<1x1xf32>
      %92 = vector.extract_strided_slice %9 {offsets = [6, 0], sizes = [1, 512], strides = [1, 1]} : vector<16x512xf32> to vector<1x512xf32>
      %93 = vector.broadcast %91 : vector<1x1xf32> to vector<1x512xf32>
      %94 = arith.mulf %92, %93 : vector<1x512xf32>
      %cst_26 = arith.constant 1.000000e+00 : f32
      %95 = vector.broadcast %cst_26 : f32 to vector<1x512xf32>
      %96 = arith.subf %95, %94 : vector<1x512xf32>
      %97 = arith.mulf %85, %96 : vector<1x512xf32>
      %c7_i32 = arith.constant 7 : i32
      %98 = vector.broadcast %c7_i32 : i32 to vector<1x512xi32>
      %99 = arith.cmpi eq, %12, %98 : vector<1x512xi32>
      %cst_27 = arith.constant 0.000000e+00 : f32
      %100 = vector.broadcast %cst_27 : f32 to vector<1x512xf32>
      %101 = arith.select %99, %97, %100 : vector<1x512xi1>, vector<1x512xf32>
      %cst_28 = arith.constant dense<0xFF800000> : vector<1xf32>
      %102 = vector.multi_reduction <maximumf>, %101, %cst_28 [1] : vector<1x512xf32> to vector<1xf32>
      %103 = vector.shape_cast %102 : vector<1xf32> to vector<1x1xf32>
      %104 = vector.extract_strided_slice %9 {offsets = [7, 0], sizes = [1, 512], strides = [1, 1]} : vector<16x512xf32> to vector<1x512xf32>
      %105 = vector.broadcast %103 : vector<1x1xf32> to vector<1x512xf32>
      %106 = arith.mulf %104, %105 : vector<1x512xf32>
      %cst_29 = arith.constant 1.000000e+00 : f32
      %107 = vector.broadcast %cst_29 : f32 to vector<1x512xf32>
      %108 = arith.subf %107, %106 : vector<1x512xf32>
      %109 = arith.mulf %97, %108 : vector<1x512xf32>
      %c8_i32 = arith.constant 8 : i32
      %110 = vector.broadcast %c8_i32 : i32 to vector<1x512xi32>
      %111 = arith.cmpi eq, %12, %110 : vector<1x512xi32>
      %cst_30 = arith.constant 0.000000e+00 : f32
      %112 = vector.broadcast %cst_30 : f32 to vector<1x512xf32>
      %113 = arith.select %111, %109, %112 : vector<1x512xi1>, vector<1x512xf32>
      %cst_31 = arith.constant dense<0xFF800000> : vector<1xf32>
      %114 = vector.multi_reduction <maximumf>, %113, %cst_31 [1] : vector<1x512xf32> to vector<1xf32>
      %115 = vector.shape_cast %114 : vector<1xf32> to vector<1x1xf32>
      %116 = vector.extract_strided_slice %9 {offsets = [8, 0], sizes = [1, 512], strides = [1, 1]} : vector<16x512xf32> to vector<1x512xf32>
      %117 = vector.broadcast %115 : vector<1x1xf32> to vector<1x512xf32>
      %118 = arith.mulf %116, %117 : vector<1x512xf32>
      %cst_32 = arith.constant 1.000000e+00 : f32
      %119 = vector.broadcast %cst_32 : f32 to vector<1x512xf32>
      %120 = arith.subf %119, %118 : vector<1x512xf32>
      %121 = arith.mulf %109, %120 : vector<1x512xf32>
      %c9_i32 = arith.constant 9 : i32
      %122 = vector.broadcast %c9_i32 : i32 to vector<1x512xi32>
      %123 = arith.cmpi eq, %12, %122 : vector<1x512xi32>
      %cst_33 = arith.constant 0.000000e+00 : f32
      %124 = vector.broadcast %cst_33 : f32 to vector<1x512xf32>
      %125 = arith.select %123, %121, %124 : vector<1x512xi1>, vector<1x512xf32>
      %cst_34 = arith.constant dense<0xFF800000> : vector<1xf32>
      %126 = vector.multi_reduction <maximumf>, %125, %cst_34 [1] : vector<1x512xf32> to vector<1xf32>
      %127 = vector.shape_cast %126 : vector<1xf32> to vector<1x1xf32>
      %128 = vector.extract_strided_slice %9 {offsets = [9, 0], sizes = [1, 512], strides = [1, 1]} : vector<16x512xf32> to vector<1x512xf32>
      %129 = vector.broadcast %127 : vector<1x1xf32> to vector<1x512xf32>
      %130 = arith.mulf %128, %129 : vector<1x512xf32>
      %cst_35 = arith.constant 1.000000e+00 : f32
      %131 = vector.broadcast %cst_35 : f32 to vector<1x512xf32>
      %132 = arith.subf %131, %130 : vector<1x512xf32>
      %133 = arith.mulf %121, %132 : vector<1x512xf32>
      %c10_i32 = arith.constant 10 : i32
      %134 = vector.broadcast %c10_i32 : i32 to vector<1x512xi32>
      %135 = arith.cmpi eq, %12, %134 : vector<1x512xi32>
      %cst_36 = arith.constant 0.000000e+00 : f32
      %136 = vector.broadcast %cst_36 : f32 to vector<1x512xf32>
      %137 = arith.select %135, %133, %136 : vector<1x512xi1>, vector<1x512xf32>
      %cst_37 = arith.constant dense<0xFF800000> : vector<1xf32>
      %138 = vector.multi_reduction <maximumf>, %137, %cst_37 [1] : vector<1x512xf32> to vector<1xf32>
      %139 = vector.shape_cast %138 : vector<1xf32> to vector<1x1xf32>
      %140 = vector.extract_strided_slice %9 {offsets = [10, 0], sizes = [1, 512], strides = [1, 1]} : vector<16x512xf32> to vector<1x512xf32>
      %141 = vector.broadcast %139 : vector<1x1xf32> to vector<1x512xf32>
      %142 = arith.mulf %140, %141 : vector<1x512xf32>
      %cst_38 = arith.constant 1.000000e+00 : f32
      %143 = vector.broadcast %cst_38 : f32 to vector<1x512xf32>
      %144 = arith.subf %143, %142 : vector<1x512xf32>
      %145 = arith.mulf %133, %144 : vector<1x512xf32>
      %c11_i32 = arith.constant 11 : i32
      %146 = vector.broadcast %c11_i32 : i32 to vector<1x512xi32>
      %147 = arith.cmpi eq, %12, %146 : vector<1x512xi32>
      %cst_39 = arith.constant 0.000000e+00 : f32
      %148 = vector.broadcast %cst_39 : f32 to vector<1x512xf32>
      %149 = arith.select %147, %145, %148 : vector<1x512xi1>, vector<1x512xf32>
      %cst_40 = arith.constant dense<0xFF800000> : vector<1xf32>
      %150 = vector.multi_reduction <maximumf>, %149, %cst_40 [1] : vector<1x512xf32> to vector<1xf32>
      %151 = vector.shape_cast %150 : vector<1xf32> to vector<1x1xf32>
      %152 = vector.extract_strided_slice %9 {offsets = [11, 0], sizes = [1, 512], strides = [1, 1]} : vector<16x512xf32> to vector<1x512xf32>
      %153 = vector.broadcast %151 : vector<1x1xf32> to vector<1x512xf32>
      %154 = arith.mulf %152, %153 : vector<1x512xf32>
      %cst_41 = arith.constant 1.000000e+00 : f32
      %155 = vector.broadcast %cst_41 : f32 to vector<1x512xf32>
      %156 = arith.subf %155, %154 : vector<1x512xf32>
      %157 = arith.mulf %145, %156 : vector<1x512xf32>
      %c12_i32 = arith.constant 12 : i32
      %158 = vector.broadcast %c12_i32 : i32 to vector<1x512xi32>
      %159 = arith.cmpi eq, %12, %158 : vector<1x512xi32>
      %cst_42 = arith.constant 0.000000e+00 : f32
      %160 = vector.broadcast %cst_42 : f32 to vector<1x512xf32>
      %161 = arith.select %159, %157, %160 : vector<1x512xi1>, vector<1x512xf32>
      %cst_43 = arith.constant dense<0xFF800000> : vector<1xf32>
      %162 = vector.multi_reduction <maximumf>, %161, %cst_43 [1] : vector<1x512xf32> to vector<1xf32>
      %163 = vector.shape_cast %162 : vector<1xf32> to vector<1x1xf32>
      %164 = vector.extract_strided_slice %9 {offsets = [12, 0], sizes = [1, 512], strides = [1, 1]} : vector<16x512xf32> to vector<1x512xf32>
      %165 = vector.broadcast %163 : vector<1x1xf32> to vector<1x512xf32>
      %166 = arith.mulf %164, %165 : vector<1x512xf32>
      %cst_44 = arith.constant 1.000000e+00 : f32
      %167 = vector.broadcast %cst_44 : f32 to vector<1x512xf32>
      %168 = arith.subf %167, %166 : vector<1x512xf32>
      %169 = arith.mulf %157, %168 : vector<1x512xf32>
      %c13_i32 = arith.constant 13 : i32
      %170 = vector.broadcast %c13_i32 : i32 to vector<1x512xi32>
      %171 = arith.cmpi eq, %12, %170 : vector<1x512xi32>
      %cst_45 = arith.constant 0.000000e+00 : f32
      %172 = vector.broadcast %cst_45 : f32 to vector<1x512xf32>
      %173 = arith.select %171, %169, %172 : vector<1x512xi1>, vector<1x512xf32>
      %cst_46 = arith.constant dense<0xFF800000> : vector<1xf32>
      %174 = vector.multi_reduction <maximumf>, %173, %cst_46 [1] : vector<1x512xf32> to vector<1xf32>
      %175 = vector.shape_cast %174 : vector<1xf32> to vector<1x1xf32>
      %176 = vector.extract_strided_slice %9 {offsets = [13, 0], sizes = [1, 512], strides = [1, 1]} : vector<16x512xf32> to vector<1x512xf32>
      %177 = vector.broadcast %175 : vector<1x1xf32> to vector<1x512xf32>
      %178 = arith.mulf %176, %177 : vector<1x512xf32>
      %cst_47 = arith.constant 1.000000e+00 : f32
      %179 = vector.broadcast %cst_47 : f32 to vector<1x512xf32>
      %180 = arith.subf %179, %178 : vector<1x512xf32>
      %181 = arith.mulf %169, %180 : vector<1x512xf32>
      %c14_i32 = arith.constant 14 : i32
      %182 = vector.broadcast %c14_i32 : i32 to vector<1x512xi32>
      %183 = arith.cmpi eq, %12, %182 : vector<1x512xi32>
      %cst_48 = arith.constant 0.000000e+00 : f32
      %184 = vector.broadcast %cst_48 : f32 to vector<1x512xf32>
      %185 = arith.select %183, %181, %184 : vector<1x512xi1>, vector<1x512xf32>
      %cst_49 = arith.constant dense<0xFF800000> : vector<1xf32>
      %186 = vector.multi_reduction <maximumf>, %185, %cst_49 [1] : vector<1x512xf32> to vector<1xf32>
      %187 = vector.shape_cast %186 : vector<1xf32> to vector<1x1xf32>
      %188 = vector.extract_strided_slice %9 {offsets = [14, 0], sizes = [1, 512], strides = [1, 1]} : vector<16x512xf32> to vector<1x512xf32>
      %189 = vector.broadcast %187 : vector<1x1xf32> to vector<1x512xf32>
      %190 = arith.mulf %188, %189 : vector<1x512xf32>
      %cst_50 = arith.constant 1.000000e+00 : f32
      %191 = vector.broadcast %cst_50 : f32 to vector<1x512xf32>
      %192 = arith.subf %191, %190 : vector<1x512xf32>
      %193 = arith.mulf %181, %192 : vector<1x512xf32>
      %c15_i32 = arith.constant 15 : i32
      %194 = vector.broadcast %c15_i32 : i32 to vector<1x512xi32>
      %195 = arith.cmpi eq, %12, %194 : vector<1x512xi32>
      %cst_51 = arith.constant 0.000000e+00 : f32
      %196 = vector.broadcast %cst_51 : f32 to vector<1x512xf32>
      %197 = arith.select %195, %193, %196 : vector<1x512xi1>, vector<1x512xf32>
      %cst_52 = arith.constant dense<0xFF800000> : vector<1xf32>
      %198 = vector.multi_reduction <maximumf>, %197, %cst_52 [1] : vector<1x512xf32> to vector<1xf32>
      %199 = vector.shape_cast %198 : vector<1xf32> to vector<1x1xf32>
      %200 = vector.extract_strided_slice %9 {offsets = [15, 0], sizes = [1, 512], strides = [1, 1]} : vector<16x512xf32> to vector<1x512xf32>
      %201 = vector.broadcast %199 : vector<1x1xf32> to vector<1x512xf32>
      %202 = arith.mulf %200, %201 : vector<1x512xf32>
      %cst_53 = arith.constant 1.000000e+00 : f32
      %203 = vector.broadcast %cst_53 : f32 to vector<1x512xf32>
      %204 = arith.subf %203, %202 : vector<1x512xf32>
      %205 = arith.mulf %193, %204 : vector<1x512xf32>
      %c0_54 = arith.constant 0 : index
      %c0_55 = arith.constant 0 : index
      %206 = vector.load %arg4[%c0_54, %c0_55] : memref<1x512xf32, #tpu.memory_space<vmem>>, vector<1x512xf32>
      tpu.vector_store %arg4[%c0_54, %c0_55], %205 {strides = array<i32>} : memref<1x512xf32, #tpu.memory_space<vmem>>, vector<1x512xf32>,
    } else {
    }
    return
  }
  func.func @transform_0(%arg0: i32, %arg1: memref<1xi32, #tpu.memory_space<smem>>) -> (i32, i32) {
    %c0_i32 = arith.constant 0 : i32
    %c0_i32_0 = arith.constant 0 : i32
    return %arg0, %c0_i32 : i32, i32
  }
  func.func @transform_1(%arg0: i32, %arg1: memref<1xi32, #tpu.memory_space<smem>>) -> (i32, i32) {
    %c0_i32 = arith.constant 0 : i32
    %c0_i32_0 = arith.constant 0 : i32
    %c0_i32_1 = arith.constant 0 : i32
    return %c0_i32, %c0_i32_0 : i32, i32
  }
  func.func @transform_2(%arg0: i32, %arg1: memref<1xi32, #tpu.memory_space<smem>>) -> (i32, i32) {
    %c0_i32 = arith.constant 0 : i32
    %c0_i32_0 = arith.constant 0 : i32
    %c0_i32_1 = arith.constant 0 : i32
    return %c0_i32, %c0_i32_0 : i32, i32
  }
}

module attributes {stable_mosaic.version = 11 : i64} {
  func.func @_iou_mask_kernel(%arg0: i32, %arg1: i32, %arg2: memref<256x128xf32, #tpu.memory_space<vmem>>, %arg3: memref<8x512xf32, #tpu.memory_space<vmem>>, %arg4: memref<256x512xbf16, #tpu.memory_space<vmem>>) attributes {dimension_semantics = [#tpu.dimension_semantics<parallel>, #tpu.dimension_semantics<parallel>], iteration_bounds = array<i64: 2, 1>, scalar_prefetch = 0 : i64, scratch_operands = 0 : i64, tpu.core_type = #tpu.core_type<tc>, window_params = [{transform_indices = @transform_0, window_bounds = array<i64: 256, 128>}, {transform_indices = @transform_1, window_bounds = array<i64: 8, 512>}, {transform_indices = @transform_2, window_bounds = array<i64: 256, 512>}]} {
    %c0 = arith.constant 0 : index
    %c0_0 = arith.constant 0 : index
    %0 = vector.load %arg2[%c0, %c0_0] : memref<256x128xf32, #tpu.memory_space<vmem>>, vector<256x128xf32>
    %c0_1 = arith.constant 0 : index
    %c0_2 = arith.constant 0 : index
    %1 = vector.load %arg3[%c0_1, %c0_2] : memref<8x512xf32, #tpu.memory_space<vmem>>, vector<8x512xf32>
    %2 = vector.extract_strided_slice %0 {offsets = [0, 0], sizes = [256, 1], strides = [1, 1]} : vector<256x128xf32> to vector<256x1xf32>
    %3 = vector.extract_strided_slice %0 {offsets = [0, 1], sizes = [256, 1], strides = [1, 1]} : vector<256x128xf32> to vector<256x1xf32>
    %4 = vector.extract_strided_slice %0 {offsets = [0, 2], sizes = [256, 1], strides = [1, 1]} : vector<256x128xf32> to vector<256x1xf32>
    %5 = vector.extract_strided_slice %0 {offsets = [0, 3], sizes = [256, 1], strides = [1, 1]} : vector<256x128xf32> to vector<256x1xf32>
    %6 = vector.extract_strided_slice %1 {offsets = [0, 0], sizes = [1, 512], strides = [1, 1]} : vector<8x512xf32> to vector<1x512xf32>
    %7 = vector.extract_strided_slice %1 {offsets = [1, 0], sizes = [1, 512], strides = [1, 1]} : vector<8x512xf32> to vector<1x512xf32>
    %8 = vector.extract_strided_slice %1 {offsets = [2, 0], sizes = [1, 512], strides = [1, 1]} : vector<8x512xf32> to vector<1x512xf32>
    %9 = vector.extract_strided_slice %1 {offsets = [3, 0], sizes = [1, 512], strides = [1, 1]} : vector<8x512xf32> to vector<1x512xf32>
    %10 = vector.broadcast %4 : vector<256x1xf32> to vector<256x512xf32>
    %11 = vector.broadcast %8 : vector<1x512xf32> to vector<256x512xf32>
    %12 = arith.minimumf %10, %11 : vector<256x512xf32>
    %13 = vector.broadcast %2 : vector<256x1xf32> to vector<256x512xf32>
    %14 = vector.broadcast %6 : vector<1x512xf32> to vector<256x512xf32>
    %15 = arith.maximumf %13, %14 : vector<256x512xf32>
    %16 = arith.subf %12, %15 : vector<256x512xf32>
    %cst = arith.constant 0.000000e+00 : f32
    %17 = vector.broadcast %cst : f32 to vector<256x512xf32>
    %18 = arith.maximumf %16, %17 : vector<256x512xf32>
    %19 = vector.broadcast %5 : vector<256x1xf32> to vector<256x512xf32>
    %20 = vector.broadcast %9 : vector<1x512xf32> to vector<256x512xf32>
    %21 = arith.minimumf %19, %20 : vector<256x512xf32>
    %22 = vector.broadcast %3 : vector<256x1xf32> to vector<256x512xf32>
    %23 = vector.broadcast %7 : vector<1x512xf32> to vector<256x512xf32>
    %24 = arith.maximumf %22, %23 : vector<256x512xf32>
    %25 = arith.subf %21, %24 : vector<256x512xf32>
    %cst_3 = arith.constant 0.000000e+00 : f32
    %26 = vector.broadcast %cst_3 : f32 to vector<256x512xf32>
    %27 = arith.maximumf %25, %26 : vector<256x512xf32>
    %28 = arith.mulf %18, %27 : vector<256x512xf32>
    %29 = arith.subf %4, %2 : vector<256x1xf32>
    %cst_4 = arith.constant 0.000000e+00 : f32
    %30 = vector.broadcast %cst_4 : f32 to vector<256x1xf32>
    %31 = arith.maximumf %29, %30 : vector<256x1xf32>
    %32 = arith.subf %5, %3 : vector<256x1xf32>
    %cst_5 = arith.constant 0.000000e+00 : f32
    %33 = vector.broadcast %cst_5 : f32 to vector<256x1xf32>
    %34 = arith.maximumf %32, %33 : vector<256x1xf32>
    %35 = arith.mulf %31, %34 : vector<256x1xf32>
    %36 = arith.subf %8, %6 : vector<1x512xf32>
    %cst_6 = arith.constant 0.000000e+00 : f32
    %37 = vector.broadcast %cst_6 : f32 to vector<1x512xf32>
    %38 = arith.maximumf %36, %37 : vector<1x512xf32>
    %39 = arith.subf %9, %7 : vector<1x512xf32>
    %cst_7 = arith.constant 0.000000e+00 : f32
    %40 = vector.broadcast %cst_7 : f32 to vector<1x512xf32>
    %41 = arith.maximumf %39, %40 : vector<1x512xf32>
    %42 = arith.mulf %38, %41 : vector<1x512xf32>
    %43 = vector.broadcast %35 : vector<256x1xf32> to vector<256x512xf32>
    %44 = vector.broadcast %42 : vector<1x512xf32> to vector<256x512xf32>
    %45 = arith.addf %43, %44 : vector<256x512xf32>
    %46 = arith.subf %45, %28 : vector<256x512xf32>
    %cst_8 = arith.constant 1.000000e-07 : f32
    %47 = vector.broadcast %cst_8 : f32 to vector<256x512xf32>
    %48 = arith.addf %46, %47 : vector<256x512xf32>
    %49 = arith.divf %28, %48 : vector<256x512xf32>
    %c256_i32 = arith.constant 256 : i32
    %50 = arith.muli %arg0, %c256_i32 : i32
    %51 = tpu.iota {dimensions = array<i32: 0>} : vector<256x512xi32>
    %52 = vector.broadcast %50 : i32 to vector<256x512xi32>
    %53 = arith.addi %52, %51 : vector<256x512xi32>
    %c512_i32 = arith.constant 512 : i32
    %54 = arith.muli %arg1, %c512_i32 : i32
    %55 = tpu.iota {dimensions = array<i32: 1>} : vector<256x512xi32>
    %56 = vector.broadcast %54 : i32 to vector<256x512xi32>
    %57 = arith.addi %56, %55 : vector<256x512xi32>
    %cst_9 = arith.constant 5.000000e-01 : f32
    %58 = vector.broadcast %cst_9 : f32 to vector<256x512xf32>
    %59 = arith.cmpf ogt, %49, %58 : vector<256x512xf32>
    %60 = arith.cmpi sgt, %57, %53 : vector<256x512xi32>
    %61 = arith.andi %59, %60 : vector<256x512xi1>
    %cst_10 = arith.constant 1.000000e+00 : f32
    %cst_11 = arith.constant 0.000000e+00 : f32
    %62 = vector.broadcast %cst_10 : f32 to vector<256x512xf32>
    %63 = vector.broadcast %cst_11 : f32 to vector<256x512xf32>
    %64 = arith.select %61, %62, %63 : vector<256x512xi1>, vector<256x512xf32>
    %65 = arith.truncf %64 : vector<256x512xf32> to vector<256x512xbf16>
    %c0_12 = arith.constant 0 : index
    %c0_13 = arith.constant 0 : index
    %66 = vector.load %arg4[%c0_12, %c0_13] : memref<256x512xbf16, #tpu.memory_space<vmem>>, vector<256x512xbf16>
    tpu.vector_store %arg4[%c0_12, %c0_13], %65 {strides = array<i32>} : memref<256x512xbf16, #tpu.memory_space<vmem>>, vector<256x512xbf16>,
    return
  }
  func.func @transform_0(%arg0: i32, %arg1: i32) -> (i32, i32) {
    %c0_i32 = arith.constant 0 : i32
    %c0_i32_0 = arith.constant 0 : i32
    return %arg0, %c0_i32 : i32, i32
  }
  func.func @transform_1(%arg0: i32, %arg1: i32) -> (i32, i32) {
    %c0_i32 = arith.constant 0 : i32
    %c0_i32_0 = arith.constant 0 : i32
    return %c0_i32, %arg1 : i32, i32
  }
  func.func @transform_2(%arg0: i32, %arg1: i32) -> (i32, i32) {
    %c0_i32 = arith.constant 0 : i32
    return %arg0, %arg1 : i32, i32
  }
}

</mosaic_0001>

<llo_original>
// kernel: object_detection_forward.4
$region0: #{object_detection_forward.4}
  #allocation0 [shape = 'u32[]', space=smem, size = 0x4, offset = 0x4, fixed_abs, tag = 'smem constant byte address 0x4 - core index']
  #allocation1 [shape = 'u32[72,128]{1,0:T(1,128)}', space=vmem, size = 0x9000, scoped, tag = 'internal scratch']
  %s0 = inlined_call_operand.vmem [shape: bf16[256,128], index: 0, kind: input, shape index: {}]
  %s1 = inlined_call_operand.vmem [shape: bf16[128,128], index: 1, kind: input, shape index: {}]
  %s2 = inlined_call_operand.vmem [shape: f32[1,128], index: 2, kind: input, shape index: {}]
  %s3 = inlined_call_operand.vmem [shape: bf16[128,128], index: 3, kind: input, shape index: {}]
  %s4 = inlined_call_operand.vmem [shape: f32[1,128], index: 4, kind: input, shape index: {}]
  %s5 = inlined_call_operand.vmem [shape: bf16[128,128], index: 5, kind: input, shape index: {}]
  %s6 = inlined_call_operand.vmem [shape: f32[1,128], index: 6, kind: input, shape index: {}]
  %s7 = inlined_call_operand.vmem [shape: bf16[128,128], index: 7, kind: input, shape index: {}]
  %s8 = inlined_call_operand.vmem [shape: f32[1,128], index: 8, kind: input, shape index: {}]
  %s9 = inlined_call_operand.vmem [shape: bf16[256,128], index: 9, kind: output, shape index: {0}]
  %s10 = inlined_call_operand.vmem [shape: bf16[256,128], index: 10, kind: output, shape index: {1}]
  %11 = xla_tuple %s9, %s10
  %s12 = sld [smem:[#allocation0]]
  $region77: #{object_detection_forward.4} parent=0
    _
  %s14 = ssub.s32 1, %s12
  %s15 = scalar_select 0, %s14, %s12
  loop: start=0, step=1, limit=4
  $region2: #{object_detection_forward.4} parent=0 // loop_pre_header
    _
  $region3: #{object_detection_forward.4} parent=0 // loop_header
    %s17 = sphi 0, %s21
    %p18 = scmp.ge.s32.totalorder %s17, 4
    %s27 = sphi 0, %s29
    %s30 = sphi 0, %s27
    %s31 = sphi 0, %s30
    %s47 = sphi 0, %s31
    %s51 = sphi 0, %s51
    %s53 = sphi 0, %s51
    %s54 = sphi 0, %s53
    %s68 = sphi 0, %s54
    %s72 = sphi 0, %s72
    %s74 = sphi 0, %s72
    %s75 = sphi 0, %s74
    %s89 = sphi 0, %s75
    %s93 = sphi 0, %s93
    %s95 = sphi 0, %s93
    %s96 = sphi 0, %s95
    %s110 = sphi 0, %s96
    %s114 = sphi 0, %s114
    %s116 = sphi 0, %s114
    %s117 = sphi 0, %s116
    %s131 = sphi 0, %s117
    %s135 = sphi 0, %s135
    %s137 = sphi 0, %s135
    %s138 = sphi 0, %s137
    %s152 = sphi 0, %s138
    %s156 = sphi 0, %s156
    %s158 = sphi 0, %s156
    %s159 = sphi 0, %s158
    %s173 = sphi 0, %s159
    %s177 = sphi 0, %s177
    %s179 = sphi 0, %s177
    %s180 = sphi 0, %s179
    %s194 = sphi 0, %s180
    %s198 = sphi 0, %s198
    %s200 = sphi 0, %s198
    %s201 = sphi 0, %s200
    %s215 = sphi 0, %s201
    %s221 = sphi 0, %s223
    %s224 = sphi 0, %s221
    %s225 = sphi 0, %s224
    %s241 = sphi 0, %s225
    %s247 = sphi 0, %s249
    %s250 = sphi 0, %s247
    %s251 = sphi 0, %s250
    %s267 = sphi 0, %s251
  $region4: #{object_detection_forward.4} parent=0 // loop_header_branch
    %20 = sbr.rel (%p18) target = $region8
  $region5: #{object_detection_forward.4} parent=0 // loop_body
    %s22 = ssub.s32 %s17, 1
    %s23 = ssub.s32 %s17, 2
    %s24 = sadd.s32 %s17, 1
    %s25 = ssub.s32 %s17, %s24
    %p26 = scmp.eq.s32.totalorder %s25, 0
    %s28 = sadd.s32 %s27, 1
    %s29 = scalar_select %p26, %s27, %s28
    %p32 = pneg %p26
    %p33 = scmp.eq.s32.totalorder %s17, 1
    %p34 = por %p32, %p33
    %p35 = scmp.ne.s32.totalorder %s27, %s30
    %p36 = scmp.eq.s32.totalorder %s17, 0
    %p37 = por %p35, %p36
    %p38 = scmp.ne.s32.totalorder %s27, %s30
    %p39 = scmp.eq.s32.totalorder %s22, 1
    %p40 = por %p38, %p39
    %p41 = scmp.ne.s32.totalorder %s30, %s31
    %p42 = scmp.eq.s32.totalorder %s22, 0
    %p43 = por %p41, %p42
    %p44 = scmp.ne.s32.totalorder %s30, %s31
    %p45 = scmp.eq.s32.totalorder %s23, 1
    %p46 = por %p44, %p45
    %p48 = scmp.ne.s32.totalorder %s31, %s47
    %p49 = scmp.eq.s32.totalorder %s23, 0
    %p50 = por %p48, %p49
    %s52 = sadd.s32 %s51, 1
    %p55 = scmp.eq.s32.totalorder %s17, 1
    %p56 = scmp.ne.s32.totalorder %s51, %s53
    %p57 = scmp.eq.s32.totalorder %s17, 0
    %p58 = por %p56, %p57
    %p59 = scmp.ne.s32.totalorder %s51, %s53
    %p60 = scmp.eq.s32.totalorder %s22, 1
    %p61 = por %p59, %p60
    %p62 = scmp.ne.s32.totalorder %s53, %s54
    %p63 = scmp.eq.s32.totalorder %s22, 0
    %p64 = por %p62, %p63
    %p65 = scmp.ne.s32.totalorder %s53, %s54
    %p66 = scmp.eq.s32.totalorder %s23, 1
    %p67 = por %p65, %p66
    %p69 = scmp.ne.s32.totalorder %s54, %s68
    %p70 = scmp.eq.s32.totalorder %s23, 0
    %p71 = por %p69, %p70
    %s73 = sadd.s32 %s72, 1
    %p76 = scmp.eq.s32.totalorder %s17, 1
    %p77 = scmp.ne.s32.totalorder %s72, %s74
    %p78 = scmp.eq.s32.totalorder %s17, 0
    %p79 = por %p77, %p78
    %p80 = scmp.ne.s32.totalorder %s72, %s74
    %p81 = scmp.eq.s32.totalorder %s22, 1
    %p82 = por %p80, %p81
    %p83 = scmp.ne.s32.totalorder %s74, %s75
    %p84 = scmp.eq.s32.totalorder %s22, 0
    %p85 = por %p83, %p84
    %p86 = scmp.ne.s32.totalorder %s74, %s75
    %p87 = scmp.eq.s32.totalorder %s23, 1
    %p88 = por %p86, %p87
    %p90 = scmp.ne.s32.totalorder %s75, %s89
    %p91 = scmp.eq.s32.totalorder %s23, 0
    %p92 = por %p90, %p91
    %s94 = sadd.s32 %s93, 1
    %p97 = scmp.eq.s32.totalorder %s17, 1
    %p98 = scmp.ne.s32.totalorder %s93, %s95
    %p99 = scmp.eq.s32.totalorder %s17, 0
    %p100 = por %p98, %p99
    %p101 = scmp.ne.s32.totalorder %s93, %s95
    %p102 = scmp.eq.s32.totalorder %s22, 1
    %p103 = por %p101, %p102
    %p104 = scmp.ne.s32.totalorder %s95, %s96
    %p105 = scmp.eq.s32.totalorder %s22, 0
    %p106 = por %p104, %p105
    %p107 = scmp.ne.s32.totalorder %s95, %s96
    %p108 = scmp.eq.s32.totalorder %s23, 1
    %p109 = por %p107, %p108
    %p111 = scmp.ne.s32.totalorder %s96, %s110
    %p112 = scmp.eq.s32.totalorder %s23, 0
    %p113 = por %p111, %p112
    %s115 = sadd.s32 %s114, 1
    %p118 = scmp.eq.s32.totalorder %s17, 1
    %p119 = scmp.ne.s32.totalorder %s114, %s116
    %p120 = scmp.eq.s32.totalorder %s17, 0
    %p121 = por %p119, %p120
    %p122 = scmp.ne.s32.totalorder %s114, %s116
    %p123 = scmp.eq.s32.totalorder %s22, 1
    %p124 = por %p122, %p123
    %p125 = scmp.ne.s32.totalorder %s116, %s117
    %p126 = scmp.eq.s32.totalorder %s22, 0
    %p127 = por %p125, %p126
    %p128 = scmp.ne.s32.totalorder %s116, %s117
    %p129 = scmp.eq.s32.totalorder %s23, 1
    %p130 = por %p128, %p129
    %p132 = scmp.ne.s32.totalorder %s117, %s131
    %p133 = scmp.eq.s32.totalorder %s23, 0
    %p134 = por %p132, %p133
    %s136 = sadd.s32 %s135, 1
    %p139 = scmp.eq.s32.totalorder %s17, 1
    %p140 = scmp.ne.s32.totalorder %s135, %s137
    %p141 = scmp.eq.s32.totalorder %s17, 0
    %p142 = por %p140, %p141
    %p143 = scmp.ne.s32.totalorder %s135, %s137
    %p144 = scmp.eq.s32.totalorder %s22, 1
    %p145 = por %p143, %p144
    %p146 = scmp.ne.s32.totalorder %s137, %s138
    %p147 = scmp.eq.s32.totalorder %s22, 0
    %p148 = por %p146, %p147
    %p149 = scmp.ne.s32.totalorder %s137, %s138
    %p150 = scmp.eq.s32.totalorder %s23, 1
    %p151 = por %p149, %p150
    %p153 = scmp.ne.s32.totalorder %s138, %s152
    %p154 = scmp.eq.s32.totalorder %s23, 0
    %p155 = por %p153, %p154
    %s157 = sadd.s32 %s156, 1
    %p160 = scmp.eq.s32.totalorder %s17, 1
    %p161 = scmp.ne.s32.totalorder %s156, %s158
    %p162 = scmp.eq.s32.totalorder %s17, 0
    %p163 = por %p161, %p162
    %p164 = scmp.ne.s32.totalorder %s156, %s158
    %p165 = scmp.eq.s32.totalorder %s22, 1
    %p166 = por %p164, %p165
    %p167 = scmp.ne.s32.totalorder %s158, %s159
    %p168 = scmp.eq.s32.totalorder %s22, 0
    %p169 = por %p167, %p168
    %p170 = scmp.ne.s32.totalorder %s158, %s159
    %p171 = scmp.eq.s32.totalorder %s23, 1
    %p172 = por %p170, %p171
    %p174 = scmp.ne.s32.totalorder %s159, %s173
    %p175 = scmp.eq.s32.totalorder %s23, 0
    %p176 = por %p174, %p175
    %s178 = sadd.s32 %s177, 1
    %p181 = scmp.eq.s32.totalorder %s17, 1
    %p182 = scmp.ne.s32.totalorder %s177, %s179
    %p183 = scmp.eq.s32.totalorder %s17, 0
    %p184 = por %p182, %p183
    %p185 = scmp.ne.s32.totalorder %s177, %s179
    %p186 = scmp.eq.s32.totalorder %s22, 1
    %p187 = por %p185, %p186
    %p188 = scmp.ne.s32.totalorder %s179, %s180
    %p189 = scmp.eq.s32.totalorder %s22, 0
    %p190 = por %p188, %p189
    %p191 = scmp.ne.s32.totalorder %s179, %s180
    %p192 = scmp.eq.s32.totalorder %s23, 1
    %p193 = por %p191, %p192
    %p195 = scmp.ne.s32.totalorder %s180, %s194
    %p196 = scmp.eq.s32.totalorder %s23, 0
    %p197 = por %p195, %p196
    %s199 = sadd.s32 %s198, 1
    %p202 = scmp.eq.s32.totalorder %s17, 1
    %p203 = scmp.ne.s32.totalorder %s198, %s200
    %p204 = scmp.eq.s32.totalorder %s17, 0
    %p205 = por %p203, %p204
    %p206 = scmp.ne.s32.totalorder %s198, %s200
    %p207 = scmp.eq.s32.totalorder %s22, 1
    %p208 = por %p206, %p207
    %p209 = scmp.ne.s32.totalorder %s200, %s201
    %p210 = scmp.eq.s32.totalorder %s22, 0
    %p211 = por %p209, %p210
    %p212 = scmp.ne.s32.totalorder %s200, %s201
    %p213 = scmp.eq.s32.totalorder %s23, 1
    %p214 = por %p212, %p213
    %p216 = scmp.ne.s32.totalorder %s201, %s215
    %p217 = scmp.eq.s32.totalorder %s23, 0
    %p218 = por %p216, %p217
    %s219 = ssub.s32 %s17, %s24
    %p220 = scmp.eq.s32.totalorder %s219, 0
    %s222 = sadd.s32 %s221, 1
    %s223 = scalar_select %p220, %s221, %s222
    %p226 = pneg %p220
    %p227 = scmp.eq.s32.totalorder %s17, 1
    %p228 = por %p226, %p227
    %p229 = scmp.ne.s32.totalorder %s221, %s224
    %p230 = scmp.eq.s32.totalorder %s17, 0
    %p231 = por %p229, %p230
    %p232 = scmp.ne.s32.totalorder %s221, %s224
    %p233 = scmp.eq.s32.totalorder %s22, 1
    %p234 = por %p232, %p233
    %p235 = scmp.ne.s32.totalorder %s224, %s225
    %p236 = scmp.eq.s32.totalorder %s22, 0
    %p237 = por %p235, %p236
    %p238 = scmp.ne.s32.totalorder %s224, %s225
    %p239 = scmp.eq.s32.totalorder %s23, 1
    %p240 = por %p238, %p239
    %p242 = scmp.ne.s32.totalorder %s225, %s241
    %p243 = scmp.eq.s32.totalorder %s23, 0
    %p244 = por %p242, %p243
    %s245 = ssub.s32 %s17, %s24
    %p246 = scmp.eq.s32.totalorder %s245, 0
    %s248 = sadd.s32 %s247, 1
    %s249 = scalar_select %p246, %s247, %s248
    %p252 = pneg %p246
    %p253 = scmp.eq.s32.totalorder %s17, 1
    %p254 = por %p252, %p253
    %p255 = scmp.ne.s32.totalorder %s247, %s250
    %p256 = scmp.eq.s32.totalorder %s17, 0
    %p257 = por %p255, %p256
    %p258 = scmp.ne.s32.totalorder %s247, %s250
    %p259 = scmp.eq.s32.totalorder %s22, 1
    %p260 = por %p258, %p259
    %p261 = scmp.ne.s32.totalorder %s250, %s251
    %p262 = scmp.eq.s32.totalorder %s22, 0
    %p263 = por %p261, %p262
    %p264 = scmp.ne.s32.totalorder %s250, %s251
    %p265 = scmp.eq.s32.totalorder %s23, 1
    %p266 = por %p264, %p265
    %p268 = scmp.ne.s32.totalorder %s251, %s267
    %p269 = scmp.eq.s32.totalorder %s23, 0
    %p270 = por %p268, %p269
    %p271 = scmp.le.s32.totalorder 1, %s17
    %p272 = scmp.lt.s32.totalorder %s17, 3
    %p273 = pnand %p271, %p272
    %p274 = pneg %p273
    // Predicated region
    $region9: #{object_detection_forward.4} parent=5 // pred_check
      _
    $region10: #{object_detection_forward.4} parent=5 // pred_check_branch
      %276 = sbr.rel (%p273) target = $region12
    $region11: #{object_detection_forward.4} parent=5 // pred_region
      %s277 = ssub.s32 %s17, 1
      // Predicated region
      $region13: #{object_detection_forward.4} parent=11 // pred_check
        %p278 = pneg %p64
      $region14: #{object_detection_forward.4} parent=11 // pred_check_branch
        %280 = sbr.rel (%p278) target = $region16
      $region15: #{object_detection_forward.4} parent=11 // pred_region
        _
      $region16: #{object_detection_forward.4} parent=11 // pred_fallthru
        _
      // Predicated region
      $region17: #{object_detection_forward.4} parent=11 // pred_check
        %p281 = pneg %p85
      $region18: #{object_detection_forward.4} parent=11 // pred_check_branch
        %283 = sbr.rel (%p281) target = $region20
      $region19: #{object_detection_forward.4} parent=11 // pred_region
        _
      $region20: #{object_detection_forward.4} parent=11 // pred_fallthru
        _
      // Predicated region
      $region21: #{object_detection_forward.4} parent=11 // pred_check
        %p284 = pneg %p106
      $region22: #{object_detection_forward.4} parent=11 // pred_check_branch
        %286 = sbr.rel (%p284) target = $region24
      $region23: #{object_detection_forward.4} parent=11 // pred_region
        _
      $region24: #{object_detection_forward.4} parent=11 // pred_fallthru
        _
      // Predicated region
      $region25: #{object_detection_forward.4} parent=11 // pred_check
        %p287 = pneg %p127
      $region26: #{object_detection_forward.4} parent=11 // pred_check_branch
        %289 = sbr.rel (%p287) target = $region28
      $region27: #{object_detection_forward.4} parent=11 // pred_region
        _
      $region28: #{object_detection_forward.4} parent=11 // pred_fallthru
        _
      // Predicated region
      $region29: #{object_detection_forward.4} parent=11 // pred_check
        %p290 = pneg %p148
      $region30: #{object_detection_forward.4} parent=11 // pred_check_branch
        %292 = sbr.rel (%p290) target = $region32
      $region31: #{object_detection_forward.4} parent=11 // pred_region
        _
      $region32: #{object_detection_forward.4} parent=11 // pred_fallthru
        _
      // Predicated region
      $region33: #{object_detection_forward.4} parent=11 // pred_check
        %p293 = pneg %p169
      $region34: #{object_detection_forward.4} parent=11 // pred_check_branch
        %295 = sbr.rel (%p293) target = $region36
      $region35: #{object_detection_forward.4} parent=11 // pred_region
        _
      $region36: #{object_detection_forward.4} parent=11 // pred_fallthru
        _
      // Predicated region
      $region37: #{object_detection_forward.4} parent=11 // pred_check
        %p296 = pneg %p190
      $region38: #{object_detection_forward.4} parent=11 // pred_check_branch
        %298 = sbr.rel (%p296) target = $region40
      $region39: #{object_detection_forward.4} parent=11 // pred_region
        _
      $region40: #{object_detection_forward.4} parent=11 // pred_fallthru
        _
      // Predicated region
      $region41: #{object_detection_forward.4} parent=11 // pred_check
        %p299 = pneg %p211
      $region42: #{object_detection_forward.4} parent=11 // pred_check_branch
        %301 = sbr.rel (%p299) target = $region44
      $region43: #{object_detection_forward.4} parent=11 // pred_region
        _
      $region44: #{object_detection_forward.4} parent=11 // pred_fallthru
        _
    $region12: #{object_detection_forward.4} parent=5 // pred_fallthru
      _
    %p302 = scmp.lt.s32.totalorder %s17, 2
    // Predicated region
    $region45: #{object_detection_forward.4} parent=5 // pred_check
      %p303 = pneg %p302
    $region46: #{object_detection_forward.4} parent=5 // pred_check_branch
      %305 = sbr.rel (%p303) target = $region48
    $region47: #{object_detection_forward.4} parent=5 // pred_region
      // Predicated region
      $region49: #{object_detection_forward.4} parent=47 // pred_check
        %p306 = pneg %p37
      $region50: #{object_detection_forward.4} parent=47 // pred_check_branch
        %308 = sbr.rel (%p306) target = $region52
      $region51: #{object_detection_forward.4} parent=47 // pred_region
        %s309 = smul.u32 16, %s17
        %p310 = scmp.lt.s32.totalorder %s309, 31
        %s311 = scalar_select %p310, %s309, 31
        %s312 = smul.addr %s311, 4
        %s313 = scalar_lea.vmem %s0, %s312
        %s314 = smul.u32 16, %s17
      $region52: #{object_detection_forward.4} parent=47 // pred_fallthru
        _
    $region48: #{object_detection_forward.4} parent=5 // pred_fallthru
      _
    %p315 = scmp.le.s32.totalorder 1, %s17
    %p316 = scmp.lt.s32.totalorder %s17, 3
    %p317 = pnand %p315, %p316
    %p318 = pneg %p317
    // Predicated region
    $region53: #{object_detection_forward.4} parent=5 // pred_check
      _
    $region54: #{object_detection_forward.4} parent=5 // pred_check_branch
      %320 = sbr.rel (%p317) target = $region56
    $region55: #{object_detection_forward.4} parent=5 // pred_region
      %s321 = ssub.s32 %s17, 1
      %s322 = smul.u32 16, %s22
      %p323 = scmp.lt.s32.totalorder %s322, 31
      %s324 = scalar_select %p323, %s322, 31
      %s325 = smul.addr %s324, 4
      %s326 = scalar_lea.vmem %s0, %s325
      %p327 = pneg %p43
      %p328 = pneg %p40
      %p329 = pneg %p64
      %p330 = pneg %p61
      %p331 = pneg %p85
      %p332 = pneg %p82
      %p333 = pneg %p106
      %p334 = pneg %p103
      %p335 = pneg %p127
      %p336 = pneg %p124
      %p337 = pneg %p148
      %p338 = pneg %p145
      %p339 = pneg %p169
      %p340 = pneg %p166
      %p341 = pneg %p190
      %p342 = pneg %p187
      %p343 = pneg %p211
      %p344 = pneg %p208
      %p345 = pneg %p237
      %p346 = pneg %p234
      %s347 = smul.u32 16, %s22
      %p348 = scmp.lt.s32.totalorder %s347, 31
      %s349 = scalar_select %p348, %s347, 31
      %s350 = smul.addr %s349, 4
      %s351 = scalar_lea.vmem %s9, %s350
      %p352 = pneg %p263
      %p353 = pneg %p260
      %s354 = smul.u32 16, %s22
      %p355 = scmp.lt.s32.totalorder %s354, 31
      %s356 = scalar_select %p355, %s354, 31
      %s357 = smul.addr %s356, 4
      %s358 = scalar_lea.vmem %s10, %s357
      %s359 = smul.u32 16, %s22
      %p360 = scmp.lt.s32.totalorder %s359, 31
      %s361 = scalar_select %p360, %s359, 31
      %s362 = smul.addr %s361, 4
      %s363 = scalar_lea.vmem %s0, %s362
      %s364 = smul.u32 16, %s22
      %s365 = smul.u32 16, %s22
      %p366 = scmp.lt.s32.totalorder %s365, 31
      %s367 = scalar_select %p366, %s365, 31
      %s368 = smul.addr %s367, 4
      %s369 = scalar_lea.vmem %s9, %s368
      %s370 = smul.u32 16, %s22
      %s371 = smul.u32 16, %s22
      %p372 = scmp.lt.s32.totalorder %s371, 31
      %s373 = scalar_select %p372, %s371, 31
      %s374 = smul.addr %s373, 4
      %s375 = scalar_lea.vmem %s10, %s374
      %s376 = smul.u32 16, %s22
      %v377 = vld [vmem:[%s363] sm:$0xf]
      %v378 = vld [vmem:[%s363 + $0x4] sm:$0xf]
      %v379 = vld [vmem:[%s363 + $0x8] sm:$0xf]
      %v380 = vld [vmem:[%s363 + $0xc] sm:$0xf]
      %v381 = vld [vmem:[%s363 + $0x10] sm:$0xf]
      %v382 = vld [vmem:[%s363 + $0x14] sm:$0xf]
      %v383 = vld [vmem:[%s363 + $0x18] sm:$0xf]
      %v384 = vld [vmem:[%s363 + $0x1c] sm:$0xf]
      %v385 = vld [vmem:[%s363 + $0x20] sm:$0xf]
      %v386 = vld [vmem:[%s363 + $0x24] sm:$0xf]
      %v387 = vld [vmem:[%s363 + $0x28] sm:$0xf]
      %v388 = vld [vmem:[%s363 + $0x2c] sm:$0xf]
      %v389 = vld [vmem:[%s363 + $0x30] sm:$0xf]
      %v390 = vld [vmem:[%s363 + $0x34] sm:$0xf]
      %v391 = vld [vmem:[%s363 + $0x38] sm:$0xf]
      %v392 = vld [vmem:[%s363 + $0x3c] sm:$0xf]
      %v393 = vld [vmem:[%s1] sm:$0xf]
      %v394 = vld [vmem:[%s1 + $0x4] sm:$0xf]
      %v395 = vld [vmem:[%s1 + $0x8] sm:$0xf]
      %v396 = vld [vmem:[%s1 + $0xc] sm:$0xf]
      %v397 = vld [vmem:[%s1 + $0x10] sm:$0xf]
      %v398 = vld [vmem:[%s1 + $0x14] sm:$0xf]
      %v399 = vld [vmem:[%s1 + $0x18] sm:$0xf]
      %v400 = vld [vmem:[%s1 + $0x1c] sm:$0xf]
      %v401 = vld [vmem:[%s1 + $0x20] sm:$0xf]
      %v402 = vld [vmem:[%s1 + $0x24] sm:$0xf]
      %v403 = vld [vmem:[%s1 + $0x28] sm:$0xf]
      %v404 = vld [vmem:[%s1 + $0x2c] sm:$0xf]
      %v405 = vld [vmem:[%s1 + $0x30] sm:$0xf]
      %v406 = vld [vmem:[%s1 + $0x34] sm:$0xf]
      %v407 = vld [vmem:[%s1 + $0x38] sm:$0xf]
      %v408 = vld [vmem:[%s1 + $0x3c] sm:$0xf]
      %v409 = vld [vmem:[%s2] sm:$0x1]
      %v411 = vperm.slane %v409, 0
      %v429 = vunpack.c.l.b16 %v377
      %v430 = vunpack.c.l.b16 %v378
      %v431 = vunpack.c.l.b16 %v379
      %v432 = vunpack.c.l.b16 %v380
      %v433 = vunpack.c.l.b16 %v381
      %v434 = vunpack.c.l.b16 %v382
      %v435 = vunpack.c.l.b16 %v383
      %v436 = vunpack.c.l.b16 %v384
      %v437 = vunpack.c.l.b16 %v385
      %v438 = vunpack.c.l.b16 %v386
      %v439 = vunpack.c.l.b16 %v387
      %v440 = vunpack.c.l.b16 %v388
      %v441 = vunpack.c.l.b16 %v389
      %v442 = vunpack.c.l.b16 %v390
      %v443 = vunpack.c.l.b16 %v391
      %v444 = vunpack.c.l.b16 %v392
      %v445 = vpack.c.b16 %v430, %v429
      %v446 = vpack.c.b16 %v432, %v431
      %v447 = vpack.c.b16 %v434, %v433
      %v448 = vpack.c.b16 %v436, %v435
      %v449 = vpack.c.b16 %v438, %v437
      %v450 = vpack.c.b16 %v440, %v439
      %v451 = vpack.c.b16 %v442, %v441
      %v452 = vpack.c.b16 %v444, %v443
      %v477 = vunpack.c.l.b16 %v393
      %v478 = vunpack.c.l.b16 %v394
      %v479 = vunpack.c.l.b16 %v395
      %v480 = vunpack.c.l.b16 %v396
      %v481 = vunpack.c.l.b16 %v397
      %v482 = vunpack.c.l.b16 %v398
      %v483 = vunpack.c.l.b16 %v399
      %v484 = vunpack.c.l.b16 %v400
      %v485 = vunpack.c.l.b16 %v401
      %v486 = vunpack.c.l.b16 %v402
      %v487 = vunpack.c.l.b16 %v403
      %v488 = vunpack.c.l.b16 %v404
      %v489 = vunpack.c.l.b16 %v405
      %v490 = vunpack.c.l.b16 %v406
      %v491 = vunpack.c.l.b16 %v407
      %v492 = vunpack.c.l.b16 %v408
      %v493 = vpack.c.b16 %v478, %v477
      %v494 = vpack.c.b16 %v480, %v479
      %v495 = vpack.c.b16 %v482, %v481
      %v496 = vpack.c.b16 %v484, %v483
      %v497 = vpack.c.b16 %v486, %v485
      %v498 = vpack.c.b16 %v488, %v487
      %v499 = vpack.c.b16 %v490, %v489
      %v500 = vpack.c.b16 %v492, %v491
      %509 = vmatpush.bf16.msra.mxu0 %v500
      %510 = vmatpush.bf16.msra.mxu0 %v499
      %511 = vmatpush.bf16.msra.mxu0 %v498
      %512 = vmatpush.bf16.msra.mxu0 %v497
      %513 = vmatpush.bf16.msra.mxu0 %v496
      %514 = vmatpush.bf16.msra.mxu0 %v495
      %515 = vmatpush.bf16.msra.mxu0 %v494
      %516 = vmatpush.bf16.msra.mxu0 %v493
      %517 = vmatmul.bf16.gmra.mxu0 %v445
      %v518 = vpop.f32.mrf.mxu0
      %v519 = vadd.f32 %v411, %v518
      %v520 = vpop.f32.mrf.mxu0
      %v521 = vadd.f32 %v411, %v520
      %522 = vmatmul.bf16.gmra.mxu0 %v446
      %v523 = vpop.f32.mrf.mxu0
      %v524 = vadd.f32 %v411, %v523
      %v525 = vpop.f32.mrf.mxu0
      %v526 = vadd.f32 %v411, %v525
      %527 = vmatmul.bf16.gmra.mxu0 %v447
      %v528 = vpop.f32.mrf.mxu0
      %v529 = vadd.f32 %v411, %v528
      %v530 = vpop.f32.mrf.mxu0
      %v531 = vadd.f32 %v411, %v530
      %532 = vmatmul.bf16.gmra.mxu0 %v448
      %v533 = vpop.f32.mrf.mxu0
      %v534 = vadd.f32 %v411, %v533
      %v535 = vpop.f32.mrf.mxu0
      %v536 = vadd.f32 %v411, %v535
      %537 = vmatmul.bf16.gmra.mxu0 %v449
      %v538 = vpop.f32.mrf.mxu0
      %v539 = vadd.f32 %v411, %v538
      %v540 = vpop.f32.mrf.mxu0
      %v541 = vadd.f32 %v411, %v540
      %542 = vmatmul.bf16.gmra.mxu0 %v450
      %v543 = vpop.f32.mrf.mxu0
      %v544 = vadd.f32 %v411, %v543
      %v545 = vpop.f32.mrf.mxu0
      %v546 = vadd.f32 %v411, %v545
      %547 = vmatmul.bf16.gmra.mxu0 %v451
      %v548 = vpop.f32.mrf.mxu0
      %v549 = vadd.f32 %v411, %v548
      %v550 = vpop.f32.mrf.mxu0
      %v551 = vadd.f32 %v411, %v550
      %552 = vmatmul.bf16.gmra.mxu0 %v452
      %v553 = vpop.f32.mrf.mxu0
      %v554 = vadd.f32 %v411, %v553
      %v555 = vpop.f32.mrf.mxu0
      %v556 = vadd.f32 %v411, %v555
      %557 = vdwg.mxu0
      %v558 = vpack.c.bf16 %v521, %v519
      %v559 = vpack.c.bf16 %v526, %v524
      %v560 = vpack.c.bf16 %v531, %v529
      %v561 = vpack.c.bf16 %v536, %v534
      %v562 = vpack.c.bf16 %v541, %v539
      %v563 = vpack.c.bf16 %v546, %v544
      %v564 = vpack.c.bf16 %v551, %v549
      %v565 = vpack.c.bf16 %v556, %v554
      %v566 = vld [vmem:[%s3] sm:$0xf]
      %v567 = vld [vmem:[%s3 + $0x4] sm:$0xf]
      %v568 = vld [vmem:[%s3 + $0x8] sm:$0xf]
      %v569 = vld [vmem:[%s3 + $0xc] sm:$0xf]
      %v570 = vld [vmem:[%s3 + $0x10] sm:$0xf]
      %v571 = vld [vmem:[%s3 + $0x14] sm:$0xf]
      %v572 = vld [vmem:[%s3 + $0x18] sm:$0xf]
      %v573 = vld [vmem:[%s3 + $0x1c] sm:$0xf]
      %v574 = vld [vmem:[%s3 + $0x20] sm:$0xf]
      %v575 = vld [vmem:[%s3 + $0x24] sm:$0xf]
      %v576 = vld [vmem:[%s3 + $0x28] sm:$0xf]
      %v577 = vld [vmem:[%s3 + $0x2c] sm:$0xf]
      %v578 = vld [vmem:[%s3 + $0x30] sm:$0xf]
      %v579 = vld [vmem:[%s3 + $0x34] sm:$0xf]
      %v580 = vld [vmem:[%s3 + $0x38] sm:$0xf]
      %v581 = vld [vmem:[%s3 + $0x3c] sm:$0xf]
      %v582 = vld [vmem:[%s4] sm:$0x1]
      %v584 = vperm.slane %v582, 0
      %v602 = vunpack.c.l.b16 %v566
      %v603 = vunpack.c.l.b16 %v567
      %v604 = vunpack.c.l.b16 %v568
      %v605 = vunpack.c.l.b16 %v569
      %v606 = vunpack.c.l.b16 %v570
      %v607 = vunpack.c.l.b16 %v571
      %v608 = vunpack.c.l.b16 %v572
      %v609 = vunpack.c.l.b16 %v573
      %v610 = vunpack.c.l.b16 %v574
      %v611 = vunpack.c.l.b16 %v575
      %v612 = vunpack.c.l.b16 %v576
      %v613 = vunpack.c.l.b16 %v577
      %v614 = vunpack.c.l.b16 %v578
      %v615 = vunpack.c.l.b16 %v579
      %v616 = vunpack.c.l.b16 %v580
      %v617 = vunpack.c.l.b16 %v581
      %v618 = vpack.c.b16 %v603, %v602
      %v619 = vpack.c.b16 %v605, %v604
      %v620 = vpack.c.b16 %v607, %v606
      %v621 = vpack.c.b16 %v609, %v608
      %v622 = vpack.c.b16 %v611, %v610
      %v623 = vpack.c.b16 %v613, %v612
      %v624 = vpack.c.b16 %v615, %v614
      %v625 = vpack.c.b16 %v617, %v616
      %634 = vmatpush.bf16.msra.mxu0 %v625
      %635 = vmatpush.bf16.msra.mxu0 %v624
      %636 = vmatpush.bf16.msra.mxu0 %v623
      %637 = vmatpush.bf16.msra.mxu0 %v622
      %638 = vmatpush.bf16.msra.mxu0 %v621
      %639 = vmatpush.bf16.msra.mxu0 %v620
      %640 = vmatpush.bf16.msra.mxu0 %v619
      %641 = vmatpush.bf16.msra.mxu0 %v618
      %642 = vmatmul.bf16.gmra.mxu0 %v558
      %v643 = vpop.f32.mrf.mxu0
      %v644 = vadd.f32 %v584, %v643
      %v645 = vpop.f32.mrf.mxu0
      %v646 = vadd.f32 %v584, %v645
      %647 = vmatmul.bf16.gmra.mxu0 %v559
      %v648 = vpop.f32.mrf.mxu0
      %v649 = vadd.f32 %v584, %v648
      %v650 = vpop.f32.mrf.mxu0
      %v651 = vadd.f32 %v584, %v650
      %652 = vmatmul.bf16.gmra.mxu0 %v560
      %v653 = vpop.f32.mrf.mxu0
      %v654 = vadd.f32 %v584, %v653
      %v655 = vpop.f32.mrf.mxu0
      %v656 = vadd.f32 %v584, %v655
      %657 = vmatmul.bf16.gmra.mxu0 %v561
      %v658 = vpop.f32.mrf.mxu0
      %v659 = vadd.f32 %v584, %v658
      %v660 = vpop.f32.mrf.mxu0
      %v661 = vadd.f32 %v584, %v660
      %662 = vmatmul.bf16.gmra.mxu0 %v562
      %v663 = vpop.f32.mrf.mxu0
      %v664 = vadd.f32 %v584, %v663
      %v665 = vpop.f32.mrf.mxu0
      %v666 = vadd.f32 %v584, %v665
      %667 = vmatmul.bf16.gmra.mxu0 %v563
      %v668 = vpop.f32.mrf.mxu0
      %v669 = vadd.f32 %v584, %v668
      %v670 = vpop.f32.mrf.mxu0
      %v671 = vadd.f32 %v584, %v670
      %672 = vmatmul.bf16.gmra.mxu0 %v564
      %v673 = vpop.f32.mrf.mxu0
      %v674 = vadd.f32 %v584, %v673
      %v675 = vpop.f32.mrf.mxu0
      %v676 = vadd.f32 %v584, %v675
      %677 = vmatmul.bf16.gmra.mxu0 %v565
      %v678 = vpop.f32.mrf.mxu0
      %v679 = vadd.f32 %v584, %v678
      %v680 = vpop.f32.mrf.mxu0
      %v681 = vadd.f32 %v584, %v680
      %682 = vdwg.mxu0
      %v683 = vmul.f32 %v644, %v644
      %v684 = vmul.f32 %v646, %v646
      %v685 = vmul.f32 %v649, %v649
      %v686 = vmul.f32 %v651, %v651
      %v687 = vmul.f32 %v654, %v654
      %v688 = vmul.f32 %v656, %v656
      %v689 = vmul.f32 %v659, %v659
      %v690 = vmul.f32 %v661, %v661
      %v691 = vmul.f32 %v664, %v664
      %v692 = vmul.f32 %v666, %v666
      %v693 = vmul.f32 %v669, %v669
      %v694 = vmul.f32 %v671, %v671
      %v695 = vmul.f32 %v674, %v674
      %v696 = vmul.f32 %v676, %v676
      %v697 = vmul.f32 %v679, %v679
      %v698 = vmul.f32 %v681, %v681
      %v699 = vmul.f32 %v644, %v683
      %v700 = vmul.f32 %v646, %v684
      %v701 = vmul.f32 %v649, %v685
      %v702 = vmul.f32 %v651, %v686
      %v703 = vmul.f32 %v654, %v687
      %v704 = vmul.f32 %v656, %v688
      %v705 = vmul.f32 %v659, %v689
      %v706 = vmul.f32 %v661, %v690
      %v707 = vmul.f32 %v664, %v691
      %v708 = vmul.f32 %v666, %v692
      %v709 = vmul.f32 %v669, %v693
      %v710 = vmul.f32 %v671, %v694
      %v711 = vmul.f32 %v674, %v695
      %v712 = vmul.f32 %v676, %v696
      %v713 = vmul.f32 %v679, %v697
      %v714 = vmul.f32 %v681, %v698
      %v715 = vmul.f32 %v699, 0.044715
      %v716 = vmul.f32 %v700, 0.044715
      %v717 = vmul.f32 %v701, 0.044715
      %v718 = vmul.f32 %v702, 0.044715
      %v719 = vmul.f32 %v703, 0.044715
      %v720 = vmul.f32 %v704, 0.044715
      %v721 = vmul.f32 %v705, 0.044715
      %v722 = vmul.f32 %v706, 0.044715
      %v723 = vmul.f32 %v707, 0.044715
      %v724 = vmul.f32 %v708, 0.044715
      %v725 = vmul.f32 %v709, 0.044715
      %v726 = vmul.f32 %v710, 0.044715
      %v727 = vmul.f32 %v711, 0.044715
      %v728 = vmul.f32 %v712, 0.044715
      %v729 = vmul.f32 %v713, 0.044715
      %v730 = vmul.f32 %v714, 0.044715
      %v731 = vadd.f32 %v644, %v715
      %v732 = vadd.f32 %v646, %v716
      %v733 = vadd.f32 %v649, %v717
      %v734 = vadd.f32 %v651, %v718
      %v735 = vadd.f32 %v654, %v719
      %v736 = vadd.f32 %v656, %v720
      %v737 = vadd.f32 %v659, %v721
      %v738 = vadd.f32 %v661, %v722
      %v739 = vadd.f32 %v664, %v723
      %v740 = vadd.f32 %v666, %v724
      %v741 = vadd.f32 %v669, %v725
      %v742 = vadd.f32 %v671, %v726
      %v743 = vadd.f32 %v674, %v727
      %v744 = vadd.f32 %v676, %v728
      %v745 = vadd.f32 %v679, %v729
      %v746 = vadd.f32 %v681, %v730
      %v747 = vmul.f32 %v731, 0.7978846
      %v748 = vmul.f32 %v732, 0.7978846
      %v749 = vmul.f32 %v733, 0.7978846
      %v750 = vmul.f32 %v734, 0.7978846
      %v751 = vmul.f32 %v735, 0.7978846
      %v752 = vmul.f32 %v736, 0.7978846
      %v753 = vmul.f32 %v737, 0.7978846
      %v754 = vmul.f32 %v738, 0.7978846
      %v755 = vmul.f32 %v739, 0.7978846
      %v756 = vmul.f32 %v740, 0.7978846
      %v757 = vmul.f32 %v741, 0.7978846
      %v758 = vmul.f32 %v742, 0.7978846
      %v759 = vmul.f32 %v743, 0.7978846
      %v760 = vmul.f32 %v744, 0.7978846
      %v761 = vmul.f32 %v745, 0.7978846
      %v762 = vmul.f32 %v746, 0.7978846
      %v763 = vtanh.pop %v747
      %v764 = vtanh.pop %v748
      %v765 = vtanh.pop %v749
      %v766 = vtanh.pop %v750
      %v767 = vtanh.pop %v751
      %v768 = vtanh.pop %v752
      %v769 = vtanh.pop %v753
      %v770 = vtanh.pop %v754
      %v771 = vtanh.pop %v755
      %v772 = vtanh.pop %v756
      %v773 = vtanh.pop %v757
      %v774 = vtanh.pop %v758
      %v775 = vtanh.pop %v759
      %v776 = vtanh.pop %v760
      %v777 = vtanh.pop %v761
      %v778 = vtanh.pop %v762
      %v779 = vadd.f32 %v763, 1.0
      %v780 = vadd.f32 %v764, 1.0
      %v781 = vadd.f32 %v765, 1.0
      %v782 = vadd.f32 %v766, 1.0
      %v783 = vadd.f32 %v767, 1.0
      %v784 = vadd.f32 %v768, 1.0
      %v785 = vadd.f32 %v769, 1.0
      %v786 = vadd.f32 %v770, 1.0
      %v787 = vadd.f32 %v771, 1.0
      %v788 = vadd.f32 %v772, 1.0
      %v789 = vadd.f32 %v773, 1.0
      %v790 = vadd.f32 %v774, 1.0
      %v791 = vadd.f32 %v775, 1.0
      %v792 = vadd.f32 %v776, 1.0
      %v793 = vadd.f32 %v777, 1.0
      %v794 = vadd.f32 %v778, 1.0
      %v795 = vmul.f32 %v779, 0.5
      %v796 = vmul.f32 %v780, 0.5
      %v797 = vmul.f32 %v781, 0.5
      %v798 = vmul.f32 %v782, 0.5
      %v799 = vmul.f32 %v783, 0.5
      %v800 = vmul.f32 %v784, 0.5
      %v801 = vmul.f32 %v785, 0.5
      %v802 = vmul.f32 %v786, 0.5
      %v803 = vmul.f32 %v787, 0.5
      %v804 = vmul.f32 %v788, 0.5
      %v805 = vmul.f32 %v789, 0.5
      %v806 = vmul.f32 %v790, 0.5
      %v807 = vmul.f32 %v791, 0.5
      %v808 = vmul.f32 %v792, 0.5
      %v809 = vmul.f32 %v793, 0.5
      %v810 = vmul.f32 %v794, 0.5
      %v811 = vmul.f32 %v644, %v795
      %v812 = vmul.f32 %v646, %v796
      %v813 = vmul.f32 %v649, %v797
      %v814 = vmul.f32 %v651, %v798
      %v815 = vmul.f32 %v654, %v799
      %v816 = vmul.f32 %v656, %v800
      %v817 = vmul.f32 %v659, %v801
      %v818 = vmul.f32 %v661, %v802
      %v819 = vmul.f32 %v664, %v803
      %v820 = vmul.f32 %v666, %v804
      %v821 = vmul.f32 %v669, %v805
      %v822 = vmul.f32 %v671, %v806
      %v823 = vmul.f32 %v674, %v807
      %v824 = vmul.f32 %v676, %v808
      %v825 = vmul.f32 %v679, %v809
      %v826 = vmul.f32 %v681, %v810
      %v827 = vpack.c.bf16 %v812, %v811
      %v828 = vpack.c.bf16 %v814, %v813
      %v829 = vpack.c.bf16 %v816, %v815
      %v830 = vpack.c.bf16 %v818, %v817
      %v831 = vpack.c.bf16 %v820, %v819
      %v832 = vpack.c.bf16 %v822, %v821
      %v833 = vpack.c.bf16 %v824, %v823
      %v834 = vpack.c.bf16 %v826, %v825
      %v835 = vld [vmem:[%s5] sm:$0xf]
      %v836 = vld [vmem:[%s5 + $0x4] sm:$0xf]
      %v837 = vld [vmem:[%s5 + $0x8] sm:$0xf]
      %v838 = vld [vmem:[%s5 + $0xc] sm:$0xf]
      %v839 = vld [vmem:[%s5 + $0x10] sm:$0xf]
      %v840 = vld [vmem:[%s5 + $0x14] sm:$0xf]
      %v841 = vld [vmem:[%s5 + $0x18] sm:$0xf]
      %v842 = vld [vmem:[%s5 + $0x1c] sm:$0xf]
      %v843 = vld [vmem:[%s5 + $0x20] sm:$0xf]
      %v844 = vld [vmem:[%s5 + $0x24] sm:$0xf]
      %v845 = vld [vmem:[%s5 + $0x28] sm:$0xf]
      %v846 = vld [vmem:[%s5 + $0x2c] sm:$0xf]
      %v847 = vld [vmem:[%s5 + $0x30] sm:$0xf]
      %v848 = vld [vmem:[%s5 + $0x34] sm:$0xf]
      %v849 = vld [vmem:[%s5 + $0x38] sm:$0xf]
      %v850 = vld [vmem:[%s5 + $0x3c] sm:$0xf]
      %v851 = vld [vmem:[%s6] sm:$0x1]
      %v853 = vperm.slane %v851, 0
      %v871 = vunpack.c.l.b16 %v835
      %v872 = vunpack.c.l.b16 %v836
      %v873 = vunpack.c.l.b16 %v837
      %v874 = vunpack.c.l.b16 %v838
      %v875 = vunpack.c.l.b16 %v839
      %v876 = vunpack.c.l.b16 %v840
      %v877 = vunpack.c.l.b16 %v841
      %v878 = vunpack.c.l.b16 %v842
      %v879 = vunpack.c.l.b16 %v843
      %v880 = vunpack.c.l.b16 %v844
      %v881 = vunpack.c.l.b16 %v845
      %v882 = vunpack.c.l.b16 %v846
      %v883 = vunpack.c.l.b16 %v847
      %v884 = vunpack.c.l.b16 %v848
      %v885 = vunpack.c.l.b16 %v849
      %v886 = vunpack.c.l.b16 %v850
      %v887 = vpack.c.b16 %v872, %v871
      %v888 = vpack.c.b16 %v874, %v873
      %v889 = vpack.c.b16 %v876, %v875
      %v890 = vpack.c.b16 %v878, %v877
      %v891 = vpack.c.b16 %v880, %v879
      %v892 = vpack.c.b16 %v882, %v881
      %v893 = vpack.c.b16 %v884, %v883
      %v894 = vpack.c.b16 %v886, %v885
      %903 = vmatpush.bf16.msra.mxu0 %v894
      %904 = vmatpush.bf16.msra.mxu0 %v893
      %905 = vmatpush.bf16.msra.mxu0 %v892
      %906 = vmatpush.bf16.msra.mxu0 %v891
      %907 = vmatpush.bf16.msra.mxu0 %v890
      %908 = vmatpush.bf16.msra.mxu0 %v889
      %909 = vmatpush.bf16.msra.mxu0 %v888
      %910 = vmatpush.bf16.msra.mxu0 %v887
      %911 = vmatmul.bf16.gmra.mxu0 %v827
      %v912 = vpop.f32.mrf.mxu0
      %v913 = vadd.f32 %v853, %v912
      %v914 = vpop.f32.mrf.mxu0
      %v915 = vadd.f32 %v853, %v914
      %916 = vmatmul.bf16.gmra.mxu0 %v828
      %v917 = vpop.f32.mrf.mxu0
      %v918 = vadd.f32 %v853, %v917
      %v919 = vpop.f32.mrf.mxu0
      %v920 = vadd.f32 %v853, %v919
      %921 = vmatmul.bf16.gmra.mxu0 %v829
      %v922 = vpop.f32.mrf.mxu0
      %v923 = vadd.f32 %v853, %v922
      %v924 = vpop.f32.mrf.mxu0
      %v925 = vadd.f32 %v853, %v924
      %926 = vmatmul.bf16.gmra.mxu0 %v830
      %v927 = vpop.f32.mrf.mxu0
      %v928 = vadd.f32 %v853, %v927
      %v929 = vpop.f32.mrf.mxu0
      %v930 = vadd.f32 %v853, %v929
      %931 = vmatmul.bf16.gmra.mxu0 %v831
      %v932 = vpop.f32.mrf.mxu0
      %v933 = vadd.f32 %v853, %v932
      %v934 = vpop.f32.mrf.mxu0
      %v935 = vadd.f32 %v853, %v934
      %936 = vmatmul.bf16.gmra.mxu0 %v832
      %v937 = vpop.f32.mrf.mxu0
      %v938 = vadd.f32 %v853, %v937
      %v939 = vpop.f32.mrf.mxu0
      %v940 = vadd.f32 %v853, %v939
      %941 = vmatmul.bf16.gmra.mxu0 %v833
      %v942 = vpop.f32.mrf.mxu0
      %v943 = vadd.f32 %v853, %v942
      %v944 = vpop.f32.mrf.mxu0
      %v945 = vadd.f32 %v853, %v944
      %946 = vmatmul.bf16.gmra.mxu0 %v834
      %v947 = vpop.f32.mrf.mxu0
      %v948 = vadd.f32 %v853, %v947
      %v949 = vpop.f32.mrf.mxu0
      %v950 = vadd.f32 %v853, %v949
      %951 = vdwg.mxu0
      %v952 = vadd.f32 %v519, %v913
      %v953 = vadd.f32 %v521, %v915
      %v954 = vadd.f32 %v524, %v918
      %v955 = vadd.f32 %v526, %v920
      %v956 = vadd.f32 %v529, %v923
      %v957 = vadd.f32 %v531, %v925
      %v958 = vadd.f32 %v534, %v928
      %v959 = vadd.f32 %v536, %v930
      %v960 = vadd.f32 %v539, %v933
      %v961 = vadd.f32 %v541, %v935
      %v962 = vadd.f32 %v544, %v938
      %v963 = vadd.f32 %v546, %v940
      %v964 = vadd.f32 %v549, %v943
      %v965 = vadd.f32 %v551, %v945
      %v966 = vadd.f32 %v554, %v948
      %v967 = vadd.f32 %v556, %v950
      %v968 = vpack.c.bf16 %v952, %v952
      %v969 = vpack.c.bf16 %v953, %v953
      %v970 = vpack.c.bf16 %v954, %v954
      %v971 = vpack.c.bf16 %v955, %v955
      %v972 = vpack.c.bf16 %v956, %v956
      %v973 = vpack.c.bf16 %v957, %v957
      %v974 = vpack.c.bf16 %v958, %v958
      %v975 = vpack.c.bf16 %v959, %v959
      %v976 = vpack.c.bf16 %v960, %v960
      %v977 = vpack.c.bf16 %v961, %v961
      %v978 = vpack.c.bf16 %v962, %v962
      %v979 = vpack.c.bf16 %v963, %v963
      %v980 = vpack.c.bf16 %v964, %v964
      %v981 = vpack.c.bf16 %v965, %v965
      %v982 = vpack.c.bf16 %v966, %v966
      %v983 = vpack.c.bf16 %v967, %v967
      %984 = vst [vmem:[%s369] sm:$0xf] %v968
      %985 = vst [vmem:[%s369 + $0x4] sm:$0xf] %v969
      %986 = vst [vmem:[%s369 + $0x8] sm:$0xf] %v970
      %987 = vst [vmem:[%s369 + $0xc] sm:$0xf] %v971
      %988 = vst [vmem:[%s369 + $0x10] sm:$0xf] %v972
      %989 = vst [vmem:[%s369 + $0x14] sm:$0xf] %v973
      %990 = vst [vmem:[%s369 + $0x18] sm:$0xf] %v974
      %991 = vst [vmem:[%s369 + $0x1c] sm:$0xf] %v975
      %992 = vst [vmem:[%s369 + $0x20] sm:$0xf] %v976
      %993 = vst [vmem:[%s369 + $0x24] sm:$0xf] %v977
      %994 = vst [vmem:[%s369 + $0x28] sm:$0xf] %v978
      %995 = vst [vmem:[%s369 + $0x2c] sm:$0xf] %v979
      %996 = vst [vmem:[%s369 + $0x30] sm:$0xf] %v980
      %997 = vst [vmem:[%s369 + $0x34] sm:$0xf] %v981
      %998 = vst [vmem:[%s369 + $0x38] sm:$0xf] %v982
      %999 = vst [vmem:[%s369 + $0x3c] sm:$0xf] %v983
      %v1000 = vld [vmem:[%s7] sm:$0xf]
      %v1001 = vld [vmem:[%s7 + $0x4] sm:$0xf]
      %v1002 = vld [vmem:[%s7 + $0x8] sm:$0xf]
      %v1003 = vld [vmem:[%s7 + $0xc] sm:$0xf]
      %v1004 = vld [vmem:[%s7 + $0x10] sm:$0xf]
      %v1005 = vld [vmem:[%s7 + $0x14] sm:$0xf]
      %v1006 = vld [vmem:[%s7 + $0x18] sm:$0xf]
      %v1007 = vld [vmem:[%s7 + $0x1c] sm:$0xf]
      %v1008 = vld [vmem:[%s7 + $0x20] sm:$0xf]
      %v1009 = vld [vmem:[%s7 + $0x24] sm:$0xf]
      %v1010 = vld [vmem:[%s7 + $0x28] sm:$0xf]
      %v1011 = vld [vmem:[%s7 + $0x2c] sm:$0xf]
      %v1012 = vld [vmem:[%s7 + $0x30] sm:$0xf]
      %v1013 = vld [vmem:[%s7 + $0x34] sm:$0xf]
      %v1014 = vld [vmem:[%s7 + $0x38] sm:$0xf]
      %v1015 = vld [vmem:[%s7 + $0x3c] sm:$0xf]
      %v1016 = vld [vmem:[%s8] sm:$0x1]
      %v1018 = vperm.slane %v1016, 0
      %v1036 = vunpack.c.l.b16 %v968
      %v1037 = vunpack.c.l.b16 %v969
      %v1038 = vunpack.c.l.b16 %v970
      %v1039 = vunpack.c.l.b16 %v971
      %v1040 = vunpack.c.l.b16 %v972
      %v1041 = vunpack.c.l.b16 %v973
      %v1042 = vunpack.c.l.b16 %v974
      %v1043 = vunpack.c.l.b16 %v975
      %v1044 = vunpack.c.l.b16 %v976
      %v1045 = vunpack.c.l.b16 %v977
      %v1046 = vunpack.c.l.b16 %v978
      %v1047 = vunpack.c.l.b16 %v979
      %v1048 = vunpack.c.l.b16 %v980
      %v1049 = vunpack.c.l.b16 %v981
      %v1050 = vunpack.c.l.b16 %v982
      %v1051 = vunpack.c.l.b16 %v983
      %v1052 = vpack.c.b16 %v1037, %v1036
      %v1053 = vpack.c.b16 %v1039, %v1038
      %v1054 = vpack.c.b16 %v1041, %v1040
      %v1055 = vpack.c.b16 %v1043, %v1042
      %v1056 = vpack.c.b16 %v1045, %v1044
      %v1057 = vpack.c.b16 %v1047, %v1046
      %v1058 = vpack.c.b16 %v1049, %v1048
      %v1059 = vpack.c.b16 %v1051, %v1050
      %v1084 = vunpack.c.l.b16 %v1000
      %v1085 = vunpack.c.l.b16 %v1001
      %v1086 = vunpack.c.l.b16 %v1002
      %v1087 = vunpack.c.l.b16 %v1003
      %v1088 = vunpack.c.l.b16 %v1004
      %v1089 = vunpack.c.l.b16 %v1005
      %v1090 = vunpack.c.l.b16 %v1006
      %v1091 = vunpack.c.l.b16 %v1007
      %v1092 = vunpack.c.l.b16 %v1008
      %v1093 = vunpack.c.l.b16 %v1009
      %v1094 = vunpack.c.l.b16 %v1010
      %v1095 = vunpack.c.l.b16 %v1011
      %v1096 = vunpack.c.l.b16 %v1012
      %v1097 = vunpack.c.l.b16 %v1013
      %v1098 = vunpack.c.l.b16 %v1014
      %v1099 = vunpack.c.l.b16 %v1015
      %v1100 = vpack.c.b16 %v1085, %v1084
      %v1101 = vpack.c.b16 %v1087, %v1086
      %v1102 = vpack.c.b16 %v1089, %v1088
      %v1103 = vpack.c.b16 %v1091, %v1090
      %v1104 = vpack.c.b16 %v1093, %v1092
      %v1105 = vpack.c.b16 %v1095, %v1094
      %v1106 = vpack.c.b16 %v1097, %v1096
      %v1107 = vpack.c.b16 %v1099, %v1098
      %1116 = vmatpush.bf16.msra.mxu0 %v1107
      %1117 = vmatpush.bf16.msra.mxu0 %v1106
      %1118 = vmatpush.bf16.msra.mxu0 %v1105
      %1119 = vmatpush.bf16.msra.mxu0 %v1104
      %1120 = vmatpush.bf16.msra.mxu0 %v1103
      %1121 = vmatpush.bf16.msra.mxu0 %v1102
      %1122 = vmatpush.bf16.msra.mxu0 %v1101
      %1123 = vmatpush.bf16.msra.mxu0 %v1100
      %1124 = vmatmul.bf16.gmra.mxu0 %v1052
      %v1125 = vpop.f32.mrf.mxu0
      %v1126 = vadd.f32 %v1018, %v1125
      %v1127 = vpop.f32.mrf.mxu0
      %v1128 = vadd.f32 %v1018, %v1127
      %1129 = vmatmul.bf16.gmra.mxu0 %v1053
      %v1130 = vpop.f32.mrf.mxu0
      %v1131 = vadd.f32 %v1018, %v1130
      %v1132 = vpop.f32.mrf.mxu0
      %v1133 = vadd.f32 %v1018, %v1132
      %1134 = vmatmul.bf16.gmra.mxu0 %v1054
      %v1135 = vpop.f32.mrf.mxu0
      %v1136 = vadd.f32 %v1018, %v1135
      %v1137 = vpop.f32.mrf.mxu0
      %v1138 = vadd.f32 %v1018, %v1137
      %1139 = vmatmul.bf16.gmra.mxu0 %v1055
      %v1140 = vpop.f32.mrf.mxu0
      %v1141 = vadd.f32 %v1018, %v1140
      %v1142 = vpop.f32.mrf.mxu0
      %v1143 = vadd.f32 %v1018, %v1142
      %1144 = vmatmul.bf16.gmra.mxu0 %v1056
      %v1145 = vpop.f32.mrf.mxu0
      %v1146 = vadd.f32 %v1018, %v1145
      %v1147 = vpop.f32.mrf.mxu0
      %v1148 = vadd.f32 %v1018, %v1147
      %1149 = vmatmul.bf16.gmra.mxu0 %v1057
      %v1150 = vpop.f32.mrf.mxu0
      %v1151 = vadd.f32 %v1018, %v1150
      %v1152 = vpop.f32.mrf.mxu0
      %v1153 = vadd.f32 %v1018, %v1152
      %1154 = vmatmul.bf16.gmra.mxu0 %v1058
      %v1155 = vpop.f32.mrf.mxu0
      %v1156 = vadd.f32 %v1018, %v1155
      %v1157 = vpop.f32.mrf.mxu0
      %v1158 = vadd.f32 %v1018, %v1157
      %1159 = vmatmul.bf16.gmra.mxu0 %v1059
      %v1160 = vpop.f32.mrf.mxu0
      %v1161 = vadd.f32 %v1018, %v1160
      %v1162 = vpop.f32.mrf.mxu0
      %v1163 = vadd.f32 %v1018, %v1162
      %1164 = vdwg.mxu0
      %v1165 = vpack.c.bf16 %v1126, %v1126
      %v1166 = vpack.c.bf16 %v1128, %v1128
      %v1167 = vpack.c.bf16 %v1131, %v1131
      %v1168 = vpack.c.bf16 %v1133, %v1133
      %v1169 = vpack.c.bf16 %v1136, %v1136
      %v1170 = vpack.c.bf16 %v1138, %v1138
      %v1171 = vpack.c.bf16 %v1141, %v1141
      %v1172 = vpack.c.bf16 %v1143, %v1143
      %v1173 = vpack.c.bf16 %v1146, %v1146
      %v1174 = vpack.c.bf16 %v1148, %v1148
      %v1175 = vpack.c.bf16 %v1151, %v1151
      %v1176 = vpack.c.bf16 %v1153, %v1153
      %v1177 = vpack.c.bf16 %v1156, %v1156
      %v1178 = vpack.c.bf16 %v1158, %v1158
      %v1179 = vpack.c.bf16 %v1161, %v1161
      %v1180 = vpack.c.bf16 %v1163, %v1163
      %1181 = vst [vmem:[%s375] sm:$0xf] %v1165
      %1182 = vst [vmem:[%s375 + $0x4] sm:$0xf] %v1166
      %1183 = vst [vmem:[%s375 + $0x8] sm:$0xf] %v1167
      %1184 = vst [vmem:[%s375 + $0xc] sm:$0xf] %v1168
      %1185 = vst [vmem:[%s375 + $0x10] sm:$0xf] %v1169
      %1186 = vst [vmem:[%s375 + $0x14] sm:$0xf] %v1170
      %1187 = vst [vmem:[%s375 + $0x18] sm:$0xf] %v1171
      %1188 = vst [vmem:[%s375 + $0x1c] sm:$0xf] %v1172
      %1189 = vst [vmem:[%s375 + $0x20] sm:$0xf] %v1173
      %1190 = vst [vmem:[%s375 + $0x24] sm:$0xf] %v1174
      %1191 = vst [vmem:[%s375 + $0x28] sm:$0xf] %v1175
      %1192 = vst [vmem:[%s375 + $0x2c] sm:$0xf] %v1176
      %1193 = vst [vmem:[%s375 + $0x30] sm:$0xf] %v1177
      %1194 = vst [vmem:[%s375 + $0x34] sm:$0xf] %v1178
      %1195 = vst [vmem:[%s375 + $0x38] sm:$0xf] %v1179
      %1196 = vst [vmem:[%s375 + $0x3c] sm:$0xf] %v1180
      %s1197 = smul.u32 16, %s22
      %p1198 = scmp.lt.s32.totalorder %s1197, 31
      %s1199 = scalar_select %p1198, %s1197, 31
      %s1200 = smul.addr %s1199, 4
      %s1201 = scalar_lea.vmem %s9, %s1200
      %s1202 = smul.u32 16, %s22
      %p1203 = scmp.lt.s32.totalorder %s1202, 31
      %s1204 = scalar_select %p1203, %s1202, 31
      %s1205 = smul.addr %s1204, 4
      %s1206 = scalar_lea.vmem %s10, %s1205
      // Predicated region
      $region57: #{object_detection_forward.4} parent=55 // pred_check
        %p1207 = pneg %p234
      $region58: #{object_detection_forward.4} parent=55 // pred_check_branch
        %1209 = sbr.rel (%p1207) target = $region60
      $region59: #{object_detection_forward.4} parent=55 // pred_region
        %s1210 = smul.u32 16, %s22
      $region60: #{object_detection_forward.4} parent=55 // pred_fallthru
        _
      // Predicated region
      $region61: #{object_detection_forward.4} parent=55 // pred_check
        %p1211 = pneg %p260
      $region62: #{object_detection_forward.4} parent=55 // pred_check_branch
        %1213 = sbr.rel (%p1211) target = $region64
      $region63: #{object_detection_forward.4} parent=55 // pred_region
        %s1214 = smul.u32 16, %s22
      $region64: #{object_detection_forward.4} parent=55 // pred_fallthru
        _
    $region56: #{object_detection_forward.4} parent=5 // pred_fallthru
      _
    %p1215 = scmp.le.s32.totalorder 2, %s17
    // Predicated region
    $region65: #{object_detection_forward.4} parent=5 // pred_check
      %p1216 = pneg %p1215
    $region66: #{object_detection_forward.4} parent=5 // pred_check_branch
      %1218 = sbr.rel (%p1216) target = $region68
    $region67: #{object_detection_forward.4} parent=5 // pred_region
      %s1219 = ssub.s32 %s17, 2
      // Predicated region
      $region69: #{object_detection_forward.4} parent=67 // pred_check
        %p1220 = pneg %p240
      $region70: #{object_detection_forward.4} parent=67 // pred_check_branch
        %1222 = sbr.rel (%p1220) target = $region72
      $region71: #{object_detection_forward.4} parent=67 // pred_region
        %s1223 = smul.u32 16, %s23
        %p1224 = scmp.lt.s32.totalorder %s1223, 31
        %s1225 = scalar_select %p1224, %s1223, 31
        %s1226 = smul.addr %s1225, 4
        %s1227 = scalar_lea.vmem %s9, %s1226
      $region72: #{object_detection_forward.4} parent=67 // pred_fallthru
        _
      // Predicated region
      $region73: #{object_detection_forward.4} parent=67 // pred_check
        %p1228 = pneg %p266
      $region74: #{object_detection_forward.4} parent=67 // pred_check_branch
        %1230 = sbr.rel (%p1228) target = $region76
      $region75: #{object_detection_forward.4} parent=67 // pred_region
        %s1231 = smul.u32 16, %s23
        %p1232 = scmp.lt.s32.totalorder %s1231, 31
        %s1233 = scalar_select %p1232, %s1231, 31
        %s1234 = smul.addr %s1233, 4
        %s1235 = scalar_lea.vmem %s10, %s1234
      $region76: #{object_detection_forward.4} parent=67 // pred_fallthru
        _
    $region68: #{object_detection_forward.4} parent=5 // pred_fallthru
      _
  $region6: #{object_detection_forward.4} parent=0 // loop_footer
    %s21 = sadd.s32 1, %s17
  $region7: #{object_detection_forward.4} parent=0 // loop_footer_branch
    %16 = sbr.rel target = $region3
  $region8: #{object_detection_forward.4} parent=0 // loop_exit
    _

// kernel: object_detection_forward.5
$region0: #{object_detection_forward.5}
  #allocation0 [shape = 'u32[]', space=smem, size = 0x4, offset = 0x4, fixed_abs, tag = 'smem constant byte address 0x4 - core index']
  #allocation1 [shape = 'u32[72,128]{1,0:T(1,128)}', space=vmem, size = 0x9000, scoped, tag = 'internal scratch']
  %s0 = inlined_call_operand.vmem [shape: bf16[128,128], index: 0, kind: input, shape index: {}]
  %s1 = inlined_call_operand.vmem [shape: bf16[128,128], index: 1, kind: input, shape index: {}]
  %s2 = inlined_call_operand.vmem [shape: f32[1,128], index: 2, kind: input, shape index: {}]
  %s3 = inlined_call_operand.vmem [shape: bf16[128,128], index: 3, kind: output, shape index: {}]
  %s4 = sld [smem:[#allocation0]]
  $region22: #{object_detection_forward.5} parent=0
    _
  %s6 = ssub.s32 1, %s4
  %s7 = scalar_select 0, %s6, %s4
  // Predicated region
  $region2: #{object_detection_forward.5} parent=0 // pred_check
    _
  $region3: #{object_detection_forward.5} parent=0 // pred_check_branch
    %9 = sbr.rel (0) target = $region5
  $region4: #{object_detection_forward.5} parent=0 // pred_region
    _
  $region5: #{object_detection_forward.5} parent=0 // pred_fallthru
    _
  // Predicated region
  $region6: #{object_detection_forward.5} parent=0 // pred_check
    _
  $region7: #{object_detection_forward.5} parent=0 // pred_check_branch
    %11 = sbr.rel (0) target = $region9
  $region8: #{object_detection_forward.5} parent=0 // pred_region
    _
  $region9: #{object_detection_forward.5} parent=0 // pred_fallthru
    _
  // Predicated region
  $region10: #{object_detection_forward.5} parent=0 // pred_check
    _
  $region11: #{object_detection_forward.5} parent=0 // pred_check_branch
    %13 = sbr.rel (0) target = $region13
  $region12: #{object_detection_forward.5} parent=0 // pred_region
    _
  $region13: #{object_detection_forward.5} parent=0 // pred_fallthru
    _
  %v14 = vld [vmem:[%s0] sm:$0xf]
  %v15 = vld [vmem:[%s0 + $0x4] sm:$0xf]
  %v16 = vld [vmem:[%s0 + $0x8] sm:$0xf]
  %v17 = vld [vmem:[%s0 + $0xc] sm:$0xf]
  %v18 = vld [vmem:[%s0 + $0x10] sm:$0xf]
  %v19 = vld [vmem:[%s0 + $0x14] sm:$0xf]
  %v20 = vld [vmem:[%s0 + $0x18] sm:$0xf]
  %v21 = vld [vmem:[%s0 + $0x1c] sm:$0xf]
  %v22 = vld [vmem:[%s0 + $0x20] sm:$0xf]
  %v23 = vld [vmem:[%s0 + $0x24] sm:$0xf]
  %v24 = vld [vmem:[%s0 + $0x28] sm:$0xf]
  %v25 = vld [vmem:[%s0 + $0x2c] sm:$0xf]
  %v26 = vld [vmem:[%s0 + $0x30] sm:$0xf]
  %v27 = vld [vmem:[%s0 + $0x34] sm:$0xf]
  %v28 = vld [vmem:[%s0 + $0x38] sm:$0xf]
  %v29 = vld [vmem:[%s0 + $0x3c] sm:$0xf]
  %v30 = vld [vmem:[%s1] sm:$0xf]
  %v31 = vld [vmem:[%s1 + $0x4] sm:$0xf]
  %v32 = vld [vmem:[%s1 + $0x8] sm:$0xf]
  %v33 = vld [vmem:[%s1 + $0xc] sm:$0xf]
  %v34 = vld [vmem:[%s1 + $0x10] sm:$0xf]
  %v35 = vld [vmem:[%s1 + $0x14] sm:$0xf]
  %v36 = vld [vmem:[%s1 + $0x18] sm:$0xf]
  %v37 = vld [vmem:[%s1 + $0x1c] sm:$0xf]
  %v38 = vld [vmem:[%s1 + $0x20] sm:$0xf]
  %v39 = vld [vmem:[%s1 + $0x24] sm:$0xf]
  %v40 = vld [vmem:[%s1 + $0x28] sm:$0xf]
  %v41 = vld [vmem:[%s1 + $0x2c] sm:$0xf]
  %v42 = vld [vmem:[%s1 + $0x30] sm:$0xf]
  %v43 = vld [vmem:[%s1 + $0x34] sm:$0xf]
  %v44 = vld [vmem:[%s1 + $0x38] sm:$0xf]
  %v45 = vld [vmem:[%s1 + $0x3c] sm:$0xf]
  %v46 = vld [vmem:[%s2] sm:$0x1]
  %v48 = vperm.slane %v46, 0
  %v66 = vunpack.c.l.b16 %v14
  %v67 = vunpack.c.l.b16 %v15
  %v68 = vunpack.c.l.b16 %v16
  %v69 = vunpack.c.l.b16 %v17
  %v70 = vunpack.c.l.b16 %v18
  %v71 = vunpack.c.l.b16 %v19
  %v72 = vunpack.c.l.b16 %v20
  %v73 = vunpack.c.l.b16 %v21
  %v74 = vunpack.c.l.b16 %v22
  %v75 = vunpack.c.l.b16 %v23
  %v76 = vunpack.c.l.b16 %v24
  %v77 = vunpack.c.l.b16 %v25
  %v78 = vunpack.c.l.b16 %v26
  %v79 = vunpack.c.l.b16 %v27
  %v80 = vunpack.c.l.b16 %v28
  %v81 = vunpack.c.l.b16 %v29
  %v82 = vpack.c.b16 %v67, %v66
  %v83 = vpack.c.b16 %v69, %v68
  %v84 = vpack.c.b16 %v71, %v70
  %v85 = vpack.c.b16 %v73, %v72
  %v86 = vpack.c.b16 %v75, %v74
  %v87 = vpack.c.b16 %v77, %v76
  %v88 = vpack.c.b16 %v79, %v78
  %v89 = vpack.c.b16 %v81, %v80
  %v114 = vunpack.c.l.b16 %v30
  %v115 = vunpack.c.l.b16 %v31
  %v116 = vunpack.c.l.b16 %v32
  %v117 = vunpack.c.l.b16 %v33
  %v118 = vunpack.c.l.b16 %v34
  %v119 = vunpack.c.l.b16 %v35
  %v120 = vunpack.c.l.b16 %v36
  %v121 = vunpack.c.l.b16 %v37
  %v122 = vunpack.c.l.b16 %v38
  %v123 = vunpack.c.l.b16 %v39
  %v124 = vunpack.c.l.b16 %v40
  %v125 = vunpack.c.l.b16 %v41
  %v126 = vunpack.c.l.b16 %v42
  %v127 = vunpack.c.l.b16 %v43
  %v128 = vunpack.c.l.b16 %v44
  %v129 = vunpack.c.l.b16 %v45
  %v130 = vpack.c.b16 %v115, %v114
  %v131 = vpack.c.b16 %v117, %v116
  %v132 = vpack.c.b16 %v119, %v118
  %v133 = vpack.c.b16 %v121, %v120
  %v134 = vpack.c.b16 %v123, %v122
  %v135 = vpack.c.b16 %v125, %v124
  %v136 = vpack.c.b16 %v127, %v126
  %v137 = vpack.c.b16 %v129, %v128
  %146 = vmatpush.bf16.msra.mxu0 %v137
  %147 = vmatpush.bf16.msra.mxu0 %v136
  %148 = vmatpush.bf16.msra.mxu0 %v135
  %149 = vmatpush.bf16.msra.mxu0 %v134
  %150 = vmatpush.bf16.msra.mxu0 %v133
  %151 = vmatpush.bf16.msra.mxu0 %v132
  %152 = vmatpush.bf16.msra.mxu0 %v131
  %153 = vmatpush.bf16.msra.mxu0 %v130
  %154 = vmatmul.bf16.gmra.mxu0 %v82
  %v155 = vpop.f32.mrf.mxu0
  %v156 = vadd.f32 %v48, %v155
  %v157 = vpop.f32.mrf.mxu0
  %v158 = vadd.f32 %v48, %v157
  %159 = vmatmul.bf16.gmra.mxu0 %v83
  %v160 = vpop.f32.mrf.mxu0
  %v161 = vadd.f32 %v48, %v160
  %v162 = vpop.f32.mrf.mxu0
  %v163 = vadd.f32 %v48, %v162
  %164 = vmatmul.bf16.gmra.mxu0 %v84
  %v165 = vpop.f32.mrf.mxu0
  %v166 = vadd.f32 %v48, %v165
  %v167 = vpop.f32.mrf.mxu0
  %v168 = vadd.f32 %v48, %v167
  %169 = vmatmul.bf16.gmra.mxu0 %v85
  %v170 = vpop.f32.mrf.mxu0
  %v171 = vadd.f32 %v48, %v170
  %v172 = vpop.f32.mrf.mxu0
  %v173 = vadd.f32 %v48, %v172
  %174 = vmatmul.bf16.gmra.mxu0 %v86
  %v175 = vpop.f32.mrf.mxu0
  %v176 = vadd.f32 %v48, %v175
  %v177 = vpop.f32.mrf.mxu0
  %v178 = vadd.f32 %v48, %v177
  %179 = vmatmul.bf16.gmra.mxu0 %v87
  %v180 = vpop.f32.mrf.mxu0
  %v181 = vadd.f32 %v48, %v180
  %v182 = vpop.f32.mrf.mxu0
  %v183 = vadd.f32 %v48, %v182
  %184 = vmatmul.bf16.gmra.mxu0 %v88
  %v185 = vpop.f32.mrf.mxu0
  %v186 = vadd.f32 %v48, %v185
  %v187 = vpop.f32.mrf.mxu0
  %v188 = vadd.f32 %v48, %v187
  %189 = vmatmul.bf16.gmra.mxu0 %v89
  %v190 = vpop.f32.mrf.mxu0
  %v191 = vadd.f32 %v48, %v190
  %v192 = vpop.f32.mrf.mxu0
  %v193 = vadd.f32 %v48, %v192
  %194 = vdwg.mxu0
  %v195 = vpack.c.bf16 %v156, %v156
  %v196 = vpack.c.bf16 %v158, %v158
  %v197 = vpack.c.bf16 %v161, %v161
  %v198 = vpack.c.bf16 %v163, %v163
  %v199 = vpack.c.bf16 %v166, %v166
  %v200 = vpack.c.bf16 %v168, %v168
  %v201 = vpack.c.bf16 %v171, %v171
  %v202 = vpack.c.bf16 %v173, %v173
  %v203 = vpack.c.bf16 %v176, %v176
  %v204 = vpack.c.bf16 %v178, %v178
  %v205 = vpack.c.bf16 %v181, %v181
  %v206 = vpack.c.bf16 %v183, %v183
  %v207 = vpack.c.bf16 %v186, %v186
  %v208 = vpack.c.bf16 %v188, %v188
  %v209 = vpack.c.bf16 %v191, %v191
  %v210 = vpack.c.bf16 %v193, %v193
  %211 = vst [vmem:[%s3] sm:$0xf] %v195
  %212 = vst [vmem:[%s3 + $0x4] sm:$0xf] %v196
  %213 = vst [vmem:[%s3 + $0x8] sm:$0xf] %v197
  %214 = vst [vmem:[%s3 + $0xc] sm:$0xf] %v198
  %215 = vst [vmem:[%s3 + $0x10] sm:$0xf] %v199
  %216 = vst [vmem:[%s3 + $0x14] sm:$0xf] %v200
  %217 = vst [vmem:[%s3 + $0x18] sm:$0xf] %v201
  %218 = vst [vmem:[%s3 + $0x1c] sm:$0xf] %v202
  %219 = vst [vmem:[%s3 + $0x20] sm:$0xf] %v203
  %220 = vst [vmem:[%s3 + $0x24] sm:$0xf] %v204
  %221 = vst [vmem:[%s3 + $0x28] sm:$0xf] %v205
  %222 = vst [vmem:[%s3 + $0x2c] sm:$0xf] %v206
  %223 = vst [vmem:[%s3 + $0x30] sm:$0xf] %v207
  %224 = vst [vmem:[%s3 + $0x34] sm:$0xf] %v208
  %225 = vst [vmem:[%s3 + $0x38] sm:$0xf] %v209
  %226 = vst [vmem:[%s3 + $0x3c] sm:$0xf] %v210
  // Predicated region
  $region14: #{object_detection_forward.5} parent=0 // pred_check
    _
  $region15: #{object_detection_forward.5} parent=0 // pred_check_branch
    %228 = sbr.rel (0) target = $region17
  $region16: #{object_detection_forward.5} parent=0 // pred_region
    _
  $region17: #{object_detection_forward.5} parent=0 // pred_fallthru
    _
  // Predicated region
  $region18: #{object_detection_forward.5} parent=0 // pred_check
    _
  $region19: #{object_detection_forward.5} parent=0 // pred_check_branch
    %230 = sbr.rel (0) target = $region21
  $region20: #{object_detection_forward.5} parent=0 // pred_region
    _
  $region21: #{object_detection_forward.5} parent=0 // pred_fallthru
    _

// kernel: object_detection_forward.7
$region0: #{object_detection_forward.7}
  #allocation0 [shape = 'u32[]', space=smem, size = 0x4, offset = 0x4, fixed_abs, tag = 'smem constant byte address 0x4 - core index']
  #allocation1 [shape = 'u32[72,128]{1,0:T(1,128)}', space=vmem, size = 0x9000, scoped, tag = 'internal scratch']
  #allocation2 [shape = 's32[1]{0}', space=sflag, size = 0x4, scoped, tag = 'scoped memory for object_detection_forward.7']
  #allocation3 [shape = 's32[1]{0:T(128)S(6)}', space=smem, size = 0x200, scoped, tag = 'prefetched SMEM operand 0']
  %s0 = inlined_call_operand.<no memory space> [shape: s32[1], index: 0, kind: input, shape index: {}]
  %s1 = inlined_call_operand.vmem [shape: bf16[512,512], index: 1, kind: input, shape index: {}]
  %s2 = inlined_call_operand.vmem [shape: f32[1,512], index: 2, kind: input, shape index: {}]
  %s3 = inlined_call_operand.vmem [shape: f32[1,512], index: 3, kind: output, shape index: {}]
  %s4 = sld [smem:[#allocation0]]
  $region49: #{object_detection_forward.7} parent=0
    _
  %s6 = ssub.s32 1, %s4
  %s7 = scalar_select 0, %s6, %s4
  %8 = sst [smem:[#allocation3]] %s0
  loop: start=0, step=1, limit=34
  $region2: #{object_detection_forward.7} parent=0 // loop_pre_header
    _
  $region3: #{object_detection_forward.7} parent=0 // loop_header
    %s10 = sphi 0, %s14
    %p11 = scmp.ge.s32.totalorder %s10, 34
    %s20 = sphi 0, %s22
    %s23 = sphi 0, %s20
    %s24 = sphi 0, %s23
    %s40 = sphi 0, %s24
    %s44 = sphi 0, %s44
    %s46 = sphi 0, %s44
    %s47 = sphi 0, %s46
    %s61 = sphi 0, %s47
    %s65 = sphi 0, %s65
    %s67 = sphi 0, %s65
    %s68 = sphi 0, %s67
    %s82 = sphi 0, %s68
  $region4: #{object_detection_forward.7} parent=0 // loop_header_branch
    %13 = sbr.rel (%p11) target = $region8
  $region5: #{object_detection_forward.7} parent=0 // loop_body
    %s15 = ssub.s32 %s10, 1
    %s16 = ssub.s32 %s10, 2
    %s17 = sadd.s32 %s10, 1
    %s18 = ssub.s32 %s10, %s17
    %p19 = scmp.eq.s32.totalorder %s18, 0
    %s21 = sadd.s32 %s20, 1
    %s22 = scalar_select %p19, %s20, %s21
    %p25 = pneg %p19
    %p26 = scmp.eq.s32.totalorder %s10, 31
    %p27 = por %p25, %p26
    %p28 = scmp.ne.s32.totalorder %s20, %s23
    %p29 = scmp.eq.s32.totalorder %s10, 0
    %p30 = por %p28, %p29
    %p31 = scmp.ne.s32.totalorder %s20, %s23
    %p32 = scmp.eq.s32.totalorder %s15, 31
    %p33 = por %p31, %p32
    %p34 = scmp.ne.s32.totalorder %s23, %s24
    %p35 = scmp.eq.s32.totalorder %s15, 0
    %p36 = por %p34, %p35
    %p37 = scmp.ne.s32.totalorder %s23, %s24
    %p38 = scmp.eq.s32.totalorder %s16, 31
    %p39 = por %p37, %p38
    %p41 = scmp.ne.s32.totalorder %s24, %s40
    %p42 = scmp.eq.s32.totalorder %s16, 0
    %p43 = por %p41, %p42
    %s45 = sadd.s32 %s44, 1
    %p48 = scmp.eq.s32.totalorder %s10, 31
    %p49 = scmp.ne.s32.totalorder %s44, %s46
    %p50 = scmp.eq.s32.totalorder %s10, 0
    %p51 = por %p49, %p50
    %p52 = scmp.ne.s32.totalorder %s44, %s46
    %p53 = scmp.eq.s32.totalorder %s15, 31
    %p54 = por %p52, %p53
    %p55 = scmp.ne.s32.totalorder %s46, %s47
    %p56 = scmp.eq.s32.totalorder %s15, 0
    %p57 = por %p55, %p56
    %p58 = scmp.ne.s32.totalorder %s46, %s47
    %p59 = scmp.eq.s32.totalorder %s16, 31
    %p60 = por %p58, %p59
    %p62 = scmp.ne.s32.totalorder %s47, %s61
    %p63 = scmp.eq.s32.totalorder %s16, 0
    %p64 = por %p62, %p63
    %s66 = sadd.s32 %s65, 1
    %p69 = scmp.eq.s32.totalorder %s10, 31
    %p70 = scmp.ne.s32.totalorder %s65, %s67
    %p71 = scmp.eq.s32.totalorder %s10, 0
    %p72 = por %p70, %p71
    %p73 = scmp.ne.s32.totalorder %s65, %s67
    %p74 = scmp.eq.s32.totalorder %s15, 31
    %p75 = por %p73, %p74
    %p76 = scmp.ne.s32.totalorder %s67, %s68
    %p77 = scmp.eq.s32.totalorder %s15, 0
    %p78 = por %p76, %p77
    %p79 = scmp.ne.s32.totalorder %s67, %s68
    %p80 = scmp.eq.s32.totalorder %s16, 31
    %p81 = por %p79, %p80
    %p83 = scmp.ne.s32.totalorder %s68, %s82
    %p84 = scmp.eq.s32.totalorder %s16, 0
    %p85 = por %p83, %p84
    %p86 = scmp.le.s32.totalorder 1, %s10
    %p87 = scmp.lt.s32.totalorder %s10, 33
    %p88 = pnand %p86, %p87
    %p89 = pneg %p88
    // Predicated region
    $region9: #{object_detection_forward.7} parent=5 // pred_check
      _
    $region10: #{object_detection_forward.7} parent=5 // pred_check_branch
      %91 = sbr.rel (%p88) target = $region12
    $region11: #{object_detection_forward.7} parent=5 // pred_region
      %s92 = ssub.s32 %s10, 1
      // Predicated region
      $region13: #{object_detection_forward.7} parent=11 // pred_check
        %p93 = pneg %p57
      $region14: #{object_detection_forward.7} parent=11 // pred_check_branch
        %95 = sbr.rel (%p93) target = $region16
      $region15: #{object_detection_forward.7} parent=11 // pred_region
        _
      $region16: #{object_detection_forward.7} parent=11 // pred_fallthru
        _
    $region12: #{object_detection_forward.7} parent=5 // pred_fallthru
      _
    %p96 = scmp.lt.s32.totalorder %s10, 32
    // Predicated region
    $region17: #{object_detection_forward.7} parent=5 // pred_check
      %p97 = pneg %p96
    $region18: #{object_detection_forward.7} parent=5 // pred_check_branch
      %99 = sbr.rel (%p97) target = $region20
    $region19: #{object_detection_forward.7} parent=5 // pred_region
      // Predicated region
      $region21: #{object_detection_forward.7} parent=19 // pred_check
        %p100 = pneg %p30
      $region22: #{object_detection_forward.7} parent=19 // pred_check_branch
        %102 = sbr.rel (%p100) target = $region24
      $region23: #{object_detection_forward.7} parent=19 // pred_region
        %s103 = smul.u32 2, %s10
        %p104 = scmp.lt.s32.totalorder %s103, 63
        %s105 = scalar_select %p104, %s103, 63
        %s106 = smul.addr %s105, 4
        %s107 = smul.addr %s106, 4
        %s108 = scalar_lea.vmem %s1, %s107
        %s109 = smul.u32 2, %s10
      $region24: #{object_detection_forward.7} parent=19 // pred_fallthru
        _
    $region20: #{object_detection_forward.7} parent=5 // pred_fallthru
      _
    %p110 = scmp.le.s32.totalorder 1, %s10
    %p111 = scmp.lt.s32.totalorder %s10, 33
    %p112 = pnand %p110, %p111
    %p113 = pneg %p112
    // Predicated region
    $region25: #{object_detection_forward.7} parent=5 // pred_check
      _
    $region26: #{object_detection_forward.7} parent=5 // pred_check_branch
      %115 = sbr.rel (%p112) target = $region28
    $region27: #{object_detection_forward.7} parent=5 // pred_region
      %s116 = ssub.s32 %s10, 1
      %s117 = smul.u32 2, %s15
      %p118 = scmp.lt.s32.totalorder %s117, 63
      %s119 = scalar_select %p118, %s117, 63
      %s120 = smul.addr %s119, 4
      %s121 = smul.addr %s120, 4
      %s122 = scalar_lea.vmem %s1, %s121
      %p123 = pneg %p36
      %p124 = pneg %p33
      %p125 = pneg %p57
      %p126 = pneg %p54
      %p127 = pneg %p78
      %p128 = pneg %p75
      %s129 = smul.u32 2, %s15
      %p130 = scmp.lt.s32.totalorder %s129, 63
      %s131 = scalar_select %p130, %s129, 63
      %s132 = smul.addr %s131, 4
      %s133 = smul.addr %s132, 4
      %s134 = scalar_lea.vmem %s1, %s133
      %s135 = smul.u32 2, %s15
      %p136 = scmp.eq.s32.totalorder %s15, 0
      // Predicated region
      $region29: #{object_detection_forward.7} parent=27 // pred_check
        %p137 = pneg %p136
      $region30: #{object_detection_forward.7} parent=27 // pred_check_branch
        %139 = sbr.rel (%p137) target = $region32
      $region31: #{object_detection_forward.7} parent=27 // pred_region
        %v140 = vld [vmem:[%s2] sm:$0xf]
        %v141 = vlaneseq
        %vm142 = vcmp.ge.s32.totalorder %v141, 0
        %vm143 = vcmp.lt.s32.totalorder %v141, 512
        %vm144 = vmand %vm142, %vm143
        %145 = vst.msk [vmem:[%s3] sm:$0xf] %vm144, %v140
      $region32: #{object_detection_forward.7} parent=27 // pred_fallthru
        _
      %s146 = smul.u32 %s15, 16
      %s147 = sld [smem:[#allocation3]]
      %p148 = scmp.lt.s32.totalorder %s146, %s147
      // Predicated region
      $region33: #{object_detection_forward.7} parent=27 // pred_check
        %p149 = pneg %p148
      $region34: #{object_detection_forward.7} parent=27 // pred_check_branch
        %151 = sbr.rel (%p149) target = $region36
      $region35: #{object_detection_forward.7} parent=27 // pred_region
        %v152 = vld [vmem:[%s134] sm:$0xff]
        %v153 = vld [vmem:[%s134 + $0x8] sm:$0xff]
        %v154 = vld [vmem:[%s134 + $0x10] sm:$0xff]
        %v155 = vld [vmem:[%s134 + $0x18] sm:$0xff]
        %v156 = vunpack.c.l.bf16 %v152
        %v157 = vunpack.c.h.bf16 %v152
        %v158 = vunpack.c.l.bf16 %v153
        %v159 = vunpack.c.h.bf16 %v153
        %v160 = vunpack.c.l.bf16 %v154
        %v161 = vunpack.c.h.bf16 %v154
        %v162 = vunpack.c.l.bf16 %v155
        %v163 = vunpack.c.h.bf16 %v155
        %v164 = vlaneseq
        %v165 = vand.u32 %v164, 127
        %v166 = vadd.s32 %v165, 128
        %v167 = vadd.s32 %v165, 256
        %v168 = vadd.s32 %v165, 384
        %v169 = vstv %s146
        %v170 = vsub.s32 %v165, %v169
        %v171 = vsub.s32 %v166, %v169
        %v172 = vsub.s32 %v167, %v169
        %v173 = vsub.s32 %v168, %v169
        %v174 = vld [vmem:[%s3] sm:$0xf]
        %vm175 = vcmp.eq.s32.totalorder %v170, 0
        %vm176 = vcmp.eq.s32.totalorder %v171, 0
        %vm177 = vcmp.eq.s32.totalorder %v172, 0
        %vm178 = vcmp.eq.s32.totalorder %v173, 0
        %v180 = vperm.slane %v174, 0
        %v181 = vperm.slane %v174, 1
        %v182 = vperm.slane %v174, 2
        %v183 = vperm.slane %v174, 3
        %v188 = vsel %vm175, %v180, 0.0
        %v189 = vsel %vm176, %v181, 0.0
        %v190 = vsel %vm177, %v182, 0.0
        %v191 = vsel %vm178, %v183, 0.0
        %vm192 = vcmask 1040384
        %v193 = vsel %vm192, %v188, -inf
        %v194 = vsel %vm192, %v189, -inf
        %v195 = vsel %vm192, %v190, -inf
        %v196 = vsel %vm192, %v191, -inf
        %v197 = vmax.f32 %v193, %v194
        %v198 = vmax.f32 %v195, %v196
        %v199 = vmax.f32 %v197, %v198
        %200 = vmax.xlane.f32.xlu0 %v199
        %v201 = vpop.xlane.xlu0 %200
        %v202 = vmul.f32 %v156, %v201
        %v203 = vmul.f32 %v157, %v201
        %v204 = vmul.f32 %v158, %v201
        %v205 = vmul.f32 %v159, %v201
        %v206 = vsub.f32 1.0, %v202
        %v207 = vsub.f32 1.0, %v203
        %v208 = vsub.f32 1.0, %v204
        %v209 = vsub.f32 1.0, %v205
        %v214 = vrot.slane %v207, 7
        %v215 = vrot.slane %v208, 6
        %v216 = vrot.slane %v209, 5
        %v217 = vsel %vm192, %v206, %v214
        %vm218 = vcmask 1042434
        %v219 = vsel %vm218, %v215, %v216
        %vm220 = vcmask 1041408
        %v221 = vsel %vm220, %v217, %v219
        %v223 = vmul.f32 %v174, %v221
        %vm224 = vcmp.eq.s32.totalorder %v170, 1
        %vm225 = vcmp.eq.s32.totalorder %v171, 1
        %vm226 = vcmp.eq.s32.totalorder %v172, 1
        %vm227 = vcmp.eq.s32.totalorder %v173, 1
        %v229 = vperm.slane %v223, 0
        %v230 = vperm.slane %v223, 1
        %v231 = vperm.slane %v223, 2
        %v232 = vperm.slane %v223, 3
        %v237 = vsel %vm224, %v229, 0.0
        %v238 = vsel %vm225, %v230, 0.0
        %v239 = vsel %vm226, %v231, 0.0
        %v240 = vsel %vm227, %v232, 0.0
        %v241 = vsel %vm192, %v237, -inf
        %v242 = vsel %vm192, %v238, -inf
        %v243 = vsel %vm192, %v239, -inf
        %v244 = vsel %vm192, %v240, -inf
        %v245 = vmax.f32 %v241, %v242
        %v246 = vmax.f32 %v243, %v244
        %v247 = vmax.f32 %v245, %v246
        %248 = vmax.xlane.f32.xlu0 %v247
        %v249 = vpop.xlane.xlu0 %248
        %v251 = vrot.slane %v249, 7
        %v253 = vmul.f32 %v156, %v251
        %v254 = vmul.f32 %v157, %v251
        %v255 = vmul.f32 %v158, %v251
        %v256 = vmul.f32 %v159, %v251
        %v257 = vsub.f32 1.0, %v253
        %v258 = vsub.f32 1.0, %v254
        %v259 = vsub.f32 1.0, %v255
        %v260 = vsub.f32 1.0, %v256
        %265 = vst [vmem:[#allocation1] sm:$0xff] %v257
        %266 = vst [vmem:[#allocation1 + $0x9] sm:$0xff] %v258
        %267 = vst [vmem:[#allocation1 + $0x12] sm:$0xff] %v259
        %268 = vst [vmem:[#allocation1 + $0x1b] sm:$0xff] %v260
        %s269 = scalar_lea.vmem [#allocation1], 1
        %v270 = vld [vmem:[%s269] ss:$9 sm:$0xff]
        %v272 = vmul.f32 %v223, %v270
        %vm273 = vcmp.eq.s32.totalorder %v170, 2
        %vm274 = vcmp.eq.s32.totalorder %v171, 2
        %vm275 = vcmp.eq.s32.totalorder %v172, 2
        %vm276 = vcmp.eq.s32.totalorder %v173, 2
        %v278 = vperm.slane %v272, 0
        %v279 = vperm.slane %v272, 1
        %v280 = vperm.slane %v272, 2
        %v281 = vperm.slane %v272, 3
        %v286 = vsel %vm273, %v278, 0.0
        %v287 = vsel %vm274, %v279, 0.0
        %v288 = vsel %vm275, %v280, 0.0
        %v289 = vsel %vm276, %v281, 0.0
        %v290 = vsel %vm192, %v286, -inf
        %v291 = vsel %vm192, %v287, -inf
        %v292 = vsel %vm192, %v288, -inf
        %v293 = vsel %vm192, %v289, -inf
        %v294 = vmax.f32 %v290, %v291
        %v295 = vmax.f32 %v292, %v293
        %v296 = vmax.f32 %v294, %v295
        %297 = vmax.xlane.f32.xlu0 %v296
        %v298 = vpop.xlane.xlu0 %297
        %v300 = vrot.slane %v298, 6
        %v302 = vmul.f32 %v156, %v300
        %v303 = vmul.f32 %v157, %v300
        %v304 = vmul.f32 %v158, %v300
        %v305 = vmul.f32 %v159, %v300
        %v306 = vsub.f32 1.0, %v302
        %v307 = vsub.f32 1.0, %v303
        %v308 = vsub.f32 1.0, %v304
        %v309 = vsub.f32 1.0, %v305
        %314 = vst [vmem:[#allocation1] sm:$0xff] %v306
        %315 = vst [vmem:[#allocation1 + $0x9] sm:$0xff] %v307
        %316 = vst [vmem:[#allocation1 + $0x12] sm:$0xff] %v308
        %317 = vst [vmem:[#allocation1 + $0x1b] sm:$0xff] %v309
        %s318 = scalar_lea.vmem [#allocation1], 2
        %v319 = vld [vmem:[%s318] ss:$9 sm:$0xff]
        %v321 = vmul.f32 %v272, %v319
        %vm322 = vcmp.eq.s32.totalorder %v170, 3
        %vm323 = vcmp.eq.s32.totalorder %v171, 3
        %vm324 = vcmp.eq.s32.totalorder %v172, 3
        %vm325 = vcmp.eq.s32.totalorder %v173, 3
        %v327 = vperm.slane %v321, 0
        %v328 = vperm.slane %v321, 1
        %v329 = vperm.slane %v321, 2
        %v330 = vperm.slane %v321, 3
        %v335 = vsel %vm322, %v327, 0.0
        %v336 = vsel %vm323, %v328, 0.0
        %v337 = vsel %vm324, %v329, 0.0
        %v338 = vsel %vm325, %v330, 0.0
        %v339 = vsel %vm192, %v335, -inf
        %v340 = vsel %vm192, %v336, -inf
        %v341 = vsel %vm192, %v337, -inf
        %v342 = vsel %vm192, %v338, -inf
        %v343 = vmax.f32 %v339, %v340
        %v344 = vmax.f32 %v341, %v342
        %v345 = vmax.f32 %v343, %v344
        %346 = vmax.xlane.f32.xlu0 %v345
        %v347 = vpop.xlane.xlu0 %346
        %v349 = vrot.slane %v347, 5
        %v351 = vmul.f32 %v156, %v349
        %v352 = vmul.f32 %v157, %v349
        %v353 = vmul.f32 %v158, %v349
        %v354 = vmul.f32 %v159, %v349
        %v355 = vsub.f32 1.0, %v351
        %v356 = vsub.f32 1.0, %v352
        %v357 = vsub.f32 1.0, %v353
        %v358 = vsub.f32 1.0, %v354
        %363 = vst [vmem:[#allocation1] sm:$0xff] %v355
        %364 = vst [vmem:[#allocation1 + $0x9] sm:$0xff] %v356
        %365 = vst [vmem:[#allocation1 + $0x12] sm:$0xff] %v357
        %366 = vst [vmem:[#allocation1 + $0x1b] sm:$0xff] %v358
        %s367 = scalar_lea.vmem [#allocation1], 3
        %v368 = vld [vmem:[%s367] ss:$9 sm:$0xff]
        %v370 = vmul.f32 %v321, %v368
        %vm371 = vcmp.eq.s32.totalorder %v170, 4
        %vm372 = vcmp.eq.s32.totalorder %v171, 4
        %vm373 = vcmp.eq.s32.totalorder %v172, 4
        %vm374 = vcmp.eq.s32.totalorder %v173, 4
        %v376 = vperm.slane %v370, 0
        %v377 = vperm.slane %v370, 1
        %v378 = vperm.slane %v370, 2
        %v379 = vperm.slane %v370, 3
        %v384 = vsel %vm371, %v376, 0.0
        %v385 = vsel %vm372, %v377, 0.0
        %v386 = vsel %vm373, %v378, 0.0
        %v387 = vsel %vm374, %v379, 0.0
        %v388 = vsel %vm192, %v384, -inf
        %v389 = vsel %vm192, %v385, -inf
        %v390 = vsel %vm192, %v386, -inf
        %v391 = vsel %vm192, %v387, -inf
        %v392 = vmax.f32 %v388, %v389
        %v393 = vmax.f32 %v390, %v391
        %v394 = vmax.f32 %v392, %v393
        %395 = vmax.xlane.f32.xlu0 %v394
        %v396 = vpop.xlane.xlu0 %395
        %v398 = vrot.slane %v396, 4
        %v400 = vmul.f32 %v156, %v398
        %v401 = vmul.f32 %v157, %v398
        %v402 = vmul.f32 %v158, %v398
        %v403 = vmul.f32 %v159, %v398
        %v404 = vsub.f32 1.0, %v400
        %v405 = vsub.f32 1.0, %v401
        %v406 = vsub.f32 1.0, %v402
        %v407 = vsub.f32 1.0, %v403
        %412 = vst [vmem:[#allocation1] sm:$0xff] %v404
        %413 = vst [vmem:[#allocation1 + $0x9] sm:$0xff] %v405
        %414 = vst [vmem:[#allocation1 + $0x12] sm:$0xff] %v406
        %415 = vst [vmem:[#allocation1 + $0x1b] sm:$0xff] %v407
        %s416 = scalar_lea.vmem [#allocation1], 4
        %v417 = vld [vmem:[%s416] ss:$9 sm:$0xff]
        %v419 = vmul.f32 %v370, %v417
        %vm420 = vcmp.eq.s32.totalorder %v170, 5
        %vm421 = vcmp.eq.s32.totalorder %v171, 5
        %vm422 = vcmp.eq.s32.totalorder %v172, 5
        %vm423 = vcmp.eq.s32.totalorder %v173, 5
        %v425 = vperm.slane %v419, 0
        %v426 = vperm.slane %v419, 1
        %v427 = vperm.slane %v419, 2
        %v428 = vperm.slane %v419, 3
        %v433 = vsel %vm420, %v425, 0.0
        %v434 = vsel %vm421, %v426, 0.0
        %v435 = vsel %vm422, %v427, 0.0
        %v436 = vsel %vm423, %v428, 0.0
        %v437 = vsel %vm192, %v433, -inf
        %v438 = vsel %vm192, %v434, -inf
        %v439 = vsel %vm192, %v435, -inf
        %v440 = vsel %vm192, %v436, -inf
        %v441 = vmax.f32 %v437, %v438
        %v442 = vmax.f32 %v439, %v440
        %v443 = vmax.f32 %v441, %v442
        %444 = vmax.xlane.f32.xlu0 %v443
        %v445 = vpop.xlane.xlu0 %444
        %v447 = vrot.slane %v445, 3
        %v449 = vmul.f32 %v156, %v447
        %v450 = vmul.f32 %v157, %v447
        %v451 = vmul.f32 %v158, %v447
        %v452 = vmul.f32 %v159, %v447
        %v453 = vsub.f32 1.0, %v449
        %v454 = vsub.f32 1.0, %v450
        %v455 = vsub.f32 1.0, %v451
        %v456 = vsub.f32 1.0, %v452
        %461 = vst [vmem:[#allocation1] sm:$0xff] %v453
        %462 = vst [vmem:[#allocation1 + $0x9] sm:$0xff] %v454
        %463 = vst [vmem:[#allocation1 + $0x12] sm:$0xff] %v455
        %464 = vst [vmem:[#allocation1 + $0x1b] sm:$0xff] %v456
        %s465 = scalar_lea.vmem [#allocation1], 5
        %v466 = vld [vmem:[%s465] ss:$9 sm:$0xff]
        %v468 = vmul.f32 %v419, %v466
        %vm469 = vcmp.eq.s32.totalorder %v170, 6
        %vm470 = vcmp.eq.s32.totalorder %v171, 6
        %vm471 = vcmp.eq.s32.totalorder %v172, 6
        %vm472 = vcmp.eq.s32.totalorder %v173, 6
        %v474 = vperm.slane %v468, 0
        %v475 = vperm.slane %v468, 1
        %v476 = vperm.slane %v468, 2
        %v477 = vperm.slane %v468, 3
        %v482 = vsel %vm469, %v474, 0.0
        %v483 = vsel %vm470, %v475, 0.0
        %v484 = vsel %vm471, %v476, 0.0
        %v485 = vsel %vm472, %v477, 0.0
        %v486 = vsel %vm192, %v482, -inf
        %v487 = vsel %vm192, %v483, -inf
        %v488 = vsel %vm192, %v484, -inf
        %v489 = vsel %vm192, %v485, -inf
        %v490 = vmax.f32 %v486, %v487
        %v491 = vmax.f32 %v488, %v489
        %v492 = vmax.f32 %v490, %v491
        %493 = vmax.xlane.f32.xlu0 %v492
        %v494 = vpop.xlane.xlu0 %493
        %v496 = vrot.slane %v494, 2
        %v498 = vmul.f32 %v156, %v496
        %v499 = vmul.f32 %v157, %v496
        %v500 = vmul.f32 %v158, %v496
        %v501 = vmul.f32 %v159, %v496
        %v502 = vsub.f32 1.0, %v498
        %v503 = vsub.f32 1.0, %v499
        %v504 = vsub.f32 1.0, %v500
        %v505 = vsub.f32 1.0, %v501
        %510 = vst [vmem:[#allocation1] sm:$0xff] %v502
        %511 = vst [vmem:[#allocation1 + $0x9] sm:$0xff] %v503
        %512 = vst [vmem:[#allocation1 + $0x12] sm:$0xff] %v504
        %513 = vst [vmem:[#allocation1 + $0x1b] sm:$0xff] %v505
        %s514 = scalar_lea.vmem [#allocation1], 6
        %v515 = vld [vmem:[%s514] ss:$9 sm:$0xff]
        %v517 = vmul.f32 %v468, %v515
        %vm518 = vcmp.eq.s32.totalorder %v170, 7
        %vm519 = vcmp.eq.s32.totalorder %v171, 7
        %vm520 = vcmp.eq.s32.totalorder %v172, 7
        %vm521 = vcmp.eq.s32.totalorder %v173, 7
        %v523 = vperm.slane %v517, 0
        %v524 = vperm.slane %v517, 1
        %v525 = vperm.slane %v517, 2
        %v526 = vperm.slane %v517, 3
        %v531 = vsel %vm518, %v523, 0.0
        %v532 = vsel %vm519, %v524, 0.0
        %v533 = vsel %vm520, %v525, 0.0
        %v534 = vsel %vm521, %v526, 0.0
        %v535 = vsel %vm192, %v531, -inf
        %v536 = vsel %vm192, %v532, -inf
        %v537 = vsel %vm192, %v533, -inf
        %v538 = vsel %vm192, %v534, -inf
        %v539 = vmax.f32 %v535, %v536
        %v540 = vmax.f32 %v537, %v538
        %v541 = vmax.f32 %v539, %v540
        %542 = vmax.xlane.f32.xlu0 %v541
        %v543 = vpop.xlane.xlu0 %542
        %v545 = vrot.slane %v543, 1
        %v547 = vmul.f32 %v156, %v545
        %v548 = vmul.f32 %v157, %v545
        %v549 = vmul.f32 %v158, %v545
        %v550 = vmul.f32 %v159, %v545
        %v551 = vsub.f32 1.0, %v547
        %v552 = vsub.f32 1.0, %v548
        %v553 = vsub.f32 1.0, %v549
        %v554 = vsub.f32 1.0, %v550
        %559 = vst [vmem:[#allocation1] sm:$0xff] %v551
        %560 = vst [vmem:[#allocation1 + $0x9] sm:$0xff] %v552
        %561 = vst [vmem:[#allocation1 + $0x12] sm:$0xff] %v553
        %562 = vst [vmem:[#allocation1 + $0x1b] sm:$0xff] %v554
        %s563 = scalar_lea.vmem [#allocation1], 7
        %v564 = vld [vmem:[%s563] ss:$9 sm:$0xff]
        %v566 = vmul.f32 %v517, %v564
        %vm567 = vcmp.eq.s32.totalorder %v170, 8
        %vm568 = vcmp.eq.s32.totalorder %v171, 8
        %vm569 = vcmp.eq.s32.totalorder %v172, 8
        %vm570 = vcmp.eq.s32.totalorder %v173, 8
        %v572 = vperm.slane %v566, 0
        %v573 = vperm.slane %v566, 1
        %v574 = vperm.slane %v566, 2
        %v575 = vperm.slane %v566, 3
        %v580 = vsel %vm567, %v572, 0.0
        %v581 = vsel %vm568, %v573, 0.0
        %v582 = vsel %vm569, %v574, 0.0
        %v583 = vsel %vm570, %v575, 0.0
        %v584 = vsel %vm192, %v580, -inf
        %v585 = vsel %vm192, %v581, -inf
        %v586 = vsel %vm192, %v582, -inf
        %v587 = vsel %vm192, %v583, -inf
        %v588 = vmax.f32 %v584, %v585
        %v589 = vmax.f32 %v586, %v587
        %v590 = vmax.f32 %v588, %v589
        %591 = vmax.xlane.f32.xlu0 %v590
        %v592 = vpop.xlane.xlu0 %591
        %v593 = vmul.f32 %v160, %v592
        %v594 = vmul.f32 %v161, %v592
        %v595 = vmul.f32 %v162, %v592
        %v596 = vmul.f32 %v163, %v592
        %v597 = vsub.f32 1.0, %v593
        %v598 = vsub.f32 1.0, %v594
        %v599 = vsub.f32 1.0, %v595
        %v600 = vsub.f32 1.0, %v596
        %v605 = vrot.slane %v598, 7
        %v606 = vrot.slane %v599, 6
        %v607 = vrot.slane %v600, 5
        %v608 = vsel %vm192, %v597, %v605
        %v609 = vsel %vm218, %v606, %v607
        %v610 = vsel %vm220, %v608, %v609
        %v612 = vmul.f32 %v566, %v610
        %vm613 = vcmp.eq.s32.totalorder %v170, 9
        %vm614 = vcmp.eq.s32.totalorder %v171, 9
        %vm615 = vcmp.eq.s32.totalorder %v172, 9
        %vm616 = vcmp.eq.s32.totalorder %v173, 9
        %v618 = vperm.slane %v612, 0
        %v619 = vperm.slane %v612, 1
        %v620 = vperm.slane %v612, 2
        %v621 = vperm.slane %v612, 3
        %v626 = vsel %vm613, %v618, 0.0
        %v627 = vsel %vm614, %v619, 0.0
        %v628 = vsel %vm615, %v620, 0.0
        %v629 = vsel %vm616, %v621, 0.0
        %v630 = vsel %vm192, %v626, -inf
        %v631 = vsel %vm192, %v627, -inf
        %v632 = vsel %vm192, %v628, -inf
        %v633 = vsel %vm192, %v629, -inf
        %v634 = vmax.f32 %v630, %v631
        %v635 = vmax.f32 %v632, %v633
        %v636 = vmax.f32 %v634, %v635
        %637 = vmax.xlane.f32.xlu0 %v636
        %v638 = vpop.xlane.xlu0 %637
        %v640 = vrot.slane %v638, 7
        %v642 = vmul.f32 %v160, %v640
        %v643 = vmul.f32 %v161, %v640
        %v644 = vmul.f32 %v162, %v640
        %v645 = vmul.f32 %v163, %v640
        %v646 = vsub.f32 1.0, %v642
        %v647 = vsub.f32 1.0, %v643
        %v648 = vsub.f32 1.0, %v644
        %v649 = vsub.f32 1.0, %v645
        %654 = vst [vmem:[#allocation1] sm:$0xff] %v646
        %655 = vst [vmem:[#allocation1 + $0x9] sm:$0xff] %v647
        %656 = vst [vmem:[#allocation1 + $0x12] sm:$0xff] %v648
        %657 = vst [vmem:[#allocation1 + $0x1b] sm:$0xff] %v649
        %s658 = scalar_lea.vmem [#allocation1], 1
        %v659 = vld [vmem:[%s658] ss:$9 sm:$0xff]
        %v661 = vmul.f32 %v612, %v659
        %vm662 = vcmp.eq.s32.totalorder %v170, 10
        %vm663 = vcmp.eq.s32.totalorder %v171, 10
        %vm664 = vcmp.eq.s32.totalorder %v172, 10
        %vm665 = vcmp.eq.s32.totalorder %v173, 10
        %v667 = vperm.slane %v661, 0
        %v668 = vperm.slane %v661, 1
        %v669 = vperm.slane %v661, 2
        %v670 = vperm.slane %v661, 3
        %v675 = vsel %vm662, %v667, 0.0
        %v676 = vsel %vm663, %v668, 0.0
        %v677 = vsel %vm664, %v669, 0.0
        %v678 = vsel %vm665, %v670, 0.0
        %v679 = vsel %vm192, %v675, -inf
        %v680 = vsel %vm192, %v676, -inf
        %v681 = vsel %vm192, %v677, -inf
        %v682 = vsel %vm192, %v678, -inf
        %v683 = vmax.f32 %v679, %v680
        %v684 = vmax.f32 %v681, %v682
        %v685 = vmax.f32 %v683, %v684
        %686 = vmax.xlane.f32.xlu0 %v685
        %v687 = vpop.xlane.xlu0 %686
        %v689 = vrot.slane %v687, 6
        %v691 = vmul.f32 %v160, %v689
        %v692 = vmul.f32 %v161, %v689
        %v693 = vmul.f32 %v162, %v689
        %v694 = vmul.f32 %v163, %v689
        %v695 = vsub.f32 1.0, %v691
        %v696 = vsub.f32 1.0, %v692
        %v697 = vsub.f32 1.0, %v693
        %v698 = vsub.f32 1.0, %v694
        %703 = vst [vmem:[#allocation1] sm:$0xff] %v695
        %704 = vst [vmem:[#allocation1 + $0x9] sm:$0xff] %v696
        %705 = vst [vmem:[#allocation1 + $0x12] sm:$0xff] %v697
        %706 = vst [vmem:[#allocation1 + $0x1b] sm:$0xff] %v698
        %s707 = scalar_lea.vmem [#allocation1], 2
        %v708 = vld [vmem:[%s707] ss:$9 sm:$0xff]
        %v710 = vmul.f32 %v661, %v708
        %vm711 = vcmp.eq.s32.totalorder %v170, 11
        %vm712 = vcmp.eq.s32.totalorder %v171, 11
        %vm713 = vcmp.eq.s32.totalorder %v172, 11
        %vm714 = vcmp.eq.s32.totalorder %v173, 11
        %v716 = vperm.slane %v710, 0
        %v717 = vperm.slane %v710, 1
        %v718 = vperm.slane %v710, 2
        %v719 = vperm.slane %v710, 3
        %v724 = vsel %vm711, %v716, 0.0
        %v725 = vsel %vm712, %v717, 0.0
        %v726 = vsel %vm713, %v718, 0.0
        %v727 = vsel %vm714, %v719, 0.0
        %v728 = vsel %vm192, %v724, -inf
        %v729 = vsel %vm192, %v725, -inf
        %v730 = vsel %vm192, %v726, -inf
        %v731 = vsel %vm192, %v727, -inf
        %v732 = vmax.f32 %v728, %v729
        %v733 = vmax.f32 %v730, %v731
        %v734 = vmax.f32 %v732, %v733
        %735 = vmax.xlane.f32.xlu0 %v734
        %v736 = vpop.xlane.xlu0 %735
        %v738 = vrot.slane %v736, 5
        %v740 = vmul.f32 %v160, %v738
        %v741 = vmul.f32 %v161, %v738
        %v742 = vmul.f32 %v162, %v738
        %v743 = vmul.f32 %v163, %v738
        %v744 = vsub.f32 1.0, %v740
        %v745 = vsub.f32 1.0, %v741
        %v746 = vsub.f32 1.0, %v742
        %v747 = vsub.f32 1.0, %v743
        %752 = vst [vmem:[#allocation1] sm:$0xff] %v744
        %753 = vst [vmem:[#allocation1 + $0x9] sm:$0xff] %v745
        %754 = vst [vmem:[#allocation1 + $0x12] sm:$0xff] %v746
        %755 = vst [vmem:[#allocation1 + $0x1b] sm:$0xff] %v747
        %s756 = scalar_lea.vmem [#allocation1], 3
        %v757 = vld [vmem:[%s756] ss:$9 sm:$0xff]
        %v759 = vmul.f32 %v710, %v757
        %vm760 = vcmp.eq.s32.totalorder %v170, 12
        %vm761 = vcmp.eq.s32.totalorder %v171, 12
        %vm762 = vcmp.eq.s32.totalorder %v172, 12
        %vm763 = vcmp.eq.s32.totalorder %v173, 12
        %v765 = vperm.slane %v759, 0
        %v766 = vperm.slane %v759, 1
        %v767 = vperm.slane %v759, 2
        %v768 = vperm.slane %v759, 3
        %v773 = vsel %vm760, %v765, 0.0
        %v774 = vsel %vm761, %v766, 0.0
        %v775 = vsel %vm762, %v767, 0.0
        %v776 = vsel %vm763, %v768, 0.0
        %v777 = vsel %vm192, %v773, -inf
        %v778 = vsel %vm192, %v774, -inf
        %v779 = vsel %vm192, %v775, -inf
        %v780 = vsel %vm192, %v776, -inf
        %v781 = vmax.f32 %v777, %v778
        %v782 = vmax.f32 %v779, %v780
        %v783 = vmax.f32 %v781, %v782
        %784 = vmax.xlane.f32.xlu0 %v783
        %v785 = vpop.xlane.xlu0 %784
        %v787 = vrot.slane %v785, 4
        %v789 = vmul.f32 %v160, %v787
        %v790 = vmul.f32 %v161, %v787
        %v791 = vmul.f32 %v162, %v787
        %v792 = vmul.f32 %v163, %v787
        %v793 = vsub.f32 1.0, %v789
        %v794 = vsub.f32 1.0, %v790
        %v795 = vsub.f32 1.0, %v791
        %v796 = vsub.f32 1.0, %v792
        %801 = vst [vmem:[#allocation1] sm:$0xff] %v793
        %802 = vst [vmem:[#allocation1 + $0x9] sm:$0xff] %v794
        %803 = vst [vmem:[#allocation1 + $0x12] sm:$0xff] %v795
        %804 = vst [vmem:[#allocation1 + $0x1b] sm:$0xff] %v796
        %s805 = scalar_lea.vmem [#allocation1], 4
        %v806 = vld [vmem:[%s805] ss:$9 sm:$0xff]
        %v808 = vmul.f32 %v759, %v806
        %vm809 = vcmp.eq.s32.totalorder %v170, 13
        %vm810 = vcmp.eq.s32.totalorder %v171, 13
        %vm811 = vcmp.eq.s32.totalorder %v172, 13
        %vm812 = vcmp.eq.s32.totalorder %v173, 13
        %v814 = vperm.slane %v808, 0
        %v815 = vperm.slane %v808, 1
        %v816 = vperm.slane %v808, 2
        %v817 = vperm.slane %v808, 3
        %v822 = vsel %vm809, %v814, 0.0
        %v823 = vsel %vm810, %v815, 0.0
        %v824 = vsel %vm811, %v816, 0.0
        %v825 = vsel %vm812, %v817, 0.0
        %v826 = vsel %vm192, %v822, -inf
        %v827 = vsel %vm192, %v823, -inf
        %v828 = vsel %vm192, %v824, -inf
        %v829 = vsel %vm192, %v825, -inf
        %v830 = vmax.f32 %v826, %v827
        %v831 = vmax.f32 %v828, %v829
        %v832 = vmax.f32 %v830, %v831
        %833 = vmax.xlane.f32.xlu0 %v832
        %v834 = vpop.xlane.xlu0 %833
        %v836 = vrot.slane %v834, 3
        %v838 = vmul.f32 %v160, %v836
        %v839 = vmul.f32 %v161, %v836
        %v840 = vmul.f32 %v162, %v836
        %v841 = vmul.f32 %v163, %v836
        %v842 = vsub.f32 1.0, %v838
        %v843 = vsub.f32 1.0, %v839
        %v844 = vsub.f32 1.0, %v840
        %v845 = vsub.f32 1.0, %v841
        %850 = vst [vmem:[#allocation1] sm:$0xff] %v842
        %851 = vst [vmem:[#allocation1 + $0x9] sm:$0xff] %v843
        %852 = vst [vmem:[#allocation1 + $0x12] sm:$0xff] %v844
        %853 = vst [vmem:[#allocation1 + $0x1b] sm:$0xff] %v845
        %s854 = scalar_lea.vmem [#allocation1], 5
        %v855 = vld [vmem:[%s854] ss:$9 sm:$0xff]
        %v857 = vmul.f32 %v808, %v855
        %vm858 = vcmp.eq.s32.totalorder %v170, 14
        %vm859 = vcmp.eq.s32.totalorder %v171, 14
        %vm860 = vcmp.eq.s32.totalorder %v172, 14
        %vm861 = vcmp.eq.s32.totalorder %v173, 14
        %v863 = vperm.slane %v857, 0
        %v864 = vperm.slane %v857, 1
        %v865 = vperm.slane %v857, 2
        %v866 = vperm.slane %v857, 3
        %v871 = vsel %vm858, %v863, 0.0
        %v872 = vsel %vm859, %v864, 0.0
        %v873 = vsel %vm860, %v865, 0.0
        %v874 = vsel %vm861, %v866, 0.0
        %v875 = vsel %vm192, %v871, -inf
        %v876 = vsel %vm192, %v872, -inf
        %v877 = vsel %vm192, %v873, -inf
        %v878 = vsel %vm192, %v874, -inf
        %v879 = vmax.f32 %v875, %v876
        %v880 = vmax.f32 %v877, %v878
        %v881 = vmax.f32 %v879, %v880
        %882 = vmax.xlane.f32.xlu0 %v881
        %v883 = vpop.xlane.xlu0 %882
        %v885 = vrot.slane %v883, 2
        %v887 = vmul.f32 %v160, %v885
        %v888 = vmul.f32 %v161, %v885
        %v889 = vmul.f32 %v162, %v885
        %v890 = vmul.f32 %v163, %v885
        %v891 = vsub.f32 1.0, %v887
        %v892 = vsub.f32 1.0, %v888
        %v893 = vsub.f32 1.0, %v889
        %v894 = vsub.f32 1.0, %v890
        %899 = vst [vmem:[#allocation1] sm:$0xff] %v891
        %900 = vst [vmem:[#allocation1 + $0x9] sm:$0xff] %v892
        %901 = vst [vmem:[#allocation1 + $0x12] sm:$0xff] %v893
        %902 = vst [vmem:[#allocation1 + $0x1b] sm:$0xff] %v894
        %s903 = scalar_lea.vmem [#allocation1], 6
        %v904 = vld [vmem:[%s903] ss:$9 sm:$0xff]
        %v906 = vmul.f32 %v857, %v904
        %vm907 = vcmp.eq.s32.totalorder %v170, 15
        %vm908 = vcmp.eq.s32.totalorder %v171, 15
        %vm909 = vcmp.eq.s32.totalorder %v172, 15
        %vm910 = vcmp.eq.s32.totalorder %v173, 15
        %v912 = vperm.slane %v906, 0
        %v913 = vperm.slane %v906, 1
        %v914 = vperm.slane %v906, 2
        %v915 = vperm.slane %v906, 3
        %v920 = vsel %vm907, %v912, 0.0
        %v921 = vsel %vm908, %v913, 0.0
        %v922 = vsel %vm909, %v914, 0.0
        %v923 = vsel %vm910, %v915, 0.0
        %v924 = vsel %vm192, %v920, -inf
        %v925 = vsel %vm192, %v921, -inf
        %v926 = vsel %vm192, %v922, -inf
        %v927 = vsel %vm192, %v923, -inf
        %v928 = vmax.f32 %v924, %v925
        %v929 = vmax.f32 %v926, %v927
        %v930 = vmax.f32 %v928, %v929
        %931 = vmax.xlane.f32.xlu0 %v930
        %v932 = vpop.xlane.xlu0 %931
        %v934 = vrot.slane %v932, 1
        %v936 = vmul.f32 %v160, %v934
        %v937 = vmul.f32 %v161, %v934
        %v938 = vmul.f32 %v162, %v934
        %v939 = vmul.f32 %v163, %v934
        %v940 = vsub.f32 1.0, %v936
        %v941 = vsub.f32 1.0, %v937
        %v942 = vsub.f32 1.0, %v938
        %v943 = vsub.f32 1.0, %v939
        %948 = vst [vmem:[#allocation1] sm:$0xff] %v940
        %949 = vst [vmem:[#allocation1 + $0x9] sm:$0xff] %v941
        %950 = vst [vmem:[#allocation1 + $0x12] sm:$0xff] %v942
        %951 = vst [vmem:[#allocation1 + $0x1b] sm:$0xff] %v943
        %s952 = scalar_lea.vmem [#allocation1], 7
        %v953 = vld [vmem:[%s952] ss:$9 sm:$0xff]
        %v955 = vmul.f32 %v906, %v953
        %v956 = vlaneseq
        %vm957 = vcmp.ge.s32.totalorder %v956, 0
        %vm958 = vcmp.lt.s32.totalorder %v956, 512
        %vm959 = vmand %vm957, %vm958
        %960 = vst.msk [vmem:[%s3] sm:$0xf] %vm959, %v955
      $region36: #{object_detection_forward.7} parent=27 // pred_fallthru
        _
      // Predicated region
      $region37: #{object_detection_forward.7} parent=27 // pred_check
        %p961 = pneg %p75
      $region38: #{object_detection_forward.7} parent=27 // pred_check_branch
        %963 = sbr.rel (%p961) target = $region40
      $region39: #{object_detection_forward.7} parent=27 // pred_region
        _
      $region40: #{object_detection_forward.7} parent=27 // pred_fallthru
        _
      // Predicated region
      $region41: #{object_detection_forward.7} parent=27 // pred_check
        %p964 = pneg %p75
      $region42: #{object_detection_forward.7} parent=27 // pred_check_branch
        %966 = sbr.rel (%p964) target = $region44
      $region43: #{object_detection_forward.7} parent=27 // pred_region
        _
      $region44: #{object_detection_forward.7} parent=27 // pred_fallthru
        _
    $region28: #{object_detection_forward.7} parent=5 // pred_fallthru
      _
    %p967 = scmp.le.s32.totalorder 2, %s10
    // Predicated region
    $region45: #{object_detection_forward.7} parent=5 // pred_check
      %p968 = pneg %p967
    $region46: #{object_detection_forward.7} parent=5 // pred_check_branch
      %970 = sbr.rel (%p968) target = $region48
    $region47: #{object_detection_forward.7} parent=5 // pred_region
      %s971 = ssub.s32 %s10, 2
    $region48: #{object_detection_forward.7} parent=5 // pred_fallthru
      _
  $region6: #{object_detection_forward.7} parent=0 // loop_footer
    %s14 = sadd.s32 1, %s10
  $region7: #{object_detection_forward.7} parent=0 // loop_footer_branch
    %9 = sbr.rel target = $region3
  $region8: #{object_detection_forward.7} parent=0 // loop_exit
    _

// kernel: object_detection_forward.6
$region0: #{object_detection_forward.6}
  #allocation0 [shape = 'u32[]', space=smem, size = 0x4, offset = 0x4, fixed_abs, tag = 'smem constant byte address 0x4 - core index']
  #allocation1 [shape = 'u32[72,128]{1,0:T(1,128)}', space=vmem, size = 0x9000, scoped, tag = 'internal scratch']
  %s0 = inlined_call_operand.vmem [shape: f32[512,128], index: 0, kind: input, shape index: {}]
  %s1 = inlined_call_operand.vmem [shape: f32[8,512], index: 1, kind: input, shape index: {}]
  %s2 = inlined_call_operand.vmem [shape: bf16[512,512], index: 2, kind: output, shape index: {}]
  %s3 = sld [smem:[#allocation0]]
  $region41: #{object_detection_forward.6} parent=0
    _
  %s5 = ssub.s32 1, %s3
  %s6 = scalar_select 0, %s5, %s3
  loop: start=0, step=1, limit=4
  $region2: #{object_detection_forward.6} parent=0 // loop_pre_header
    _
  $region3: #{object_detection_forward.6} parent=0 // loop_header
    %s8 = sphi 0, %s12
    %p9 = scmp.ge.s32.totalorder %s8, 4
    %s15 = sphi 0, %s27
    %s16 = sphi 0, %s23
    %s17 = sphi 0, %s15
    %s18 = sphi 0, %s16
    %s19 = sphi 0, %s17
    %s20 = sphi 0, %s18
    %s30 = sphi 0, %s32
    %s33 = sphi 0, %s30
    %s34 = sphi 0, %s33
    %s50 = sphi 0, %s34
    %s56 = sphi 0, %s58
    %s59 = sphi 0, %s56
    %s60 = sphi 0, %s59
    %s76 = sphi 0, %s60
    %s84 = sphi 0, %s86
    %s87 = sphi 0, %s84
    %s88 = sphi 0, %s87
    %s104 = sphi 0, %s88
  $region4: #{object_detection_forward.6} parent=0 // loop_header_branch
    %11 = sbr.rel (%p9) target = $region8
  $region5: #{object_detection_forward.6} parent=0 // loop_body
    %s13 = ssub.s32 %s8, 1
    %s14 = ssub.s32 %s8, 2
    %s21 = sadd.s32 1, %s16
    %p22 = scmp.ge.s32.totalorder %s21, 1
    %s23 = scalar_select %p22, 0, %s21
    %s24 = sadd.s32 1, %s15
    %s25 = scalar_select %p22, %s24, %s15
    %p26 = scmp.ge.s32.totalorder %s25, 2
    %s27 = scalar_select %p26, 0, %s25
    %s28 = ssub.s32 %s15, %s27
    %p29 = scmp.eq.s32.totalorder %s28, 0
    %s31 = sadd.s32 %s30, 1
    %s32 = scalar_select %p29, %s30, %s31
    %p35 = pneg %p29
    %p36 = scmp.eq.s32.totalorder %s8, 1
    %p37 = por %p35, %p36
    %p38 = scmp.ne.s32.totalorder %s30, %s33
    %p39 = scmp.eq.s32.totalorder %s8, 0
    %p40 = por %p38, %p39
    %p41 = scmp.ne.s32.totalorder %s30, %s33
    %p42 = scmp.eq.s32.totalorder %s13, 1
    %p43 = por %p41, %p42
    %p44 = scmp.ne.s32.totalorder %s33, %s34
    %p45 = scmp.eq.s32.totalorder %s13, 0
    %p46 = por %p44, %p45
    %p47 = scmp.ne.s32.totalorder %s33, %s34
    %p48 = scmp.eq.s32.totalorder %s14, 1
    %p49 = por %p47, %p48
    %p51 = scmp.ne.s32.totalorder %s34, %s50
    %p52 = scmp.eq.s32.totalorder %s14, 0
    %p53 = por %p51, %p52
    %s54 = ssub.s32 %s16, %s23
    %p55 = scmp.eq.s32.totalorder %s54, 0
    %s57 = sadd.s32 %s56, 1
    %s58 = scalar_select %p55, %s56, %s57
    %p61 = pneg %p55
    %p62 = scmp.eq.s32.totalorder %s8, 1
    %p63 = por %p61, %p62
    %p64 = scmp.ne.s32.totalorder %s56, %s59
    %p65 = scmp.eq.s32.totalorder %s8, 0
    %p66 = por %p64, %p65
    %p67 = scmp.ne.s32.totalorder %s56, %s59
    %p68 = scmp.eq.s32.totalorder %s13, 1
    %p69 = por %p67, %p68
    %p70 = scmp.ne.s32.totalorder %s59, %s60
    %p71 = scmp.eq.s32.totalorder %s13, 0
    %p72 = por %p70, %p71
    %p73 = scmp.ne.s32.totalorder %s59, %s60
    %p74 = scmp.eq.s32.totalorder %s14, 1
    %p75 = por %p73, %p74
    %p77 = scmp.ne.s32.totalorder %s60, %s76
    %p78 = scmp.eq.s32.totalorder %s14, 0
    %p79 = por %p77, %p78
    %s80 = ssub.s32 %s15, %s27
    %s81 = ssub.s32 %s16, %s23
    %s82 = sor.u32 %s80, %s81
    %p83 = scmp.eq.s32.totalorder %s82, 0
    %s85 = sadd.s32 %s84, 1
    %s86 = scalar_select %p83, %s84, %s85
    %p89 = pneg %p83
    %p90 = scmp.eq.s32.totalorder %s8, 1
    %p91 = por %p89, %p90
    %p92 = scmp.ne.s32.totalorder %s84, %s87
    %p93 = scmp.eq.s32.totalorder %s8, 0
    %p94 = por %p92, %p93
    %p95 = scmp.ne.s32.totalorder %s84, %s87
    %p96 = scmp.eq.s32.totalorder %s13, 1
    %p97 = por %p95, %p96
    %p98 = scmp.ne.s32.totalorder %s87, %s88
    %p99 = scmp.eq.s32.totalorder %s13, 0
    %p100 = por %p98, %p99
    %p101 = scmp.ne.s32.totalorder %s87, %s88
    %p102 = scmp.eq.s32.totalorder %s14, 1
    %p103 = por %p101, %p102
    %p105 = scmp.ne.s32.totalorder %s88, %s104
    %p106 = scmp.eq.s32.totalorder %s14, 0
    %p107 = por %p105, %p106
    %p108 = scmp.le.s32.totalorder 1, %s8
    %p109 = scmp.lt.s32.totalorder %s8, 3
    %p110 = pnand %p108, %p109
    %p111 = pneg %p110
    // Predicated region
    $region9: #{object_detection_forward.6} parent=5 // pred_check
      _
    $region10: #{object_detection_forward.6} parent=5 // pred_check_branch
      %113 = sbr.rel (%p110) target = $region12
    $region11: #{object_detection_forward.6} parent=5 // pred_region
      %s114 = ssub.s32 %s8, 1
      // Predicated region
      $region13: #{object_detection_forward.6} parent=11 // pred_check
        %p115 = pneg %p72
      $region14: #{object_detection_forward.6} parent=11 // pred_check_branch
        %117 = sbr.rel (%p115) target = $region16
      $region15: #{object_detection_forward.6} parent=11 // pred_region
        %s118 = smul.u32 4, %s18
        %p119 = scmp.lt.s32.totalorder %s118, 3
        %s120 = scalar_select %p119, %s118, 3
        %s121 = smul.addr %s120, 8
        %s122 = scalar_lea.vmem %s1, %s121
        %s123 = smul.u32 4, %s18
      $region16: #{object_detection_forward.6} parent=11 // pred_fallthru
        _
    $region12: #{object_detection_forward.6} parent=5 // pred_fallthru
      _
    %p124 = scmp.lt.s32.totalorder %s8, 2
    // Predicated region
    $region17: #{object_detection_forward.6} parent=5 // pred_check
      %p125 = pneg %p124
    $region18: #{object_detection_forward.6} parent=5 // pred_check_branch
      %127 = sbr.rel (%p125) target = $region20
    $region19: #{object_detection_forward.6} parent=5 // pred_region
      // Predicated region
      $region21: #{object_detection_forward.6} parent=19 // pred_check
        %p128 = pneg %p40
      $region22: #{object_detection_forward.6} parent=19 // pred_check_branch
        %130 = sbr.rel (%p128) target = $region24
      $region23: #{object_detection_forward.6} parent=19 // pred_region
        %s131 = smul.u32 32, %s15
        %p132 = scmp.lt.s32.totalorder %s131, 63
        %s133 = scalar_select %p132, %s131, 63
        %s134 = smul.addr %s133, 8
        %s135 = scalar_lea.vmem %s0, %s134
        %s136 = smul.u32 32, %s15
      $region24: #{object_detection_forward.6} parent=19 // pred_fallthru
        _
    $region20: #{object_detection_forward.6} parent=5 // pred_fallthru
      _
    %p137 = scmp.le.s32.totalorder 1, %s8
    %p138 = scmp.lt.s32.totalorder %s8, 3
    %p139 = pnand %p137, %p138
    %p140 = pneg %p139
    // Predicated region
    $region25: #{object_detection_forward.6} parent=5 // pred_check
      _
    $region26: #{object_detection_forward.6} parent=5 // pred_check_branch
      %142 = sbr.rel (%p139) target = $region28
    $region27: #{object_detection_forward.6} parent=5 // pred_region
      %s143 = ssub.s32 %s8, 1
      %s144 = smul.u32 32, %s17
      %p145 = scmp.lt.s32.totalorder %s144, 63
      %s146 = scalar_select %p145, %s144, 63
      %s147 = smul.addr %s146, 8
      %s148 = scalar_lea.vmem %s0, %s147
      %p149 = pneg %p46
      %p150 = pneg %p43
      %s151 = smul.u32 4, %s18
      %p152 = scmp.lt.s32.totalorder %s151, 3
      %s153 = scalar_select %p152, %s151, 3
      %s154 = smul.addr %s153, 8
      %s155 = scalar_lea.vmem %s1, %s154
      %p156 = pneg %p72
      %p157 = pneg %p69
      %p158 = pneg %p100
      %p159 = pneg %p97
      %s160 = smul.u32 32, %s17
      %s161 = smul.u32 4, %s18
      %p162 = scmp.lt.s32.totalorder %s160, 63
      %s163 = scalar_select %p162, %s160, 63
      %p164 = scmp.lt.s32.totalorder %s161, 3
      %s165 = scalar_select %p164, %s161, 3
      %s166 = smul.addr %s163, 4
      %s167 = sadd.s32 %s165, %s166
      %s168 = smul.addr %s167, 4
      %s169 = scalar_lea.vmem %s2, %s168
      %s170 = smul.u32 32, %s17
      %p171 = scmp.lt.s32.totalorder %s170, 63
      %s172 = scalar_select %p171, %s170, 63
      %s173 = smul.addr %s172, 8
      %s174 = scalar_lea.vmem %s0, %s173
      %s175 = smul.u32 32, %s17
      %s176 = smul.u32 4, %s18
      %p177 = scmp.lt.s32.totalorder %s176, 3
      %s178 = scalar_select %p177, %s176, 3
      %s179 = smul.addr %s178, 8
      %s180 = scalar_lea.vmem %s1, %s179
      %s181 = smul.u32 4, %s18
      %s182 = smul.u32 32, %s17
      %s183 = smul.u32 4, %s18
      %p184 = scmp.lt.s32.totalorder %s182, 63
      %s185 = scalar_select %p184, %s182, 63
      %p186 = scmp.lt.s32.totalorder %s183, 3
      %s187 = scalar_select %p186, %s183, 3
      %s188 = smul.addr %s185, 4
      %s189 = sadd.s32 %s187, %s188
      %s190 = smul.addr %s189, 4
      %s191 = scalar_lea.vmem %s2, %s190
      %s192 = smul.u32 32, %s17
      %s193 = smul.u32 4, %s18
      %v194 = vld [vmem:[%s174] sm:$0xff]
      %v195 = vld [vmem:[%s174 + $0x8] sm:$0xff]
      %v196 = vld [vmem:[%s174 + $0x10] sm:$0xff]
      %v197 = vld [vmem:[%s174 + $0x18] sm:$0xff]
      %v198 = vld [vmem:[%s174 + $0x20] sm:$0xff]
      %v199 = vld [vmem:[%s174 + $0x28] sm:$0xff]
      %v200 = vld [vmem:[%s174 + $0x30] sm:$0xff]
      %v201 = vld [vmem:[%s174 + $0x38] sm:$0xff]
      %v202 = vld [vmem:[%s174 + $0x40] sm:$0xff]
      %v203 = vld [vmem:[%s174 + $0x48] sm:$0xff]
      %v204 = vld [vmem:[%s174 + $0x50] sm:$0xff]
      %v205 = vld [vmem:[%s174 + $0x58] sm:$0xff]
      %v206 = vld [vmem:[%s174 + $0x60] sm:$0xff]
      %v207 = vld [vmem:[%s174 + $0x68] sm:$0xff]
      %v208 = vld [vmem:[%s174 + $0x70] sm:$0xff]
      %v209 = vld [vmem:[%s174 + $0x78] sm:$0xff]
      %v210 = vld [vmem:[%s174 + $0x80] sm:$0xff]
      %v211 = vld [vmem:[%s174 + $0x88] sm:$0xff]
      %v212 = vld [vmem:[%s174 + $0x90] sm:$0xff]
      %v213 = vld [vmem:[%s174 + $0x98] sm:$0xff]
      %v214 = vld [vmem:[%s174 + $0xa0] sm:$0xff]
      %v215 = vld [vmem:[%s174 + $0xa8] sm:$0xff]
      %v216 = vld [vmem:[%s174 + $0xb0] sm:$0xff]
      %v217 = vld [vmem:[%s174 + $0xb8] sm:$0xff]
      %v218 = vld [vmem:[%s174 + $0xc0] sm:$0xff]
      %v219 = vld [vmem:[%s174 + $0xc8] sm:$0xff]
      %v220 = vld [vmem:[%s174 + $0xd0] sm:$0xff]
      %v221 = vld [vmem:[%s174 + $0xd8] sm:$0xff]
      %v222 = vld [vmem:[%s174 + $0xe0] sm:$0xff]
      %v223 = vld [vmem:[%s174 + $0xe8] sm:$0xff]
      %v224 = vld [vmem:[%s174 + $0xf0] sm:$0xff]
      %v225 = vld [vmem:[%s174 + $0xf8] sm:$0xff]
      %v226 = vld [vmem:[%s180] sm:$0xff]
      %v227 = vld [vmem:[%s180 + $0x8] sm:$0xff]
      %v228 = vld [vmem:[%s180 + $0x10] sm:$0xff]
      %v229 = vld [vmem:[%s180 + $0x18] sm:$0xff]
      %231 = vset.pattern.permute.xlu0 2
      %232 = vperm.xlu0 %231, %v194
      %v233 = vpop.permute.xlu0 %232
      %236 = vset.pattern.permute.xlu0 2
      %237 = vperm.xlu0 %236, %v195
      %v238 = vpop.permute.xlu0 %237
      %241 = vset.pattern.permute.xlu0 2
      %242 = vperm.xlu0 %241, %v196
      %v243 = vpop.permute.xlu0 %242
      %246 = vset.pattern.permute.xlu0 2
      %247 = vperm.xlu0 %246, %v197
      %v248 = vpop.permute.xlu0 %247
      %251 = vset.pattern.permute.xlu0 2
      %252 = vperm.xlu0 %251, %v198
      %v253 = vpop.permute.xlu0 %252
      %256 = vset.pattern.permute.xlu0 2
      %257 = vperm.xlu0 %256, %v199
      %v258 = vpop.permute.xlu0 %257
      %261 = vset.pattern.permute.xlu0 2
      %262 = vperm.xlu0 %261, %v200
      %v263 = vpop.permute.xlu0 %262
      %266 = vset.pattern.permute.xlu0 2
      %267 = vperm.xlu0 %266, %v201
      %v268 = vpop.permute.xlu0 %267
      %271 = vset.pattern.permute.xlu0 2
      %272 = vperm.xlu0 %271, %v202
      %v273 = vpop.permute.xlu0 %272
      %276 = vset.pattern.permute.xlu0 2
      %277 = vperm.xlu0 %276, %v203
      %v278 = vpop.permute.xlu0 %277
      %281 = vset.pattern.permute.xlu0 2
      %282 = vperm.xlu0 %281, %v204
      %v283 = vpop.permute.xlu0 %282
      %286 = vset.pattern.permute.xlu0 2
      %287 = vperm.xlu0 %286, %v205
      %v288 = vpop.permute.xlu0 %287
      %291 = vset.pattern.permute.xlu0 2
      %292 = vperm.xlu0 %291, %v206
      %v293 = vpop.permute.xlu0 %292
      %296 = vset.pattern.permute.xlu0 2
      %297 = vperm.xlu0 %296, %v207
      %v298 = vpop.permute.xlu0 %297
      %301 = vset.pattern.permute.xlu0 2
      %302 = vperm.xlu0 %301, %v208
      %v303 = vpop.permute.xlu0 %302
      %306 = vset.pattern.permute.xlu0 2
      %307 = vperm.xlu0 %306, %v209
      %v308 = vpop.permute.xlu0 %307
      %311 = vset.pattern.permute.xlu0 2
      %312 = vperm.xlu0 %311, %v210
      %v313 = vpop.permute.xlu0 %312
      %316 = vset.pattern.permute.xlu0 2
      %317 = vperm.xlu0 %316, %v211
      %v318 = vpop.permute.xlu0 %317
      %321 = vset.pattern.permute.xlu0 2
      %322 = vperm.xlu0 %321, %v212
      %v323 = vpop.permute.xlu0 %322
      %326 = vset.pattern.permute.xlu0 2
      %327 = vperm.xlu0 %326, %v213
      %v328 = vpop.permute.xlu0 %327
      %331 = vset.pattern.permute.xlu0 2
      %332 = vperm.xlu0 %331, %v214
      %v333 = vpop.permute.xlu0 %332
      %336 = vset.pattern.permute.xlu0 2
      %337 = vperm.xlu0 %336, %v215
      %v338 = vpop.permute.xlu0 %337
      %341 = vset.pattern.permute.xlu0 2
      %342 = vperm.xlu0 %341, %v216
      %v343 = vpop.permute.xlu0 %342
      %346 = vset.pattern.permute.xlu0 2
      %347 = vperm.xlu0 %346, %v217
      %v348 = vpop.permute.xlu0 %347
      %351 = vset.pattern.permute.xlu0 2
      %352 = vperm.xlu0 %351, %v218
      %v353 = vpop.permute.xlu0 %352
      %356 = vset.pattern.permute.xlu0 2
      %357 = vperm.xlu0 %356, %v219
      %v358 = vpop.permute.xlu0 %357
      %361 = vset.pattern.permute.xlu0 2
      %362 = vperm.xlu0 %361, %v220
      %v363 = vpop.permute.xlu0 %362
      %366 = vset.pattern.permute.xlu0 2
      %367 = vperm.xlu0 %366, %v221
      %v368 = vpop.permute.xlu0 %367
      %371 = vset.pattern.permute.xlu0 2
      %372 = vperm.xlu0 %371, %v222
      %v373 = vpop.permute.xlu0 %372
      %376 = vset.pattern.permute.xlu0 2
      %377 = vperm.xlu0 %376, %v223
      %v378 = vpop.permute.xlu0 %377
      %381 = vset.pattern.permute.xlu0 2
      %382 = vperm.xlu0 %381, %v224
      %v383 = vpop.permute.xlu0 %382
      %386 = vset.pattern.permute.xlu0 2
      %387 = vperm.xlu0 %386, %v225
      %v388 = vpop.permute.xlu0 %387
      %v390 = vperm.slane %v226, 2
      %v391 = vperm.slane %v227, 2
      %v392 = vperm.slane %v228, 2
      %v393 = vperm.slane %v229, 2
      %v394 = vmin.f32 %v233, %v390
      %v395 = vmin.f32 %v233, %v391
      %v396 = vmin.f32 %v233, %v392
      %v397 = vmin.f32 %v233, %v393
      %v398 = vmin.f32 %v238, %v390
      %v399 = vmin.f32 %v238, %v391
      %v400 = vmin.f32 %v238, %v392
      %v401 = vmin.f32 %v238, %v393
      %v402 = vmin.f32 %v243, %v390
      %v403 = vmin.f32 %v243, %v391
      %v404 = vmin.f32 %v243, %v392
      %v405 = vmin.f32 %v243, %v393
      %v406 = vmin.f32 %v248, %v390
      %v407 = vmin.f32 %v248, %v391
      %v408 = vmin.f32 %v248, %v392
      %v409 = vmin.f32 %v248, %v393
      %v410 = vmin.f32 %v253, %v390
      %v411 = vmin.f32 %v253, %v391
      %v412 = vmin.f32 %v253, %v392
      %v413 = vmin.f32 %v253, %v393
      %v414 = vmin.f32 %v258, %v390
      %v415 = vmin.f32 %v258, %v391
      %v416 = vmin.f32 %v258, %v392
      %v417 = vmin.f32 %v258, %v393
      %v418 = vmin.f32 %v263, %v390
      %v419 = vmin.f32 %v263, %v391
      %v420 = vmin.f32 %v263, %v392
      %v421 = vmin.f32 %v263, %v393
      %v422 = vmin.f32 %v268, %v390
      %v423 = vmin.f32 %v268, %v391
      %v424 = vmin.f32 %v268, %v392
      %v425 = vmin.f32 %v268, %v393
      %v426 = vmin.f32 %v273, %v390
      %v427 = vmin.f32 %v273, %v391
      %v428 = vmin.f32 %v273, %v392
      %v429 = vmin.f32 %v273, %v393
      %v430 = vmin.f32 %v278, %v390
      %v431 = vmin.f32 %v278, %v391
      %v432 = vmin.f32 %v278, %v392
      %v433 = vmin.f32 %v278, %v393
      %v434 = vmin.f32 %v283, %v390
      %v435 = vmin.f32 %v283, %v391
      %v436 = vmin.f32 %v283, %v392
      %v437 = vmin.f32 %v283, %v393
      %v438 = vmin.f32 %v288, %v390
      %v439 = vmin.f32 %v288, %v391
      %v440 = vmin.f32 %v288, %v392
      %v441 = vmin.f32 %v288, %v393
      %v442 = vmin.f32 %v293, %v390
      %v443 = vmin.f32 %v293, %v391
      %v444 = vmin.f32 %v293, %v392
      %v445 = vmin.f32 %v293, %v393
      %v446 = vmin.f32 %v298, %v390
      %v447 = vmin.f32 %v298, %v391
      %v448 = vmin.f32 %v298, %v392
      %v449 = vmin.f32 %v298, %v393
      %v450 = vmin.f32 %v303, %v390
      %v451 = vmin.f32 %v303, %v391
      %v452 = vmin.f32 %v303, %v392
      %v453 = vmin.f32 %v303, %v393
      %v454 = vmin.f32 %v308, %v390
      %v455 = vmin.f32 %v308, %v391
      %v456 = vmin.f32 %v308, %v392
      %v457 = vmin.f32 %v308, %v393
      %v458 = vmin.f32 %v313, %v390
      %v459 = vmin.f32 %v313, %v391
      %v460 = vmin.f32 %v313, %v392
      %v461 = vmin.f32 %v313, %v393
      %v462 = vmin.f32 %v318, %v390
      %v463 = vmin.f32 %v318, %v391
      %v464 = vmin.f32 %v318, %v392
      %v465 = vmin.f32 %v318, %v393
      %v466 = vmin.f32 %v323, %v390
      %v467 = vmin.f32 %v323, %v391
      %v468 = vmin.f32 %v323, %v392
      %v469 = vmin.f32 %v323, %v393
      %v470 = vmin.f32 %v328, %v390
      %v471 = vmin.f32 %v328, %v391
      %v472 = vmin.f32 %v328, %v392
      %v473 = vmin.f32 %v328, %v393
      %v474 = vmin.f32 %v333, %v390
      %v475 = vmin.f32 %v333, %v391
      %v476 = vmin.f32 %v333, %v392
      %v477 = vmin.f32 %v333, %v393
      %v478 = vmin.f32 %v338, %v390
      %v479 = vmin.f32 %v338, %v391
      %v480 = vmin.f32 %v338, %v392
      %v481 = vmin.f32 %v338, %v393
      %v482 = vmin.f32 %v343, %v390
      %v483 = vmin.f32 %v343, %v391
      %v484 = vmin.f32 %v343, %v392
      %v485 = vmin.f32 %v343, %v393
      %v486 = vmin.f32 %v348, %v390
      %v487 = vmin.f32 %v348, %v391
      %v488 = vmin.f32 %v348, %v392
      %v489 = vmin.f32 %v348, %v393
      %v490 = vmin.f32 %v353, %v390
      %v491 = vmin.f32 %v353, %v391
      %v492 = vmin.f32 %v353, %v392
      %v493 = vmin.f32 %v353, %v393
      %v494 = vmin.f32 %v358, %v390
      %v495 = vmin.f32 %v358, %v391
      %v496 = vmin.f32 %v358, %v392
      %v497 = vmin.f32 %v358, %v393
      %v498 = vmin.f32 %v363, %v390
      %v499 = vmin.f32 %v363, %v391
      %v500 = vmin.f32 %v363, %v392
      %v501 = vmin.f32 %v363, %v393
      %v502 = vmin.f32 %v368, %v390
      %v503 = vmin.f32 %v368, %v391
      %v504 = vmin.f32 %v368, %v392
      %v505 = vmin.f32 %v368, %v393
      %v506 = vmin.f32 %v373, %v390
      %v507 = vmin.f32 %v373, %v391
      %v508 = vmin.f32 %v373, %v392
      %v509 = vmin.f32 %v373, %v393
      %v510 = vmin.f32 %v378, %v390
      %v511 = vmin.f32 %v378, %v391
      %v512 = vmin.f32 %v378, %v392
      %v513 = vmin.f32 %v378, %v393
      %v514 = vmin.f32 %v383, %v390
      %v515 = vmin.f32 %v383, %v391
      %v516 = vmin.f32 %v383, %v392
      %v517 = vmin.f32 %v383, %v393
      %v518 = vmin.f32 %v388, %v390
      %v519 = vmin.f32 %v388, %v391
      %v520 = vmin.f32 %v388, %v392
      %v521 = vmin.f32 %v388, %v393
      %522 = vset.pattern.permute.xlu0 0
      %523 = vperm.xlu0 %522, %v194
      %v524 = vpop.permute.xlu0 %523
      %526 = vset.pattern.permute.xlu0 0
      %527 = vperm.xlu0 %526, %v195
      %v528 = vpop.permute.xlu0 %527
      %530 = vset.pattern.permute.xlu0 0
      %531 = vperm.xlu0 %530, %v196
      %v532 = vpop.permute.xlu0 %531
      %534 = vset.pattern.permute.xlu0 0
      %535 = vperm.xlu0 %534, %v197
      %v536 = vpop.permute.xlu0 %535
      %538 = vset.pattern.permute.xlu0 0
      %539 = vperm.xlu0 %538, %v198
      %v540 = vpop.permute.xlu0 %539
      %542 = vset.pattern.permute.xlu0 0
      %543 = vperm.xlu0 %542, %v199
      %v544 = vpop.permute.xlu0 %543
      %546 = vset.pattern.permute.xlu0 0
      %547 = vperm.xlu0 %546, %v200
      %v548 = vpop.permute.xlu0 %547
      %550 = vset.pattern.permute.xlu0 0
      %551 = vperm.xlu0 %550, %v201
      %v552 = vpop.permute.xlu0 %551
      %554 = vset.pattern.permute.xlu0 0
      %555 = vperm.xlu0 %554, %v202
      %v556 = vpop.permute.xlu0 %555
      %558 = vset.pattern.permute.xlu0 0
      %559 = vperm.xlu0 %558, %v203
      %v560 = vpop.permute.xlu0 %559
      %562 = vset.pattern.permute.xlu0 0
      %563 = vperm.xlu0 %562, %v204
      %v564 = vpop.permute.xlu0 %563
      %566 = vset.pattern.permute.xlu0 0
      %567 = vperm.xlu0 %566, %v205
      %v568 = vpop.permute.xlu0 %567
      %570 = vset.pattern.permute.xlu0 0
      %571 = vperm.xlu0 %570, %v206
      %v572 = vpop.permute.xlu0 %571
      %574 = vset.pattern.permute.xlu0 0
      %575 = vperm.xlu0 %574, %v207
      %v576 = vpop.permute.xlu0 %575
      %578 = vset.pattern.permute.xlu0 0
      %579 = vperm.xlu0 %578, %v208
      %v580 = vpop.permute.xlu0 %579
      %582 = vset.pattern.permute.xlu0 0
      %583 = vperm.xlu0 %582, %v209
      %v584 = vpop.permute.xlu0 %583
      %586 = vset.pattern.permute.xlu0 0
      %587 = vperm.xlu0 %586, %v210
      %v588 = vpop.permute.xlu0 %587
      %590 = vset.pattern.permute.xlu0 0
      %591 = vperm.xlu0 %590, %v211
      %v592 = vpop.permute.xlu0 %591
      %594 = vset.pattern.permute.xlu0 0
      %595 = vperm.xlu0 %594, %v212
      %v596 = vpop.permute.xlu0 %595
      %598 = vset.pattern.permute.xlu0 0
      %599 = vperm.xlu0 %598, %v213
      %v600 = vpop.permute.xlu0 %599
      %602 = vset.pattern.permute.xlu0 0
      %603 = vperm.xlu0 %602, %v214
      %v604 = vpop.permute.xlu0 %603
      %606 = vset.pattern.permute.xlu0 0
      %607 = vperm.xlu0 %606, %v215
      %v608 = vpop.permute.xlu0 %607
      %610 = vset.pattern.permute.xlu0 0
      %611 = vperm.xlu0 %610, %v216
      %v612 = vpop.permute.xlu0 %611
      %614 = vset.pattern.permute.xlu0 0
      %615 = vperm.xlu0 %614, %v217
      %v616 = vpop.permute.xlu0 %615
      %618 = vset.pattern.permute.xlu0 0
      %619 = vperm.xlu0 %618, %v218
      %v620 = vpop.permute.xlu0 %619
      %622 = vset.pattern.permute.xlu0 0
      %623 = vperm.xlu0 %622, %v219
      %v624 = vpop.permute.xlu0 %623
      %626 = vset.pattern.permute.xlu0 0
      %627 = vperm.xlu0 %626, %v220
      %v628 = vpop.permute.xlu0 %627
      %630 = vset.pattern.permute.xlu0 0
      %631 = vperm.xlu0 %630, %v221
      %v632 = vpop.permute.xlu0 %631
      %634 = vset.pattern.permute.xlu0 0
      %635 = vperm.xlu0 %634, %v222
      %v636 = vpop.permute.xlu0 %635
      %638 = vset.pattern.permute.xlu0 0
      %639 = vperm.xlu0 %638, %v223
      %v640 = vpop.permute.xlu0 %639
      %642 = vset.pattern.permute.xlu0 0
      %643 = vperm.xlu0 %642, %v224
      %v644 = vpop.permute.xlu0 %643
      %646 = vset.pattern.permute.xlu0 0
      %647 = vperm.xlu0 %646, %v225
      %v648 = vpop.permute.xlu0 %647
      %v650 = vperm.slane %v226, 0
      %v651 = vperm.slane %v227, 0
      %v652 = vperm.slane %v228, 0
      %v653 = vperm.slane %v229, 0
      %v654 = vmax.f32 %v524, %v650
      %v655 = vmax.f32 %v524, %v651
      %v656 = vmax.f32 %v524, %v652
      %v657 = vmax.f32 %v524, %v653
      %v658 = vmax.f32 %v528, %v650
      %v659 = vmax.f32 %v528, %v651
      %v660 = vmax.f32 %v528, %v652
      %v661 = vmax.f32 %v528, %v653
      %v662 = vmax.f32 %v532, %v650
      %v663 = vmax.f32 %v532, %v651
      %v664 = vmax.f32 %v532, %v652
      %v665 = vmax.f32 %v532, %v653
      %v666 = vmax.f32 %v536, %v650
      %v667 = vmax.f32 %v536, %v651
      %v668 = vmax.f32 %v536, %v652
      %v669 = vmax.f32 %v536, %v653
      %v670 = vmax.f32 %v540, %v650
      %v671 = vmax.f32 %v540, %v651
      %v672 = vmax.f32 %v540, %v652
      %v673 = vmax.f32 %v540, %v653
      %v674 = vmax.f32 %v544, %v650
      %v675 = vmax.f32 %v544, %v651
      %v676 = vmax.f32 %v544, %v652
      %v677 = vmax.f32 %v544, %v653
      %v678 = vmax.f32 %v548, %v650
      %v679 = vmax.f32 %v548, %v651
      %v680 = vmax.f32 %v548, %v652
      %v681 = vmax.f32 %v548, %v653
      %v682 = vmax.f32 %v552, %v650
      %v683 = vmax.f32 %v552, %v651
      %v684 = vmax.f32 %v552, %v652
      %v685 = vmax.f32 %v552, %v653
      %v686 = vmax.f32 %v556, %v650
      %v687 = vmax.f32 %v556, %v651
      %v688 = vmax.f32 %v556, %v652
      %v689 = vmax.f32 %v556, %v653
      %v690 = vmax.f32 %v560, %v650
      %v691 = vmax.f32 %v560, %v651
      %v692 = vmax.f32 %v560, %v652
      %v693 = vmax.f32 %v560, %v653
      %v694 = vmax.f32 %v564, %v650
      %v695 = vmax.f32 %v564, %v651
      %v696 = vmax.f32 %v564, %v652
      %v697 = vmax.f32 %v564, %v653
      %v698 = vmax.f32 %v568, %v650
      %v699 = vmax.f32 %v568, %v651
      %v700 = vmax.f32 %v568, %v652
      %v701 = vmax.f32 %v568, %v653
      %v702 = vmax.f32 %v572, %v650
      %v703 = vmax.f32 %v572, %v651
      %v704 = vmax.f32 %v572, %v652
      %v705 = vmax.f32 %v572, %v653
      %v706 = vmax.f32 %v576, %v650
      %v707 = vmax.f32 %v576, %v651
      %v708 = vmax.f32 %v576, %v652
      %v709 = vmax.f32 %v576, %v653
      %v710 = vmax.f32 %v580, %v650
      %v711 = vmax.f32 %v580, %v651
      %v712 = vmax.f32 %v580, %v652
      %v713 = vmax.f32 %v580, %v653
      %v714 = vmax.f32 %v584, %v650
      %v715 = vmax.f32 %v584, %v651
      %v716 = vmax.f32 %v584, %v652
      %v717 = vmax.f32 %v584, %v653
      %v718 = vmax.f32 %v588, %v650
      %v719 = vmax.f32 %v588, %v651
      %v720 = vmax.f32 %v588, %v652
      %v721 = vmax.f32 %v588, %v653
      %v722 = vmax.f32 %v592, %v650
      %v723 = vmax.f32 %v592, %v651
      %v724 = vmax.f32 %v592, %v652
      %v725 = vmax.f32 %v592, %v653
      %v726 = vmax.f32 %v596, %v650
      %v727 = vmax.f32 %v596, %v651
      %v728 = vmax.f32 %v596, %v652
      %v729 = vmax.f32 %v596, %v653
      %v730 = vmax.f32 %v600, %v650
      %v731 = vmax.f32 %v600, %v651
      %v732 = vmax.f32 %v600, %v652
      %v733 = vmax.f32 %v600, %v653
      %v734 = vmax.f32 %v604, %v650
      %v735 = vmax.f32 %v604, %v651
      %v736 = vmax.f32 %v604, %v652
      %v737 = vmax.f32 %v604, %v653
      %v738 = vmax.f32 %v608, %v650
      %v739 = vmax.f32 %v608, %v651
      %v740 = vmax.f32 %v608, %v652
      %v741 = vmax.f32 %v608, %v653
      %v742 = vmax.f32 %v612, %v650
      %v743 = vmax.f32 %v612, %v651
      %v744 = vmax.f32 %v612, %v652
      %v745 = vmax.f32 %v612, %v653
      %v746 = vmax.f32 %v616, %v650
      %v747 = vmax.f32 %v616, %v651
      %v748 = vmax.f32 %v616, %v652
      %v749 = vmax.f32 %v616, %v653
      %v750 = vmax.f32 %v620, %v650
      %v751 = vmax.f32 %v620, %v651
      %v752 = vmax.f32 %v620, %v652
      %v753 = vmax.f32 %v620, %v653
      %v754 = vmax.f32 %v624, %v650
      %v755 = vmax.f32 %v624, %v651
      %v756 = vmax.f32 %v624, %v652
      %v757 = vmax.f32 %v624, %v653
      %v758 = vmax.f32 %v628, %v650
      %v759 = vmax.f32 %v628, %v651
      %v760 = vmax.f32 %v628, %v652
      %v761 = vmax.f32 %v628, %v653
      %v762 = vmax.f32 %v632, %v650
      %v763 = vmax.f32 %v632, %v651
      %v764 = vmax.f32 %v632, %v652
      %v765 = vmax.f32 %v632, %v653
      %v766 = vmax.f32 %v636, %v650
      %v767 = vmax.f32 %v636, %v651
      %v768 = vmax.f32 %v636, %v652
      %v769 = vmax.f32 %v636, %v653
      %v770 = vmax.f32 %v640, %v650
      %v771 = vmax.f32 %v640, %v651
      %v772 = vmax.f32 %v640, %v652
      %v773 = vmax.f32 %v640, %v653
      %v774 = vmax.f32 %v644, %v650
      %v775 = vmax.f32 %v644, %v651
      %v776 = vmax.f32 %v644, %v652
      %v777 = vmax.f32 %v644, %v653
      %v778 = vmax.f32 %v648, %v650
      %v779 = vmax.f32 %v648, %v651
      %v780 = vmax.f32 %v648, %v652
      %v781 = vmax.f32 %v648, %v653
      %v782 = vsub.f32 %v394, %v654
      %v783 = vsub.f32 %v395, %v655
      %v784 = vsub.f32 %v396, %v656
      %v785 = vsub.f32 %v397, %v657
      %v786 = vsub.f32 %v398, %v658
      %v787 = vsub.f32 %v399, %v659
      %v788 = vsub.f32 %v400, %v660
      %v789 = vsub.f32 %v401, %v661
      %v790 = vsub.f32 %v402, %v662
      %v791 = vsub.f32 %v403, %v663
      %v792 = vsub.f32 %v404, %v664
      %v793 = vsub.f32 %v405, %v665
      %v794 = vsub.f32 %v406, %v666
      %v795 = vsub.f32 %v407, %v667
      %v796 = vsub.f32 %v408, %v668
      %v797 = vsub.f32 %v409, %v669
      %v798 = vsub.f32 %v410, %v670
      %v799 = vsub.f32 %v411, %v671
      %v800 = vsub.f32 %v412, %v672
      %v801 = vsub.f32 %v413, %v673
      %v802 = vsub.f32 %v414, %v674
      %v803 = vsub.f32 %v415, %v675
      %v804 = vsub.f32 %v416, %v676
      %v805 = vsub.f32 %v417, %v677
      %v806 = vsub.f32 %v418, %v678
      %v807 = vsub.f32 %v419, %v679
      %v808 = vsub.f32 %v420, %v680
      %v809 = vsub.f32 %v421, %v681
      %v810 = vsub.f32 %v422, %v682
      %v811 = vsub.f32 %v423, %v683
      %v812 = vsub.f32 %v424, %v684
      %v813 = vsub.f32 %v425, %v685
      %v814 = vsub.f32 %v426, %v686
      %v815 = vsub.f32 %v427, %v687
      %v816 = vsub.f32 %v428, %v688
      %v817 = vsub.f32 %v429, %v689
      %v818 = vsub.f32 %v430, %v690
      %v819 = vsub.f32 %v431, %v691
      %v820 = vsub.f32 %v432, %v692
      %v821 = vsub.f32 %v433, %v693
      %v822 = vsub.f32 %v434, %v694
      %v823 = vsub.f32 %v435, %v695
      %v824 = vsub.f32 %v436, %v696
      %v825 = vsub.f32 %v437, %v697
      %v826 = vsub.f32 %v438, %v698
      %v827 = vsub.f32 %v439, %v699
      %v828 = vsub.f32 %v440, %v700
      %v829 = vsub.f32 %v441, %v701
      %v830 = vsub.f32 %v442, %v702
      %v831 = vsub.f32 %v443, %v703
      %v832 = vsub.f32 %v444, %v704
      %v833 = vsub.f32 %v445, %v705
      %v834 = vsub.f32 %v446, %v706
      %v835 = vsub.f32 %v447, %v707
      %v836 = vsub.f32 %v448, %v708
      %v837 = vsub.f32 %v449, %v709
      %v838 = vsub.f32 %v450, %v710
      %v839 = vsub.f32 %v451, %v711
      %v840 = vsub.f32 %v452, %v712
      %v841 = vsub.f32 %v453, %v713
      %v842 = vsub.f32 %v454, %v714
      %v843 = vsub.f32 %v455, %v715
      %v844 = vsub.f32 %v456, %v716
      %v845 = vsub.f32 %v457, %v717
      %v846 = vsub.f32 %v458, %v718
      %v847 = vsub.f32 %v459, %v719
      %v848 = vsub.f32 %v460, %v720
      %v849 = vsub.f32 %v461, %v721
      %v850 = vsub.f32 %v462, %v722
      %v851 = vsub.f32 %v463, %v723
      %v852 = vsub.f32 %v464, %v724
      %v853 = vsub.f32 %v465, %v725
      %v854 = vsub.f32 %v466, %v726
      %v855 = vsub.f32 %v467, %v727
      %v856 = vsub.f32 %v468, %v728
      %v857 = vsub.f32 %v469, %v729
      %v858 = vsub.f32 %v470, %v730
      %v859 = vsub.f32 %v471, %v731
      %v860 = vsub.f32 %v472, %v732
      %v861 = vsub.f32 %v473, %v733
      %v862 = vsub.f32 %v474, %v734
      %v863 = vsub.f32 %v475, %v735
      %v864 = vsub.f32 %v476, %v736
      %v865 = vsub.f32 %v477, %v737
      %v866 = vsub.f32 %v478, %v738
      %v867 = vsub.f32 %v479, %v739
      %v868 = vsub.f32 %v480, %v740
      %v869 = vsub.f32 %v481, %v741
      %v870 = vsub.f32 %v482, %v742
      %v871 = vsub.f32 %v483, %v743
      %v872 = vsub.f32 %v484, %v744
      %v873 = vsub.f32 %v485, %v745
      %v874 = vsub.f32 %v486, %v746
      %v875 = vsub.f32 %v487, %v747
      %v876 = vsub.f32 %v488, %v748
      %v877 = vsub.f32 %v489, %v749
      %v878 = vsub.f32 %v490, %v750
      %v879 = vsub.f32 %v491, %v751
      %v880 = vsub.f32 %v492, %v752
      %v881 = vsub.f32 %v493, %v753
      %v882 = vsub.f32 %v494, %v754
      %v883 = vsub.f32 %v495, %v755
      %v884 = vsub.f32 %v496, %v756
      %v885 = vsub.f32 %v497, %v757
      %v886 = vsub.f32 %v498, %v758
      %v887 = vsub.f32 %v499, %v759
      %v888 = vsub.f32 %v500, %v760
      %v889 = vsub.f32 %v501, %v761
      %v890 = vsub.f32 %v502, %v762
      %v891 = vsub.f32 %v503, %v763
      %v892 = vsub.f32 %v504, %v764
      %v893 = vsub.f32 %v505, %v765
      %v894 = vsub.f32 %v506, %v766
      %v895 = vsub.f32 %v507, %v767
      %v896 = vsub.f32 %v508, %v768
      %v897 = vsub.f32 %v509, %v769
      %v898 = vsub.f32 %v510, %v770
      %v899 = vsub.f32 %v511, %v771
      %v900 = vsub.f32 %v512, %v772
      %v901 = vsub.f32 %v513, %v773
      %v902 = vsub.f32 %v514, %v774
      %v903 = vsub.f32 %v515, %v775
      %v904 = vsub.f32 %v516, %v776
      %v905 = vsub.f32 %v517, %v777
      %v906 = vsub.f32 %v518, %v778
      %v907 = vsub.f32 %v519, %v779
      %v908 = vsub.f32 %v520, %v780
      %v909 = vsub.f32 %v521, %v781
      %v910 = vmax.f32 %v782, 0.0
      %v911 = vmax.f32 %v783, 0.0
      %v912 = vmax.f32 %v784, 0.0
      %v913 = vmax.f32 %v785, 0.0
      %v914 = vmax.f32 %v786, 0.0
      %v915 = vmax.f32 %v787, 0.0
      %v916 = vmax.f32 %v788, 0.0
      %v917 = vmax.f32 %v789, 0.0
      %v918 = vmax.f32 %v790, 0.0
      %v919 = vmax.f32 %v791, 0.0
      %v920 = vmax.f32 %v792, 0.0
      %v921 = vmax.f32 %v793, 0.0
      %v922 = vmax.f32 %v794, 0.0
      %v923 = vmax.f32 %v795, 0.0
      %v924 = vmax.f32 %v796, 0.0
      %v925 = vmax.f32 %v797, 0.0
      %v926 = vmax.f32 %v798, 0.0
      %v927 = vmax.f32 %v799, 0.0
      %v928 = vmax.f32 %v800, 0.0
      %v929 = vmax.f32 %v801, 0.0
      %v930 = vmax.f32 %v802, 0.0
      %v931 = vmax.f32 %v803, 0.0
      %v932 = vmax.f32 %v804, 0.0
      %v933 = vmax.f32 %v805, 0.0
      %v934 = vmax.f32 %v806, 0.0
      %v935 = vmax.f32 %v807, 0.0
      %v936 = vmax.f32 %v808, 0.0
      %v937 = vmax.f32 %v809, 0.0
      %v938 = vmax.f32 %v810, 0.0
      %v939 = vmax.f32 %v811, 0.0
      %v940 = vmax.f32 %v812, 0.0
      %v941 = vmax.f32 %v813, 0.0
      %v942 = vmax.f32 %v814, 0.0
      %v943 = vmax.f32 %v815, 0.0
      %v944 = vmax.f32 %v816, 0.0
      %v945 = vmax.f32 %v817, 0.0
      %v946 = vmax.f32 %v818, 0.0
      %v947 = vmax.f32 %v819, 0.0
      %v948 = vmax.f32 %v820, 0.0
      %v949 = vmax.f32 %v821, 0.0
      %v950 = vmax.f32 %v822, 0.0
      %v951 = vmax.f32 %v823, 0.0
      %v952 = vmax.f32 %v824, 0.0
      %v953 = vmax.f32 %v825, 0.0
      %v954 = vmax.f32 %v826, 0.0
      %v955 = vmax.f32 %v827, 0.0
      %v956 = vmax.f32 %v828, 0.0
      %v957 = vmax.f32 %v829, 0.0
      %v958 = vmax.f32 %v830, 0.0
      %v959 = vmax.f32 %v831, 0.0
      %v960 = vmax.f32 %v832, 0.0
      %v961 = vmax.f32 %v833, 0.0
      %v962 = vmax.f32 %v834, 0.0
      %v963 = vmax.f32 %v835, 0.0
      %v964 = vmax.f32 %v836, 0.0
      %v965 = vmax.f32 %v837, 0.0
      %v966 = vmax.f32 %v838, 0.0
      %v967 = vmax.f32 %v839, 0.0
      %v968 = vmax.f32 %v840, 0.0
      %v969 = vmax.f32 %v841, 0.0
      %v970 = vmax.f32 %v842, 0.0
      %v971 = vmax.f32 %v843, 0.0
      %v972 = vmax.f32 %v844, 0.0
      %v973 = vmax.f32 %v845, 0.0
      %v974 = vmax.f32 %v846, 0.0
      %v975 = vmax.f32 %v847, 0.0
      %v976 = vmax.f32 %v848, 0.0
      %v977 = vmax.f32 %v849, 0.0
      %v978 = vmax.f32 %v850, 0.0
      %v979 = vmax.f32 %v851, 0.0
      %v980 = vmax.f32 %v852, 0.0
      %v981 = vmax.f32 %v853, 0.0
      %v982 = vmax.f32 %v854, 0.0
      %v983 = vmax.f32 %v855, 0.0
      %v984 = vmax.f32 %v856, 0.0
      %v985 = vmax.f32 %v857, 0.0
      %v986 = vmax.f32 %v858, 0.0
      %v987 = vmax.f32 %v859, 0.0
      %v988 = vmax.f32 %v860, 0.0
      %v989 = vmax.f32 %v861, 0.0
      %v990 = vmax.f32 %v862, 0.0
      %v991 = vmax.f32 %v863, 0.0
      %v992 = vmax.f32 %v864, 0.0
      %v993 = vmax.f32 %v865, 0.0
      %v994 = vmax.f32 %v866, 0.0
      %v995 = vmax.f32 %v867, 0.0
      %v996 = vmax.f32 %v868, 0.0
      %v997 = vmax.f32 %v869, 0.0
      %v998 = vmax.f32 %v870, 0.0
      %v999 = vmax.f32 %v871, 0.0
      %v1000 = vmax.f32 %v872, 0.0
      %v1001 = vmax.f32 %v873, 0.0
      %v1002 = vmax.f32 %v874, 0.0
      %v1003 = vmax.f32 %v875, 0.0
      %v1004 = vmax.f32 %v876, 0.0
      %v1005 = vmax.f32 %v877, 0.0
      %v1006 = vmax.f32 %v878, 0.0
      %v1007 = vmax.f32 %v879, 0.0
      %v1008 = vmax.f32 %v880, 0.0
      %v1009 = vmax.f32 %v881, 0.0
      %v1010 = vmax.f32 %v882, 0.0
      %v1011 = vmax.f32 %v883, 0.0
      %v1012 = vmax.f32 %v884, 0.0
      %v1013 = vmax.f32 %v885, 0.0
      %v1014 = vmax.f32 %v886, 0.0
      %v1015 = vmax.f32 %v887, 0.0
      %v1016 = vmax.f32 %v888, 0.0
      %v1017 = vmax.f32 %v889, 0.0
      %v1018 = vmax.f32 %v890, 0.0
      %v1019 = vmax.f32 %v891, 0.0
      %v1020 = vmax.f32 %v892, 0.0
      %v1021 = vmax.f32 %v893, 0.0
      %v1022 = vmax.f32 %v894, 0.0
      %v1023 = vmax.f32 %v895, 0.0
      %v1024 = vmax.f32 %v896, 0.0
      %v1025 = vmax.f32 %v897, 0.0
      %v1026 = vmax.f32 %v898, 0.0
      %v1027 = vmax.f32 %v899, 0.0
      %v1028 = vmax.f32 %v900, 0.0
      %v1029 = vmax.f32 %v901, 0.0
      %v1030 = vmax.f32 %v902, 0.0
      %v1031 = vmax.f32 %v903, 0.0
      %v1032 = vmax.f32 %v904, 0.0
      %v1033 = vmax.f32 %v905, 0.0
      %v1034 = vmax.f32 %v906, 0.0
      %v1035 = vmax.f32 %v907, 0.0
      %v1036 = vmax.f32 %v908, 0.0
      %v1037 = vmax.f32 %v909, 0.0
      %1038 = vset.pattern.permute.xlu0 3
      %1039 = vperm.xlu0 %1038, %v194
      %v1040 = vpop.permute.xlu0 %1039
      %1042 = vset.pattern.permute.xlu0 3
      %1043 = vperm.xlu0 %1042, %v195
      %v1044 = vpop.permute.xlu0 %1043
      %1046 = vset.pattern.permute.xlu0 3
      %1047 = vperm.xlu0 %1046, %v196
      %v1048 = vpop.permute.xlu0 %1047
      %1050 = vset.pattern.permute.xlu0 3
      %1051 = vperm.xlu0 %1050, %v197
      %v1052 = vpop.permute.xlu0 %1051
      %1054 = vset.pattern.permute.xlu0 3
      %1055 = vperm.xlu0 %1054, %v198
      %v1056 = vpop.permute.xlu0 %1055
      %1058 = vset.pattern.permute.xlu0 3
      %1059 = vperm.xlu0 %1058, %v199
      %v1060 = vpop.permute.xlu0 %1059
      %1062 = vset.pattern.permute.xlu0 3
      %1063 = vperm.xlu0 %1062, %v200
      %v1064 = vpop.permute.xlu0 %1063
      %1066 = vset.pattern.permute.xlu0 3
      %1067 = vperm.xlu0 %1066, %v201
      %v1068 = vpop.permute.xlu0 %1067
      %1070 = vset.pattern.permute.xlu0 3
      %1071 = vperm.xlu0 %1070, %v202
      %v1072 = vpop.permute.xlu0 %1071
      %1074 = vset.pattern.permute.xlu0 3
      %1075 = vperm.xlu0 %1074, %v203
      %v1076 = vpop.permute.xlu0 %1075
      %1078 = vset.pattern.permute.xlu0 3
      %1079 = vperm.xlu0 %1078, %v204
      %v1080 = vpop.permute.xlu0 %1079
      %1082 = vset.pattern.permute.xlu0 3
      %1083 = vperm.xlu0 %1082, %v205
      %v1084 = vpop.permute.xlu0 %1083
      %1086 = vset.pattern.permute.xlu0 3
      %1087 = vperm.xlu0 %1086, %v206
      %v1088 = vpop.permute.xlu0 %1087
      %1090 = vset.pattern.permute.xlu0 3
      %1091 = vperm.xlu0 %1090, %v207
      %v1092 = vpop.permute.xlu0 %1091
      %1094 = vset.pattern.permute.xlu0 3
      %1095 = vperm.xlu0 %1094, %v208
      %v1096 = vpop.permute.xlu0 %1095
      %1098 = vset.pattern.permute.xlu0 3
      %1099 = vperm.xlu0 %1098, %v209
      %v1100 = vpop.permute.xlu0 %1099
      %1102 = vset.pattern.permute.xlu0 3
      %1103 = vperm.xlu0 %1102, %v210
      %v1104 = vpop.permute.xlu0 %1103
      %1106 = vset.pattern.permute.xlu0 3
      %1107 = vperm.xlu0 %1106, %v211
      %v1108 = vpop.permute.xlu0 %1107
      %1110 = vset.pattern.permute.xlu0 3
      %1111 = vperm.xlu0 %1110, %v212
      %v1112 = vpop.permute.xlu0 %1111
      %1114 = vset.pattern.permute.xlu0 3
      %1115 = vperm.xlu0 %1114, %v213
      %v1116 = vpop.permute.xlu0 %1115
      %1118 = vset.pattern.permute.xlu0 3
      %1119 = vperm.xlu0 %1118, %v214
      %v1120 = vpop.permute.xlu0 %1119
      %1122 = vset.pattern.permute.xlu0 3
      %1123 = vperm.xlu0 %1122, %v215
      %v1124 = vpop.permute.xlu0 %1123
      %1126 = vset.pattern.permute.xlu0 3
      %1127 = vperm.xlu0 %1126, %v216
      %v1128 = vpop.permute.xlu0 %1127
      %1130 = vset.pattern.permute.xlu0 3
      %1131 = vperm.xlu0 %1130, %v217
      %v1132 = vpop.permute.xlu0 %1131
      %1134 = vset.pattern.permute.xlu0 3
      %1135 = vperm.xlu0 %1134, %v218
      %v1136 = vpop.permute.xlu0 %1135
      %1138 = vset.pattern.permute.xlu0 3
      %1139 = vperm.xlu0 %1138, %v219
      %v1140 = vpop.permute.xlu0 %1139
      %1142 = vset.pattern.permute.xlu0 3
      %1143 = vperm.xlu0 %1142, %v220
      %v1144 = vpop.permute.xlu0 %1143
      %1146 = vset.pattern.permute.xlu0 3
      %1147 = vperm.xlu0 %1146, %v221
      %v1148 = vpop.permute.xlu0 %1147
      %1150 = vset.pattern.permute.xlu0 3
      %1151 = vperm.xlu0 %1150, %v222
      %v1152 = vpop.permute.xlu0 %1151
      %1154 = vset.pattern.permute.xlu0 3
      %1155 = vperm.xlu0 %1154, %v223
      %v1156 = vpop.permute.xlu0 %1155
      %1158 = vset.pattern.permute.xlu0 3
      %1159 = vperm.xlu0 %1158, %v224
      %v1160 = vpop.permute.xlu0 %1159
      %1162 = vset.pattern.permute.xlu0 3
      %1163 = vperm.xlu0 %1162, %v225
      %v1164 = vpop.permute.xlu0 %1163
      %v1166 = vperm.slane %v226, 3
      %v1167 = vperm.slane %v227, 3
      %v1168 = vperm.slane %v228, 3
      %v1169 = vperm.slane %v229, 3
      %v1170 = vmin.f32 %v1040, %v1166
      %v1171 = vmin.f32 %v1040, %v1167
      %v1172 = vmin.f32 %v1040, %v1168
      %v1173 = vmin.f32 %v1040, %v1169
      %v1174 = vmin.f32 %v1044, %v1166
      %v1175 = vmin.f32 %v1044, %v1167
      %v1176 = vmin.f32 %v1044, %v1168
      %v1177 = vmin.f32 %v1044, %v1169
      %v1178 = vmin.f32 %v1048, %v1166
      %v1179 = vmin.f32 %v1048, %v1167
      %v1180 = vmin.f32 %v1048, %v1168
      %v1181 = vmin.f32 %v1048, %v1169
      %v1182 = vmin.f32 %v1052, %v1166
      %v1183 = vmin.f32 %v1052, %v1167
      %v1184 = vmin.f32 %v1052, %v1168
      %v1185 = vmin.f32 %v1052, %v1169
      %v1186 = vmin.f32 %v1056, %v1166
      %v1187 = vmin.f32 %v1056, %v1167
      %v1188 = vmin.f32 %v1056, %v1168
      %v1189 = vmin.f32 %v1056, %v1169
      %v1190 = vmin.f32 %v1060, %v1166
      %v1191 = vmin.f32 %v1060, %v1167
      %v1192 = vmin.f32 %v1060, %v1168
      %v1193 = vmin.f32 %v1060, %v1169
      %v1194 = vmin.f32 %v1064, %v1166
      %v1195 = vmin.f32 %v1064, %v1167
      %v1196 = vmin.f32 %v1064, %v1168
      %v1197 = vmin.f32 %v1064, %v1169
      %v1198 = vmin.f32 %v1068, %v1166
      %v1199 = vmin.f32 %v1068, %v1167
      %v1200 = vmin.f32 %v1068, %v1168
      %v1201 = vmin.f32 %v1068, %v1169
      %v1202 = vmin.f32 %v1072, %v1166
      %v1203 = vmin.f32 %v1072, %v1167
      %v1204 = vmin.f32 %v1072, %v1168
      %v1205 = vmin.f32 %v1072, %v1169
      %v1206 = vmin.f32 %v1076, %v1166
      %v1207 = vmin.f32 %v1076, %v1167
      %v1208 = vmin.f32 %v1076, %v1168
      %v1209 = vmin.f32 %v1076, %v1169
      %v1210 = vmin.f32 %v1080, %v1166
      %v1211 = vmin.f32 %v1080, %v1167
      %v1212 = vmin.f32 %v1080, %v1168
      %v1213 = vmin.f32 %v1080, %v1169
      %v1214 = vmin.f32 %v1084, %v1166
      %v1215 = vmin.f32 %v1084, %v1167
      %v1216 = vmin.f32 %v1084, %v1168
      %v1217 = vmin.f32 %v1084, %v1169
      %v1218 = vmin.f32 %v1088, %v1166
      %v1219 = vmin.f32 %v1088, %v1167
      %v1220 = vmin.f32 %v1088, %v1168
      %v1221 = vmin.f32 %v1088, %v1169
      %v1222 = vmin.f32 %v1092, %v1166
      %v1223 = vmin.f32 %v1092, %v1167
      %v1224 = vmin.f32 %v1092, %v1168
      %v1225 = vmin.f32 %v1092, %v1169
      %v1226 = vmin.f32 %v1096, %v1166
      %v1227 = vmin.f32 %v1096, %v1167
      %v1228 = vmin.f32 %v1096, %v1168
      %v1229 = vmin.f32 %v1096, %v1169
      %v1230 = vmin.f32 %v1100, %v1166
      %v1231 = vmin.f32 %v1100, %v1167
      %v1232 = vmin.f32 %v1100, %v1168
      %v1233 = vmin.f32 %v1100, %v1169
      %v1234 = vmin.f32 %v1104, %v1166
      %v1235 = vmin.f32 %v1104, %v1167
      %v1236 = vmin.f32 %v1104, %v1168
      %v1237 = vmin.f32 %v1104, %v1169
      %v1238 = vmin.f32 %v1108, %v1166
      %v1239 = vmin.f32 %v1108, %v1167
      %v1240 = vmin.f32 %v1108, %v1168
      %v1241 = vmin.f32 %v1108, %v1169
      %v1242 = vmin.f32 %v1112, %v1166
      %v1243 = vmin.f32 %v1112, %v1167
      %v1244 = vmin.f32 %v1112, %v1168
      %v1245 = vmin.f32 %v1112, %v1169
      %v1246 = vmin.f32 %v1116, %v1166
      %v1247 = vmin.f32 %v1116, %v1167
      %v1248 = vmin.f32 %v1116, %v1168
      %v1249 = vmin.f32 %v1116, %v1169
      %v1250 = vmin.f32 %v1120, %v1166
      %v1251 = vmin.f32 %v1120, %v1167
      %v1252 = vmin.f32 %v1120, %v1168
      %v1253 = vmin.f32 %v1120, %v1169
      %v1254 = vmin.f32 %v1124, %v1166
      %v1255 = vmin.f32 %v1124, %v1167
      %v1256 = vmin.f32 %v1124, %v1168
      %v1257 = vmin.f32 %v1124, %v1169
      %v1258 = vmin.f32 %v1128, %v1166
      %v1259 = vmin.f32 %v1128, %v1167
      %v1260 = vmin.f32 %v1128, %v1168
      %v1261 = vmin.f32 %v1128, %v1169
      %v1262 = vmin.f32 %v1132, %v1166
      %v1263 = vmin.f32 %v1132, %v1167
      %v1264 = vmin.f32 %v1132, %v1168
      %v1265 = vmin.f32 %v1132, %v1169
      %v1266 = vmin.f32 %v1136, %v1166
      %v1267 = vmin.f32 %v1136, %v1167
      %v1268 = vmin.f32 %v1136, %v1168
      %v1269 = vmin.f32 %v1136, %v1169
      %v1270 = vmin.f32 %v1140, %v1166
      %v1271 = vmin.f32 %v1140, %v1167
      %v1272 = vmin.f32 %v1140, %v1168
      %v1273 = vmin.f32 %v1140, %v1169
      %v1274 = vmin.f32 %v1144, %v1166
      %v1275 = vmin.f32 %v1144, %v1167
      %v1276 = vmin.f32 %v1144, %v1168
      %v1277 = vmin.f32 %v1144, %v1169
      %v1278 = vmin.f32 %v1148, %v1166
      %v1279 = vmin.f32 %v1148, %v1167
      %v1280 = vmin.f32 %v1148, %v1168
      %v1281 = vmin.f32 %v1148, %v1169
      %v1282 = vmin.f32 %v1152, %v1166
      %v1283 = vmin.f32 %v1152, %v1167
      %v1284 = vmin.f32 %v1152, %v1168
      %v1285 = vmin.f32 %v1152, %v1169
      %v1286 = vmin.f32 %v1156, %v1166
      %v1287 = vmin.f32 %v1156, %v1167
      %v1288 = vmin.f32 %v1156, %v1168
      %v1289 = vmin.f32 %v1156, %v1169
      %v1290 = vmin.f32 %v1160, %v1166
      %v1291 = vmin.f32 %v1160, %v1167
      %v1292 = vmin.f32 %v1160, %v1168
      %v1293 = vmin.f32 %v1160, %v1169
      %v1294 = vmin.f32 %v1164, %v1166
      %v1295 = vmin.f32 %v1164, %v1167
      %v1296 = vmin.f32 %v1164, %v1168
      %v1297 = vmin.f32 %v1164, %v1169
      %1298 = vset.pattern.permute.xlu0 1
      %1299 = vperm.xlu0 %1298, %v194
      %v1300 = vpop.permute.xlu0 %1299
      %1302 = vset.pattern.permute.xlu0 1
      %1303 = vperm.xlu0 %1302, %v195
      %v1304 = vpop.permute.xlu0 %1303
      %1306 = vset.pattern.permute.xlu0 1
      %1307 = vperm.xlu0 %1306, %v196
      %v1308 = vpop.permute.xlu0 %1307
      %1310 = vset.pattern.permute.xlu0 1
      %1311 = vperm.xlu0 %1310, %v197
      %v1312 = vpop.permute.xlu0 %1311
      %1314 = vset.pattern.permute.xlu0 1
      %1315 = vperm.xlu0 %1314, %v198
      %v1316 = vpop.permute.xlu0 %1315
      %1318 = vset.pattern.permute.xlu0 1
      %1319 = vperm.xlu0 %1318, %v199
      %v1320 = vpop.permute.xlu0 %1319
      %1322 = vset.pattern.permute.xlu0 1
      %1323 = vperm.xlu0 %1322, %v200
      %v1324 = vpop.permute.xlu0 %1323
      %1326 = vset.pattern.permute.xlu0 1
      %1327 = vperm.xlu0 %1326, %v201
      %v1328 = vpop.permute.xlu0 %1327
      %1330 = vset.pattern.permute.xlu0 1
      %1331 = vperm.xlu0 %1330, %v202
      %v1332 = vpop.permute.xlu0 %1331
      %1334 = vset.pattern.permute.xlu0 1
      %1335 = vperm.xlu0 %1334, %v203
      %v1336 = vpop.permute.xlu0 %1335
      %1338 = vset.pattern.permute.xlu0 1
      %1339 = vperm.xlu0 %1338, %v204
      %v1340 = vpop.permute.xlu0 %1339
      %1342 = vset.pattern.permute.xlu0 1
      %1343 = vperm.xlu0 %1342, %v205
      %v1344 = vpop.permute.xlu0 %1343
      %1346 = vset.pattern.permute.xlu0 1
      %1347 = vperm.xlu0 %1346, %v206
      %v1348 = vpop.permute.xlu0 %1347
      %1350 = vset.pattern.permute.xlu0 1
      %1351 = vperm.xlu0 %1350, %v207
      %v1352 = vpop.permute.xlu0 %1351
      %1354 = vset.pattern.permute.xlu0 1
      %1355 = vperm.xlu0 %1354, %v208
      %v1356 = vpop.permute.xlu0 %1355
      %1358 = vset.pattern.permute.xlu0 1
      %1359 = vperm.xlu0 %1358, %v209
      %v1360 = vpop.permute.xlu0 %1359
      %1362 = vset.pattern.permute.xlu0 1
      %1363 = vperm.xlu0 %1362, %v210
      %v1364 = vpop.permute.xlu0 %1363
      %1366 = vset.pattern.permute.xlu0 1
      %1367 = vperm.xlu0 %1366, %v211
      %v1368 = vpop.permute.xlu0 %1367
      %1370 = vset.pattern.permute.xlu0 1
      %1371 = vperm.xlu0 %1370, %v212
      %v1372 = vpop.permute.xlu0 %1371
      %1374 = vset.pattern.permute.xlu0 1
      %1375 = vperm.xlu0 %1374, %v213
      %v1376 = vpop.permute.xlu0 %1375
      %1378 = vset.pattern.permute.xlu0 1
      %1379 = vperm.xlu0 %1378, %v214
      %v1380 = vpop.permute.xlu0 %1379
      %1382 = vset.pattern.permute.xlu0 1
      %1383 = vperm.xlu0 %1382, %v215
      %v1384 = vpop.permute.xlu0 %1383
      %1386 = vset.pattern.permute.xlu0 1
      %1387 = vperm.xlu0 %1386, %v216
      %v1388 = vpop.permute.xlu0 %1387
      %1390 = vset.pattern.permute.xlu0 1
      %1391 = vperm.xlu0 %1390, %v217
      %v1392 = vpop.permute.xlu0 %1391
      %1394 = vset.pattern.permute.xlu0 1
      %1395 = vperm.xlu0 %1394, %v218
      %v1396 = vpop.permute.xlu0 %1395
      %1398 = vset.pattern.permute.xlu0 1
      %1399 = vperm.xlu0 %1398, %v219
      %v1400 = vpop.permute.xlu0 %1399
      %1402 = vset.pattern.permute.xlu0 1
      %1403 = vperm.xlu0 %1402, %v220
      %v1404 = vpop.permute.xlu0 %1403
      %1406 = vset.pattern.permute.xlu0 1
      %1407 = vperm.xlu0 %1406, %v221
      %v1408 = vpop.permute.xlu0 %1407
      %1410 = vset.pattern.permute.xlu0 1
      %1411 = vperm.xlu0 %1410, %v222
      %v1412 = vpop.permute.xlu0 %1411
      %1414 = vset.pattern.permute.xlu0 1
      %1415 = vperm.xlu0 %1414, %v223
      %v1416 = vpop.permute.xlu0 %1415
      %1418 = vset.pattern.permute.xlu0 1
      %1419 = vperm.xlu0 %1418, %v224
      %v1420 = vpop.permute.xlu0 %1419
      %1422 = vset.pattern.permute.xlu0 1
      %1423 = vperm.xlu0 %1422, %v225
      %v1424 = vpop.permute.xlu0 %1423
      %v1426 = vperm.slane %v226, 1
      %v1427 = vperm.slane %v227, 1
      %v1428 = vperm.slane %v228, 1
      %v1429 = vperm.slane %v229, 1
      %v1430 = vmax.f32 %v1300, %v1426
      %v1431 = vmax.f32 %v1300, %v1427
      %v1432 = vmax.f32 %v1300, %v1428
      %v1433 = vmax.f32 %v1300, %v1429
      %v1434 = vmax.f32 %v1304, %v1426
      %v1435 = vmax.f32 %v1304, %v1427
      %v1436 = vmax.f32 %v1304, %v1428
      %v1437 = vmax.f32 %v1304, %v1429
      %v1438 = vmax.f32 %v1308, %v1426
      %v1439 = vmax.f32 %v1308, %v1427
      %v1440 = vmax.f32 %v1308, %v1428
      %v1441 = vmax.f32 %v1308, %v1429
      %v1442 = vmax.f32 %v1312, %v1426
      %v1443 = vmax.f32 %v1312, %v1427
      %v1444 = vmax.f32 %v1312, %v1428
      %v1445 = vmax.f32 %v1312, %v1429
      %v1446 = vmax.f32 %v1316, %v1426
      %v1447 = vmax.f32 %v1316, %v1427
      %v1448 = vmax.f32 %v1316, %v1428
      %v1449 = vmax.f32 %v1316, %v1429
      %v1450 = vmax.f32 %v1320, %v1426
      %v1451 = vmax.f32 %v1320, %v1427
      %v1452 = vmax.f32 %v1320, %v1428
      %v1453 = vmax.f32 %v1320, %v1429
      %v1454 = vmax.f32 %v1324, %v1426
      %v1455 = vmax.f32 %v1324, %v1427
      %v1456 = vmax.f32 %v1324, %v1428
      %v1457 = vmax.f32 %v1324, %v1429
      %v1458 = vmax.f32 %v1328, %v1426
      %v1459 = vmax.f32 %v1328, %v1427
      %v1460 = vmax.f32 %v1328, %v1428
      %v1461 = vmax.f32 %v1328, %v1429
      %v1462 = vmax.f32 %v1332, %v1426
      %v1463 = vmax.f32 %v1332, %v1427
      %v1464 = vmax.f32 %v1332, %v1428
      %v1465 = vmax.f32 %v1332, %v1429
      %v1466 = vmax.f32 %v1336, %v1426
      %v1467 = vmax.f32 %v1336, %v1427
      %v1468 = vmax.f32 %v1336, %v1428
      %v1469 = vmax.f32 %v1336, %v1429
      %v1470 = vmax.f32 %v1340, %v1426
      %v1471 = vmax.f32 %v1340, %v1427
      %v1472 = vmax.f32 %v1340, %v1428
      %v1473 = vmax.f32 %v1340, %v1429
      %v1474 = vmax.f32 %v1344, %v1426
      %v1475 = vmax.f32 %v1344, %v1427
      %v1476 = vmax.f32 %v1344, %v1428
      %v1477 = vmax.f32 %v1344, %v1429
      %v1478 = vmax.f32 %v1348, %v1426
      %v1479 = vmax.f32 %v1348, %v1427
      %v1480 = vmax.f32 %v1348, %v1428
      %v1481 = vmax.f32 %v1348, %v1429
      %v1482 = vmax.f32 %v1352, %v1426
      %v1483 = vmax.f32 %v1352, %v1427
      %v1484 = vmax.f32 %v1352, %v1428
      %v1485 = vmax.f32 %v1352, %v1429
      %v1486 = vmax.f32 %v1356, %v1426
      %v1487 = vmax.f32 %v1356, %v1427
      %v1488 = vmax.f32 %v1356, %v1428
      %v1489 = vmax.f32 %v1356, %v1429
      %v1490 = vmax.f32 %v1360, %v1426
      %v1491 = vmax.f32 %v1360, %v1427
      %v1492 = vmax.f32 %v1360, %v1428
      %v1493 = vmax.f32 %v1360, %v1429
      %v1494 = vmax.f32 %v1364, %v1426
      %v1495 = vmax.f32 %v1364, %v1427
      %v1496 = vmax.f32 %v1364, %v1428
      %v1497 = vmax.f32 %v1364, %v1429
      %v1498 = vmax.f32 %v1368, %v1426
      %v1499 = vmax.f32 %v1368, %v1427
      %v1500 = vmax.f32 %v1368, %v1428
      %v1501 = vmax.f32 %v1368, %v1429
      %v1502 = vmax.f32 %v1372, %v1426
      %v1503 = vmax.f32 %v1372, %v1427
      %v1504 = vmax.f32 %v1372, %v1428
      %v1505 = vmax.f32 %v1372, %v1429
      %v1506 = vmax.f32 %v1376, %v1426
      %v1507 = vmax.f32 %v1376, %v1427
      %v1508 = vmax.f32 %v1376, %v1428
      %v1509 = vmax.f32 %v1376, %v1429
      %v1510 = vmax.f32 %v1380, %v1426
      %v1511 = vmax.f32 %v1380, %v1427
      %v1512 = vmax.f32 %v1380, %v1428
      %v1513 = vmax.f32 %v1380, %v1429
      %v1514 = vmax.f32 %v1384, %v1426
      %v1515 = vmax.f32 %v1384, %v1427
      %v1516 = vmax.f32 %v1384, %v1428
      %v1517 = vmax.f32 %v1384, %v1429
      %v1518 = vmax.f32 %v1388, %v1426
      %v1519 = vmax.f32 %v1388, %v1427
      %v1520 = vmax.f32 %v1388, %v1428
      %v1521 = vmax.f32 %v1388, %v1429
      %v1522 = vmax.f32 %v1392, %v1426
      %v1523 = vmax.f32 %v1392, %v1427
      %v1524 = vmax.f32 %v1392, %v1428
      %v1525 = vmax.f32 %v1392, %v1429
      %v1526 = vmax.f32 %v1396, %v1426
      %v1527 = vmax.f32 %v1396, %v1427
      %v1528 = vmax.f32 %v1396, %v1428
      %v1529 = vmax.f32 %v1396, %v1429
      %v1530 = vmax.f32 %v1400, %v1426
      %v1531 = vmax.f32 %v1400, %v1427
      %v1532 = vmax.f32 %v1400, %v1428
      %v1533 = vmax.f32 %v1400, %v1429
      %v1534 = vmax.f32 %v1404, %v1426
      %v1535 = vmax.f32 %v1404, %v1427
      %v1536 = vmax.f32 %v1404, %v1428
      %v1537 = vmax.f32 %v1404, %v1429
      %v1538 = vmax.f32 %v1408, %v1426
      %v1539 = vmax.f32 %v1408, %v1427
      %v1540 = vmax.f32 %v1408, %v1428
      %v1541 = vmax.f32 %v1408, %v1429
      %v1542 = vmax.f32 %v1412, %v1426
      %v1543 = vmax.f32 %v1412, %v1427
      %v1544 = vmax.f32 %v1412, %v1428
      %v1545 = vmax.f32 %v1412, %v1429
      %v1546 = vmax.f32 %v1416, %v1426
      %v1547 = vmax.f32 %v1416, %v1427
      %v1548 = vmax.f32 %v1416, %v1428
      %v1549 = vmax.f32 %v1416, %v1429
      %v1550 = vmax.f32 %v1420, %v1426
      %v1551 = vmax.f32 %v1420, %v1427
      %v1552 = vmax.f32 %v1420, %v1428
      %v1553 = vmax.f32 %v1420, %v1429
      %v1554 = vmax.f32 %v1424, %v1426
      %v1555 = vmax.f32 %v1424, %v1427
      %v1556 = vmax.f32 %v1424, %v1428
      %v1557 = vmax.f32 %v1424, %v1429
      %v1558 = vsub.f32 %v1170, %v1430
      %v1559 = vsub.f32 %v1171, %v1431
      %v1560 = vsub.f32 %v1172, %v1432
      %v1561 = vsub.f32 %v1173, %v1433
      %v1562 = vsub.f32 %v1174, %v1434
      %v1563 = vsub.f32 %v1175, %v1435
      %v1564 = vsub.f32 %v1176, %v1436
      %v1565 = vsub.f32 %v1177, %v1437
      %v1566 = vsub.f32 %v1178, %v1438
      %v1567 = vsub.f32 %v1179, %v1439
      %v1568 = vsub.f32 %v1180, %v1440
      %v1569 = vsub.f32 %v1181, %v1441
      %v1570 = vsub.f32 %v1182, %v1442
      %v1571 = vsub.f32 %v1183, %v1443
      %v1572 = vsub.f32 %v1184, %v1444
      %v1573 = vsub.f32 %v1185, %v1445
      %v1574 = vsub.f32 %v1186, %v1446
      %v1575 = vsub.f32 %v1187, %v1447
      %v1576 = vsub.f32 %v1188, %v1448
      %v1577 = vsub.f32 %v1189, %v1449
      %v1578 = vsub.f32 %v1190, %v1450
      %v1579 = vsub.f32 %v1191, %v1451
      %v1580 = vsub.f32 %v1192, %v1452
      %v1581 = vsub.f32 %v1193, %v1453
      %v1582 = vsub.f32 %v1194, %v1454
      %v1583 = vsub.f32 %v1195, %v1455
      %v1584 = vsub.f32 %v1196, %v1456
      %v1585 = vsub.f32 %v1197, %v1457
      %v1586 = vsub.f32 %v1198, %v1458
      %v1587 = vsub.f32 %v1199, %v1459
      %v1588 = vsub.f32 %v1200, %v1460
      %v1589 = vsub.f32 %v1201, %v1461
      %v1590 = vsub.f32 %v1202, %v1462
      %v1591 = vsub.f32 %v1203, %v1463
      %v1592 = vsub.f32 %v1204, %v1464
      %v1593 = vsub.f32 %v1205, %v1465
      %v1594 = vsub.f32 %v1206, %v1466
      %v1595 = vsub.f32 %v1207, %v1467
      %v1596 = vsub.f32 %v1208, %v1468
      %v1597 = vsub.f32 %v1209, %v1469
      %v1598 = vsub.f32 %v1210, %v1470
      %v1599 = vsub.f32 %v1211, %v1471
      %v1600 = vsub.f32 %v1212, %v1472
      %v1601 = vsub.f32 %v1213, %v1473
      %v1602 = vsub.f32 %v1214, %v1474
      %v1603 = vsub.f32 %v1215, %v1475
      %v1604 = vsub.f32 %v1216, %v1476
      %v1605 = vsub.f32 %v1217, %v1477
      %v1606 = vsub.f32 %v1218, %v1478
      %v1607 = vsub.f32 %v1219, %v1479
      %v1608 = vsub.f32 %v1220, %v1480
      %v1609 = vsub.f32 %v1221, %v1481
      %v1610 = vsub.f32 %v1222, %v1482
      %v1611 = vsub.f32 %v1223, %v1483
      %v1612 = vsub.f32 %v1224, %v1484
      %v1613 = vsub.f32 %v1225, %v1485
      %v1614 = vsub.f32 %v1226, %v1486
      %v1615 = vsub.f32 %v1227, %v1487
      %v1616 = vsub.f32 %v1228, %v1488
      %v1617 = vsub.f32 %v1229, %v1489
      %v1618 = vsub.f32 %v1230, %v1490
      %v1619 = vsub.f32 %v1231, %v1491
      %v1620 = vsub.f32 %v1232, %v1492
      %v1621 = vsub.f32 %v1233, %v1493
      %v1622 = vsub.f32 %v1234, %v1494
      %v1623 = vsub.f32 %v1235, %v1495
      %v1624 = vsub.f32 %v1236, %v1496
      %v1625 = vsub.f32 %v1237, %v1497
      %v1626 = vsub.f32 %v1238, %v1498
      %v1627 = vsub.f32 %v1239, %v1499
      %v1628 = vsub.f32 %v1240, %v1500
      %v1629 = vsub.f32 %v1241, %v1501
      %v1630 = vsub.f32 %v1242, %v1502
      %v1631 = vsub.f32 %v1243, %v1503
      %v1632 = vsub.f32 %v1244, %v1504
      %v1633 = vsub.f32 %v1245, %v1505
      %v1634 = vsub.f32 %v1246, %v1506
      %v1635 = vsub.f32 %v1247, %v1507
      %v1636 = vsub.f32 %v1248, %v1508
      %v1637 = vsub.f32 %v1249, %v1509
      %v1638 = vsub.f32 %v1250, %v1510
      %v1639 = vsub.f32 %v1251, %v1511
      %v1640 = vsub.f32 %v1252, %v1512
      %v1641 = vsub.f32 %v1253, %v1513
      %v1642 = vsub.f32 %v1254, %v1514
      %v1643 = vsub.f32 %v1255, %v1515
      %v1644 = vsub.f32 %v1256, %v1516
      %v1645 = vsub.f32 %v1257, %v1517
      %v1646 = vsub.f32 %v1258, %v1518
      %v1647 = vsub.f32 %v1259, %v1519
      %v1648 = vsub.f32 %v1260, %v1520
      %v1649 = vsub.f32 %v1261, %v1521
      %v1650 = vsub.f32 %v1262, %v1522
      %v1651 = vsub.f32 %v1263, %v1523
      %v1652 = vsub.f32 %v1264, %v1524
      %v1653 = vsub.f32 %v1265, %v1525
      %v1654 = vsub.f32 %v1266, %v1526
      %v1655 = vsub.f32 %v1267, %v1527
      %v1656 = vsub.f32 %v1268, %v1528
      %v1657 = vsub.f32 %v1269, %v1529
      %v1658 = vsub.f32 %v1270, %v1530
      %v1659 = vsub.f32 %v1271, %v1531
      %v1660 = vsub.f32 %v1272, %v1532
      %v1661 = vsub.f32 %v1273, %v1533
      %v1662 = vsub.f32 %v1274, %v1534
      %v1663 = vsub.f32 %v1275, %v1535
      %v1664 = vsub.f32 %v1276, %v1536
      %v1665 = vsub.f32 %v1277, %v1537
      %v1666 = vsub.f32 %v1278, %v1538
      %v1667 = vsub.f32 %v1279, %v1539
      %v1668 = vsub.f32 %v1280, %v1540
      %v1669 = vsub.f32 %v1281, %v1541
      %v1670 = vsub.f32 %v1282, %v1542
      %v1671 = vsub.f32 %v1283, %v1543
      %v1672 = vsub.f32 %v1284, %v1544
      %v1673 = vsub.f32 %v1285, %v1545
      %v1674 = vsub.f32 %v1286, %v1546
      %v1675 = vsub.f32 %v1287, %v1547
      %v1676 = vsub.f32 %v1288, %v1548
      %v1677 = vsub.f32 %v1289, %v1549
      %v1678 = vsub.f32 %v1290, %v1550
      %v1679 = vsub.f32 %v1291, %v1551
      %v1680 = vsub.f32 %v1292, %v1552
      %v1681 = vsub.f32 %v1293, %v1553
      %v1682 = vsub.f32 %v1294, %v1554
      %v1683 = vsub.f32 %v1295, %v1555
      %v1684 = vsub.f32 %v1296, %v1556
      %v1685 = vsub.f32 %v1297, %v1557
      %v1686 = vmax.f32 %v1558, 0.0
      %v1687 = vmax.f32 %v1559, 0.0
      %v1688 = vmax.f32 %v1560, 0.0
      %v1689 = vmax.f32 %v1561, 0.0
      %v1690 = vmax.f32 %v1562, 0.0
      %v1691 = vmax.f32 %v1563, 0.0
      %v1692 = vmax.f32 %v1564, 0.0
      %v1693 = vmax.f32 %v1565, 0.0
      %v1694 = vmax.f32 %v1566, 0.0
      %v1695 = vmax.f32 %v1567, 0.0
      %v1696 = vmax.f32 %v1568, 0.0
      %v1697 = vmax.f32 %v1569, 0.0
      %v1698 = vmax.f32 %v1570, 0.0
      %v1699 = vmax.f32 %v1571, 0.0
      %v1700 = vmax.f32 %v1572, 0.0
      %v1701 = vmax.f32 %v1573, 0.0
      %v1702 = vmax.f32 %v1574, 0.0
      %v1703 = vmax.f32 %v1575, 0.0
      %v1704 = vmax.f32 %v1576, 0.0
      %v1705 = vmax.f32 %v1577, 0.0
      %v1706 = vmax.f32 %v1578, 0.0
      %v1707 = vmax.f32 %v1579, 0.0
      %v1708 = vmax.f32 %v1580, 0.0
      %v1709 = vmax.f32 %v1581, 0.0
      %v1710 = vmax.f32 %v1582, 0.0
      %v1711 = vmax.f32 %v1583, 0.0
      %v1712 = vmax.f32 %v1584, 0.0
      %v1713 = vmax.f32 %v1585, 0.0
      %v1714 = vmax.f32 %v1586, 0.0
      %v1715 = vmax.f32 %v1587, 0.0
      %v1716 = vmax.f32 %v1588, 0.0
      %v1717 = vmax.f32 %v1589, 0.0
      %v1718 = vmax.f32 %v1590, 0.0
      %v1719 = vmax.f32 %v1591, 0.0
      %v1720 = vmax.f32 %v1592, 0.0
      %v1721 = vmax.f32 %v1593, 0.0
      %v1722 = vmax.f32 %v1594, 0.0
      %v1723 = vmax.f32 %v1595, 0.0
      %v1724 = vmax.f32 %v1596, 0.0
      %v1725 = vmax.f32 %v1597, 0.0
      %v1726 = vmax.f32 %v1598, 0.0
      %v1727 = vmax.f32 %v1599, 0.0
      %v1728 = vmax.f32 %v1600, 0.0
      %v1729 = vmax.f32 %v1601, 0.0
      %v1730 = vmax.f32 %v1602, 0.0
      %v1731 = vmax.f32 %v1603, 0.0
      %v1732 = vmax.f32 %v1604, 0.0
      %v1733 = vmax.f32 %v1605, 0.0
      %v1734 = vmax.f32 %v1606, 0.0
      %v1735 = vmax.f32 %v1607, 0.0
      %v1736 = vmax.f32 %v1608, 0.0
      %v1737 = vmax.f32 %v1609, 0.0
      %v1738 = vmax.f32 %v1610, 0.0
      %v1739 = vmax.f32 %v1611, 0.0
      %v1740 = vmax.f32 %v1612, 0.0
      %v1741 = vmax.f32 %v1613, 0.0
      %v1742 = vmax.f32 %v1614, 0.0
      %v1743 = vmax.f32 %v1615, 0.0
      %v1744 = vmax.f32 %v1616, 0.0
      %v1745 = vmax.f32 %v1617, 0.0
      %v1746 = vmax.f32 %v1618, 0.0
      %v1747 = vmax.f32 %v1619, 0.0
      %v1748 = vmax.f32 %v1620, 0.0
      %v1749 = vmax.f32 %v1621, 0.0
      %v1750 = vmax.f32 %v1622, 0.0
      %v1751 = vmax.f32 %v1623, 0.0
      %v1752 = vmax.f32 %v1624, 0.0
      %v1753 = vmax.f32 %v1625, 0.0
      %v1754 = vmax.f32 %v1626, 0.0
      %v1755 = vmax.f32 %v1627, 0.0
      %v1756 = vmax.f32 %v1628, 0.0
      %v1757 = vmax.f32 %v1629, 0.0
      %v1758 = vmax.f32 %v1630, 0.0
      %v1759 = vmax.f32 %v1631, 0.0
      %v1760 = vmax.f32 %v1632, 0.0
      %v1761 = vmax.f32 %v1633, 0.0
      %v1762 = vmax.f32 %v1634, 0.0
      %v1763 = vmax.f32 %v1635, 0.0
      %v1764 = vmax.f32 %v1636, 0.0
      %v1765 = vmax.f32 %v1637, 0.0
      %v1766 = vmax.f32 %v1638, 0.0
      %v1767 = vmax.f32 %v1639, 0.0
      %v1768 = vmax.f32 %v1640, 0.0
      %v1769 = vmax.f32 %v1641, 0.0
      %v1770 = vmax.f32 %v1642, 0.0
      %v1771 = vmax.f32 %v1643, 0.0
      %v1772 = vmax.f32 %v1644, 0.0
      %v1773 = vmax.f32 %v1645, 0.0
      %v1774 = vmax.f32 %v1646, 0.0
      %v1775 = vmax.f32 %v1647, 0.0
      %v1776 = vmax.f32 %v1648, 0.0
      %v1777 = vmax.f32 %v1649, 0.0
      %v1778 = vmax.f32 %v1650, 0.0
      %v1779 = vmax.f32 %v1651, 0.0
      %v1780 = vmax.f32 %v1652, 0.0
      %v1781 = vmax.f32 %v1653, 0.0
      %v1782 = vmax.f32 %v1654, 0.0
      %v1783 = vmax.f32 %v1655, 0.0
      %v1784 = vmax.f32 %v1656, 0.0
      %v1785 = vmax.f32 %v1657, 0.0
      %v1786 = vmax.f32 %v1658, 0.0
      %v1787 = vmax.f32 %v1659, 0.0
      %v1788 = vmax.f32 %v1660, 0.0
      %v1789 = vmax.f32 %v1661, 0.0
      %v1790 = vmax.f32 %v1662, 0.0
      %v1791 = vmax.f32 %v1663, 0.0
      %v1792 = vmax.f32 %v1664, 0.0
      %v1793 = vmax.f32 %v1665, 0.0
      %v1794 = vmax.f32 %v1666, 0.0
      %v1795 = vmax.f32 %v1667, 0.0
      %v1796 = vmax.f32 %v1668, 0.0
      %v1797 = vmax.f32 %v1669, 0.0
      %v1798 = vmax.f32 %v1670, 0.0
      %v1799 = vmax.f32 %v1671, 0.0
      %v1800 = vmax.f32 %v1672, 0.0
      %v1801 = vmax.f32 %v1673, 0.0
      %v1802 = vmax.f32 %v1674, 0.0
      %v1803 = vmax.f32 %v1675, 0.0
      %v1804 = vmax.f32 %v1676, 0.0
      %v1805 = vmax.f32 %v1677, 0.0
      %v1806 = vmax.f32 %v1678, 0.0
      %v1807 = vmax.f32 %v1679, 0.0
      %v1808 = vmax.f32 %v1680, 0.0
      %v1809 = vmax.f32 %v1681, 0.0
      %v1810 = vmax.f32 %v1682, 0.0
      %v1811 = vmax.f32 %v1683, 0.0
      %v1812 = vmax.f32 %v1684, 0.0
      %v1813 = vmax.f32 %v1685, 0.0
      %v1814 = vmul.f32 %v910, %v1686
      %v1815 = vmul.f32 %v911, %v1687
      %v1816 = vmul.f32 %v912, %v1688
      %v1817 = vmul.f32 %v913, %v1689
      %v1818 = vmul.f32 %v914, %v1690
      %v1819 = vmul.f32 %v915, %v1691
      %v1820 = vmul.f32 %v916, %v1692
      %v1821 = vmul.f32 %v917, %v1693
      %v1822 = vmul.f32 %v918, %v1694
      %v1823 = vmul.f32 %v919, %v1695
      %v1824 = vmul.f32 %v920, %v1696
      %v1825 = vmul.f32 %v921, %v1697
      %v1826 = vmul.f32 %v922, %v1698
      %v1827 = vmul.f32 %v923, %v1699
      %v1828 = vmul.f32 %v924, %v1700
      %v1829 = vmul.f32 %v925, %v1701
      %v1830 = vmul.f32 %v926, %v1702
      %v1831 = vmul.f32 %v927, %v1703
      %v1832 = vmul.f32 %v928, %v1704
      %v1833 = vmul.f32 %v929, %v1705
      %v1834 = vmul.f32 %v930, %v1706
      %v1835 = vmul.f32 %v931, %v1707
      %v1836 = vmul.f32 %v932, %v1708
      %v1837 = vmul.f32 %v933, %v1709
      %v1838 = vmul.f32 %v934, %v1710
      %v1839 = vmul.f32 %v935, %v1711
      %v1840 = vmul.f32 %v936, %v1712
      %v1841 = vmul.f32 %v937, %v1713
      %v1842 = vmul.f32 %v938, %v1714
      %v1843 = vmul.f32 %v939, %v1715
      %v1844 = vmul.f32 %v940, %v1716
      %v1845 = vmul.f32 %v941, %v1717
      %v1846 = vmul.f32 %v942, %v1718
      %v1847 = vmul.f32 %v943, %v1719
      %v1848 = vmul.f32 %v944, %v1720
      %v1849 = vmul.f32 %v945, %v1721
      %v1850 = vmul.f32 %v946, %v1722
      %v1851 = vmul.f32 %v947, %v1723
      %v1852 = vmul.f32 %v948, %v1724
      %v1853 = vmul.f32 %v949, %v1725
      %v1854 = vmul.f32 %v950, %v1726
      %v1855 = vmul.f32 %v951, %v1727
      %v1856 = vmul.f32 %v952, %v1728
      %v1857 = vmul.f32 %v953, %v1729
      %v1858 = vmul.f32 %v954, %v1730
      %v1859 = vmul.f32 %v955, %v1731
      %v1860 = vmul.f32 %v956, %v1732
      %v1861 = vmul.f32 %v957, %v1733
      %v1862 = vmul.f32 %v958, %v1734
      %v1863 = vmul.f32 %v959, %v1735
      %v1864 = vmul.f32 %v960, %v1736
      %v1865 = vmul.f32 %v961, %v1737
      %v1866 = vmul.f32 %v962, %v1738
      %v1867 = vmul.f32 %v963, %v1739
      %v1868 = vmul.f32 %v964, %v1740
      %v1869 = vmul.f32 %v965, %v1741
      %v1870 = vmul.f32 %v966, %v1742
      %v1871 = vmul.f32 %v967, %v1743
      %v1872 = vmul.f32 %v968, %v1744
      %v1873 = vmul.f32 %v969, %v1745
      %v1874 = vmul.f32 %v970, %v1746
      %v1875 = vmul.f32 %v971, %v1747
      %v1876 = vmul.f32 %v972, %v1748
      %v1877 = vmul.f32 %v973, %v1749
      %v1878 = vmul.f32 %v974, %v1750
      %v1879 = vmul.f32 %v975, %v1751
      %v1880 = vmul.f32 %v976, %v1752
      %v1881 = vmul.f32 %v977, %v1753
      %v1882 = vmul.f32 %v978, %v1754
      %v1883 = vmul.f32 %v979, %v1755
      %v1884 = vmul.f32 %v980, %v1756
      %v1885 = vmul.f32 %v981, %v1757
      %v1886 = vmul.f32 %v982, %v1758
      %v1887 = vmul.f32 %v983, %v1759
      %v1888 = vmul.f32 %v984, %v1760
      %v1889 = vmul.f32 %v985, %v1761
      %v1890 = vmul.f32 %v986, %v1762
      %v1891 = vmul.f32 %v987, %v1763
      %v1892 = vmul.f32 %v988, %v1764
      %v1893 = vmul.f32 %v989, %v1765
      %v1894 = vmul.f32 %v990, %v1766
      %v1895 = vmul.f32 %v991, %v1767
      %v1896 = vmul.f32 %v992, %v1768
      %v1897 = vmul.f32 %v993, %v1769
      %v1898 = vmul.f32 %v994, %v1770
      %v1899 = vmul.f32 %v995, %v1771
      %v1900 = vmul.f32 %v996, %v1772
      %v1901 = vmul.f32 %v997, %v1773
      %v1902 = vmul.f32 %v998, %v1774
      %v1903 = vmul.f32 %v999, %v1775
      %v1904 = vmul.f32 %v1000, %v1776
      %v1905 = vmul.f32 %v1001, %v1777
      %v1906 = vmul.f32 %v1002, %v1778
      %v1907 = vmul.f32 %v1003, %v1779
      %v1908 = vmul.f32 %v1004, %v1780
      %v1909 = vmul.f32 %v1005, %v1781
      %v1910 = vmul.f32 %v1006, %v1782
      %v1911 = vmul.f32 %v1007, %v1783
      %v1912 = vmul.f32 %v1008, %v1784
      %v1913 = vmul.f32 %v1009, %v1785
      %v1914 = vmul.f32 %v1010, %v1786
      %v1915 = vmul.f32 %v1011, %v1787
      %v1916 = vmul.f32 %v1012, %v1788
      %v1917 = vmul.f32 %v1013, %v1789
      %v1918 = vmul.f32 %v1014, %v1790
      %v1919 = vmul.f32 %v1015, %v1791
      %v1920 = vmul.f32 %v1016, %v1792
      %v1921 = vmul.f32 %v1017, %v1793
      %v1922 = vmul.f32 %v1018, %v1794
      %v1923 = vmul.f32 %v1019, %v1795
      %v1924 = vmul.f32 %v1020, %v1796
      %v1925 = vmul.f32 %v1021, %v1797
      %v1926 = vmul.f32 %v1022, %v1798
      %v1927 = vmul.f32 %v1023, %v1799
      %v1928 = vmul.f32 %v1024, %v1800
      %v1929 = vmul.f32 %v1025, %v1801
      %v1930 = vmul.f32 %v1026, %v1802
      %v1931 = vmul.f32 %v1027, %v1803
      %v1932 = vmul.f32 %v1028, %v1804
      %v1933 = vmul.f32 %v1029, %v1805
      %v1934 = vmul.f32 %v1030, %v1806
      %v1935 = vmul.f32 %v1031, %v1807
      %v1936 = vmul.f32 %v1032, %v1808
      %v1937 = vmul.f32 %v1033, %v1809
      %v1938 = vmul.f32 %v1034, %v1810
      %v1939 = vmul.f32 %v1035, %v1811
      %v1940 = vmul.f32 %v1036, %v1812
      %v1941 = vmul.f32 %v1037, %v1813
      %1942 = vrot.lane.b32.xlu0 %v194, 2
      %v1943 = vpop.permute.xlu0 %1942
      %1944 = vrot.lane.b32.xlu0 %v195, 2
      %v1945 = vpop.permute.xlu0 %1944
      %1946 = vrot.lane.b32.xlu0 %v196, 2
      %v1947 = vpop.permute.xlu0 %1946
      %1948 = vrot.lane.b32.xlu0 %v197, 2
      %v1949 = vpop.permute.xlu0 %1948
      %1950 = vrot.lane.b32.xlu0 %v198, 2
      %v1951 = vpop.permute.xlu0 %1950
      %1952 = vrot.lane.b32.xlu0 %v199, 2
      %v1953 = vpop.permute.xlu0 %1952
      %1954 = vrot.lane.b32.xlu0 %v200, 2
      %v1955 = vpop.permute.xlu0 %1954
      %1956 = vrot.lane.b32.xlu0 %v201, 2
      %v1957 = vpop.permute.xlu0 %1956
      %1958 = vrot.lane.b32.xlu0 %v202, 2
      %v1959 = vpop.permute.xlu0 %1958
      %1960 = vrot.lane.b32.xlu0 %v203, 2
      %v1961 = vpop.permute.xlu0 %1960
      %1962 = vrot.lane.b32.xlu0 %v204, 2
      %v1963 = vpop.permute.xlu0 %1962
      %1964 = vrot.lane.b32.xlu0 %v205, 2
      %v1965 = vpop.permute.xlu0 %1964
      %1966 = vrot.lane.b32.xlu0 %v206, 2
      %v1967 = vpop.permute.xlu0 %1966
      %1968 = vrot.lane.b32.xlu0 %v207, 2
      %v1969 = vpop.permute.xlu0 %1968
      %1970 = vrot.lane.b32.xlu0 %v208, 2
      %v1971 = vpop.permute.xlu0 %1970
      %1972 = vrot.lane.b32.xlu0 %v209, 2
      %v1973 = vpop.permute.xlu0 %1972
      %1974 = vrot.lane.b32.xlu0 %v210, 2
      %v1975 = vpop.permute.xlu0 %1974
      %1976 = vrot.lane.b32.xlu0 %v211, 2
      %v1977 = vpop.permute.xlu0 %1976
      %1978 = vrot.lane.b32.xlu0 %v212, 2
      %v1979 = vpop.permute.xlu0 %1978
      %1980 = vrot.lane.b32.xlu0 %v213, 2
      %v1981 = vpop.permute.xlu0 %1980
      %1982 = vrot.lane.b32.xlu0 %v214, 2
      %v1983 = vpop.permute.xlu0 %1982
      %1984 = vrot.lane.b32.xlu0 %v215, 2
      %v1985 = vpop.permute.xlu0 %1984
      %1986 = vrot.lane.b32.xlu0 %v216, 2
      %v1987 = vpop.permute.xlu0 %1986
      %1988 = vrot.lane.b32.xlu0 %v217, 2
      %v1989 = vpop.permute.xlu0 %1988
      %1990 = vrot.lane.b32.xlu0 %v218, 2
      %v1991 = vpop.permute.xlu0 %1990
      %1992 = vrot.lane.b32.xlu0 %v219, 2
      %v1993 = vpop.permute.xlu0 %1992
      %1994 = vrot.lane.b32.xlu0 %v220, 2
      %v1995 = vpop.permute.xlu0 %1994
      %1996 = vrot.lane.b32.xlu0 %v221, 2
      %v1997 = vpop.permute.xlu0 %1996
      %1998 = vrot.lane.b32.xlu0 %v222, 2
      %v1999 = vpop.permute.xlu0 %1998
      %2000 = vrot.lane.b32.xlu0 %v223, 2
      %v2001 = vpop.permute.xlu0 %2000
      %2002 = vrot.lane.b32.xlu0 %v224, 2
      %v2003 = vpop.permute.xlu0 %2002
      %2004 = vrot.lane.b32.xlu0 %v225, 2
      %v2005 = vpop.permute.xlu0 %2004
      %v2038 = vsub.f32 %v194, %v1943
      %v2039 = vsub.f32 %v195, %v1945
      %v2040 = vsub.f32 %v196, %v1947
      %v2041 = vsub.f32 %v197, %v1949
      %v2042 = vsub.f32 %v198, %v1951
      %v2043 = vsub.f32 %v199, %v1953
      %v2044 = vsub.f32 %v200, %v1955
      %v2045 = vsub.f32 %v201, %v1957
      %v2046 = vsub.f32 %v202, %v1959
      %v2047 = vsub.f32 %v203, %v1961
      %v2048 = vsub.f32 %v204, %v1963
      %v2049 = vsub.f32 %v205, %v1965
      %v2050 = vsub.f32 %v206, %v1967
      %v2051 = vsub.f32 %v207, %v1969
      %v2052 = vsub.f32 %v208, %v1971
      %v2053 = vsub.f32 %v209, %v1973
      %v2054 = vsub.f32 %v210, %v1975
      %v2055 = vsub.f32 %v211, %v1977
      %v2056 = vsub.f32 %v212, %v1979
      %v2057 = vsub.f32 %v213, %v1981
      %v2058 = vsub.f32 %v214, %v1983
      %v2059 = vsub.f32 %v215, %v1985
      %v2060 = vsub.f32 %v216, %v1987
      %v2061 = vsub.f32 %v217, %v1989
      %v2062 = vsub.f32 %v218, %v1991
      %v2063 = vsub.f32 %v219, %v1993
      %v2064 = vsub.f32 %v220, %v1995
      %v2065 = vsub.f32 %v221, %v1997
      %v2066 = vsub.f32 %v222, %v1999
      %v2067 = vsub.f32 %v223, %v2001
      %v2068 = vsub.f32 %v224, %v2003
      %v2069 = vsub.f32 %v225, %v2005
      %v2070 = vmax.f32 %v2038, 0.0
      %v2071 = vmax.f32 %v2039, 0.0
      %v2072 = vmax.f32 %v2040, 0.0
      %v2073 = vmax.f32 %v2041, 0.0
      %v2074 = vmax.f32 %v2042, 0.0
      %v2075 = vmax.f32 %v2043, 0.0
      %v2076 = vmax.f32 %v2044, 0.0
      %v2077 = vmax.f32 %v2045, 0.0
      %v2078 = vmax.f32 %v2046, 0.0
      %v2079 = vmax.f32 %v2047, 0.0
      %v2080 = vmax.f32 %v2048, 0.0
      %v2081 = vmax.f32 %v2049, 0.0
      %v2082 = vmax.f32 %v2050, 0.0
      %v2083 = vmax.f32 %v2051, 0.0
      %v2084 = vmax.f32 %v2052, 0.0
      %v2085 = vmax.f32 %v2053, 0.0
      %v2086 = vmax.f32 %v2054, 0.0
      %v2087 = vmax.f32 %v2055, 0.0
      %v2088 = vmax.f32 %v2056, 0.0
      %v2089 = vmax.f32 %v2057, 0.0
      %v2090 = vmax.f32 %v2058, 0.0
      %v2091 = vmax.f32 %v2059, 0.0
      %v2092 = vmax.f32 %v2060, 0.0
      %v2093 = vmax.f32 %v2061, 0.0
      %v2094 = vmax.f32 %v2062, 0.0
      %v2095 = vmax.f32 %v2063, 0.0
      %v2096 = vmax.f32 %v2064, 0.0
      %v2097 = vmax.f32 %v2065, 0.0
      %v2098 = vmax.f32 %v2066, 0.0
      %v2099 = vmax.f32 %v2067, 0.0
      %v2100 = vmax.f32 %v2068, 0.0
      %v2101 = vmax.f32 %v2069, 0.0
      %2134 = vrot.lane.b32.xlu0 %v2070, 127
      %v2135 = vpop.permute.xlu0 %2134
      %2136 = vrot.lane.b32.xlu0 %v2071, 127
      %v2137 = vpop.permute.xlu0 %2136
      %2138 = vrot.lane.b32.xlu0 %v2072, 127
      %v2139 = vpop.permute.xlu0 %2138
      %2140 = vrot.lane.b32.xlu0 %v2073, 127
      %v2141 = vpop.permute.xlu0 %2140
      %2142 = vrot.lane.b32.xlu0 %v2074, 127
      %v2143 = vpop.permute.xlu0 %2142
      %2144 = vrot.lane.b32.xlu0 %v2075, 127
      %v2145 = vpop.permute.xlu0 %2144
      %2146 = vrot.lane.b32.xlu0 %v2076, 127
      %v2147 = vpop.permute.xlu0 %2146
      %2148 = vrot.lane.b32.xlu0 %v2077, 127
      %v2149 = vpop.permute.xlu0 %2148
      %2150 = vrot.lane.b32.xlu0 %v2078, 127
      %v2151 = vpop.permute.xlu0 %2150
      %2152 = vrot.lane.b32.xlu0 %v2079, 127
      %v2153 = vpop.permute.xlu0 %2152
      %2154 = vrot.lane.b32.xlu0 %v2080, 127
      %v2155 = vpop.permute.xlu0 %2154
      %2156 = vrot.lane.b32.xlu0 %v2081, 127
      %v2157 = vpop.permute.xlu0 %2156
      %2158 = vrot.lane.b32.xlu0 %v2082, 127
      %v2159 = vpop.permute.xlu0 %2158
      %2160 = vrot.lane.b32.xlu0 %v2083, 127
      %v2161 = vpop.permute.xlu0 %2160
      %2162 = vrot.lane.b32.xlu0 %v2084, 127
      %v2163 = vpop.permute.xlu0 %2162
      %2164 = vrot.lane.b32.xlu0 %v2085, 127
      %v2165 = vpop.permute.xlu0 %2164
      %2166 = vrot.lane.b32.xlu0 %v2086, 127
      %v2167 = vpop.permute.xlu0 %2166
      %2168 = vrot.lane.b32.xlu0 %v2087, 127
      %v2169 = vpop.permute.xlu0 %2168
      %2170 = vrot.lane.b32.xlu0 %v2088, 127
      %v2171 = vpop.permute.xlu0 %2170
      %2172 = vrot.lane.b32.xlu0 %v2089, 127
      %v2173 = vpop.permute.xlu0 %2172
      %2174 = vrot.lane.b32.xlu0 %v2090, 127
      %v2175 = vpop.permute.xlu0 %2174
      %2176 = vrot.lane.b32.xlu0 %v2091, 127
      %v2177 = vpop.permute.xlu0 %2176
      %2178 = vrot.lane.b32.xlu0 %v2092, 127
      %v2179 = vpop.permute.xlu0 %2178
      %2180 = vrot.lane.b32.xlu0 %v2093, 127
      %v2181 = vpop.permute.xlu0 %2180
      %2182 = vrot.lane.b32.xlu0 %v2094, 127
      %v2183 = vpop.permute.xlu0 %2182
      %2184 = vrot.lane.b32.xlu0 %v2095, 127
      %v2185 = vpop.permute.xlu0 %2184
      %2186 = vrot.lane.b32.xlu0 %v2096, 127
      %v2187 = vpop.permute.xlu0 %2186
      %2188 = vrot.lane.b32.xlu0 %v2097, 127
      %v2189 = vpop.permute.xlu0 %2188
      %2190 = vrot.lane.b32.xlu0 %v2098, 127
      %v2191 = vpop.permute.xlu0 %2190
      %2192 = vrot.lane.b32.xlu0 %v2099, 127
      %v2193 = vpop.permute.xlu0 %2192
      %2194 = vrot.lane.b32.xlu0 %v2100, 127
      %v2195 = vpop.permute.xlu0 %2194
      %2196 = vrot.lane.b32.xlu0 %v2101, 127
      %v2197 = vpop.permute.xlu0 %2196
      %v2230 = vmul.f32 %v2070, %v2135
      %v2231 = vmul.f32 %v2071, %v2137
      %v2232 = vmul.f32 %v2072, %v2139
      %v2233 = vmul.f32 %v2073, %v2141
      %v2234 = vmul.f32 %v2074, %v2143
      %v2235 = vmul.f32 %v2075, %v2145
      %v2236 = vmul.f32 %v2076, %v2147
      %v2237 = vmul.f32 %v2077, %v2149
      %v2238 = vmul.f32 %v2078, %v2151
      %v2239 = vmul.f32 %v2079, %v2153
      %v2240 = vmul.f32 %v2080, %v2155
      %v2241 = vmul.f32 %v2081, %v2157
      %v2242 = vmul.f32 %v2082, %v2159
      %v2243 = vmul.f32 %v2083, %v2161
      %v2244 = vmul.f32 %v2084, %v2163
      %v2245 = vmul.f32 %v2085, %v2165
      %v2246 = vmul.f32 %v2086, %v2167
      %v2247 = vmul.f32 %v2087, %v2169
      %v2248 = vmul.f32 %v2088, %v2171
      %v2249 = vmul.f32 %v2089, %v2173
      %v2250 = vmul.f32 %v2090, %v2175
      %v2251 = vmul.f32 %v2091, %v2177
      %v2252 = vmul.f32 %v2092, %v2179
      %v2253 = vmul.f32 %v2093, %v2181
      %v2254 = vmul.f32 %v2094, %v2183
      %v2255 = vmul.f32 %v2095, %v2185
      %v2256 = vmul.f32 %v2096, %v2187
      %v2257 = vmul.f32 %v2097, %v2189
      %v2258 = vmul.f32 %v2098, %v2191
      %v2259 = vmul.f32 %v2099, %v2193
      %v2260 = vmul.f32 %v2100, %v2195
      %v2261 = vmul.f32 %v2101, %v2197
      %v2266 = vrot.slane %v226, 6
      %v2267 = vrot.slane %v227, 6
      %v2268 = vrot.slane %v228, 6
      %v2269 = vrot.slane %v229, 6
      %v2274 = vsub.f32 %v226, %v2266
      %v2275 = vsub.f32 %v227, %v2267
      %v2276 = vsub.f32 %v228, %v2268
      %v2277 = vsub.f32 %v229, %v2269
      %v2278 = vmax.f32 %v2274, 0.0
      %v2279 = vmax.f32 %v2275, 0.0
      %v2280 = vmax.f32 %v2276, 0.0
      %v2281 = vmax.f32 %v2277, 0.0
      %v2286 = vrot.slane %v2278, 1
      %v2287 = vrot.slane %v2279, 1
      %v2288 = vrot.slane %v2280, 1
      %v2289 = vrot.slane %v2281, 1
      %v2294 = vmul.f32 %v2278, %v2286
      %v2295 = vmul.f32 %v2279, %v2287
      %v2296 = vmul.f32 %v2280, %v2288
      %v2297 = vmul.f32 %v2281, %v2289
      %2299 = vset.pattern.permute.xlu0 2
      %2300 = vperm.xlu0 %2299, %v2230
      %v2301 = vpop.permute.xlu0 %2300
      %2304 = vset.pattern.permute.xlu0 2
      %2305 = vperm.xlu0 %2304, %v2231
      %v2306 = vpop.permute.xlu0 %2305
      %2309 = vset.pattern.permute.xlu0 2
      %2310 = vperm.xlu0 %2309, %v2232
      %v2311 = vpop.permute.xlu0 %2310
      %2314 = vset.pattern.permute.xlu0 2
      %2315 = vperm.xlu0 %2314, %v2233
      %v2316 = vpop.permute.xlu0 %2315
      %2319 = vset.pattern.permute.xlu0 2
      %2320 = vperm.xlu0 %2319, %v2234
      %v2321 = vpop.permute.xlu0 %2320
      %2324 = vset.pattern.permute.xlu0 2
      %2325 = vperm.xlu0 %2324, %v2235
      %v2326 = vpop.permute.xlu0 %2325
      %2329 = vset.pattern.permute.xlu0 2
      %2330 = vperm.xlu0 %2329, %v2236
      %v2331 = vpop.permute.xlu0 %2330
      %2334 = vset.pattern.permute.xlu0 2
      %2335 = vperm.xlu0 %2334, %v2237
      %v2336 = vpop.permute.xlu0 %2335
      %2339 = vset.pattern.permute.xlu0 2
      %2340 = vperm.xlu0 %2339, %v2238
      %v2341 = vpop.permute.xlu0 %2340
      %2344 = vset.pattern.permute.xlu0 2
      %2345 = vperm.xlu0 %2344, %v2239
      %v2346 = vpop.permute.xlu0 %2345
      %2349 = vset.pattern.permute.xlu0 2
      %2350 = vperm.xlu0 %2349, %v2240
      %v2351 = vpop.permute.xlu0 %2350
      %2354 = vset.pattern.permute.xlu0 2
      %2355 = vperm.xlu0 %2354, %v2241
      %v2356 = vpop.permute.xlu0 %2355
      %2359 = vset.pattern.permute.xlu0 2
      %2360 = vperm.xlu0 %2359, %v2242
      %v2361 = vpop.permute.xlu0 %2360
      %2364 = vset.pattern.permute.xlu0 2
      %2365 = vperm.xlu0 %2364, %v2243
      %v2366 = vpop.permute.xlu0 %2365
      %2369 = vset.pattern.permute.xlu0 2
      %2370 = vperm.xlu0 %2369, %v2244
      %v2371 = vpop.permute.xlu0 %2370
      %2374 = vset.pattern.permute.xlu0 2
      %2375 = vperm.xlu0 %2374, %v2245
      %v2376 = vpop.permute.xlu0 %2375
      %2379 = vset.pattern.permute.xlu0 2
      %2380 = vperm.xlu0 %2379, %v2246
      %v2381 = vpop.permute.xlu0 %2380
      %2384 = vset.pattern.permute.xlu0 2
      %2385 = vperm.xlu0 %2384, %v2247
      %v2386 = vpop.permute.xlu0 %2385
      %2389 = vset.pattern.permute.xlu0 2
      %2390 = vperm.xlu0 %2389, %v2248
      %v2391 = vpop.permute.xlu0 %2390
      %2394 = vset.pattern.permute.xlu0 2
      %2395 = vperm.xlu0 %2394, %v2249
      %v2396 = vpop.permute.xlu0 %2395
      %2399 = vset.pattern.permute.xlu0 2
      %2400 = vperm.xlu0 %2399, %v2250
      %v2401 = vpop.permute.xlu0 %2400
      %2404 = vset.pattern.permute.xlu0 2
      %2405 = vperm.xlu0 %2404, %v2251
      %v2406 = vpop.permute.xlu0 %2405
      %2409 = vset.pattern.permute.xlu0 2
      %2410 = vperm.xlu0 %2409, %v2252
      %v2411 = vpop.permute.xlu0 %2410
      %2414 = vset.pattern.permute.xlu0 2
      %2415 = vperm.xlu0 %2414, %v2253
      %v2416 = vpop.permute.xlu0 %2415
      %2419 = vset.pattern.permute.xlu0 2
      %2420 = vperm.xlu0 %2419, %v2254
      %v2421 = vpop.permute.xlu0 %2420
      %2424 = vset.pattern.permute.xlu0 2
      %2425 = vperm.xlu0 %2424, %v2255
      %v2426 = vpop.permute.xlu0 %2425
      %2429 = vset.pattern.permute.xlu0 2
      %2430 = vperm.xlu0 %2429, %v2256
      %v2431 = vpop.permute.xlu0 %2430
      %2434 = vset.pattern.permute.xlu0 2
      %2435 = vperm.xlu0 %2434, %v2257
      %v2436 = vpop.permute.xlu0 %2435
      %2439 = vset.pattern.permute.xlu0 2
      %2440 = vperm.xlu0 %2439, %v2258
      %v2441 = vpop.permute.xlu0 %2440
      %2444 = vset.pattern.permute.xlu0 2
      %2445 = vperm.xlu0 %2444, %v2259
      %v2446 = vpop.permute.xlu0 %2445
      %2449 = vset.pattern.permute.xlu0 2
      %2450 = vperm.xlu0 %2449, %v2260
      %v2451 = vpop.permute.xlu0 %2450
      %2454 = vset.pattern.permute.xlu0 2
      %2455 = vperm.xlu0 %2454, %v2261
      %v2456 = vpop.permute.xlu0 %2455
      %v2458 = vperm.slane %v2294, 2
      %v2459 = vperm.slane %v2295, 2
      %v2460 = vperm.slane %v2296, 2
      %v2461 = vperm.slane %v2297, 2
      %v2462 = vadd.f32 %v2301, %v2458
      %v2463 = vadd.f32 %v2301, %v2459
      %v2464 = vadd.f32 %v2301, %v2460
      %v2465 = vadd.f32 %v2301, %v2461
      %v2466 = vadd.f32 %v2306, %v2458
      %v2467 = vadd.f32 %v2306, %v2459
      %v2468 = vadd.f32 %v2306, %v2460
      %v2469 = vadd.f32 %v2306, %v2461
      %v2470 = vadd.f32 %v2311, %v2458
      %v2471 = vadd.f32 %v2311, %v2459
      %v2472 = vadd.f32 %v2311, %v2460
      %v2473 = vadd.f32 %v2311, %v2461
      %v2474 = vadd.f32 %v2316, %v2458
      %v2475 = vadd.f32 %v2316, %v2459
      %v2476 = vadd.f32 %v2316, %v2460
      %v2477 = vadd.f32 %v2316, %v2461
      %v2478 = vadd.f32 %v2321, %v2458
      %v2479 = vadd.f32 %v2321, %v2459
      %v2480 = vadd.f32 %v2321, %v2460
      %v2481 = vadd.f32 %v2321, %v2461
      %v2482 = vadd.f32 %v2326, %v2458
      %v2483 = vadd.f32 %v2326, %v2459
      %v2484 = vadd.f32 %v2326, %v2460
      %v2485 = vadd.f32 %v2326, %v2461
      %v2486 = vadd.f32 %v2331, %v2458
      %v2487 = vadd.f32 %v2331, %v2459
      %v2488 = vadd.f32 %v2331, %v2460
      %v2489 = vadd.f32 %v2331, %v2461
      %v2490 = vadd.f32 %v2336, %v2458
      %v2491 = vadd.f32 %v2336, %v2459
      %v2492 = vadd.f32 %v2336, %v2460
      %v2493 = vadd.f32 %v2336, %v2461
      %v2494 = vadd.f32 %v2341, %v2458
      %v2495 = vadd.f32 %v2341, %v2459
      %v2496 = vadd.f32 %v2341, %v2460
      %v2497 = vadd.f32 %v2341, %v2461
      %v2498 = vadd.f32 %v2346, %v2458
      %v2499 = vadd.f32 %v2346, %v2459
      %v2500 = vadd.f32 %v2346, %v2460
      %v2501 = vadd.f32 %v2346, %v2461
      %v2502 = vadd.f32 %v2351, %v2458
      %v2503 = vadd.f32 %v2351, %v2459
      %v2504 = vadd.f32 %v2351, %v2460
      %v2505 = vadd.f32 %v2351, %v2461
      %v2506 = vadd.f32 %v2356, %v2458
      %v2507 = vadd.f32 %v2356, %v2459
      %v2508 = vadd.f32 %v2356, %v2460
      %v2509 = vadd.f32 %v2356, %v2461
      %v2510 = vadd.f32 %v2361, %v2458
      %v2511 = vadd.f32 %v2361, %v2459
      %v2512 = vadd.f32 %v2361, %v2460
      %v2513 = vadd.f32 %v2361, %v2461
      %v2514 = vadd.f32 %v2366, %v2458
      %v2515 = vadd.f32 %v2366, %v2459
      %v2516 = vadd.f32 %v2366, %v2460
      %v2517 = vadd.f32 %v2366, %v2461
      %v2518 = vadd.f32 %v2371, %v2458
      %v2519 = vadd.f32 %v2371, %v2459
      %v2520 = vadd.f32 %v2371, %v2460
      %v2521 = vadd.f32 %v2371, %v2461
      %v2522 = vadd.f32 %v2376, %v2458
      %v2523 = vadd.f32 %v2376, %v2459
      %v2524 = vadd.f32 %v2376, %v2460
      %v2525 = vadd.f32 %v2376, %v2461
      %v2526 = vadd.f32 %v2381, %v2458
      %v2527 = vadd.f32 %v2381, %v2459
      %v2528 = vadd.f32 %v2381, %v2460
      %v2529 = vadd.f32 %v2381, %v2461
      %v2530 = vadd.f32 %v2386, %v2458
      %v2531 = vadd.f32 %v2386, %v2459
      %v2532 = vadd.f32 %v2386, %v2460
      %v2533 = vadd.f32 %v2386, %v2461
      %v2534 = vadd.f32 %v2391, %v2458
      %v2535 = vadd.f32 %v2391, %v2459
      %v2536 = vadd.f32 %v2391, %v2460
      %v2537 = vadd.f32 %v2391, %v2461
      %v2538 = vadd.f32 %v2396, %v2458
      %v2539 = vadd.f32 %v2396, %v2459
      %v2540 = vadd.f32 %v2396, %v2460
      %v2541 = vadd.f32 %v2396, %v2461
      %v2542 = vadd.f32 %v2401, %v2458
      %v2543 = vadd.f32 %v2401, %v2459
      %v2544 = vadd.f32 %v2401, %v2460
      %v2545 = vadd.f32 %v2401, %v2461
      %v2546 = vadd.f32 %v2406, %v2458
      %v2547 = vadd.f32 %v2406, %v2459
      %v2548 = vadd.f32 %v2406, %v2460
      %v2549 = vadd.f32 %v2406, %v2461
      %v2550 = vadd.f32 %v2411, %v2458
      %v2551 = vadd.f32 %v2411, %v2459
      %v2552 = vadd.f32 %v2411, %v2460
      %v2553 = vadd.f32 %v2411, %v2461
      %v2554 = vadd.f32 %v2416, %v2458
      %v2555 = vadd.f32 %v2416, %v2459
      %v2556 = vadd.f32 %v2416, %v2460
      %v2557 = vadd.f32 %v2416, %v2461
      %v2558 = vadd.f32 %v2421, %v2458
      %v2559 = vadd.f32 %v2421, %v2459
      %v2560 = vadd.f32 %v2421, %v2460
      %v2561 = vadd.f32 %v2421, %v2461
      %v2562 = vadd.f32 %v2426, %v2458
      %v2563 = vadd.f32 %v2426, %v2459
      %v2564 = vadd.f32 %v2426, %v2460
      %v2565 = vadd.f32 %v2426, %v2461
      %v2566 = vadd.f32 %v2431, %v2458
      %v2567 = vadd.f32 %v2431, %v2459
      %v2568 = vadd.f32 %v2431, %v2460
      %v2569 = vadd.f32 %v2431, %v2461
      %v2570 = vadd.f32 %v2436, %v2458
      %v2571 = vadd.f32 %v2436, %v2459
      %v2572 = vadd.f32 %v2436, %v2460
      %v2573 = vadd.f32 %v2436, %v2461
      %v2574 = vadd.f32 %v2441, %v2458
      %v2575 = vadd.f32 %v2441, %v2459
      %v2576 = vadd.f32 %v2441, %v2460
      %v2577 = vadd.f32 %v2441, %v2461
      %v2578 = vadd.f32 %v2446, %v2458
      %v2579 = vadd.f32 %v2446, %v2459
      %v2580 = vadd.f32 %v2446, %v2460
      %v2581 = vadd.f32 %v2446, %v2461
      %v2582 = vadd.f32 %v2451, %v2458
      %v2583 = vadd.f32 %v2451, %v2459
      %v2584 = vadd.f32 %v2451, %v2460
      %v2585 = vadd.f32 %v2451, %v2461
      %v2586 = vadd.f32 %v2456, %v2458
      %v2587 = vadd.f32 %v2456, %v2459
      %v2588 = vadd.f32 %v2456, %v2460
      %v2589 = vadd.f32 %v2456, %v2461
      %v2590 = vsub.f32 %v2462, %v1814
      %v2591 = vsub.f32 %v2463, %v1815
      %v2592 = vsub.f32 %v2464, %v1816
      %v2593 = vsub.f32 %v2465, %v1817
      %v2594 = vsub.f32 %v2466, %v1818
      %v2595 = vsub.f32 %v2467, %v1819
      %v2596 = vsub.f32 %v2468, %v1820
      %v2597 = vsub.f32 %v2469, %v1821
      %v2598 = vsub.f32 %v2470, %v1822
      %v2599 = vsub.f32 %v2471, %v1823
      %v2600 = vsub.f32 %v2472, %v1824
      %v2601 = vsub.f32 %v2473, %v1825
      %v2602 = vsub.f32 %v2474, %v1826
      %v2603 = vsub.f32 %v2475, %v1827
      %v2604 = vsub.f32 %v2476, %v1828
      %v2605 = vsub.f32 %v2477, %v1829
      %v2606 = vsub.f32 %v2478, %v1830
      %v2607 = vsub.f32 %v2479, %v1831
      %v2608 = vsub.f32 %v2480, %v1832
      %v2609 = vsub.f32 %v2481, %v1833
      %v2610 = vsub.f32 %v2482, %v1834
      %v2611 = vsub.f32 %v2483, %v1835
      %v2612 = vsub.f32 %v2484, %v1836
      %v2613 = vsub.f32 %v2485, %v1837
      %v2614 = vsub.f32 %v2486, %v1838
      %v2615 = vsub.f32 %v2487, %v1839
      %v2616 = vsub.f32 %v2488, %v1840
      %v2617 = vsub.f32 %v2489, %v1841
      %v2618 = vsub.f32 %v2490, %v1842
      %v2619 = vsub.f32 %v2491, %v1843
      %v2620 = vsub.f32 %v2492, %v1844
      %v2621 = vsub.f32 %v2493, %v1845
      %v2622 = vsub.f32 %v2494, %v1846
      %v2623 = vsub.f32 %v2495, %v1847
      %v2624 = vsub.f32 %v2496, %v1848
      %v2625 = vsub.f32 %v2497, %v1849
      %v2626 = vsub.f32 %v2498, %v1850
      %v2627 = vsub.f32 %v2499, %v1851
      %v2628 = vsub.f32 %v2500, %v1852
      %v2629 = vsub.f32 %v2501, %v1853
      %v2630 = vsub.f32 %v2502, %v1854
      %v2631 = vsub.f32 %v2503, %v1855
      %v2632 = vsub.f32 %v2504, %v1856
      %v2633 = vsub.f32 %v2505, %v1857
      %v2634 = vsub.f32 %v2506, %v1858
      %v2635 = vsub.f32 %v2507, %v1859
      %v2636 = vsub.f32 %v2508, %v1860
      %v2637 = vsub.f32 %v2509, %v1861
      %v2638 = vsub.f32 %v2510, %v1862
      %v2639 = vsub.f32 %v2511, %v1863
      %v2640 = vsub.f32 %v2512, %v1864
      %v2641 = vsub.f32 %v2513, %v1865
      %v2642 = vsub.f32 %v2514, %v1866
      %v2643 = vsub.f32 %v2515, %v1867
      %v2644 = vsub.f32 %v2516, %v1868
      %v2645 = vsub.f32 %v2517, %v1869
      %v2646 = vsub.f32 %v2518, %v1870
      %v2647 = vsub.f32 %v2519, %v1871
      %v2648 = vsub.f32 %v2520, %v1872
      %v2649 = vsub.f32 %v2521, %v1873
      %v2650 = vsub.f32 %v2522, %v1874
      %v2651 = vsub.f32 %v2523, %v1875
      %v2652 = vsub.f32 %v2524, %v1876
      %v2653 = vsub.f32 %v2525, %v1877
      %v2654 = vsub.f32 %v2526, %v1878
      %v2655 = vsub.f32 %v2527, %v1879
      %v2656 = vsub.f32 %v2528, %v1880
      %v2657 = vsub.f32 %v2529, %v1881
      %v2658 = vsub.f32 %v2530, %v1882
      %v2659 = vsub.f32 %v2531, %v1883
      %v2660 = vsub.f32 %v2532, %v1884
      %v2661 = vsub.f32 %v2533, %v1885
      %v2662 = vsub.f32 %v2534, %v1886
      %v2663 = vsub.f32 %v2535, %v1887
      %v2664 = vsub.f32 %v2536, %v1888
      %v2665 = vsub.f32 %v2537, %v1889
      %v2666 = vsub.f32 %v2538, %v1890
      %v2667 = vsub.f32 %v2539, %v1891
      %v2668 = vsub.f32 %v2540, %v1892
      %v2669 = vsub.f32 %v2541, %v1893
      %v2670 = vsub.f32 %v2542, %v1894
      %v2671 = vsub.f32 %v2543, %v1895
      %v2672 = vsub.f32 %v2544, %v1896
      %v2673 = vsub.f32 %v2545, %v1897
      %v2674 = vsub.f32 %v2546, %v1898
      %v2675 = vsub.f32 %v2547, %v1899
      %v2676 = vsub.f32 %v2548, %v1900
      %v2677 = vsub.f32 %v2549, %v1901
      %v2678 = vsub.f32 %v2550, %v1902
      %v2679 = vsub.f32 %v2551, %v1903
      %v2680 = vsub.f32 %v2552, %v1904
      %v2681 = vsub.f32 %v2553, %v1905
      %v2682 = vsub.f32 %v2554, %v1906
      %v2683 = vsub.f32 %v2555, %v1907
      %v2684 = vsub.f32 %v2556, %v1908
      %v2685 = vsub.f32 %v2557, %v1909
      %v2686 = vsub.f32 %v2558, %v1910
      %v2687 = vsub.f32 %v2559, %v1911
      %v2688 = vsub.f32 %v2560, %v1912
      %v2689 = vsub.f32 %v2561, %v1913
      %v2690 = vsub.f32 %v2562, %v1914
      %v2691 = vsub.f32 %v2563, %v1915
      %v2692 = vsub.f32 %v2564, %v1916
      %v2693 = vsub.f32 %v2565, %v1917
      %v2694 = vsub.f32 %v2566, %v1918
      %v2695 = vsub.f32 %v2567, %v1919
      %v2696 = vsub.f32 %v2568, %v1920
      %v2697 = vsub.f32 %v2569, %v1921
      %v2698 = vsub.f32 %v2570, %v1922
      %v2699 = vsub.f32 %v2571, %v1923
      %v2700 = vsub.f32 %v2572, %v1924
      %v2701 = vsub.f32 %v2573, %v1925
      %v2702 = vsub.f32 %v2574, %v1926
      %v2703 = vsub.f32 %v2575, %v1927
      %v2704 = vsub.f32 %v2576, %v1928
      %v2705 = vsub.f32 %v2577, %v1929
      %v2706 = vsub.f32 %v2578, %v1930
      %v2707 = vsub.f32 %v2579, %v1931
      %v2708 = vsub.f32 %v2580, %v1932
      %v2709 = vsub.f32 %v2581, %v1933
      %v2710 = vsub.f32 %v2582, %v1934
      %v2711 = vsub.f32 %v2583, %v1935
      %v2712 = vsub.f32 %v2584, %v1936
      %v2713 = vsub.f32 %v2585, %v1937
      %v2714 = vsub.f32 %v2586, %v1938
      %v2715 = vsub.f32 %v2587, %v1939
      %v2716 = vsub.f32 %v2588, %v1940
      %v2717 = vsub.f32 %v2589, %v1941
      %v2718 = vadd.f32 %v2590, 1e-07
      %v2719 = vadd.f32 %v2591, 1e-07
      %v2720 = vadd.f32 %v2592, 1e-07
      %v2721 = vadd.f32 %v2593, 1e-07
      %v2722 = vadd.f32 %v2594, 1e-07
      %v2723 = vadd.f32 %v2595, 1e-07
      %v2724 = vadd.f32 %v2596, 1e-07
      %v2725 = vadd.f32 %v2597, 1e-07
      %v2726 = vadd.f32 %v2598, 1e-07
      %v2727 = vadd.f32 %v2599, 1e-07
      %v2728 = vadd.f32 %v2600, 1e-07
      %v2729 = vadd.f32 %v2601, 1e-07
      %v2730 = vadd.f32 %v2602, 1e-07
      %v2731 = vadd.f32 %v2603, 1e-07
      %v2732 = vadd.f32 %v2604, 1e-07
      %v2733 = vadd.f32 %v2605, 1e-07
      %v2734 = vadd.f32 %v2606, 1e-07
      %v2735 = vadd.f32 %v2607, 1e-07
      %v2736 = vadd.f32 %v2608, 1e-07
      %v2737 = vadd.f32 %v2609, 1e-07
      %v2738 = vadd.f32 %v2610, 1e-07
      %v2739 = vadd.f32 %v2611, 1e-07
      %v2740 = vadd.f32 %v2612, 1e-07
      %v2741 = vadd.f32 %v2613, 1e-07
      %v2742 = vadd.f32 %v2614, 1e-07
      %v2743 = vadd.f32 %v2615, 1e-07
      %v2744 = vadd.f32 %v2616, 1e-07
      %v2745 = vadd.f32 %v2617, 1e-07
      %v2746 = vadd.f32 %v2618, 1e-07
      %v2747 = vadd.f32 %v2619, 1e-07
      %v2748 = vadd.f32 %v2620, 1e-07
      %v2749 = vadd.f32 %v2621, 1e-07
      %v2750 = vadd.f32 %v2622, 1e-07
      %v2751 = vadd.f32 %v2623, 1e-07
      %v2752 = vadd.f32 %v2624, 1e-07
      %v2753 = vadd.f32 %v2625, 1e-07
      %v2754 = vadd.f32 %v2626, 1e-07
      %v2755 = vadd.f32 %v2627, 1e-07
      %v2756 = vadd.f32 %v2628, 1e-07
      %v2757 = vadd.f32 %v2629, 1e-07
      %v2758 = vadd.f32 %v2630, 1e-07
      %v2759 = vadd.f32 %v2631, 1e-07
      %v2760 = vadd.f32 %v2632, 1e-07
      %v2761 = vadd.f32 %v2633, 1e-07
      %v2762 = vadd.f32 %v2634, 1e-07
      %v2763 = vadd.f32 %v2635, 1e-07
      %v2764 = vadd.f32 %v2636, 1e-07
      %v2765 = vadd.f32 %v2637, 1e-07
      %v2766 = vadd.f32 %v2638, 1e-07
      %v2767 = vadd.f32 %v2639, 1e-07
      %v2768 = vadd.f32 %v2640, 1e-07
      %v2769 = vadd.f32 %v2641, 1e-07
      %v2770 = vadd.f32 %v2642, 1e-07
      %v2771 = vadd.f32 %v2643, 1e-07
      %v2772 = vadd.f32 %v2644, 1e-07
      %v2773 = vadd.f32 %v2645, 1e-07
      %v2774 = vadd.f32 %v2646, 1e-07
      %v2775 = vadd.f32 %v2647, 1e-07
      %v2776 = vadd.f32 %v2648, 1e-07
      %v2777 = vadd.f32 %v2649, 1e-07
      %v2778 = vadd.f32 %v2650, 1e-07
      %v2779 = vadd.f32 %v2651, 1e-07
      %v2780 = vadd.f32 %v2652, 1e-07
      %v2781 = vadd.f32 %v2653, 1e-07
      %v2782 = vadd.f32 %v2654, 1e-07
      %v2783 = vadd.f32 %v2655, 1e-07
      %v2784 = vadd.f32 %v2656, 1e-07
      %v2785 = vadd.f32 %v2657, 1e-07
      %v2786 = vadd.f32 %v2658, 1e-07
      %v2787 = vadd.f32 %v2659, 1e-07
      %v2788 = vadd.f32 %v2660, 1e-07
      %v2789 = vadd.f32 %v2661, 1e-07
      %v2790 = vadd.f32 %v2662, 1e-07
      %v2791 = vadd.f32 %v2663, 1e-07
      %v2792 = vadd.f32 %v2664, 1e-07
      %v2793 = vadd.f32 %v2665, 1e-07
      %v2794 = vadd.f32 %v2666, 1e-07
      %v2795 = vadd.f32 %v2667, 1e-07
      %v2796 = vadd.f32 %v2668, 1e-07
      %v2797 = vadd.f32 %v2669, 1e-07
      %v2798 = vadd.f32 %v2670, 1e-07
      %v2799 = vadd.f32 %v2671, 1e-07
      %v2800 = vadd.f32 %v2672, 1e-07
      %v2801 = vadd.f32 %v2673, 1e-07
      %v2802 = vadd.f32 %v2674, 1e-07
      %v2803 = vadd.f32 %v2675, 1e-07
      %v2804 = vadd.f32 %v2676, 1e-07
      %v2805 = vadd.f32 %v2677, 1e-07
      %v2806 = vadd.f32 %v2678, 1e-07
      %v2807 = vadd.f32 %v2679, 1e-07
      %v2808 = vadd.f32 %v2680, 1e-07
      %v2809 = vadd.f32 %v2681, 1e-07
      %v2810 = vadd.f32 %v2682, 1e-07
      %v2811 = vadd.f32 %v2683, 1e-07
      %v2812 = vadd.f32 %v2684, 1e-07
      %v2813 = vadd.f32 %v2685, 1e-07
      %v2814 = vadd.f32 %v2686, 1e-07
      %v2815 = vadd.f32 %v2687, 1e-07
      %v2816 = vadd.f32 %v2688, 1e-07
      %v2817 = vadd.f32 %v2689, 1e-07
      %v2818 = vadd.f32 %v2690, 1e-07
      %v2819 = vadd.f32 %v2691, 1e-07
      %v2820 = vadd.f32 %v2692, 1e-07
      %v2821 = vadd.f32 %v2693, 1e-07
      %v2822 = vadd.f32 %v2694, 1e-07
      %v2823 = vadd.f32 %v2695, 1e-07
      %v2824 = vadd.f32 %v2696, 1e-07
      %v2825 = vadd.f32 %v2697, 1e-07
      %v2826 = vadd.f32 %v2698, 1e-07
      %v2827 = vadd.f32 %v2699, 1e-07
      %v2828 = vadd.f32 %v2700, 1e-07
      %v2829 = vadd.f32 %v2701, 1e-07
      %v2830 = vadd.f32 %v2702, 1e-07
      %v2831 = vadd.f32 %v2703, 1e-07
      %v2832 = vadd.f32 %v2704, 1e-07
      %v2833 = vadd.f32 %v2705, 1e-07
      %v2834 = vadd.f32 %v2706, 1e-07
      %v2835 = vadd.f32 %v2707, 1e-07
      %v2836 = vadd.f32 %v2708, 1e-07
      %v2837 = vadd.f32 %v2709, 1e-07
      %v2838 = vadd.f32 %v2710, 1e-07
      %v2839 = vadd.f32 %v2711, 1e-07
      %v2840 = vadd.f32 %v2712, 1e-07
      %v2841 = vadd.f32 %v2713, 1e-07
      %v2842 = vadd.f32 %v2714, 1e-07
      %v2843 = vadd.f32 %v2715, 1e-07
      %v2844 = vadd.f32 %v2716, 1e-07
      %v2845 = vadd.f32 %v2717, 1e-07
      %v2846 = vrcp.pop %v2718
      %v2847 = vmul.f32 %v2718, %v2846
      %v2848 = vsub.f32 1.0, %v2847
      %v2849 = vmul.f32 %v2846, %v2848
      %v2850 = vadd.f32 %v2846, %v2849
      %vm2851 = vweird.f32 %v2718
      %vm2852 = vweird.f32 %v2846
      %vm2853 = vmor %vm2851, %vm2852
      %v2854 = vsel %vm2853, %v2846, %v2850
      %v2855 = vand.u32 2147483647, %v2718
      %vm2856 = vcmp.eq.f32.partialorder %v2855, 8.507059e+37
      %v2857 = vand.u32 %v2718, 2147483648
      %v2858 = vor.u32 1.1754944e-38, %v2857
      %v2859 = vsel %vm2856, %v2858, %v2854
      %v2860 = vmul.f32 %v1814, %v2859
      %v2861 = vrcp.pop %v2719
      %v2862 = vmul.f32 %v2719, %v2861
      %v2863 = vsub.f32 1.0, %v2862
      %v2864 = vmul.f32 %v2861, %v2863
      %v2865 = vadd.f32 %v2861, %v2864
      %vm2866 = vweird.f32 %v2719
      %vm2867 = vweird.f32 %v2861
      %vm2868 = vmor %vm2866, %vm2867
      %v2869 = vsel %vm2868, %v2861, %v2865
      %v2870 = vand.u32 2147483647, %v2719
      %vm2871 = vcmp.eq.f32.partialorder %v2870, 8.507059e+37
      %v2872 = vand.u32 %v2719, 2147483648
      %v2873 = vor.u32 1.1754944e-38, %v2872
      %v2874 = vsel %vm2871, %v2873, %v2869
      %v2875 = vmul.f32 %v1815, %v2874
      %v2876 = vrcp.pop %v2720
      %v2877 = vmul.f32 %v2720, %v2876
      %v2878 = vsub.f32 1.0, %v2877
      %v2879 = vmul.f32 %v2876, %v2878
      %v2880 = vadd.f32 %v2876, %v2879
      %vm2881 = vweird.f32 %v2720
      %vm2882 = vweird.f32 %v2876
      %vm2883 = vmor %vm2881, %vm2882
      %v2884 = vsel %vm2883, %v2876, %v2880
      %v2885 = vand.u32 2147483647, %v2720
      %vm2886 = vcmp.eq.f32.partialorder %v2885, 8.507059e+37
      %v2887 = vand.u32 %v2720, 2147483648
      %v2888 = vor.u32 1.1754944e-38, %v2887
      %v2889 = vsel %vm2886, %v2888, %v2884
      %v2890 = vmul.f32 %v1816, %v2889
      %v2891 = vrcp.pop %v2721
      %v2892 = vmul.f32 %v2721, %v2891
      %v2893 = vsub.f32 1.0, %v2892
      %v2894 = vmul.f32 %v2891, %v2893
      %v2895 = vadd.f32 %v2891, %v2894
      %vm2896 = vweird.f32 %v2721
      %vm2897 = vweird.f32 %v2891
      %vm2898 = vmor %vm2896, %vm2897
      %v2899 = vsel %vm2898, %v2891, %v2895
      %v2900 = vand.u32 2147483647, %v2721
      %vm2901 = vcmp.eq.f32.partialorder %v2900, 8.507059e+37
      %v2902 = vand.u32 %v2721, 2147483648
      %v2903 = vor.u32 1.1754944e-38, %v2902
      %v2904 = vsel %vm2901, %v2903, %v2899
      %v2905 = vmul.f32 %v1817, %v2904
      %v2906 = vrcp.pop %v2722
      %v2907 = vmul.f32 %v2722, %v2906
      %v2908 = vsub.f32 1.0, %v2907
      %v2909 = vmul.f32 %v2906, %v2908
      %v2910 = vadd.f32 %v2906, %v2909
      %vm2911 = vweird.f32 %v2722
      %vm2912 = vweird.f32 %v2906
      %vm2913 = vmor %vm2911, %vm2912
      %v2914 = vsel %vm2913, %v2906, %v2910
      %v2915 = vand.u32 2147483647, %v2722
      %vm2916 = vcmp.eq.f32.partialorder %v2915, 8.507059e+37
      %v2917 = vand.u32 %v2722, 2147483648
      %v2918 = vor.u32 1.1754944e-38, %v2917
      %v2919 = vsel %vm2916, %v2918, %v2914
      %v2920 = vmul.f32 %v1818, %v2919
      %v2921 = vrcp.pop %v2723
      %v2922 = vmul.f32 %v2723, %v2921
      %v2923 = vsub.f32 1.0, %v2922
      %v2924 = vmul.f32 %v2921, %v2923
      %v2925 = vadd.f32 %v2921, %v2924
      %vm2926 = vweird.f32 %v2723
      %vm2927 = vweird.f32 %v2921
      %vm2928 = vmor %vm2926, %vm2927
      %v2929 = vsel %vm2928, %v2921, %v2925
      %v2930 = vand.u32 2147483647, %v2723
      %vm2931 = vcmp.eq.f32.partialorder %v2930, 8.507059e+37
      %v2932 = vand.u32 %v2723, 2147483648
      %v2933 = vor.u32 1.1754944e-38, %v2932
      %v2934 = vsel %vm2931, %v2933, %v2929
      %v2935 = vmul.f32 %v1819, %v2934
      %v2936 = vrcp.pop %v2724
      %v2937 = vmul.f32 %v2724, %v2936
      %v2938 = vsub.f32 1.0, %v2937
      %v2939 = vmul.f32 %v2936, %v2938
      %v2940 = vadd.f32 %v2936, %v2939
      %vm2941 = vweird.f32 %v2724
      %vm2942 = vweird.f32 %v2936
      %vm2943 = vmor %vm2941, %vm2942
      %v2944 = vsel %vm2943, %v2936, %v2940
      %v2945 = vand.u32 2147483647, %v2724
      %vm2946 = vcmp.eq.f32.partialorder %v2945, 8.507059e+37
      %v2947 = vand.u32 %v2724, 2147483648
      %v2948 = vor.u32 1.1754944e-38, %v2947
      %v2949 = vsel %vm2946, %v2948, %v2944
      %v2950 = vmul.f32 %v1820, %v2949
      %v2951 = vrcp.pop %v2725
      %v2952 = vmul.f32 %v2725, %v2951
      %v2953 = vsub.f32 1.0, %v2952
      %v2954 = vmul.f32 %v2951, %v2953
      %v2955 = vadd.f32 %v2951, %v2954
      %vm2956 = vweird.f32 %v2725
      %vm2957 = vweird.f32 %v2951
      %vm2958 = vmor %vm2956, %vm2957
      %v2959 = vsel %vm2958, %v2951, %v2955
      %v2960 = vand.u32 2147483647, %v2725
      %vm2961 = vcmp.eq.f32.partialorder %v2960, 8.507059e+37
      %v2962 = vand.u32 %v2725, 2147483648
      %v2963 = vor.u32 1.1754944e-38, %v2962
      %v2964 = vsel %vm2961, %v2963, %v2959
      %v2965 = vmul.f32 %v1821, %v2964
      %v2966 = vrcp.pop %v2726
      %v2967 = vmul.f32 %v2726, %v2966
      %v2968 = vsub.f32 1.0, %v2967
      %v2969 = vmul.f32 %v2966, %v2968
      %v2970 = vadd.f32 %v2966, %v2969
      %vm2971 = vweird.f32 %v2726
      %vm2972 = vweird.f32 %v2966
      %vm2973 = vmor %vm2971, %vm2972
      %v2974 = vsel %vm2973, %v2966, %v2970
      %v2975 = vand.u32 2147483647, %v2726
      %vm2976 = vcmp.eq.f32.partialorder %v2975, 8.507059e+37
      %v2977 = vand.u32 %v2726, 2147483648
      %v2978 = vor.u32 1.1754944e-38, %v2977
      %v2979 = vsel %vm2976, %v2978, %v2974
      %v2980 = vmul.f32 %v1822, %v2979
      %v2981 = vrcp.pop %v2727
      %v2982 = vmul.f32 %v2727, %v2981
      %v2983 = vsub.f32 1.0, %v2982
      %v2984 = vmul.f32 %v2981, %v2983
      %v2985 = vadd.f32 %v2981, %v2984
      %vm2986 = vweird.f32 %v2727
      %vm2987 = vweird.f32 %v2981
      %vm2988 = vmor %vm2986, %vm2987
      %v2989 = vsel %vm2988, %v2981, %v2985
      %v2990 = vand.u32 2147483647, %v2727
      %vm2991 = vcmp.eq.f32.partialorder %v2990, 8.507059e+37
      %v2992 = vand.u32 %v2727, 2147483648
      %v2993 = vor.u32 1.1754944e-38, %v2992
      %v2994 = vsel %vm2991, %v2993, %v2989
      %v2995 = vmul.f32 %v1823, %v2994
      %v2996 = vrcp.pop %v2728
      %v2997 = vmul.f32 %v2728, %v2996
      %v2998 = vsub.f32 1.0, %v2997
      %v2999 = vmul.f32 %v2996, %v2998
      %v3000 = vadd.f32 %v2996, %v2999
      %vm3001 = vweird.f32 %v2728
      %vm3002 = vweird.f32 %v2996
      %vm3003 = vmor %vm3001, %vm3002
      %v3004 = vsel %vm3003, %v2996, %v3000
      %v3005 = vand.u32 2147483647, %v2728
      %vm3006 = vcmp.eq.f32.partialorder %v3005, 8.507059e+37
      %v3007 = vand.u32 %v2728, 2147483648
      %v3008 = vor.u32 1.1754944e-38, %v3007
      %v3009 = vsel %vm3006, %v3008, %v3004
      %v3010 = vmul.f32 %v1824, %v3009
      %v3011 = vrcp.pop %v2729
      %v3012 = vmul.f32 %v2729, %v3011
      %v3013 = vsub.f32 1.0, %v3012
      %v3014 = vmul.f32 %v3011, %v3013
      %v3015 = vadd.f32 %v3011, %v3014
      %vm3016 = vweird.f32 %v2729
      %vm3017 = vweird.f32 %v3011
      %vm3018 = vmor %vm3016, %vm3017
      %v3019 = vsel %vm3018, %v3011, %v3015
      %v3020 = vand.u32 2147483647, %v2729
      %vm3021 = vcmp.eq.f32.partialorder %v3020, 8.507059e+37
      %v3022 = vand.u32 %v2729, 2147483648
      %v3023 = vor.u32 1.1754944e-38, %v3022
      %v3024 = vsel %vm3021, %v3023, %v3019
      %v3025 = vmul.f32 %v1825, %v3024
      %v3026 = vrcp.pop %v2730
      %v3027 = vmul.f32 %v2730, %v3026
      %v3028 = vsub.f32 1.0, %v3027
      %v3029 = vmul.f32 %v3026, %v3028
      %v3030 = vadd.f32 %v3026, %v3029
      %vm3031 = vweird.f32 %v2730
      %vm3032 = vweird.f32 %v3026
      %vm3033 = vmor %vm3031, %vm3032
      %v3034 = vsel %vm3033, %v3026, %v3030
      %v3035 = vand.u32 2147483647, %v2730
      %vm3036 = vcmp.eq.f32.partialorder %v3035, 8.507059e+37
      %v3037 = vand.u32 %v2730, 2147483648
      %v3038 = vor.u32 1.1754944e-38, %v3037
      %v3039 = vsel %vm3036, %v3038, %v3034
      %v3040 = vmul.f32 %v1826, %v3039
      %v3041 = vrcp.pop %v2731
      %v3042 = vmul.f32 %v2731, %v3041
      %v3043 = vsub.f32 1.0, %v3042
      %v3044 = vmul.f32 %v3041, %v3043
      %v3045 = vadd.f32 %v3041, %v3044
      %vm3046 = vweird.f32 %v2731
      %vm3047 = vweird.f32 %v3041
      %vm3048 = vmor %vm3046, %vm3047
      %v3049 = vsel %vm3048, %v3041, %v3045
      %v3050 = vand.u32 2147483647, %v2731
      %vm3051 = vcmp.eq.f32.partialorder %v3050, 8.507059e+37
      %v3052 = vand.u32 %v2731, 2147483648
      %v3053 = vor.u32 1.1754944e-38, %v3052
      %v3054 = vsel %vm3051, %v3053, %v3049
      %v3055 = vmul.f32 %v1827, %v3054
      %v3056 = vrcp.pop %v2732
      %v3057 = vmul.f32 %v2732, %v3056
      %v3058 = vsub.f32 1.0, %v3057
      %v3059 = vmul.f32 %v3056, %v3058
      %v3060 = vadd.f32 %v3056, %v3059
      %vm3061 = vweird.f32 %v2732
      %vm3062 = vweird.f32 %v3056
      %vm3063 = vmor %vm3061, %vm3062
      %v3064 = vsel %vm3063, %v3056, %v3060
      %v3065 = vand.u32 2147483647, %v2732
      %vm3066 = vcmp.eq.f32.partialorder %v3065, 8.507059e+37
      %v3067 = vand.u32 %v2732, 2147483648
      %v3068 = vor.u32 1.1754944e-38, %v3067
      %v3069 = vsel %vm3066, %v3068, %v3064
      %v3070 = vmul.f32 %v1828, %v3069
      %v3071 = vrcp.pop %v2733
      %v3072 = vmul.f32 %v2733, %v3071
      %v3073 = vsub.f32 1.0, %v3072
      %v3074 = vmul.f32 %v3071, %v3073
      %v3075 = vadd.f32 %v3071, %v3074
      %vm3076 = vweird.f32 %v2733
      %vm3077 = vweird.f32 %v3071
      %vm3078 = vmor %vm3076, %vm3077
      %v3079 = vsel %vm3078, %v3071, %v3075
      %v3080 = vand.u32 2147483647, %v2733
      %vm3081 = vcmp.eq.f32.partialorder %v3080, 8.507059e+37
      %v3082 = vand.u32 %v2733, 2147483648
      %v3083 = vor.u32 1.1754944e-38, %v3082
      %v3084 = vsel %vm3081, %v3083, %v3079
      %v3085 = vmul.f32 %v1829, %v3084
      %v3086 = vrcp.pop %v2734
      %v3087 = vmul.f32 %v2734, %v3086
      %v3088 = vsub.f32 1.0, %v3087
      %v3089 = vmul.f32 %v3086, %v3088
      %v3090 = vadd.f32 %v3086, %v3089
      %vm3091 = vweird.f32 %v2734
      %vm3092 = vweird.f32 %v3086
      %vm3093 = vmor %vm3091, %vm3092
      %v3094 = vsel %vm3093, %v3086, %v3090
      %v3095 = vand.u32 2147483647, %v2734
      %vm3096 = vcmp.eq.f32.partialorder %v3095, 8.507059e+37
      %v3097 = vand.u32 %v2734, 2147483648
      %v3098 = vor.u32 1.1754944e-38, %v3097
      %v3099 = vsel %vm3096, %v3098, %v3094
      %v3100 = vmul.f32 %v1830, %v3099
      %v3101 = vrcp.pop %v2735
      %v3102 = vmul.f32 %v2735, %v3101
      %v3103 = vsub.f32 1.0, %v3102
      %v3104 = vmul.f32 %v3101, %v3103
      %v3105 = vadd.f32 %v3101, %v3104
      %vm3106 = vweird.f32 %v2735
      %vm3107 = vweird.f32 %v3101
      %vm3108 = vmor %vm3106, %vm3107
      %v3109 = vsel %vm3108, %v3101, %v3105
      %v3110 = vand.u32 2147483647, %v2735
      %vm3111 = vcmp.eq.f32.partialorder %v3110, 8.507059e+37
      %v3112 = vand.u32 %v2735, 2147483648
      %v3113 = vor.u32 1.1754944e-38, %v3112
      %v3114 = vsel %vm3111, %v3113, %v3109
      %v3115 = vmul.f32 %v1831, %v3114
      %v3116 = vrcp.pop %v2736
      %v3117 = vmul.f32 %v2736, %v3116
      %v3118 = vsub.f32 1.0, %v3117
      %v3119 = vmul.f32 %v3116, %v3118
      %v3120 = vadd.f32 %v3116, %v3119
      %vm3121 = vweird.f32 %v2736
      %vm3122 = vweird.f32 %v3116
      %vm3123 = vmor %vm3121, %vm3122
      %v3124 = vsel %vm3123, %v3116, %v3120
      %v3125 = vand.u32 2147483647, %v2736
      %vm3126 = vcmp.eq.f32.partialorder %v3125, 8.507059e+37
      %v3127 = vand.u32 %v2736, 2147483648
      %v3128 = vor.u32 1.1754944e-38, %v3127
      %v3129 = vsel %vm3126, %v3128, %v3124
      %v3130 = vmul.f32 %v1832, %v3129
      %v3131 = vrcp.pop %v2737
      %v3132 = vmul.f32 %v2737, %v3131
      %v3133 = vsub.f32 1.0, %v3132
      %v3134 = vmul.f32 %v3131, %v3133
      %v3135 = vadd.f32 %v3131, %v3134
      %vm3136 = vweird.f32 %v2737
      %vm3137 = vweird.f32 %v3131
      %vm3138 = vmor %vm3136, %vm3137
      %v3139 = vsel %vm3138, %v3131, %v3135
      %v3140 = vand.u32 2147483647, %v2737
      %vm3141 = vcmp.eq.f32.partialorder %v3140, 8.507059e+37
      %v3142 = vand.u32 %v2737, 2147483648
      %v3143 = vor.u32 1.1754944e-38, %v3142
      %v3144 = vsel %vm3141, %v3143, %v3139
      %v3145 = vmul.f32 %v1833, %v3144
      %v3146 = vrcp.pop %v2738
      %v3147 = vmul.f32 %v2738, %v3146
      %v3148 = vsub.f32 1.0, %v3147
      %v3149 = vmul.f32 %v3146, %v3148
      %v3150 = vadd.f32 %v3146, %v3149
      %vm3151 = vweird.f32 %v2738
      %vm3152 = vweird.f32 %v3146
      %vm3153 = vmor %vm3151, %vm3152
      %v3154 = vsel %vm3153, %v3146, %v3150
      %v3155 = vand.u32 2147483647, %v2738
      %vm3156 = vcmp.eq.f32.partialorder %v3155, 8.507059e+37
      %v3157 = vand.u32 %v2738, 2147483648
      %v3158 = vor.u32 1.1754944e-38, %v3157
      %v3159 = vsel %vm3156, %v3158, %v3154
      %v3160 = vmul.f32 %v1834, %v3159
      %v3161 = vrcp.pop %v2739
      %v3162 = vmul.f32 %v2739, %v3161
      %v3163 = vsub.f32 1.0, %v3162
      %v3164 = vmul.f32 %v3161, %v3163
      %v3165 = vadd.f32 %v3161, %v3164
      %vm3166 = vweird.f32 %v2739
      %vm3167 = vweird.f32 %v3161
      %vm3168 = vmor %vm3166, %vm3167
      %v3169 = vsel %vm3168, %v3161, %v3165
      %v3170 = vand.u32 2147483647, %v2739
      %vm3171 = vcmp.eq.f32.partialorder %v3170, 8.507059e+37
      %v3172 = vand.u32 %v2739, 2147483648
      %v3173 = vor.u32 1.1754944e-38, %v3172
      %v3174 = vsel %vm3171, %v3173, %v3169
      %v3175 = vmul.f32 %v1835, %v3174
      %v3176 = vrcp.pop %v2740
      %v3177 = vmul.f32 %v2740, %v3176
      %v3178 = vsub.f32 1.0, %v3177
      %v3179 = vmul.f32 %v3176, %v3178
      %v3180 = vadd.f32 %v3176, %v3179
      %vm3181 = vweird.f32 %v2740
      %vm3182 = vweird.f32 %v3176
      %vm3183 = vmor %vm3181, %vm3182
      %v3184 = vsel %vm3183, %v3176, %v3180
      %v3185 = vand.u32 2147483647, %v2740
      %vm3186 = vcmp.eq.f32.partialorder %v3185, 8.507059e+37
      %v3187 = vand.u32 %v2740, 2147483648
      %v3188 = vor.u32 1.1754944e-38, %v3187
      %v3189 = vsel %vm3186, %v3188, %v3184
      %v3190 = vmul.f32 %v1836, %v3189
      %v3191 = vrcp.pop %v2741
      %v3192 = vmul.f32 %v2741, %v3191
      %v3193 = vsub.f32 1.0, %v3192
      %v3194 = vmul.f32 %v3191, %v3193
      %v3195 = vadd.f32 %v3191, %v3194
      %vm3196 = vweird.f32 %v2741
      %vm3197 = vweird.f32 %v3191
      %vm3198 = vmor %vm3196, %vm3197
      %v3199 = vsel %vm3198, %v3191, %v3195
      %v3200 = vand.u32 2147483647, %v2741
      %vm3201 = vcmp.eq.f32.partialorder %v3200, 8.507059e+37
      %v3202 = vand.u32 %v2741, 2147483648
      %v3203 = vor.u32 1.1754944e-38, %v3202
      %v3204 = vsel %vm3201, %v3203, %v3199
      %v3205 = vmul.f32 %v1837, %v3204
      %v3206 = vrcp.pop %v2742
      %v3207 = vmul.f32 %v2742, %v3206
      %v3208 = vsub.f32 1.0, %v3207
      %v3209 = vmul.f32 %v3206, %v3208
      %v3210 = vadd.f32 %v3206, %v3209
      %vm3211 = vweird.f32 %v2742
      %vm3212 = vweird.f32 %v3206
      %vm3213 = vmor %vm3211, %vm3212
      %v3214 = vsel %vm3213, %v3206, %v3210
      %v3215 = vand.u32 2147483647, %v2742
      %vm3216 = vcmp.eq.f32.partialorder %v3215, 8.507059e+37
      %v3217 = vand.u32 %v2742, 2147483648
      %v3218 = vor.u32 1.1754944e-38, %v3217
      %v3219 = vsel %vm3216, %v3218, %v3214
      %v3220 = vmul.f32 %v1838, %v3219
      %v3221 = vrcp.pop %v2743
      %v3222 = vmul.f32 %v2743, %v3221
      %v3223 = vsub.f32 1.0, %v3222
      %v3224 = vmul.f32 %v3221, %v3223
      %v3225 = vadd.f32 %v3221, %v3224
      %vm3226 = vweird.f32 %v2743
      %vm3227 = vweird.f32 %v3221
      %vm3228 = vmor %vm3226, %vm3227
      %v3229 = vsel %vm3228, %v3221, %v3225
      %v3230 = vand.u32 2147483647, %v2743
      %vm3231 = vcmp.eq.f32.partialorder %v3230, 8.507059e+37
      %v3232 = vand.u32 %v2743, 2147483648
      %v3233 = vor.u32 1.1754944e-38, %v3232
      %v3234 = vsel %vm3231, %v3233, %v3229
      %v3235 = vmul.f32 %v1839, %v3234
      %v3236 = vrcp.pop %v2744
      %v3237 = vmul.f32 %v2744, %v3236
      %v3238 = vsub.f32 1.0, %v3237
      %v3239 = vmul.f32 %v3236, %v3238
      %v3240 = vadd.f32 %v3236, %v3239
      %vm3241 = vweird.f32 %v2744
      %vm3242 = vweird.f32 %v3236
      %vm3243 = vmor %vm3241, %vm3242
      %v3244 = vsel %vm3243, %v3236, %v3240
      %v3245 = vand.u32 2147483647, %v2744
      %vm3246 = vcmp.eq.f32.partialorder %v3245, 8.507059e+37
      %v3247 = vand.u32 %v2744, 2147483648
      %v3248 = vor.u32 1.1754944e-38, %v3247
      %v3249 = vsel %vm3246, %v3248, %v3244
      %v3250 = vmul.f32 %v1840, %v3249
      %v3251 = vrcp.pop %v2745
      %v3252 = vmul.f32 %v2745, %v3251
      %v3253 = vsub.f32 1.0, %v3252
      %v3254 = vmul.f32 %v3251, %v3253
      %v3255 = vadd.f32 %v3251, %v3254
      %vm3256 = vweird.f32 %v2745
      %vm3257 = vweird.f32 %v3251
      %vm3258 = vmor %vm3256, %vm3257
      %v3259 = vsel %vm3258, %v3251, %v3255
      %v3260 = vand.u32 2147483647, %v2745
      %vm3261 = vcmp.eq.f32.partialorder %v3260, 8.507059e+37
      %v3262 = vand.u32 %v2745, 2147483648
      %v3263 = vor.u32 1.1754944e-38, %v3262
      %v3264 = vsel %vm3261, %v3263, %v3259
      %v3265 = vmul.f32 %v1841, %v3264
      %v3266 = vrcp.pop %v2746
      %v3267 = vmul.f32 %v2746, %v3266
      %v3268 = vsub.f32 1.0, %v3267
      %v3269 = vmul.f32 %v3266, %v3268
      %v3270 = vadd.f32 %v3266, %v3269
      %vm3271 = vweird.f32 %v2746
      %vm3272 = vweird.f32 %v3266
      %vm3273 = vmor %vm3271, %vm3272
      %v3274 = vsel %vm3273, %v3266, %v3270
      %v3275 = vand.u32 2147483647, %v2746
      %vm3276 = vcmp.eq.f32.partialorder %v3275, 8.507059e+37
      %v3277 = vand.u32 %v2746, 2147483648
      %v3278 = vor.u32 1.1754944e-38, %v3277
      %v3279 = vsel %vm3276, %v3278, %v3274
      %v3280 = vmul.f32 %v1842, %v3279
      %v3281 = vrcp.pop %v2747
      %v3282 = vmul.f32 %v2747, %v3281
      %v3283 = vsub.f32 1.0, %v3282
      %v3284 = vmul.f32 %v3281, %v3283
      %v3285 = vadd.f32 %v3281, %v3284
      %vm3286 = vweird.f32 %v2747
      %vm3287 = vweird.f32 %v3281
      %vm3288 = vmor %vm3286, %vm3287
      %v3289 = vsel %vm3288, %v3281, %v3285
      %v3290 = vand.u32 2147483647, %v2747
      %vm3291 = vcmp.eq.f32.partialorder %v3290, 8.507059e+37
      %v3292 = vand.u32 %v2747, 2147483648
      %v3293 = vor.u32 1.1754944e-38, %v3292
      %v3294 = vsel %vm3291, %v3293, %v3289
      %v3295 = vmul.f32 %v1843, %v3294
      %v3296 = vrcp.pop %v2748
      %v3297 = vmul.f32 %v2748, %v3296
      %v3298 = vsub.f32 1.0, %v3297
      %v3299 = vmul.f32 %v3296, %v3298
      %v3300 = vadd.f32 %v3296, %v3299
      %vm3301 = vweird.f32 %v2748
      %vm3302 = vweird.f32 %v3296
      %vm3303 = vmor %vm3301, %vm3302
      %v3304 = vsel %vm3303, %v3296, %v3300
      %v3305 = vand.u32 2147483647, %v2748
      %vm3306 = vcmp.eq.f32.partialorder %v3305, 8.507059e+37
      %v3307 = vand.u32 %v2748, 2147483648
      %v3308 = vor.u32 1.1754944e-38, %v3307
      %v3309 = vsel %vm3306, %v3308, %v3304
      %v3310 = vmul.f32 %v1844, %v3309
      %v3311 = vrcp.pop %v2749
      %v3312 = vmul.f32 %v2749, %v3311
      %v3313 = vsub.f32 1.0, %v3312
      %v3314 = vmul.f32 %v3311, %v3313
      %v3315 = vadd.f32 %v3311, %v3314
      %vm3316 = vweird.f32 %v2749
      %vm3317 = vweird.f32 %v3311
      %vm3318 = vmor %vm3316, %vm3317
      %v3319 = vsel %vm3318, %v3311, %v3315
      %v3320 = vand.u32 2147483647, %v2749
      %vm3321 = vcmp.eq.f32.partialorder %v3320, 8.507059e+37
      %v3322 = vand.u32 %v2749, 2147483648
      %v3323 = vor.u32 1.1754944e-38, %v3322
      %v3324 = vsel %vm3321, %v3323, %v3319
      %v3325 = vmul.f32 %v1845, %v3324
      %v3326 = vrcp.pop %v2750
      %v3327 = vmul.f32 %v2750, %v3326
      %v3328 = vsub.f32 1.0, %v3327
      %v3329 = vmul.f32 %v3326, %v3328
      %v3330 = vadd.f32 %v3326, %v3329
      %vm3331 = vweird.f32 %v2750
      %vm3332 = vweird.f32 %v3326
      %vm3333 = vmor %vm3331, %vm3332
      %v3334 = vsel %vm3333, %v3326, %v3330
      %v3335 = vand.u32 2147483647, %v2750
      %vm3336 = vcmp.eq.f32.partialorder %v3335, 8.507059e+37
      %v3337 = vand.u32 %v2750, 2147483648
      %v3338 = vor.u32 1.1754944e-38, %v3337
      %v3339 = vsel %vm3336, %v3338, %v3334
      %v3340 = vmul.f32 %v1846, %v3339
      %v3341 = vrcp.pop %v2751
      %v3342 = vmul.f32 %v2751, %v3341
      %v3343 = vsub.f32 1.0, %v3342
      %v3344 = vmul.f32 %v3341, %v3343
      %v3345 = vadd.f32 %v3341, %v3344
      %vm3346 = vweird.f32 %v2751
      %vm3347 = vweird.f32 %v3341
      %vm3348 = vmor %vm3346, %vm3347
      %v3349 = vsel %vm3348, %v3341, %v3345
      %v3350 = vand.u32 2147483647, %v2751
      %vm3351 = vcmp.eq.f32.partialorder %v3350, 8.507059e+37
      %v3352 = vand.u32 %v2751, 2147483648
      %v3353 = vor.u32 1.1754944e-38, %v3352
      %v3354 = vsel %vm3351, %v3353, %v3349
      %v3355 = vmul.f32 %v1847, %v3354
      %v3356 = vrcp.pop %v2752
      %v3357 = vmul.f32 %v2752, %v3356
      %v3358 = vsub.f32 1.0, %v3357
      %v3359 = vmul.f32 %v3356, %v3358
      %v3360 = vadd.f32 %v3356, %v3359
      %vm3361 = vweird.f32 %v2752
      %vm3362 = vweird.f32 %v3356
      %vm3363 = vmor %vm3361, %vm3362
      %v3364 = vsel %vm3363, %v3356, %v3360
      %v3365 = vand.u32 2147483647, %v2752
      %vm3366 = vcmp.eq.f32.partialorder %v3365, 8.507059e+37
      %v3367 = vand.u32 %v2752, 2147483648
      %v3368 = vor.u32 1.1754944e-38, %v3367
      %v3369 = vsel %vm3366, %v3368, %v3364
      %v3370 = vmul.f32 %v1848, %v3369
      %v3371 = vrcp.pop %v2753
      %v3372 = vmul.f32 %v2753, %v3371
      %v3373 = vsub.f32 1.0, %v3372
      %v3374 = vmul.f32 %v3371, %v3373
      %v3375 = vadd.f32 %v3371, %v3374
      %vm3376 = vweird.f32 %v2753
      %vm3377 = vweird.f32 %v3371
      %vm3378 = vmor %vm3376, %vm3377
      %v3379 = vsel %vm3378, %v3371, %v3375
      %v3380 = vand.u32 2147483647, %v2753
      %vm3381 = vcmp.eq.f32.partialorder %v3380, 8.507059e+37
      %v3382 = vand.u32 %v2753, 2147483648
      %v3383 = vor.u32 1.1754944e-38, %v3382
      %v3384 = vsel %vm3381, %v3383, %v3379
      %v3385 = vmul.f32 %v1849, %v3384
      %v3386 = vrcp.pop %v2754
      %v3387 = vmul.f32 %v2754, %v3386
      %v3388 = vsub.f32 1.0, %v3387
      %v3389 = vmul.f32 %v3386, %v3388
      %v3390 = vadd.f32 %v3386, %v3389
      %vm3391 = vweird.f32 %v2754
      %vm3392 = vweird.f32 %v3386
      %vm3393 = vmor %vm3391, %vm3392
      %v3394 = vsel %vm3393, %v3386, %v3390
      %v3395 = vand.u32 2147483647, %v2754
      %vm3396 = vcmp.eq.f32.partialorder %v3395, 8.507059e+37
      %v3397 = vand.u32 %v2754, 2147483648
      %v3398 = vor.u32 1.1754944e-38, %v3397
      %v3399 = vsel %vm3396, %v3398, %v3394
      %v3400 = vmul.f32 %v1850, %v3399
      %v3401 = vrcp.pop %v2755
      %v3402 = vmul.f32 %v2755, %v3401
      %v3403 = vsub.f32 1.0, %v3402
      %v3404 = vmul.f32 %v3401, %v3403
      %v3405 = vadd.f32 %v3401, %v3404
      %vm3406 = vweird.f32 %v2755
      %vm3407 = vweird.f32 %v3401
      %vm3408 = vmor %vm3406, %vm3407
      %v3409 = vsel %vm3408, %v3401, %v3405
      %v3410 = vand.u32 2147483647, %v2755
      %vm3411 = vcmp.eq.f32.partialorder %v3410, 8.507059e+37
      %v3412 = vand.u32 %v2755, 2147483648
      %v3413 = vor.u32 1.1754944e-38, %v3412
      %v3414 = vsel %vm3411, %v3413, %v3409
      %v3415 = vmul.f32 %v1851, %v3414
      %v3416 = vrcp.pop %v2756
      %v3417 = vmul.f32 %v2756, %v3416
      %v3418 = vsub.f32 1.0, %v3417
      %v3419 = vmul.f32 %v3416, %v3418
      %v3420 = vadd.f32 %v3416, %v3419
      %vm3421 = vweird.f32 %v2756
      %vm3422 = vweird.f32 %v3416
      %vm3423 = vmor %vm3421, %vm3422
      %v3424 = vsel %vm3423, %v3416, %v3420
      %v3425 = vand.u32 2147483647, %v2756
      %vm3426 = vcmp.eq.f32.partialorder %v3425, 8.507059e+37
      %v3427 = vand.u32 %v2756, 2147483648
      %v3428 = vor.u32 1.1754944e-38, %v3427
      %v3429 = vsel %vm3426, %v3428, %v3424
      %v3430 = vmul.f32 %v1852, %v3429
      %v3431 = vrcp.pop %v2757
      %v3432 = vmul.f32 %v2757, %v3431
      %v3433 = vsub.f32 1.0, %v3432
      %v3434 = vmul.f32 %v3431, %v3433
      %v3435 = vadd.f32 %v3431, %v3434
      %vm3436 = vweird.f32 %v2757
      %vm3437 = vweird.f32 %v3431
      %vm3438 = vmor %vm3436, %vm3437
      %v3439 = vsel %vm3438, %v3431, %v3435
      %v3440 = vand.u32 2147483647, %v2757
      %vm3441 = vcmp.eq.f32.partialorder %v3440, 8.507059e+37
      %v3442 = vand.u32 %v2757, 2147483648
      %v3443 = vor.u32 1.1754944e-38, %v3442
      %v3444 = vsel %vm3441, %v3443, %v3439
      %v3445 = vmul.f32 %v1853, %v3444
      %v3446 = vrcp.pop %v2758
      %v3447 = vmul.f32 %v2758, %v3446
      %v3448 = vsub.f32 1.0, %v3447
      %v3449 = vmul.f32 %v3446, %v3448
      %v3450 = vadd.f32 %v3446, %v3449
      %vm3451 = vweird.f32 %v2758
      %vm3452 = vweird.f32 %v3446
      %vm3453 = vmor %vm3451, %vm3452
      %v3454 = vsel %vm3453, %v3446, %v3450
      %v3455 = vand.u32 2147483647, %v2758
      %vm3456 = vcmp.eq.f32.partialorder %v3455, 8.507059e+37
      %v3457 = vand.u32 %v2758, 2147483648
      %v3458 = vor.u32 1.1754944e-38, %v3457
      %v3459 = vsel %vm3456, %v3458, %v3454
      %v3460 = vmul.f32 %v1854, %v3459
      %v3461 = vrcp.pop %v2759
      %v3462 = vmul.f32 %v2759, %v3461
      %v3463 = vsub.f32 1.0, %v3462
      %v3464 = vmul.f32 %v3461, %v3463
      %v3465 = vadd.f32 %v3461, %v3464
      %vm3466 = vweird.f32 %v2759
      %vm3467 = vweird.f32 %v3461
      %vm3468 = vmor %vm3466, %vm3467
      %v3469 = vsel %vm3468, %v3461, %v3465
      %v3470 = vand.u32 2147483647, %v2759
      %vm3471 = vcmp.eq.f32.partialorder %v3470, 8.507059e+37
      %v3472 = vand.u32 %v2759, 2147483648
      %v3473 = vor.u32 1.1754944e-38, %v3472
      %v3474 = vsel %vm3471, %v3473, %v3469
      %v3475 = vmul.f32 %v1855, %v3474
      %v3476 = vrcp.pop %v2760
      %v3477 = vmul.f32 %v2760, %v3476
      %v3478 = vsub.f32 1.0, %v3477
      %v3479 = vmul.f32 %v3476, %v3478
      %v3480 = vadd.f32 %v3476, %v3479
      %vm3481 = vweird.f32 %v2760
      %vm3482 = vweird.f32 %v3476
      %vm3483 = vmor %vm3481, %vm3482
      %v3484 = vsel %vm3483, %v3476, %v3480
      %v3485 = vand.u32 2147483647, %v2760
      %vm3486 = vcmp.eq.f32.partialorder %v3485, 8.507059e+37
      %v3487 = vand.u32 %v2760, 2147483648
      %v3488 = vor.u32 1.1754944e-38, %v3487
      %v3489 = vsel %vm3486, %v3488, %v3484
      %v3490 = vmul.f32 %v1856, %v3489
      %v3491 = vrcp.pop %v2761
      %v3492 = vmul.f32 %v2761, %v3491
      %v3493 = vsub.f32 1.0, %v3492
      %v3494 = vmul.f32 %v3491, %v3493
      %v3495 = vadd.f32 %v3491, %v3494
      %vm3496 = vweird.f32 %v2761
      %vm3497 = vweird.f32 %v3491
      %vm3498 = vmor %vm3496, %vm3497
      %v3499 = vsel %vm3498, %v3491, %v3495
      %v3500 = vand.u32 2147483647, %v2761
      %vm3501 = vcmp.eq.f32.partialorder %v3500, 8.507059e+37
      %v3502 = vand.u32 %v2761, 2147483648
      %v3503 = vor.u32 1.1754944e-38, %v3502
      %v3504 = vsel %vm3501, %v3503, %v3499
      %v3505 = vmul.f32 %v1857, %v3504
      %v3506 = vrcp.pop %v2762
      %v3507 = vmul.f32 %v2762, %v3506
      %v3508 = vsub.f32 1.0, %v3507
      %v3509 = vmul.f32 %v3506, %v3508
      %v3510 = vadd.f32 %v3506, %v3509
      %vm3511 = vweird.f32 %v2762
      %vm3512 = vweird.f32 %v3506
      %vm3513 = vmor %vm3511, %vm3512
      %v3514 = vsel %vm3513, %v3506, %v3510
      %v3515 = vand.u32 2147483647, %v2762
      %vm3516 = vcmp.eq.f32.partialorder %v3515, 8.507059e+37
      %v3517 = vand.u32 %v2762, 2147483648
      %v3518 = vor.u32 1.1754944e-38, %v3517
      %v3519 = vsel %vm3516, %v3518, %v3514
      %v3520 = vmul.f32 %v1858, %v3519
      %v3521 = vrcp.pop %v2763
      %v3522 = vmul.f32 %v2763, %v3521
      %v3523 = vsub.f32 1.0, %v3522
      %v3524 = vmul.f32 %v3521, %v3523
      %v3525 = vadd.f32 %v3521, %v3524
      %vm3526 = vweird.f32 %v2763
      %vm3527 = vweird.f32 %v3521
      %vm3528 = vmor %vm3526, %vm3527
      %v3529 = vsel %vm3528, %v3521, %v3525
      %v3530 = vand.u32 2147483647, %v2763
      %vm3531 = vcmp.eq.f32.partialorder %v3530, 8.507059e+37
      %v3532 = vand.u32 %v2763, 2147483648
      %v3533 = vor.u32 1.1754944e-38, %v3532
      %v3534 = vsel %vm3531, %v3533, %v3529
      %v3535 = vmul.f32 %v1859, %v3534
      %v3536 = vrcp.pop %v2764
      %v3537 = vmul.f32 %v2764, %v3536
      %v3538 = vsub.f32 1.0, %v3537
      %v3539 = vmul.f32 %v3536, %v3538
      %v3540 = vadd.f32 %v3536, %v3539
      %vm3541 = vweird.f32 %v2764
      %vm3542 = vweird.f32 %v3536
      %vm3543 = vmor %vm3541, %vm3542
      %v3544 = vsel %vm3543, %v3536, %v3540
      %v3545 = vand.u32 2147483647, %v2764
      %vm3546 = vcmp.eq.f32.partialorder %v3545, 8.507059e+37
      %v3547 = vand.u32 %v2764, 2147483648
      %v3548 = vor.u32 1.1754944e-38, %v3547
      %v3549 = vsel %vm3546, %v3548, %v3544
      %v3550 = vmul.f32 %v1860, %v3549
      %v3551 = vrcp.pop %v2765
      %v3552 = vmul.f32 %v2765, %v3551
      %v3553 = vsub.f32 1.0, %v3552
      %v3554 = vmul.f32 %v3551, %v3553
      %v3555 = vadd.f32 %v3551, %v3554
      %vm3556 = vweird.f32 %v2765
      %vm3557 = vweird.f32 %v3551
      %vm3558 = vmor %vm3556, %vm3557
      %v3559 = vsel %vm3558, %v3551, %v3555
      %v3560 = vand.u32 2147483647, %v2765
      %vm3561 = vcmp.eq.f32.partialorder %v3560, 8.507059e+37
      %v3562 = vand.u32 %v2765, 2147483648
      %v3563 = vor.u32 1.1754944e-38, %v3562
      %v3564 = vsel %vm3561, %v3563, %v3559
      %v3565 = vmul.f32 %v1861, %v3564
      %v3566 = vrcp.pop %v2766
      %v3567 = vmul.f32 %v2766, %v3566
      %v3568 = vsub.f32 1.0, %v3567
      %v3569 = vmul.f32 %v3566, %v3568
      %v3570 = vadd.f32 %v3566, %v3569
      %vm3571 = vweird.f32 %v2766
      %vm3572 = vweird.f32 %v3566
      %vm3573 = vmor %vm3571, %vm3572
      %v3574 = vsel %vm3573, %v3566, %v3570
      %v3575 = vand.u32 2147483647, %v2766
      %vm3576 = vcmp.eq.f32.partialorder %v3575, 8.507059e+37
      %v3577 = vand.u32 %v2766, 2147483648
      %v3578 = vor.u32 1.1754944e-38, %v3577
      %v3579 = vsel %vm3576, %v3578, %v3574
      %v3580 = vmul.f32 %v1862, %v3579
      %v3581 = vrcp.pop %v2767
      %v3582 = vmul.f32 %v2767, %v3581
      %v3583 = vsub.f32 1.0, %v3582
      %v3584 = vmul.f32 %v3581, %v3583
      %v3585 = vadd.f32 %v3581, %v3584
      %vm3586 = vweird.f32 %v2767
      %vm3587 = vweird.f32 %v3581
      %vm3588 = vmor %vm3586, %vm3587
      %v3589 = vsel %vm3588, %v3581, %v3585
      %v3590 = vand.u32 2147483647, %v2767
      %vm3591 = vcmp.eq.f32.partialorder %v3590, 8.507059e+37
      %v3592 = vand.u32 %v2767, 2147483648
      %v3593 = vor.u32 1.1754944e-38, %v3592
      %v3594 = vsel %vm3591, %v3593, %v3589
      %v3595 = vmul.f32 %v1863, %v3594
      %v3596 = vrcp.pop %v2768
      %v3597 = vmul.f32 %v2768, %v3596
      %v3598 = vsub.f32 1.0, %v3597
      %v3599 = vmul.f32 %v3596, %v3598
      %v3600 = vadd.f32 %v3596, %v3599
      %vm3601 = vweird.f32 %v2768
      %vm3602 = vweird.f32 %v3596
      %vm3603 = vmor %vm3601, %vm3602
      %v3604 = vsel %vm3603, %v3596, %v3600
      %v3605 = vand.u32 2147483647, %v2768
      %vm3606 = vcmp.eq.f32.partialorder %v3605, 8.507059e+37
      %v3607 = vand.u32 %v2768, 2147483648
      %v3608 = vor.u32 1.1754944e-38, %v3607
      %v3609 = vsel %vm3606, %v3608, %v3604
      %v3610 = vmul.f32 %v1864, %v3609
      %v3611 = vrcp.pop %v2769
      %v3612 = vmul.f32 %v2769, %v3611
      %v3613 = vsub.f32 1.0, %v3612
      %v3614 = vmul.f32 %v3611, %v3613
      %v3615 = vadd.f32 %v3611, %v3614
      %vm3616 = vweird.f32 %v2769
      %vm3617 = vweird.f32 %v3611
      %vm3618 = vmor %vm3616, %vm3617
      %v3619 = vsel %vm3618, %v3611, %v3615
      %v3620 = vand.u32 2147483647, %v2769
      %vm3621 = vcmp.eq.f32.partialorder %v3620, 8.507059e+37
      %v3622 = vand.u32 %v2769, 2147483648
      %v3623 = vor.u32 1.1754944e-38, %v3622
      %v3624 = vsel %vm3621, %v3623, %v3619
      %v3625 = vmul.f32 %v1865, %v3624
      %v3626 = vrcp.pop %v2770
      %v3627 = vmul.f32 %v2770, %v3626
      %v3628 = vsub.f32 1.0, %v3627
      %v3629 = vmul.f32 %v3626, %v3628
      %v3630 = vadd.f32 %v3626, %v3629
      %vm3631 = vweird.f32 %v2770
      %vm3632 = vweird.f32 %v3626
      %vm3633 = vmor %vm3631, %vm3632
      %v3634 = vsel %vm3633, %v3626, %v3630
      %v3635 = vand.u32 2147483647, %v2770
      %vm3636 = vcmp.eq.f32.partialorder %v3635, 8.507059e+37
      %v3637 = vand.u32 %v2770, 2147483648
      %v3638 = vor.u32 1.1754944e-38, %v3637
      %v3639 = vsel %vm3636, %v3638, %v3634
      %v3640 = vmul.f32 %v1866, %v3639
      %v3641 = vrcp.pop %v2771
      %v3642 = vmul.f32 %v2771, %v3641
      %v3643 = vsub.f32 1.0, %v3642
      %v3644 = vmul.f32 %v3641, %v3643
      %v3645 = vadd.f32 %v3641, %v3644
      %vm3646 = vweird.f32 %v2771
      %vm3647 = vweird.f32 %v3641
      %vm3648 = vmor %vm3646, %vm3647
      %v3649 = vsel %vm3648, %v3641, %v3645
      %v3650 = vand.u32 2147483647, %v2771
      %vm3651 = vcmp.eq.f32.partialorder %v3650, 8.507059e+37
      %v3652 = vand.u32 %v2771, 2147483648
      %v3653 = vor.u32 1.1754944e-38, %v3652
      %v3654 = vsel %vm3651, %v3653, %v3649
      %v3655 = vmul.f32 %v1867, %v3654
      %v3656 = vrcp.pop %v2772
      %v3657 = vmul.f32 %v2772, %v3656
      %v3658 = vsub.f32 1.0, %v3657
      %v3659 = vmul.f32 %v3656, %v3658
      %v3660 = vadd.f32 %v3656, %v3659
      %vm3661 = vweird.f32 %v2772
      %vm3662 = vweird.f32 %v3656
      %vm3663 = vmor %vm3661, %vm3662
      %v3664 = vsel %vm3663, %v3656, %v3660
      %v3665 = vand.u32 2147483647, %v2772
      %vm3666 = vcmp.eq.f32.partialorder %v3665, 8.507059e+37
      %v3667 = vand.u32 %v2772, 2147483648
      %v3668 = vor.u32 1.1754944e-38, %v3667
      %v3669 = vsel %vm3666, %v3668, %v3664
      %v3670 = vmul.f32 %v1868, %v3669
      %v3671 = vrcp.pop %v2773
      %v3672 = vmul.f32 %v2773, %v3671
      %v3673 = vsub.f32 1.0, %v3672
      %v3674 = vmul.f32 %v3671, %v3673
      %v3675 = vadd.f32 %v3671, %v3674
      %vm3676 = vweird.f32 %v2773
      %vm3677 = vweird.f32 %v3671
      %vm3678 = vmor %vm3676, %vm3677
      %v3679 = vsel %vm3678, %v3671, %v3675
      %v3680 = vand.u32 2147483647, %v2773
      %vm3681 = vcmp.eq.f32.partialorder %v3680, 8.507059e+37
      %v3682 = vand.u32 %v2773, 2147483648
      %v3683 = vor.u32 1.1754944e-38, %v3682
      %v3684 = vsel %vm3681, %v3683, %v3679
      %v3685 = vmul.f32 %v1869, %v3684
      %v3686 = vrcp.pop %v2774
      %v3687 = vmul.f32 %v2774, %v3686
      %v3688 = vsub.f32 1.0, %v3687
      %v3689 = vmul.f32 %v3686, %v3688
      %v3690 = vadd.f32 %v3686, %v3689
      %vm3691 = vweird.f32 %v2774
      %vm3692 = vweird.f32 %v3686
      %vm3693 = vmor %vm3691, %vm3692
      %v3694 = vsel %vm3693, %v3686, %v3690
      %v3695 = vand.u32 2147483647, %v2774
      %vm3696 = vcmp.eq.f32.partialorder %v3695, 8.507059e+37
      %v3697 = vand.u32 %v2774, 2147483648
      %v3698 = vor.u32 1.1754944e-38, %v3697
      %v3699 = vsel %vm3696, %v3698, %v3694
      %v3700 = vmul.f32 %v1870, %v3699
      %v3701 = vrcp.pop %v2775
      %v3702 = vmul.f32 %v2775, %v3701
      %v3703 = vsub.f32 1.0, %v3702
      %v3704 = vmul.f32 %v3701, %v3703
      %v3705 = vadd.f32 %v3701, %v3704
      %vm3706 = vweird.f32 %v2775
      %vm3707 = vweird.f32 %v3701
      %vm3708 = vmor %vm3706, %vm3707
      %v3709 = vsel %vm3708, %v3701, %v3705
      %v3710 = vand.u32 2147483647, %v2775
      %vm3711 = vcmp.eq.f32.partialorder %v3710, 8.507059e+37
      %v3712 = vand.u32 %v2775, 2147483648
      %v3713 = vor.u32 1.1754944e-38, %v3712
      %v3714 = vsel %vm3711, %v3713, %v3709
      %v3715 = vmul.f32 %v1871, %v3714
      %v3716 = vrcp.pop %v2776
      %v3717 = vmul.f32 %v2776, %v3716
      %v3718 = vsub.f32 1.0, %v3717
      %v3719 = vmul.f32 %v3716, %v3718
      %v3720 = vadd.f32 %v3716, %v3719
      %vm3721 = vweird.f32 %v2776
      %vm3722 = vweird.f32 %v3716
      %vm3723 = vmor %vm3721, %vm3722
      %v3724 = vsel %vm3723, %v3716, %v3720
      %v3725 = vand.u32 2147483647, %v2776
      %vm3726 = vcmp.eq.f32.partialorder %v3725, 8.507059e+37
      %v3727 = vand.u32 %v2776, 2147483648
      %v3728 = vor.u32 1.1754944e-38, %v3727
      %v3729 = vsel %vm3726, %v3728, %v3724
      %v3730 = vmul.f32 %v1872, %v3729
      %v3731 = vrcp.pop %v2777
      %v3732 = vmul.f32 %v2777, %v3731
      %v3733 = vsub.f32 1.0, %v3732
      %v3734 = vmul.f32 %v3731, %v3733
      %v3735 = vadd.f32 %v3731, %v3734
      %vm3736 = vweird.f32 %v2777
      %vm3737 = vweird.f32 %v3731
      %vm3738 = vmor %vm3736, %vm3737
      %v3739 = vsel %vm3738, %v3731, %v3735
      %v3740 = vand.u32 2147483647, %v2777
      %vm3741 = vcmp.eq.f32.partialorder %v3740, 8.507059e+37
      %v3742 = vand.u32 %v2777, 2147483648
      %v3743 = vor.u32 1.1754944e-38, %v3742
      %v3744 = vsel %vm3741, %v3743, %v3739
      %v3745 = vmul.f32 %v1873, %v3744
      %v3746 = vrcp.pop %v2778
      %v3747 = vmul.f32 %v2778, %v3746
      %v3748 = vsub.f32 1.0, %v3747
      %v3749 = vmul.f32 %v3746, %v3748
      %v3750 = vadd.f32 %v3746, %v3749
      %vm3751 = vweird.f32 %v2778
      %vm3752 = vweird.f32 %v3746
      %vm3753 = vmor %vm3751, %vm3752
      %v3754 = vsel %vm3753, %v3746, %v3750
      %v3755 = vand.u32 2147483647, %v2778
      %vm3756 = vcmp.eq.f32.partialorder %v3755, 8.507059e+37
      %v3757 = vand.u32 %v2778, 2147483648
      %v3758 = vor.u32 1.1754944e-38, %v3757
      %v3759 = vsel %vm3756, %v3758, %v3754
      %v3760 = vmul.f32 %v1874, %v3759
      %v3761 = vrcp.pop %v2779
      %v3762 = vmul.f32 %v2779, %v3761
      %v3763 = vsub.f32 1.0, %v3762
      %v3764 = vmul.f32 %v3761, %v3763
      %v3765 = vadd.f32 %v3761, %v3764
      %vm3766 = vweird.f32 %v2779
      %vm3767 = vweird.f32 %v3761
      %vm3768 = vmor %vm3766, %vm3767
      %v3769 = vsel %vm3768, %v3761, %v3765
      %v3770 = vand.u32 2147483647, %v2779
      %vm3771 = vcmp.eq.f32.partialorder %v3770, 8.507059e+37
      %v3772 = vand.u32 %v2779, 2147483648
      %v3773 = vor.u32 1.1754944e-38, %v3772
      %v3774 = vsel %vm3771, %v3773, %v3769
      %v3775 = vmul.f32 %v1875, %v3774
      %v3776 = vrcp.pop %v2780
      %v3777 = vmul.f32 %v2780, %v3776
      %v3778 = vsub.f32 1.0, %v3777
      %v3779 = vmul.f32 %v3776, %v3778
      %v3780 = vadd.f32 %v3776, %v3779
      %vm3781 = vweird.f32 %v2780
      %vm3782 = vweird.f32 %v3776
      %vm3783 = vmor %vm3781, %vm3782
      %v3784 = vsel %vm3783, %v3776, %v3780
      %v3785 = vand.u32 2147483647, %v2780
      %vm3786 = vcmp.eq.f32.partialorder %v3785, 8.507059e+37
      %v3787 = vand.u32 %v2780, 2147483648
      %v3788 = vor.u32 1.1754944e-38, %v3787
      %v3789 = vsel %vm3786, %v3788, %v3784
      %v3790 = vmul.f32 %v1876, %v3789
      %v3791 = vrcp.pop %v2781
      %v3792 = vmul.f32 %v2781, %v3791
      %v3793 = vsub.f32 1.0, %v3792
      %v3794 = vmul.f32 %v3791, %v3793
      %v3795 = vadd.f32 %v3791, %v3794
      %vm3796 = vweird.f32 %v2781
      %vm3797 = vweird.f32 %v3791
      %vm3798 = vmor %vm3796, %vm3797
      %v3799 = vsel %vm3798, %v3791, %v3795
      %v3800 = vand.u32 2147483647, %v2781
      %vm3801 = vcmp.eq.f32.partialorder %v3800, 8.507059e+37
      %v3802 = vand.u32 %v2781, 2147483648
      %v3803 = vor.u32 1.1754944e-38, %v3802
      %v3804 = vsel %vm3801, %v3803, %v3799
      %v3805 = vmul.f32 %v1877, %v3804
      %v3806 = vrcp.pop %v2782
      %v3807 = vmul.f32 %v2782, %v3806
      %v3808 = vsub.f32 1.0, %v3807
      %v3809 = vmul.f32 %v3806, %v3808
      %v3810 = vadd.f32 %v3806, %v3809
      %vm3811 = vweird.f32 %v2782
      %vm3812 = vweird.f32 %v3806
      %vm3813 = vmor %vm3811, %vm3812
      %v3814 = vsel %vm3813, %v3806, %v3810
      %v3815 = vand.u32 2147483647, %v2782
      %vm3816 = vcmp.eq.f32.partialorder %v3815, 8.507059e+37
      %v3817 = vand.u32 %v2782, 2147483648
      %v3818 = vor.u32 1.1754944e-38, %v3817
      %v3819 = vsel %vm3816, %v3818, %v3814
      %v3820 = vmul.f32 %v1878, %v3819
      %v3821 = vrcp.pop %v2783
      %v3822 = vmul.f32 %v2783, %v3821
      %v3823 = vsub.f32 1.0, %v3822
      %v3824 = vmul.f32 %v3821, %v3823
      %v3825 = vadd.f32 %v3821, %v3824
      %vm3826 = vweird.f32 %v2783
      %vm3827 = vweird.f32 %v3821
      %vm3828 = vmor %vm3826, %vm3827
      %v3829 = vsel %vm3828, %v3821, %v3825
      %v3830 = vand.u32 2147483647, %v2783
      %vm3831 = vcmp.eq.f32.partialorder %v3830, 8.507059e+37
      %v3832 = vand.u32 %v2783, 2147483648
      %v3833 = vor.u32 1.1754944e-38, %v3832
      %v3834 = vsel %vm3831, %v3833, %v3829
      %v3835 = vmul.f32 %v1879, %v3834
      %v3836 = vrcp.pop %v2784
      %v3837 = vmul.f32 %v2784, %v3836
      %v3838 = vsub.f32 1.0, %v3837
      %v3839 = vmul.f32 %v3836, %v3838
      %v3840 = vadd.f32 %v3836, %v3839
      %vm3841 = vweird.f32 %v2784
      %vm3842 = vweird.f32 %v3836
      %vm3843 = vmor %vm3841, %vm3842
      %v3844 = vsel %vm3843, %v3836, %v3840
      %v3845 = vand.u32 2147483647, %v2784
      %vm3846 = vcmp.eq.f32.partialorder %v3845, 8.507059e+37
      %v3847 = vand.u32 %v2784, 2147483648
      %v3848 = vor.u32 1.1754944e-38, %v3847
      %v3849 = vsel %vm3846, %v3848, %v3844
      %v3850 = vmul.f32 %v1880, %v3849
      %v3851 = vrcp.pop %v2785
      %v3852 = vmul.f32 %v2785, %v3851
      %v3853 = vsub.f32 1.0, %v3852
      %v3854 = vmul.f32 %v3851, %v3853
      %v3855 = vadd.f32 %v3851, %v3854
      %vm3856 = vweird.f32 %v2785
      %vm3857 = vweird.f32 %v3851
      %vm3858 = vmor %vm3856, %vm3857
      %v3859 = vsel %vm3858, %v3851, %v3855
      %v3860 = vand.u32 2147483647, %v2785
      %vm3861 = vcmp.eq.f32.partialorder %v3860, 8.507059e+37
      %v3862 = vand.u32 %v2785, 2147483648
      %v3863 = vor.u32 1.1754944e-38, %v3862
      %v3864 = vsel %vm3861, %v3863, %v3859
      %v3865 = vmul.f32 %v1881, %v3864
      %v3866 = vrcp.pop %v2786
      %v3867 = vmul.f32 %v2786, %v3866
      %v3868 = vsub.f32 1.0, %v3867
      %v3869 = vmul.f32 %v3866, %v3868
      %v3870 = vadd.f32 %v3866, %v3869
      %vm3871 = vweird.f32 %v2786
      %vm3872 = vweird.f32 %v3866
      %vm3873 = vmor %vm3871, %vm3872
      %v3874 = vsel %vm3873, %v3866, %v3870
      %v3875 = vand.u32 2147483647, %v2786
      %vm3876 = vcmp.eq.f32.partialorder %v3875, 8.507059e+37
      %v3877 = vand.u32 %v2786, 2147483648
      %v3878 = vor.u32 1.1754944e-38, %v3877
      %v3879 = vsel %vm3876, %v3878, %v3874
      %v3880 = vmul.f32 %v1882, %v3879
      %v3881 = vrcp.pop %v2787
      %v3882 = vmul.f32 %v2787, %v3881
      %v3883 = vsub.f32 1.0, %v3882
      %v3884 = vmul.f32 %v3881, %v3883
      %v3885 = vadd.f32 %v3881, %v3884
      %vm3886 = vweird.f32 %v2787
      %vm3887 = vweird.f32 %v3881
      %vm3888 = vmor %vm3886, %vm3887
      %v3889 = vsel %vm3888, %v3881, %v3885
      %v3890 = vand.u32 2147483647, %v2787
      %vm3891 = vcmp.eq.f32.partialorder %v3890, 8.507059e+37
      %v3892 = vand.u32 %v2787, 2147483648
      %v3893 = vor.u32 1.1754944e-38, %v3892
      %v3894 = vsel %vm3891, %v3893, %v3889
      %v3895 = vmul.f32 %v1883, %v3894
      %v3896 = vrcp.pop %v2788
      %v3897 = vmul.f32 %v2788, %v3896
      %v3898 = vsub.f32 1.0, %v3897
      %v3899 = vmul.f32 %v3896, %v3898
      %v3900 = vadd.f32 %v3896, %v3899
      %vm3901 = vweird.f32 %v2788
      %vm3902 = vweird.f32 %v3896
      %vm3903 = vmor %vm3901, %vm3902
      %v3904 = vsel %vm3903, %v3896, %v3900
      %v3905 = vand.u32 2147483647, %v2788
      %vm3906 = vcmp.eq.f32.partialorder %v3905, 8.507059e+37
      %v3907 = vand.u32 %v2788, 2147483648
      %v3908 = vor.u32 1.1754944e-38, %v3907
      %v3909 = vsel %vm3906, %v3908, %v3904
      %v3910 = vmul.f32 %v1884, %v3909
      %v3911 = vrcp.pop %v2789
      %v3912 = vmul.f32 %v2789, %v3911
      %v3913 = vsub.f32 1.0, %v3912
      %v3914 = vmul.f32 %v3911, %v3913
      %v3915 = vadd.f32 %v3911, %v3914
      %vm3916 = vweird.f32 %v2789
      %vm3917 = vweird.f32 %v3911
      %vm3918 = vmor %vm3916, %vm3917
      %v3919 = vsel %vm3918, %v3911, %v3915
      %v3920 = vand.u32 2147483647, %v2789
      %vm3921 = vcmp.eq.f32.partialorder %v3920, 8.507059e+37
      %v3922 = vand.u32 %v2789, 2147483648
      %v3923 = vor.u32 1.1754944e-38, %v3922
      %v3924 = vsel %vm3921, %v3923, %v3919
      %v3925 = vmul.f32 %v1885, %v3924
      %v3926 = vrcp.pop %v2790
      %v3927 = vmul.f32 %v2790, %v3926
      %v3928 = vsub.f32 1.0, %v3927
      %v3929 = vmul.f32 %v3926, %v3928
      %v3930 = vadd.f32 %v3926, %v3929
      %vm3931 = vweird.f32 %v2790
      %vm3932 = vweird.f32 %v3926
      %vm3933 = vmor %vm3931, %vm3932
      %v3934 = vsel %vm3933, %v3926, %v3930
      %v3935 = vand.u32 2147483647, %v2790
      %vm3936 = vcmp.eq.f32.partialorder %v3935, 8.507059e+37
      %v3937 = vand.u32 %v2790, 2147483648
      %v3938 = vor.u32 1.1754944e-38, %v3937
      %v3939 = vsel %vm3936, %v3938, %v3934
      %v3940 = vmul.f32 %v1886, %v3939
      %v3941 = vrcp.pop %v2791
      %v3942 = vmul.f32 %v2791, %v3941
      %v3943 = vsub.f32 1.0, %v3942
      %v3944 = vmul.f32 %v3941, %v3943
      %v3945 = vadd.f32 %v3941, %v3944
      %vm3946 = vweird.f32 %v2791
      %vm3947 = vweird.f32 %v3941
      %vm3948 = vmor %vm3946, %vm3947
      %v3949 = vsel %vm3948, %v3941, %v3945
      %v3950 = vand.u32 2147483647, %v2791
      %vm3951 = vcmp.eq.f32.partialorder %v3950, 8.507059e+37
      %v3952 = vand.u32 %v2791, 2147483648
      %v3953 = vor.u32 1.1754944e-38, %v3952
      %v3954 = vsel %vm3951, %v3953, %v3949
      %v3955 = vmul.f32 %v1887, %v3954
      %v3956 = vrcp.pop %v2792
      %v3957 = vmul.f32 %v2792, %v3956
      %v3958 = vsub.f32 1.0, %v3957
      %v3959 = vmul.f32 %v3956, %v3958
      %v3960 = vadd.f32 %v3956, %v3959
      %vm3961 = vweird.f32 %v2792
      %vm3962 = vweird.f32 %v3956
      %vm3963 = vmor %vm3961, %vm3962
      %v3964 = vsel %vm3963, %v3956, %v3960
      %v3965 = vand.u32 2147483647, %v2792
      %vm3966 = vcmp.eq.f32.partialorder %v3965, 8.507059e+37
      %v3967 = vand.u32 %v2792, 2147483648
      %v3968 = vor.u32 1.1754944e-38, %v3967
      %v3969 = vsel %vm3966, %v3968, %v3964
      %v3970 = vmul.f32 %v1888, %v3969
      %v3971 = vrcp.pop %v2793
      %v3972 = vmul.f32 %v2793, %v3971
      %v3973 = vsub.f32 1.0, %v3972
      %v3974 = vmul.f32 %v3971, %v3973
      %v3975 = vadd.f32 %v3971, %v3974
      %vm3976 = vweird.f32 %v2793
      %vm3977 = vweird.f32 %v3971
      %vm3978 = vmor %vm3976, %vm3977
      %v3979 = vsel %vm3978, %v3971, %v3975
      %v3980 = vand.u32 2147483647, %v2793
      %vm3981 = vcmp.eq.f32.partialorder %v3980, 8.507059e+37
      %v3982 = vand.u32 %v2793, 2147483648
      %v3983 = vor.u32 1.1754944e-38, %v3982
      %v3984 = vsel %vm3981, %v3983, %v3979
      %v3985 = vmul.f32 %v1889, %v3984
      %v3986 = vrcp.pop %v2794
      %v3987 = vmul.f32 %v2794, %v3986
      %v3988 = vsub.f32 1.0, %v3987
      %v3989 = vmul.f32 %v3986, %v3988
      %v3990 = vadd.f32 %v3986, %v3989
      %vm3991 = vweird.f32 %v2794
      %vm3992 = vweird.f32 %v3986
      %vm3993 = vmor %vm3991, %vm3992
      %v3994 = vsel %vm3993, %v3986, %v3990
      %v3995 = vand.u32 2147483647, %v2794
      %vm3996 = vcmp.eq.f32.partialorder %v3995, 8.507059e+37
      %v3997 = vand.u32 %v2794, 2147483648
      %v3998 = vor.u32 1.1754944e-38, %v3997
      %v3999 = vsel %vm3996, %v3998, %v3994
      %v4000 = vmul.f32 %v1890, %v3999
      %v4001 = vrcp.pop %v2795
      %v4002 = vmul.f32 %v2795, %v4001
      %v4003 = vsub.f32 1.0, %v4002
      %v4004 = vmul.f32 %v4001, %v4003
      %v4005 = vadd.f32 %v4001, %v4004
      %vm4006 = vweird.f32 %v2795
      %vm4007 = vweird.f32 %v4001
      %vm4008 = vmor %vm4006, %vm4007
      %v4009 = vsel %vm4008, %v4001, %v4005
      %v4010 = vand.u32 2147483647, %v2795
      %vm4011 = vcmp.eq.f32.partialorder %v4010, 8.507059e+37
      %v4012 = vand.u32 %v2795, 2147483648
      %v4013 = vor.u32 1.1754944e-38, %v4012
      %v4014 = vsel %vm4011, %v4013, %v4009
      %v4015 = vmul.f32 %v1891, %v4014
      %v4016 = vrcp.pop %v2796
      %v4017 = vmul.f32 %v2796, %v4016
      %v4018 = vsub.f32 1.0, %v4017
      %v4019 = vmul.f32 %v4016, %v4018
      %v4020 = vadd.f32 %v4016, %v4019
      %vm4021 = vweird.f32 %v2796
      %vm4022 = vweird.f32 %v4016
      %vm4023 = vmor %vm4021, %vm4022
      %v4024 = vsel %vm4023, %v4016, %v4020
      %v4025 = vand.u32 2147483647, %v2796
      %vm4026 = vcmp.eq.f32.partialorder %v4025, 8.507059e+37
      %v4027 = vand.u32 %v2796, 2147483648
      %v4028 = vor.u32 1.1754944e-38, %v4027
      %v4029 = vsel %vm4026, %v4028, %v4024
      %v4030 = vmul.f32 %v1892, %v4029
      %v4031 = vrcp.pop %v2797
      %v4032 = vmul.f32 %v2797, %v4031
      %v4033 = vsub.f32 1.0, %v4032
      %v4034 = vmul.f32 %v4031, %v4033
      %v4035 = vadd.f32 %v4031, %v4034
      %vm4036 = vweird.f32 %v2797
      %vm4037 = vweird.f32 %v4031
      %vm4038 = vmor %vm4036, %vm4037
      %v4039 = vsel %vm4038, %v4031, %v4035
      %v4040 = vand.u32 2147483647, %v2797
      %vm4041 = vcmp.eq.f32.partialorder %v4040, 8.507059e+37
      %v4042 = vand.u32 %v2797, 2147483648
      %v4043 = vor.u32 1.1754944e-38, %v4042
      %v4044 = vsel %vm4041, %v4043, %v4039
      %v4045 = vmul.f32 %v1893, %v4044
      %v4046 = vrcp.pop %v2798
      %v4047 = vmul.f32 %v2798, %v4046
      %v4048 = vsub.f32 1.0, %v4047
      %v4049 = vmul.f32 %v4046, %v4048
      %v4050 = vadd.f32 %v4046, %v4049
      %vm4051 = vweird.f32 %v2798
      %vm4052 = vweird.f32 %v4046
      %vm4053 = vmor %vm4051, %vm4052
      %v4054 = vsel %vm4053, %v4046, %v4050
      %v4055 = vand.u32 2147483647, %v2798
      %vm4056 = vcmp.eq.f32.partialorder %v4055, 8.507059e+37
      %v4057 = vand.u32 %v2798, 2147483648
      %v4058 = vor.u32 1.1754944e-38, %v4057
      %v4059 = vsel %vm4056, %v4058, %v4054
      %v4060 = vmul.f32 %v1894, %v4059
      %v4061 = vrcp.pop %v2799
      %v4062 = vmul.f32 %v2799, %v4061
      %v4063 = vsub.f32 1.0, %v4062
      %v4064 = vmul.f32 %v4061, %v4063
      %v4065 = vadd.f32 %v4061, %v4064
      %vm4066 = vweird.f32 %v2799
      %vm4067 = vweird.f32 %v4061
      %vm4068 = vmor %vm4066, %vm4067
      %v4069 = vsel %vm4068, %v4061, %v4065
      %v4070 = vand.u32 2147483647, %v2799
      %vm4071 = vcmp.eq.f32.partialorder %v4070, 8.507059e+37
      %v4072 = vand.u32 %v2799, 2147483648
      %v4073 = vor.u32 1.1754944e-38, %v4072
      %v4074 = vsel %vm4071, %v4073, %v4069
      %v4075 = vmul.f32 %v1895, %v4074
      %v4076 = vrcp.pop %v2800
      %v4077 = vmul.f32 %v2800, %v4076
      %v4078 = vsub.f32 1.0, %v4077
      %v4079 = vmul.f32 %v4076, %v4078
      %v4080 = vadd.f32 %v4076, %v4079
      %vm4081 = vweird.f32 %v2800
      %vm4082 = vweird.f32 %v4076
      %vm4083 = vmor %vm4081, %vm4082
      %v4084 = vsel %vm4083, %v4076, %v4080
      %v4085 = vand.u32 2147483647, %v2800
      %vm4086 = vcmp.eq.f32.partialorder %v4085, 8.507059e+37
      %v4087 = vand.u32 %v2800, 2147483648
      %v4088 = vor.u32 1.1754944e-38, %v4087
      %v4089 = vsel %vm4086, %v4088, %v4084
      %v4090 = vmul.f32 %v1896, %v4089
      %v4091 = vrcp.pop %v2801
      %v4092 = vmul.f32 %v2801, %v4091
      %v4093 = vsub.f32 1.0, %v4092
      %v4094 = vmul.f32 %v4091, %v4093
      %v4095 = vadd.f32 %v4091, %v4094
      %vm4096 = vweird.f32 %v2801
      %vm4097 = vweird.f32 %v4091
      %vm4098 = vmor %vm4096, %vm4097
      %v4099 = vsel %vm4098, %v4091, %v4095
      %v4100 = vand.u32 2147483647, %v2801
      %vm4101 = vcmp.eq.f32.partialorder %v4100, 8.507059e+37
      %v4102 = vand.u32 %v2801, 2147483648
      %v4103 = vor.u32 1.1754944e-38, %v4102
      %v4104 = vsel %vm4101, %v4103, %v4099
      %v4105 = vmul.f32 %v1897, %v4104
      %v4106 = vrcp.pop %v2802
      %v4107 = vmul.f32 %v2802, %v4106
      %v4108 = vsub.f32 1.0, %v4107
      %v4109 = vmul.f32 %v4106, %v4108
      %v4110 = vadd.f32 %v4106, %v4109
      %vm4111 = vweird.f32 %v2802
      %vm4112 = vweird.f32 %v4106
      %vm4113 = vmor %vm4111, %vm4112
      %v4114 = vsel %vm4113, %v4106, %v4110
      %v4115 = vand.u32 2147483647, %v2802
      %vm4116 = vcmp.eq.f32.partialorder %v4115, 8.507059e+37
      %v4117 = vand.u32 %v2802, 2147483648
      %v4118 = vor.u32 1.1754944e-38, %v4117
      %v4119 = vsel %vm4116, %v4118, %v4114
      %v4120 = vmul.f32 %v1898, %v4119
      %v4121 = vrcp.pop %v2803
      %v4122 = vmul.f32 %v2803, %v4121
      %v4123 = vsub.f32 1.0, %v4122
      %v4124 = vmul.f32 %v4121, %v4123
      %v4125 = vadd.f32 %v4121, %v4124
      %vm4126 = vweird.f32 %v2803
      %vm4127 = vweird.f32 %v4121
      %vm4128 = vmor %vm4126, %vm4127
      %v4129 = vsel %vm4128, %v4121, %v4125
      %v4130 = vand.u32 2147483647, %v2803
      %vm4131 = vcmp.eq.f32.partialorder %v4130, 8.507059e+37
      %v4132 = vand.u32 %v2803, 2147483648
      %v4133 = vor.u32 1.1754944e-38, %v4132
      %v4134 = vsel %vm4131, %v4133, %v4129
      %v4135 = vmul.f32 %v1899, %v4134
      %v4136 = vrcp.pop %v2804
      %v4137 = vmul.f32 %v2804, %v4136
      %v4138 = vsub.f32 1.0, %v4137
      %v4139 = vmul.f32 %v4136, %v4138
      %v4140 = vadd.f32 %v4136, %v4139
      %vm4141 = vweird.f32 %v2804
      %vm4142 = vweird.f32 %v4136
      %vm4143 = vmor %vm4141, %vm4142
      %v4144 = vsel %vm4143, %v4136, %v4140
      %v4145 = vand.u32 2147483647, %v2804
      %vm4146 = vcmp.eq.f32.partialorder %v4145, 8.507059e+37
      %v4147 = vand.u32 %v2804, 2147483648
      %v4148 = vor.u32 1.1754944e-38, %v4147
      %v4149 = vsel %vm4146, %v4148, %v4144
      %v4150 = vmul.f32 %v1900, %v4149
      %v4151 = vrcp.pop %v2805
      %v4152 = vmul.f32 %v2805, %v4151
      %v4153 = vsub.f32 1.0, %v4152
      %v4154 = vmul.f32 %v4151, %v4153
      %v4155 = vadd.f32 %v4151, %v4154
      %vm4156 = vweird.f32 %v2805
      %vm4157 = vweird.f32 %v4151
      %vm4158 = vmor %vm4156, %vm4157
      %v4159 = vsel %vm4158, %v4151, %v4155
      %v4160 = vand.u32 2147483647, %v2805
      %vm4161 = vcmp.eq.f32.partialorder %v4160, 8.507059e+37
      %v4162 = vand.u32 %v2805, 2147483648
      %v4163 = vor.u32 1.1754944e-38, %v4162
      %v4164 = vsel %vm4161, %v4163, %v4159
      %v4165 = vmul.f32 %v1901, %v4164
      %v4166 = vrcp.pop %v2806
      %v4167 = vmul.f32 %v2806, %v4166
      %v4168 = vsub.f32 1.0, %v4167
      %v4169 = vmul.f32 %v4166, %v4168
      %v4170 = vadd.f32 %v4166, %v4169
      %vm4171 = vweird.f32 %v2806
      %vm4172 = vweird.f32 %v4166
      %vm4173 = vmor %vm4171, %vm4172
      %v4174 = vsel %vm4173, %v4166, %v4170
      %v4175 = vand.u32 2147483647, %v2806
      %vm4176 = vcmp.eq.f32.partialorder %v4175, 8.507059e+37
      %v4177 = vand.u32 %v2806, 2147483648
      %v4178 = vor.u32 1.1754944e-38, %v4177
      %v4179 = vsel %vm4176, %v4178, %v4174
      %v4180 = vmul.f32 %v1902, %v4179
      %v4181 = vrcp.pop %v2807
      %v4182 = vmul.f32 %v2807, %v4181
      %v4183 = vsub.f32 1.0, %v4182
      %v4184 = vmul.f32 %v4181, %v4183
      %v4185 = vadd.f32 %v4181, %v4184
      %vm4186 = vweird.f32 %v2807
      %vm4187 = vweird.f32 %v4181
      %vm4188 = vmor %vm4186, %vm4187
      %v4189 = vsel %vm4188, %v4181, %v4185
      %v4190 = vand.u32 2147483647, %v2807
      %vm4191 = vcmp.eq.f32.partialorder %v4190, 8.507059e+37
      %v4192 = vand.u32 %v2807, 2147483648
      %v4193 = vor.u32 1.1754944e-38, %v4192
      %v4194 = vsel %vm4191, %v4193, %v4189
      %v4195 = vmul.f32 %v1903, %v4194
      %v4196 = vrcp.pop %v2808
      %v4197 = vmul.f32 %v2808, %v4196
      %v4198 = vsub.f32 1.0, %v4197
      %v4199 = vmul.f32 %v4196, %v4198
      %v4200 = vadd.f32 %v4196, %v4199
      %vm4201 = vweird.f32 %v2808
      %vm4202 = vweird.f32 %v4196
      %vm4203 = vmor %vm4201, %vm4202
      %v4204 = vsel %vm4203, %v4196, %v4200
      %v4205 = vand.u32 2147483647, %v2808
      %vm4206 = vcmp.eq.f32.partialorder %v4205, 8.507059e+37
      %v4207 = vand.u32 %v2808, 2147483648
      %v4208 = vor.u32 1.1754944e-38, %v4207
      %v4209 = vsel %vm4206, %v4208, %v4204
      %v4210 = vmul.f32 %v1904, %v4209
      %v4211 = vrcp.pop %v2809
      %v4212 = vmul.f32 %v2809, %v4211
      %v4213 = vsub.f32 1.0, %v4212
      %v4214 = vmul.f32 %v4211, %v4213
      %v4215 = vadd.f32 %v4211, %v4214
      %vm4216 = vweird.f32 %v2809
      %vm4217 = vweird.f32 %v4211
      %vm4218 = vmor %vm4216, %vm4217
      %v4219 = vsel %vm4218, %v4211, %v4215
      %v4220 = vand.u32 2147483647, %v2809
      %vm4221 = vcmp.eq.f32.partialorder %v4220, 8.507059e+37
      %v4222 = vand.u32 %v2809, 2147483648
      %v4223 = vor.u32 1.1754944e-38, %v4222
      %v4224 = vsel %vm4221, %v4223, %v4219
      %v4225 = vmul.f32 %v1905, %v4224
      %v4226 = vrcp.pop %v2810
      %v4227 = vmul.f32 %v2810, %v4226
      %v4228 = vsub.f32 1.0, %v4227
      %v4229 = vmul.f32 %v4226, %v4228
      %v4230 = vadd.f32 %v4226, %v4229
      %vm4231 = vweird.f32 %v2810
      %vm4232 = vweird.f32 %v4226
      %vm4233 = vmor %vm4231, %vm4232
      %v4234 = vsel %vm4233, %v4226, %v4230
      %v4235 = vand.u32 2147483647, %v2810
      %vm4236 = vcmp.eq.f32.partialorder %v4235, 8.507059e+37
      %v4237 = vand.u32 %v2810, 2147483648
      %v4238 = vor.u32 1.1754944e-38, %v4237
      %v4239 = vsel %vm4236, %v4238, %v4234
      %v4240 = vmul.f32 %v1906, %v4239
      %v4241 = vrcp.pop %v2811
      %v4242 = vmul.f32 %v2811, %v4241
      %v4243 = vsub.f32 1.0, %v4242
      %v4244 = vmul.f32 %v4241, %v4243
      %v4245 = vadd.f32 %v4241, %v4244
      %vm4246 = vweird.f32 %v2811
      %vm4247 = vweird.f32 %v4241
      %vm4248 = vmor %vm4246, %vm4247
      %v4249 = vsel %vm4248, %v4241, %v4245
      %v4250 = vand.u32 2147483647, %v2811
      %vm4251 = vcmp.eq.f32.partialorder %v4250, 8.507059e+37
      %v4252 = vand.u32 %v2811, 2147483648
      %v4253 = vor.u32 1.1754944e-38, %v4252
      %v4254 = vsel %vm4251, %v4253, %v4249
      %v4255 = vmul.f32 %v1907, %v4254
      %v4256 = vrcp.pop %v2812
      %v4257 = vmul.f32 %v2812, %v4256
      %v4258 = vsub.f32 1.0, %v4257
      %v4259 = vmul.f32 %v4256, %v4258
      %v4260 = vadd.f32 %v4256, %v4259
      %vm4261 = vweird.f32 %v2812
      %vm4262 = vweird.f32 %v4256
      %vm4263 = vmor %vm4261, %vm4262
      %v4264 = vsel %vm4263, %v4256, %v4260
      %v4265 = vand.u32 2147483647, %v2812
      %vm4266 = vcmp.eq.f32.partialorder %v4265, 8.507059e+37
      %v4267 = vand.u32 %v2812, 2147483648
      %v4268 = vor.u32 1.1754944e-38, %v4267
      %v4269 = vsel %vm4266, %v4268, %v4264
      %v4270 = vmul.f32 %v1908, %v4269
      %v4271 = vrcp.pop %v2813
      %v4272 = vmul.f32 %v2813, %v4271
      %v4273 = vsub.f32 1.0, %v4272
      %v4274 = vmul.f32 %v4271, %v4273
      %v4275 = vadd.f32 %v4271, %v4274
      %vm4276 = vweird.f32 %v2813
      %vm4277 = vweird.f32 %v4271
      %vm4278 = vmor %vm4276, %vm4277
      %v4279 = vsel %vm4278, %v4271, %v4275
      %v4280 = vand.u32 2147483647, %v2813
      %vm4281 = vcmp.eq.f32.partialorder %v4280, 8.507059e+37
      %v4282 = vand.u32 %v2813, 2147483648
      %v4283 = vor.u32 1.1754944e-38, %v4282
      %v4284 = vsel %vm4281, %v4283, %v4279
      %v4285 = vmul.f32 %v1909, %v4284
      %v4286 = vrcp.pop %v2814
      %v4287 = vmul.f32 %v2814, %v4286
      %v4288 = vsub.f32 1.0, %v4287
      %v4289 = vmul.f32 %v4286, %v4288
      %v4290 = vadd.f32 %v4286, %v4289
      %vm4291 = vweird.f32 %v2814
      %vm4292 = vweird.f32 %v4286
      %vm4293 = vmor %vm4291, %vm4292
      %v4294 = vsel %vm4293, %v4286, %v4290
      %v4295 = vand.u32 2147483647, %v2814
      %vm4296 = vcmp.eq.f32.partialorder %v4295, 8.507059e+37
      %v4297 = vand.u32 %v2814, 2147483648
      %v4298 = vor.u32 1.1754944e-38, %v4297
      %v4299 = vsel %vm4296, %v4298, %v4294
      %v4300 = vmul.f32 %v1910, %v4299
      %v4301 = vrcp.pop %v2815
      %v4302 = vmul.f32 %v2815, %v4301
      %v4303 = vsub.f32 1.0, %v4302
      %v4304 = vmul.f32 %v4301, %v4303
      %v4305 = vadd.f32 %v4301, %v4304
      %vm4306 = vweird.f32 %v2815
      %vm4307 = vweird.f32 %v4301
      %vm4308 = vmor %vm4306, %vm4307
      %v4309 = vsel %vm4308, %v4301, %v4305
      %v4310 = vand.u32 2147483647, %v2815
      %vm4311 = vcmp.eq.f32.partialorder %v4310, 8.507059e+37
      %v4312 = vand.u32 %v2815, 2147483648
      %v4313 = vor.u32 1.1754944e-38, %v4312
      %v4314 = vsel %vm4311, %v4313, %v4309
      %v4315 = vmul.f32 %v1911, %v4314
      %v4316 = vrcp.pop %v2816
      %v4317 = vmul.f32 %v2816, %v4316
      %v4318 = vsub.f32 1.0, %v4317
      %v4319 = vmul.f32 %v4316, %v4318
      %v4320 = vadd.f32 %v4316, %v4319
      %vm4321 = vweird.f32 %v2816
      %vm4322 = vweird.f32 %v4316
      %vm4323 = vmor %vm4321, %vm4322
      %v4324 = vsel %vm4323, %v4316, %v4320
      %v4325 = vand.u32 2147483647, %v2816
      %vm4326 = vcmp.eq.f32.partialorder %v4325, 8.507059e+37
      %v4327 = vand.u32 %v2816, 2147483648
      %v4328 = vor.u32 1.1754944e-38, %v4327
      %v4329 = vsel %vm4326, %v4328, %v4324
      %v4330 = vmul.f32 %v1912, %v4329
      %v4331 = vrcp.pop %v2817
      %v4332 = vmul.f32 %v2817, %v4331
      %v4333 = vsub.f32 1.0, %v4332
      %v4334 = vmul.f32 %v4331, %v4333
      %v4335 = vadd.f32 %v4331, %v4334
      %vm4336 = vweird.f32 %v2817
      %vm4337 = vweird.f32 %v4331
      %vm4338 = vmor %vm4336, %vm4337
      %v4339 = vsel %vm4338, %v4331, %v4335
      %v4340 = vand.u32 2147483647, %v2817
      %vm4341 = vcmp.eq.f32.partialorder %v4340, 8.507059e+37
      %v4342 = vand.u32 %v2817, 2147483648
      %v4343 = vor.u32 1.1754944e-38, %v4342
      %v4344 = vsel %vm4341, %v4343, %v4339
      %v4345 = vmul.f32 %v1913, %v4344
      %v4346 = vrcp.pop %v2818
      %v4347 = vmul.f32 %v2818, %v4346
      %v4348 = vsub.f32 1.0, %v4347
      %v4349 = vmul.f32 %v4346, %v4348
      %v4350 = vadd.f32 %v4346, %v4349
      %vm4351 = vweird.f32 %v2818
      %vm4352 = vweird.f32 %v4346
      %vm4353 = vmor %vm4351, %vm4352
      %v4354 = vsel %vm4353, %v4346, %v4350
      %v4355 = vand.u32 2147483647, %v2818
      %vm4356 = vcmp.eq.f32.partialorder %v4355, 8.507059e+37
      %v4357 = vand.u32 %v2818, 2147483648
      %v4358 = vor.u32 1.1754944e-38, %v4357
      %v4359 = vsel %vm4356, %v4358, %v4354
      %v4360 = vmul.f32 %v1914, %v4359
      %v4361 = vrcp.pop %v2819
      %v4362 = vmul.f32 %v2819, %v4361
      %v4363 = vsub.f32 1.0, %v4362
      %v4364 = vmul.f32 %v4361, %v4363
      %v4365 = vadd.f32 %v4361, %v4364
      %vm4366 = vweird.f32 %v2819
      %vm4367 = vweird.f32 %v4361
      %vm4368 = vmor %vm4366, %vm4367
      %v4369 = vsel %vm4368, %v4361, %v4365
      %v4370 = vand.u32 2147483647, %v2819
      %vm4371 = vcmp.eq.f32.partialorder %v4370, 8.507059e+37
      %v4372 = vand.u32 %v2819, 2147483648
      %v4373 = vor.u32 1.1754944e-38, %v4372
      %v4374 = vsel %vm4371, %v4373, %v4369
      %v4375 = vmul.f32 %v1915, %v4374
      %v4376 = vrcp.pop %v2820
      %v4377 = vmul.f32 %v2820, %v4376
      %v4378 = vsub.f32 1.0, %v4377
      %v4379 = vmul.f32 %v4376, %v4378
      %v4380 = vadd.f32 %v4376, %v4379
      %vm4381 = vweird.f32 %v2820
      %vm4382 = vweird.f32 %v4376
      %vm4383 = vmor %vm4381, %vm4382
      %v4384 = vsel %vm4383, %v4376, %v4380
      %v4385 = vand.u32 2147483647, %v2820
      %vm4386 = vcmp.eq.f32.partialorder %v4385, 8.507059e+37
      %v4387 = vand.u32 %v2820, 2147483648
      %v4388 = vor.u32 1.1754944e-38, %v4387
      %v4389 = vsel %vm4386, %v4388, %v4384
      %v4390 = vmul.f32 %v1916, %v4389
      %v4391 = vrcp.pop %v2821
      %v4392 = vmul.f32 %v2821, %v4391
      %v4393 = vsub.f32 1.0, %v4392
      %v4394 = vmul.f32 %v4391, %v4393
      %v4395 = vadd.f32 %v4391, %v4394
      %vm4396 = vweird.f32 %v2821
      %vm4397 = vweird.f32 %v4391
      %vm4398 = vmor %vm4396, %vm4397
      %v4399 = vsel %vm4398, %v4391, %v4395
      %v4400 = vand.u32 2147483647, %v2821
      %vm4401 = vcmp.eq.f32.partialorder %v4400, 8.507059e+37
      %v4402 = vand.u32 %v2821, 2147483648
      %v4403 = vor.u32 1.1754944e-38, %v4402
      %v4404 = vsel %vm4401, %v4403, %v4399
      %v4405 = vmul.f32 %v1917, %v4404
      %v4406 = vrcp.pop %v2822
      %v4407 = vmul.f32 %v2822, %v4406
      %v4408 = vsub.f32 1.0, %v4407
      %v4409 = vmul.f32 %v4406, %v4408
      %v4410 = vadd.f32 %v4406, %v4409
      %vm4411 = vweird.f32 %v2822
      %vm4412 = vweird.f32 %v4406
      %vm4413 = vmor %vm4411, %vm4412
      %v4414 = vsel %vm4413, %v4406, %v4410
      %v4415 = vand.u32 2147483647, %v2822
      %vm4416 = vcmp.eq.f32.partialorder %v4415, 8.507059e+37
      %v4417 = vand.u32 %v2822, 2147483648
      %v4418 = vor.u32 1.1754944e-38, %v4417
      %v4419 = vsel %vm4416, %v4418, %v4414
      %v4420 = vmul.f32 %v1918, %v4419
      %v4421 = vrcp.pop %v2823
      %v4422 = vmul.f32 %v2823, %v4421
      %v4423 = vsub.f32 1.0, %v4422
      %v4424 = vmul.f32 %v4421, %v4423
      %v4425 = vadd.f32 %v4421, %v4424
      %vm4426 = vweird.f32 %v2823
      %vm4427 = vweird.f32 %v4421
      %vm4428 = vmor %vm4426, %vm4427
      %v4429 = vsel %vm4428, %v4421, %v4425
      %v4430 = vand.u32 2147483647, %v2823
      %vm4431 = vcmp.eq.f32.partialorder %v4430, 8.507059e+37
      %v4432 = vand.u32 %v2823, 2147483648
      %v4433 = vor.u32 1.1754944e-38, %v4432
      %v4434 = vsel %vm4431, %v4433, %v4429
      %v4435 = vmul.f32 %v1919, %v4434
      %v4436 = vrcp.pop %v2824
      %v4437 = vmul.f32 %v2824, %v4436
      %v4438 = vsub.f32 1.0, %v4437
      %v4439 = vmul.f32 %v4436, %v4438
      %v4440 = vadd.f32 %v4436, %v4439
      %vm4441 = vweird.f32 %v2824
      %vm4442 = vweird.f32 %v4436
      %vm4443 = vmor %vm4441, %vm4442
      %v4444 = vsel %vm4443, %v4436, %v4440
      %v4445 = vand.u32 2147483647, %v2824
      %vm4446 = vcmp.eq.f32.partialorder %v4445, 8.507059e+37
      %v4447 = vand.u32 %v2824, 2147483648
      %v4448 = vor.u32 1.1754944e-38, %v4447
      %v4449 = vsel %vm4446, %v4448, %v4444
      %v4450 = vmul.f32 %v1920, %v4449
      %v4451 = vrcp.pop %v2825
      %v4452 = vmul.f32 %v2825, %v4451
      %v4453 = vsub.f32 1.0, %v4452
      %v4454 = vmul.f32 %v4451, %v4453
      %v4455 = vadd.f32 %v4451, %v4454
      %vm4456 = vweird.f32 %v2825
      %vm4457 = vweird.f32 %v4451
      %vm4458 = vmor %vm4456, %vm4457
      %v4459 = vsel %vm4458, %v4451, %v4455
      %v4460 = vand.u32 2147483647, %v2825
      %vm4461 = vcmp.eq.f32.partialorder %v4460, 8.507059e+37
      %v4462 = vand.u32 %v2825, 2147483648
      %v4463 = vor.u32 1.1754944e-38, %v4462
      %v4464 = vsel %vm4461, %v4463, %v4459
      %v4465 = vmul.f32 %v1921, %v4464
      %v4466 = vrcp.pop %v2826
      %v4467 = vmul.f32 %v2826, %v4466
      %v4468 = vsub.f32 1.0, %v4467
      %v4469 = vmul.f32 %v4466, %v4468
      %v4470 = vadd.f32 %v4466, %v4469
      %vm4471 = vweird.f32 %v2826
      %vm4472 = vweird.f32 %v4466
      %vm4473 = vmor %vm4471, %vm4472
      %v4474 = vsel %vm4473, %v4466, %v4470
      %v4475 = vand.u32 2147483647, %v2826
      %vm4476 = vcmp.eq.f32.partialorder %v4475, 8.507059e+37
      %v4477 = vand.u32 %v2826, 2147483648
      %v4478 = vor.u32 1.1754944e-38, %v4477
      %v4479 = vsel %vm4476, %v4478, %v4474
      %v4480 = vmul.f32 %v1922, %v4479
      %v4481 = vrcp.pop %v2827
      %v4482 = vmul.f32 %v2827, %v4481
      %v4483 = vsub.f32 1.0, %v4482
      %v4484 = vmul.f32 %v4481, %v4483
      %v4485 = vadd.f32 %v4481, %v4484
      %vm4486 = vweird.f32 %v2827
      %vm4487 = vweird.f32 %v4481
      %vm4488 = vmor %vm4486, %vm4487
      %v4489 = vsel %vm4488, %v4481, %v4485
      %v4490 = vand.u32 2147483647, %v2827
      %vm4491 = vcmp.eq.f32.partialorder %v4490, 8.507059e+37
      %v4492 = vand.u32 %v2827, 2147483648
      %v4493 = vor.u32 1.1754944e-38, %v4492
      %v4494 = vsel %vm4491, %v4493, %v4489
      %v4495 = vmul.f32 %v1923, %v4494
      %v4496 = vrcp.pop %v2828
      %v4497 = vmul.f32 %v2828, %v4496
      %v4498 = vsub.f32 1.0, %v4497
      %v4499 = vmul.f32 %v4496, %v4498
      %v4500 = vadd.f32 %v4496, %v4499
      %vm4501 = vweird.f32 %v2828
      %vm4502 = vweird.f32 %v4496
      %vm4503 = vmor %vm4501, %vm4502
      %v4504 = vsel %vm4503, %v4496, %v4500
      %v4505 = vand.u32 2147483647, %v2828
      %vm4506 = vcmp.eq.f32.partialorder %v4505, 8.507059e+37
      %v4507 = vand.u32 %v2828, 2147483648
      %v4508 = vor.u32 1.1754944e-38, %v4507
      %v4509 = vsel %vm4506, %v4508, %v4504
      %v4510 = vmul.f32 %v1924, %v4509
      %v4511 = vrcp.pop %v2829
      %v4512 = vmul.f32 %v2829, %v4511
      %v4513 = vsub.f32 1.0, %v4512
      %v4514 = vmul.f32 %v4511, %v4513
      %v4515 = vadd.f32 %v4511, %v4514
      %vm4516 = vweird.f32 %v2829
      %vm4517 = vweird.f32 %v4511
      %vm4518 = vmor %vm4516, %vm4517
      %v4519 = vsel %vm4518, %v4511, %v4515
      %v4520 = vand.u32 2147483647, %v2829
      %vm4521 = vcmp.eq.f32.partialorder %v4520, 8.507059e+37
      %v4522 = vand.u32 %v2829, 2147483648
      %v4523 = vor.u32 1.1754944e-38, %v4522
      %v4524 = vsel %vm4521, %v4523, %v4519
      %v4525 = vmul.f32 %v1925, %v4524
      %v4526 = vrcp.pop %v2830
      %v4527 = vmul.f32 %v2830, %v4526
      %v4528 = vsub.f32 1.0, %v4527
      %v4529 = vmul.f32 %v4526, %v4528
      %v4530 = vadd.f32 %v4526, %v4529
      %vm4531 = vweird.f32 %v2830
      %vm4532 = vweird.f32 %v4526
      %vm4533 = vmor %vm4531, %vm4532
      %v4534 = vsel %vm4533, %v4526, %v4530
      %v4535 = vand.u32 2147483647, %v2830
      %vm4536 = vcmp.eq.f32.partialorder %v4535, 8.507059e+37
      %v4537 = vand.u32 %v2830, 2147483648
      %v4538 = vor.u32 1.1754944e-38, %v4537
      %v4539 = vsel %vm4536, %v4538, %v4534
      %v4540 = vmul.f32 %v1926, %v4539
      %v4541 = vrcp.pop %v2831
      %v4542 = vmul.f32 %v2831, %v4541
      %v4543 = vsub.f32 1.0, %v4542
      %v4544 = vmul.f32 %v4541, %v4543
      %v4545 = vadd.f32 %v4541, %v4544
      %vm4546 = vweird.f32 %v2831
      %vm4547 = vweird.f32 %v4541
      %vm4548 = vmor %vm4546, %vm4547
      %v4549 = vsel %vm4548, %v4541, %v4545
      %v4550 = vand.u32 2147483647, %v2831
      %vm4551 = vcmp.eq.f32.partialorder %v4550, 8.507059e+37
      %v4552 = vand.u32 %v2831, 2147483648
      %v4553 = vor.u32 1.1754944e-38, %v4552
      %v4554 = vsel %vm4551, %v4553, %v4549
      %v4555 = vmul.f32 %v1927, %v4554
      %v4556 = vrcp.pop %v2832
      %v4557 = vmul.f32 %v2832, %v4556
      %v4558 = vsub.f32 1.0, %v4557
      %v4559 = vmul.f32 %v4556, %v4558
      %v4560 = vadd.f32 %v4556, %v4559
      %vm4561 = vweird.f32 %v2832
      %vm4562 = vweird.f32 %v4556
      %vm4563 = vmor %vm4561, %vm4562
      %v4564 = vsel %vm4563, %v4556, %v4560
      %v4565 = vand.u32 2147483647, %v2832
      %vm4566 = vcmp.eq.f32.partialorder %v4565, 8.507059e+37
      %v4567 = vand.u32 %v2832, 2147483648
      %v4568 = vor.u32 1.1754944e-38, %v4567
      %v4569 = vsel %vm4566, %v4568, %v4564
      %v4570 = vmul.f32 %v1928, %v4569
      %v4571 = vrcp.pop %v2833
      %v4572 = vmul.f32 %v2833, %v4571
      %v4573 = vsub.f32 1.0, %v4572
      %v4574 = vmul.f32 %v4571, %v4573
      %v4575 = vadd.f32 %v4571, %v4574
      %vm4576 = vweird.f32 %v2833
      %vm4577 = vweird.f32 %v4571
      %vm4578 = vmor %vm4576, %vm4577
      %v4579 = vsel %vm4578, %v4571, %v4575
      %v4580 = vand.u32 2147483647, %v2833
      %vm4581 = vcmp.eq.f32.partialorder %v4580, 8.507059e+37
      %v4582 = vand.u32 %v2833, 2147483648
      %v4583 = vor.u32 1.1754944e-38, %v4582
      %v4584 = vsel %vm4581, %v4583, %v4579
      %v4585 = vmul.f32 %v1929, %v4584
      %v4586 = vrcp.pop %v2834
      %v4587 = vmul.f32 %v2834, %v4586
      %v4588 = vsub.f32 1.0, %v4587
      %v4589 = vmul.f32 %v4586, %v4588
      %v4590 = vadd.f32 %v4586, %v4589
      %vm4591 = vweird.f32 %v2834
      %vm4592 = vweird.f32 %v4586
      %vm4593 = vmor %vm4591, %vm4592
      %v4594 = vsel %vm4593, %v4586, %v4590
      %v4595 = vand.u32 2147483647, %v2834
      %vm4596 = vcmp.eq.f32.partialorder %v4595, 8.507059e+37
      %v4597 = vand.u32 %v2834, 2147483648
      %v4598 = vor.u32 1.1754944e-38, %v4597
      %v4599 = vsel %vm4596, %v4598, %v4594
      %v4600 = vmul.f32 %v1930, %v4599
      %v4601 = vrcp.pop %v2835
      %v4602 = vmul.f32 %v2835, %v4601
      %v4603 = vsub.f32 1.0, %v4602
      %v4604 = vmul.f32 %v4601, %v4603
      %v4605 = vadd.f32 %v4601, %v4604
      %vm4606 = vweird.f32 %v2835
      %vm4607 = vweird.f32 %v4601
      %vm4608 = vmor %vm4606, %vm4607
      %v4609 = vsel %vm4608, %v4601, %v4605
      %v4610 = vand.u32 2147483647, %v2835
      %vm4611 = vcmp.eq.f32.partialorder %v4610, 8.507059e+37
      %v4612 = vand.u32 %v2835, 2147483648
      %v4613 = vor.u32 1.1754944e-38, %v4612
      %v4614 = vsel %vm4611, %v4613, %v4609
      %v4615 = vmul.f32 %v1931, %v4614
      %v4616 = vrcp.pop %v2836
      %v4617 = vmul.f32 %v2836, %v4616
      %v4618 = vsub.f32 1.0, %v4617
      %v4619 = vmul.f32 %v4616, %v4618
      %v4620 = vadd.f32 %v4616, %v4619
      %vm4621 = vweird.f32 %v2836
      %vm4622 = vweird.f32 %v4616
      %vm4623 = vmor %vm4621, %vm4622
      %v4624 = vsel %vm4623, %v4616, %v4620
      %v4625 = vand.u32 2147483647, %v2836
      %vm4626 = vcmp.eq.f32.partialorder %v4625, 8.507059e+37
      %v4627 = vand.u32 %v2836, 2147483648
      %v4628 = vor.u32 1.1754944e-38, %v4627
      %v4629 = vsel %vm4626, %v4628, %v4624
      %v4630 = vmul.f32 %v1932, %v4629
      %v4631 = vrcp.pop %v2837
      %v4632 = vmul.f32 %v2837, %v4631
      %v4633 = vsub.f32 1.0, %v4632
      %v4634 = vmul.f32 %v4631, %v4633
      %v4635 = vadd.f32 %v4631, %v4634
      %vm4636 = vweird.f32 %v2837
      %vm4637 = vweird.f32 %v4631
      %vm4638 = vmor %vm4636, %vm4637
      %v4639 = vsel %vm4638, %v4631, %v4635
      %v4640 = vand.u32 2147483647, %v2837
      %vm4641 = vcmp.eq.f32.partialorder %v4640, 8.507059e+37
      %v4642 = vand.u32 %v2837, 2147483648
      %v4643 = vor.u32 1.1754944e-38, %v4642
      %v4644 = vsel %vm4641, %v4643, %v4639
      %v4645 = vmul.f32 %v1933, %v4644
      %v4646 = vrcp.pop %v2838
      %v4647 = vmul.f32 %v2838, %v4646
      %v4648 = vsub.f32 1.0, %v4647
      %v4649 = vmul.f32 %v4646, %v4648
      %v4650 = vadd.f32 %v4646, %v4649
      %vm4651 = vweird.f32 %v2838
      %vm4652 = vweird.f32 %v4646
      %vm4653 = vmor %vm4651, %vm4652
      %v4654 = vsel %vm4653, %v4646, %v4650
      %v4655 = vand.u32 2147483647, %v2838
      %vm4656 = vcmp.eq.f32.partialorder %v4655, 8.507059e+37
      %v4657 = vand.u32 %v2838, 2147483648
      %v4658 = vor.u32 1.1754944e-38, %v4657
      %v4659 = vsel %vm4656, %v4658, %v4654
      %v4660 = vmul.f32 %v1934, %v4659
      %v4661 = vrcp.pop %v2839
      %v4662 = vmul.f32 %v2839, %v4661
      %v4663 = vsub.f32 1.0, %v4662
      %v4664 = vmul.f32 %v4661, %v4663
      %v4665 = vadd.f32 %v4661, %v4664
      %vm4666 = vweird.f32 %v2839
      %vm4667 = vweird.f32 %v4661
      %vm4668 = vmor %vm4666, %vm4667
      %v4669 = vsel %vm4668, %v4661, %v4665
      %v4670 = vand.u32 2147483647, %v2839
      %vm4671 = vcmp.eq.f32.partialorder %v4670, 8.507059e+37
      %v4672 = vand.u32 %v2839, 2147483648
      %v4673 = vor.u32 1.1754944e-38, %v4672
      %v4674 = vsel %vm4671, %v4673, %v4669
      %v4675 = vmul.f32 %v1935, %v4674
      %v4676 = vrcp.pop %v2840
      %v4677 = vmul.f32 %v2840, %v4676
      %v4678 = vsub.f32 1.0, %v4677
      %v4679 = vmul.f32 %v4676, %v4678
      %v4680 = vadd.f32 %v4676, %v4679
      %vm4681 = vweird.f32 %v2840
      %vm4682 = vweird.f32 %v4676
      %vm4683 = vmor %vm4681, %vm4682
      %v4684 = vsel %vm4683, %v4676, %v4680
      %v4685 = vand.u32 2147483647, %v2840
      %vm4686 = vcmp.eq.f32.partialorder %v4685, 8.507059e+37
      %v4687 = vand.u32 %v2840, 2147483648
      %v4688 = vor.u32 1.1754944e-38, %v4687
      %v4689 = vsel %vm4686, %v4688, %v4684
      %v4690 = vmul.f32 %v1936, %v4689
      %v4691 = vrcp.pop %v2841
      %v4692 = vmul.f32 %v2841, %v4691
      %v4693 = vsub.f32 1.0, %v4692
      %v4694 = vmul.f32 %v4691, %v4693
      %v4695 = vadd.f32 %v4691, %v4694
      %vm4696 = vweird.f32 %v2841
      %vm4697 = vweird.f32 %v4691
      %vm4698 = vmor %vm4696, %vm4697
      %v4699 = vsel %vm4698, %v4691, %v4695
      %v4700 = vand.u32 2147483647, %v2841
      %vm4701 = vcmp.eq.f32.partialorder %v4700, 8.507059e+37
      %v4702 = vand.u32 %v2841, 2147483648
      %v4703 = vor.u32 1.1754944e-38, %v4702
      %v4704 = vsel %vm4701, %v4703, %v4699
      %v4705 = vmul.f32 %v1937, %v4704
      %v4706 = vrcp.pop %v2842
      %v4707 = vmul.f32 %v2842, %v4706
      %v4708 = vsub.f32 1.0, %v4707
      %v4709 = vmul.f32 %v4706, %v4708
      %v4710 = vadd.f32 %v4706, %v4709
      %vm4711 = vweird.f32 %v2842
      %vm4712 = vweird.f32 %v4706
      %vm4713 = vmor %vm4711, %vm4712
      %v4714 = vsel %vm4713, %v4706, %v4710
      %v4715 = vand.u32 2147483647, %v2842
      %vm4716 = vcmp.eq.f32.partialorder %v4715, 8.507059e+37
      %v4717 = vand.u32 %v2842, 2147483648
      %v4718 = vor.u32 1.1754944e-38, %v4717
      %v4719 = vsel %vm4716, %v4718, %v4714
      %v4720 = vmul.f32 %v1938, %v4719
      %v4721 = vrcp.pop %v2843
      %v4722 = vmul.f32 %v2843, %v4721
      %v4723 = vsub.f32 1.0, %v4722
      %v4724 = vmul.f32 %v4721, %v4723
      %v4725 = vadd.f32 %v4721, %v4724
      %vm4726 = vweird.f32 %v2843
      %vm4727 = vweird.f32 %v4721
      %vm4728 = vmor %vm4726, %vm4727
      %v4729 = vsel %vm4728, %v4721, %v4725
      %v4730 = vand.u32 2147483647, %v2843
      %vm4731 = vcmp.eq.f32.partialorder %v4730, 8.507059e+37
      %v4732 = vand.u32 %v2843, 2147483648
      %v4733 = vor.u32 1.1754944e-38, %v4732
      %v4734 = vsel %vm4731, %v4733, %v4729
      %v4735 = vmul.f32 %v1939, %v4734
      %v4736 = vrcp.pop %v2844
      %v4737 = vmul.f32 %v2844, %v4736
      %v4738 = vsub.f32 1.0, %v4737
      %v4739 = vmul.f32 %v4736, %v4738
      %v4740 = vadd.f32 %v4736, %v4739
      %vm4741 = vweird.f32 %v2844
      %vm4742 = vweird.f32 %v4736
      %vm4743 = vmor %vm4741, %vm4742
      %v4744 = vsel %vm4743, %v4736, %v4740
      %v4745 = vand.u32 2147483647, %v2844
      %vm4746 = vcmp.eq.f32.partialorder %v4745, 8.507059e+37
      %v4747 = vand.u32 %v2844, 2147483648
      %v4748 = vor.u32 1.1754944e-38, %v4747
      %v4749 = vsel %vm4746, %v4748, %v4744
      %v4750 = vmul.f32 %v1940, %v4749
      %v4751 = vrcp.pop %v2845
      %v4752 = vmul.f32 %v2845, %v4751
      %v4753 = vsub.f32 1.0, %v4752
      %v4754 = vmul.f32 %v4751, %v4753
      %v4755 = vadd.f32 %v4751, %v4754
      %vm4756 = vweird.f32 %v2845
      %vm4757 = vweird.f32 %v4751
      %vm4758 = vmor %vm4756, %vm4757
      %v4759 = vsel %vm4758, %v4751, %v4755
      %v4760 = vand.u32 2147483647, %v2845
      %vm4761 = vcmp.eq.f32.partialorder %v4760, 8.507059e+37
      %v4762 = vand.u32 %v2845, 2147483648
      %v4763 = vor.u32 1.1754944e-38, %v4762
      %v4764 = vsel %vm4761, %v4763, %v4759
      %v4765 = vmul.f32 %v1941, %v4764
      %s4766 = smul.u32 %s17, 256
      %v4767 = vlaneseq
      %v4768 = vshrl.u32 %v4767, 7
      %v4769 = vadd.s32 %v4768, 8
      %v4770 = vadd.s32 %v4768, 16
      %v4771 = vadd.s32 %v4768, 24
      %v4772 = vadd.s32 %v4768, 32
      %v4773 = vadd.s32 %v4768, 40
      %v4774 = vadd.s32 %v4768, 48
      %v4775 = vadd.s32 %v4768, 56
      %v4776 = vadd.s32 %v4768, 64
      %v4777 = vadd.s32 %v4768, 72
      %v4778 = vadd.s32 %v4768, 80
      %v4779 = vadd.s32 %v4768, 88
      %v4780 = vadd.s32 %v4768, 96
      %v4781 = vadd.s32 %v4768, 104
      %v4782 = vadd.s32 %v4768, 112
      %v4783 = vadd.s32 %v4768, 120
      %v4784 = vadd.s32 %v4768, 128
      %v4785 = vadd.s32 %v4768, 136
      %v4786 = vadd.s32 %v4768, 144
      %v4787 = vadd.s32 %v4768, 152
      %v4788 = vadd.s32 %v4768, 160
      %v4789 = vadd.s32 %v4768, 168
      %v4790 = vadd.s32 %v4768, 176
      %v4791 = vadd.s32 %v4768, 184
      %v4792 = vadd.s32 %v4768, 192
      %v4793 = vadd.s32 %v4768, 200
      %v4794 = vadd.s32 %v4768, 208
      %v4795 = vadd.s32 %v4768, 216
      %v4796 = vadd.s32 %v4768, 224
      %v4797 = vadd.s32 %v4768, 232
      %v4798 = vadd.s32 %v4768, 240
      %v4799 = vadd.s32 %v4768, 248
      %v4800 = vstv %s4766
      %v4801 = vadd.s32 %v4800, %v4768
      %v4802 = vadd.s32 %v4800, %v4769
      %v4803 = vadd.s32 %v4800, %v4770
      %v4804 = vadd.s32 %v4800, %v4771
      %v4805 = vadd.s32 %v4800, %v4772
      %v4806 = vadd.s32 %v4800, %v4773
      %v4807 = vadd.s32 %v4800, %v4774
      %v4808 = vadd.s32 %v4800, %v4775
      %v4809 = vadd.s32 %v4800, %v4776
      %v4810 = vadd.s32 %v4800, %v4777
      %v4811 = vadd.s32 %v4800, %v4778
      %v4812 = vadd.s32 %v4800, %v4779
      %v4813 = vadd.s32 %v4800, %v4780
      %v4814 = vadd.s32 %v4800, %v4781
      %v4815 = vadd.s32 %v4800, %v4782
      %v4816 = vadd.s32 %v4800, %v4783
      %v4817 = vadd.s32 %v4800, %v4784
      %v4818 = vadd.s32 %v4800, %v4785
      %v4819 = vadd.s32 %v4800, %v4786
      %v4820 = vadd.s32 %v4800, %v4787
      %v4821 = vadd.s32 %v4800, %v4788
      %v4822 = vadd.s32 %v4800, %v4789
      %v4823 = vadd.s32 %v4800, %v4790
      %v4824 = vadd.s32 %v4800, %v4791
      %v4825 = vadd.s32 %v4800, %v4792
      %v4826 = vadd.s32 %v4800, %v4793
      %v4827 = vadd.s32 %v4800, %v4794
      %v4828 = vadd.s32 %v4800, %v4795
      %v4829 = vadd.s32 %v4800, %v4796
      %v4830 = vadd.s32 %v4800, %v4797
      %v4831 = vadd.s32 %v4800, %v4798
      %v4832 = vadd.s32 %v4800, %v4799
      %s4833 = smul.u32 %s18, 512
      %v4834 = vlaneseq
      %v4835 = vand.u32 %v4834, 127
      %v4836 = vadd.s32 %v4835, 128
      %v4837 = vadd.s32 %v4835, 256
      %v4838 = vadd.s32 %v4835, 384
      %v4839 = vstv %s4833
      %v4840 = vadd.s32 %v4839, %v4835
      %v4841 = vadd.s32 %v4839, %v4836
      %v4842 = vadd.s32 %v4839, %v4837
      %v4843 = vadd.s32 %v4839, %v4838
      %vm4844 = vcmp.gt.f32.partialorder %v2860, 0.5
      %vm4845 = vcmp.gt.f32.partialorder %v2875, 0.5
      %vm4846 = vcmp.gt.f32.partialorder %v2890, 0.5
      %vm4847 = vcmp.gt.f32.partialorder %v2905, 0.5
      %vm4848 = vcmp.gt.f32.partialorder %v2920, 0.5
      %vm4849 = vcmp.gt.f32.partialorder %v2935, 0.5
      %vm4850 = vcmp.gt.f32.partialorder %v2950, 0.5
      %vm4851 = vcmp.gt.f32.partialorder %v2965, 0.5
      %vm4852 = vcmp.gt.f32.partialorder %v2980, 0.5
      %vm4853 = vcmp.gt.f32.partialorder %v2995, 0.5
      %vm4854 = vcmp.gt.f32.partialorder %v3010, 0.5
      %vm4855 = vcmp.gt.f32.partialorder %v3025, 0.5
      %vm4856 = vcmp.gt.f32.partialorder %v3040, 0.5
      %vm4857 = vcmp.gt.f32.partialorder %v3055, 0.5
      %vm4858 = vcmp.gt.f32.partialorder %v3070, 0.5
      %vm4859 = vcmp.gt.f32.partialorder %v3085, 0.5
      %vm4860 = vcmp.gt.f32.partialorder %v3100, 0.5
      %vm4861 = vcmp.gt.f32.partialorder %v3115, 0.5
      %vm4862 = vcmp.gt.f32.partialorder %v3130, 0.5
      %vm4863 = vcmp.gt.f32.partialorder %v3145, 0.5
      %vm4864 = vcmp.gt.f32.partialorder %v3160, 0.5
      %vm4865 = vcmp.gt.f32.partialorder %v3175, 0.5
      %vm4866 = vcmp.gt.f32.partialorder %v3190, 0.5
      %vm4867 = vcmp.gt.f32.partialorder %v3205, 0.5
      %vm4868 = vcmp.gt.f32.partialorder %v3220, 0.5
      %vm4869 = vcmp.gt.f32.partialorder %v3235, 0.5
      %vm4870 = vcmp.gt.f32.partialorder %v3250, 0.5
      %vm4871 = vcmp.gt.f32.partialorder %v3265, 0.5
      %vm4872 = vcmp.gt.f32.partialorder %v3280, 0.5
      %vm4873 = vcmp.gt.f32.partialorder %v3295, 0.5
      %vm4874 = vcmp.gt.f32.partialorder %v3310, 0.5
      %vm4875 = vcmp.gt.f32.partialorder %v3325, 0.5
      %vm4876 = vcmp.gt.f32.partialorder %v3340, 0.5
      %vm4877 = vcmp.gt.f32.partialorder %v3355, 0.5
      %vm4878 = vcmp.gt.f32.partialorder %v3370, 0.5
      %vm4879 = vcmp.gt.f32.partialorder %v3385, 0.5
      %vm4880 = vcmp.gt.f32.partialorder %v3400, 0.5
      %vm4881 = vcmp.gt.f32.partialorder %v3415, 0.5
      %vm4882 = vcmp.gt.f32.partialorder %v3430, 0.5
      %vm4883 = vcmp.gt.f32.partialorder %v3445, 0.5
      %vm4884 = vcmp.gt.f32.partialorder %v3460, 0.5
      %vm4885 = vcmp.gt.f32.partialorder %v3475, 0.5
      %vm4886 = vcmp.gt.f32.partialorder %v3490, 0.5
      %vm4887 = vcmp.gt.f32.partialorder %v3505, 0.5
      %vm4888 = vcmp.gt.f32.partialorder %v3520, 0.5
      %vm4889 = vcmp.gt.f32.partialorder %v3535, 0.5
      %vm4890 = vcmp.gt.f32.partialorder %v3550, 0.5
      %vm4891 = vcmp.gt.f32.partialorder %v3565, 0.5
      %vm4892 = vcmp.gt.f32.partialorder %v3580, 0.5
      %vm4893 = vcmp.gt.f32.partialorder %v3595, 0.5
      %vm4894 = vcmp.gt.f32.partialorder %v3610, 0.5
      %vm4895 = vcmp.gt.f32.partialorder %v3625, 0.5
      %vm4896 = vcmp.gt.f32.partialorder %v3640, 0.5
      %vm4897 = vcmp.gt.f32.partialorder %v3655, 0.5
      %vm4898 = vcmp.gt.f32.partialorder %v3670, 0.5
      %vm4899 = vcmp.gt.f32.partialorder %v3685, 0.5
      %vm4900 = vcmp.gt.f32.partialorder %v3700, 0.5
      %vm4901 = vcmp.gt.f32.partialorder %v3715, 0.5
      %vm4902 = vcmp.gt.f32.partialorder %v3730, 0.5
      %vm4903 = vcmp.gt.f32.partialorder %v3745, 0.5
      %vm4904 = vcmp.gt.f32.partialorder %v3760, 0.5
      %vm4905 = vcmp.gt.f32.partialorder %v3775, 0.5
      %vm4906 = vcmp.gt.f32.partialorder %v3790, 0.5
      %vm4907 = vcmp.gt.f32.partialorder %v3805, 0.5
      %vm4908 = vcmp.gt.f32.partialorder %v3820, 0.5
      %vm4909 = vcmp.gt.f32.partialorder %v3835, 0.5
      %vm4910 = vcmp.gt.f32.partialorder %v3850, 0.5
      %vm4911 = vcmp.gt.f32.partialorder %v3865, 0.5
      %vm4912 = vcmp.gt.f32.partialorder %v3880, 0.5
      %vm4913 = vcmp.gt.f32.partialorder %v3895, 0.5
      %vm4914 = vcmp.gt.f32.partialorder %v3910, 0.5
      %vm4915 = vcmp.gt.f32.partialorder %v3925, 0.5
      %vm4916 = vcmp.gt.f32.partialorder %v3940, 0.5
      %vm4917 = vcmp.gt.f32.partialorder %v3955, 0.5
      %vm4918 = vcmp.gt.f32.partialorder %v3970, 0.5
      %vm4919 = vcmp.gt.f32.partialorder %v3985, 0.5
      %vm4920 = vcmp.gt.f32.partialorder %v4000, 0.5
      %vm4921 = vcmp.gt.f32.partialorder %v4015, 0.5
      %vm4922 = vcmp.gt.f32.partialorder %v4030, 0.5
      %vm4923 = vcmp.gt.f32.partialorder %v4045, 0.5
      %vm4924 = vcmp.gt.f32.partialorder %v4060, 0.5
      %vm4925 = vcmp.gt.f32.partialorder %v4075, 0.5
      %vm4926 = vcmp.gt.f32.partialorder %v4090, 0.5
      %vm4927 = vcmp.gt.f32.partialorder %v4105, 0.5
      %vm4928 = vcmp.gt.f32.partialorder %v4120, 0.5
      %vm4929 = vcmp.gt.f32.partialorder %v4135, 0.5
      %vm4930 = vcmp.gt.f32.partialorder %v4150, 0.5
      %vm4931 = vcmp.gt.f32.partialorder %v4165, 0.5
      %vm4932 = vcmp.gt.f32.partialorder %v4180, 0.5
      %vm4933 = vcmp.gt.f32.partialorder %v4195, 0.5
      %vm4934 = vcmp.gt.f32.partialorder %v4210, 0.5
      %vm4935 = vcmp.gt.f32.partialorder %v4225, 0.5
      %vm4936 = vcmp.gt.f32.partialorder %v4240, 0.5
      %vm4937 = vcmp.gt.f32.partialorder %v4255, 0.5
      %vm4938 = vcmp.gt.f32.partialorder %v4270, 0.5
      %vm4939 = vcmp.gt.f32.partialorder %v4285, 0.5
      %vm4940 = vcmp.gt.f32.partialorder %v4300, 0.5
      %vm4941 = vcmp.gt.f32.partialorder %v4315, 0.5
      %vm4942 = vcmp.gt.f32.partialorder %v4330, 0.5
      %vm4943 = vcmp.gt.f32.partialorder %v4345, 0.5
      %vm4944 = vcmp.gt.f32.partialorder %v4360, 0.5
      %vm4945 = vcmp.gt.f32.partialorder %v4375, 0.5
      %vm4946 = vcmp.gt.f32.partialorder %v4390, 0.5
      %vm4947 = vcmp.gt.f32.partialorder %v4405, 0.5
      %vm4948 = vcmp.gt.f32.partialorder %v4420, 0.5
      %vm4949 = vcmp.gt.f32.partialorder %v4435, 0.5
      %vm4950 = vcmp.gt.f32.partialorder %v4450, 0.5
      %vm4951 = vcmp.gt.f32.partialorder %v4465, 0.5
      %vm4952 = vcmp.gt.f32.partialorder %v4480, 0.5
      %vm4953 = vcmp.gt.f32.partialorder %v4495, 0.5
      %vm4954 = vcmp.gt.f32.partialorder %v4510, 0.5
      %vm4955 = vcmp.gt.f32.partialorder %v4525, 0.5
      %vm4956 = vcmp.gt.f32.partialorder %v4540, 0.5
      %vm4957 = vcmp.gt.f32.partialorder %v4555, 0.5
      %vm4958 = vcmp.gt.f32.partialorder %v4570, 0.5
      %vm4959 = vcmp.gt.f32.partialorder %v4585, 0.5
      %vm4960 = vcmp.gt.f32.partialorder %v4600, 0.5
      %vm4961 = vcmp.gt.f32.partialorder %v4615, 0.5
      %vm4962 = vcmp.gt.f32.partialorder %v4630, 0.5
      %vm4963 = vcmp.gt.f32.partialorder %v4645, 0.5
      %vm4964 = vcmp.gt.f32.partialorder %v4660, 0.5
      %vm4965 = vcmp.gt.f32.partialorder %v4675, 0.5
      %vm4966 = vcmp.gt.f32.partialorder %v4690, 0.5
      %vm4967 = vcmp.gt.f32.partialorder %v4705, 0.5
      %vm4968 = vcmp.gt.f32.partialorder %v4720, 0.5
      %vm4969 = vcmp.gt.f32.partialorder %v4735, 0.5
      %vm4970 = vcmp.gt.f32.partialorder %v4750, 0.5
      %vm4971 = vcmp.gt.f32.partialorder %v4765, 0.5
      %vm4972 = vcmp.gt.s32.totalorder %v4840, %v4801
      %vm4973 = vcmp.gt.s32.totalorder %v4841, %v4801
      %vm4974 = vcmp.gt.s32.totalorder %v4842, %v4801
      %vm4975 = vcmp.gt.s32.totalorder %v4843, %v4801
      %vm4976 = vcmp.gt.s32.totalorder %v4840, %v4802
      %vm4977 = vcmp.gt.s32.totalorder %v4841, %v4802
      %vm4978 = vcmp.gt.s32.totalorder %v4842, %v4802
      %vm4979 = vcmp.gt.s32.totalorder %v4843, %v4802
      %vm4980 = vcmp.gt.s32.totalorder %v4840, %v4803
      %vm4981 = vcmp.gt.s32.totalorder %v4841, %v4803
      %vm4982 = vcmp.gt.s32.totalorder %v4842, %v4803
      %vm4983 = vcmp.gt.s32.totalorder %v4843, %v4803
      %vm4984 = vcmp.gt.s32.totalorder %v4840, %v4804
      %vm4985 = vcmp.gt.s32.totalorder %v4841, %v4804
      %vm4986 = vcmp.gt.s32.totalorder %v4842, %v4804
      %vm4987 = vcmp.gt.s32.totalorder %v4843, %v4804
      %vm4988 = vcmp.gt.s32.totalorder %v4840, %v4805
      %vm4989 = vcmp.gt.s32.totalorder %v4841, %v4805
      %vm4990 = vcmp.gt.s32.totalorder %v4842, %v4805
      %vm4991 = vcmp.gt.s32.totalorder %v4843, %v4805
      %vm4992 = vcmp.gt.s32.totalorder %v4840, %v4806
      %vm4993 = vcmp.gt.s32.totalorder %v4841, %v4806
      %vm4994 = vcmp.gt.s32.totalorder %v4842, %v4806
      %vm4995 = vcmp.gt.s32.totalorder %v4843, %v4806
      %vm4996 = vcmp.gt.s32.totalorder %v4840, %v4807
      %vm4997 = vcmp.gt.s32.totalorder %v4841, %v4807
      %vm4998 = vcmp.gt.s32.totalorder %v4842, %v4807
      %vm4999 = vcmp.gt.s32.totalorder %v4843, %v4807
      %vm5000 = vcmp.gt.s32.totalorder %v4840, %v4808
      %vm5001 = vcmp.gt.s32.totalorder %v4841, %v4808
      %vm5002 = vcmp.gt.s32.totalorder %v4842, %v4808
      %vm5003 = vcmp.gt.s32.totalorder %v4843, %v4808
      %vm5004 = vcmp.gt.s32.totalorder %v4840, %v4809
      %vm5005 = vcmp.gt.s32.totalorder %v4841, %v4809
      %vm5006 = vcmp.gt.s32.totalorder %v4842, %v4809
      %vm5007 = vcmp.gt.s32.totalorder %v4843, %v4809
      %vm5008 = vcmp.gt.s32.totalorder %v4840, %v4810
      %vm5009 = vcmp.gt.s32.totalorder %v4841, %v4810
      %vm5010 = vcmp.gt.s32.totalorder %v4842, %v4810
      %vm5011 = vcmp.gt.s32.totalorder %v4843, %v4810
      %vm5012 = vcmp.gt.s32.totalorder %v4840, %v4811
      %vm5013 = vcmp.gt.s32.totalorder %v4841, %v4811
      %vm5014 = vcmp.gt.s32.totalorder %v4842, %v4811
      %vm5015 = vcmp.gt.s32.totalorder %v4843, %v4811
      %vm5016 = vcmp.gt.s32.totalorder %v4840, %v4812
      %vm5017 = vcmp.gt.s32.totalorder %v4841, %v4812
      %vm5018 = vcmp.gt.s32.totalorder %v4842, %v4812
      %vm5019 = vcmp.gt.s32.totalorder %v4843, %v4812
      %vm5020 = vcmp.gt.s32.totalorder %v4840, %v4813
      %vm5021 = vcmp.gt.s32.totalorder %v4841, %v4813
      %vm5022 = vcmp.gt.s32.totalorder %v4842, %v4813
      %vm5023 = vcmp.gt.s32.totalorder %v4843, %v4813
      %vm5024 = vcmp.gt.s32.totalorder %v4840, %v4814
      %vm5025 = vcmp.gt.s32.totalorder %v4841, %v4814
      %vm5026 = vcmp.gt.s32.totalorder %v4842, %v4814
      %vm5027 = vcmp.gt.s32.totalorder %v4843, %v4814
      %vm5028 = vcmp.gt.s32.totalorder %v4840, %v4815
      %vm5029 = vcmp.gt.s32.totalorder %v4841, %v4815
      %vm5030 = vcmp.gt.s32.totalorder %v4842, %v4815
      %vm5031 = vcmp.gt.s32.totalorder %v4843, %v4815
      %vm5032 = vcmp.gt.s32.totalorder %v4840, %v4816
      %vm5033 = vcmp.gt.s32.totalorder %v4841, %v4816
      %vm5034 = vcmp.gt.s32.totalorder %v4842, %v4816
      %vm5035 = vcmp.gt.s32.totalorder %v4843, %v4816
      %vm5036 = vcmp.gt.s32.totalorder %v4840, %v4817
      %vm5037 = vcmp.gt.s32.totalorder %v4841, %v4817
      %vm5038 = vcmp.gt.s32.totalorder %v4842, %v4817
      %vm5039 = vcmp.gt.s32.totalorder %v4843, %v4817
      %vm5040 = vcmp.gt.s32.totalorder %v4840, %v4818
      %vm5041 = vcmp.gt.s32.totalorder %v4841, %v4818
      %vm5042 = vcmp.gt.s32.totalorder %v4842, %v4818
      %vm5043 = vcmp.gt.s32.totalorder %v4843, %v4818
      %vm5044 = vcmp.gt.s32.totalorder %v4840, %v4819
      %vm5045 = vcmp.gt.s32.totalorder %v4841, %v4819
      %vm5046 = vcmp.gt.s32.totalorder %v4842, %v4819
      %vm5047 = vcmp.gt.s32.totalorder %v4843, %v4819
      %vm5048 = vcmp.gt.s32.totalorder %v4840, %v4820
      %vm5049 = vcmp.gt.s32.totalorder %v4841, %v4820
      %vm5050 = vcmp.gt.s32.totalorder %v4842, %v4820
      %vm5051 = vcmp.gt.s32.totalorder %v4843, %v4820
      %vm5052 = vcmp.gt.s32.totalorder %v4840, %v4821
      %vm5053 = vcmp.gt.s32.totalorder %v4841, %v4821
      %vm5054 = vcmp.gt.s32.totalorder %v4842, %v4821
      %vm5055 = vcmp.gt.s32.totalorder %v4843, %v4821
      %vm5056 = vcmp.gt.s32.totalorder %v4840, %v4822
      %vm5057 = vcmp.gt.s32.totalorder %v4841, %v4822
      %vm5058 = vcmp.gt.s32.totalorder %v4842, %v4822
      %vm5059 = vcmp.gt.s32.totalorder %v4843, %v4822
      %vm5060 = vcmp.gt.s32.totalorder %v4840, %v4823
      %vm5061 = vcmp.gt.s32.totalorder %v4841, %v4823
      %vm5062 = vcmp.gt.s32.totalorder %v4842, %v4823
      %vm5063 = vcmp.gt.s32.totalorder %v4843, %v4823
      %vm5064 = vcmp.gt.s32.totalorder %v4840, %v4824
      %vm5065 = vcmp.gt.s32.totalorder %v4841, %v4824
      %vm5066 = vcmp.gt.s32.totalorder %v4842, %v4824
      %vm5067 = vcmp.gt.s32.totalorder %v4843, %v4824
      %vm5068 = vcmp.gt.s32.totalorder %v4840, %v4825
      %vm5069 = vcmp.gt.s32.totalorder %v4841, %v4825
      %vm5070 = vcmp.gt.s32.totalorder %v4842, %v4825
      %vm5071 = vcmp.gt.s32.totalorder %v4843, %v4825
      %vm5072 = vcmp.gt.s32.totalorder %v4840, %v4826
      %vm5073 = vcmp.gt.s32.totalorder %v4841, %v4826
      %vm5074 = vcmp.gt.s32.totalorder %v4842, %v4826
      %vm5075 = vcmp.gt.s32.totalorder %v4843, %v4826
      %vm5076 = vcmp.gt.s32.totalorder %v4840, %v4827
      %vm5077 = vcmp.gt.s32.totalorder %v4841, %v4827
      %vm5078 = vcmp.gt.s32.totalorder %v4842, %v4827
      %vm5079 = vcmp.gt.s32.totalorder %v4843, %v4827
      %vm5080 = vcmp.gt.s32.totalorder %v4840, %v4828
      %vm5081 = vcmp.gt.s32.totalorder %v4841, %v4828
      %vm5082 = vcmp.gt.s32.totalorder %v4842, %v4828
      %vm5083 = vcmp.gt.s32.totalorder %v4843, %v4828
      %vm5084 = vcmp.gt.s32.totalorder %v4840, %v4829
      %vm5085 = vcmp.gt.s32.totalorder %v4841, %v4829
      %vm5086 = vcmp.gt.s32.totalorder %v4842, %v4829
      %vm5087 = vcmp.gt.s32.totalorder %v4843, %v4829
      %vm5088 = vcmp.gt.s32.totalorder %v4840, %v4830
      %vm5089 = vcmp.gt.s32.totalorder %v4841, %v4830
      %vm5090 = vcmp.gt.s32.totalorder %v4842, %v4830
      %vm5091 = vcmp.gt.s32.totalorder %v4843, %v4830
      %vm5092 = vcmp.gt.s32.totalorder %v4840, %v4831
      %vm5093 = vcmp.gt.s32.totalorder %v4841, %v4831
      %vm5094 = vcmp.gt.s32.totalorder %v4842, %v4831
      %vm5095 = vcmp.gt.s32.totalorder %v4843, %v4831
      %vm5096 = vcmp.gt.s32.totalorder %v4840, %v4832
      %vm5097 = vcmp.gt.s32.totalorder %v4841, %v4832
      %vm5098 = vcmp.gt.s32.totalorder %v4842, %v4832
      %vm5099 = vcmp.gt.s32.totalorder %v4843, %v4832
      %vm5100 = vmand %vm4844, %vm4972
      %vm5101 = vmand %vm4845, %vm4973
      %vm5102 = vmand %vm4846, %vm4974
      %vm5103 = vmand %vm4847, %vm4975
      %vm5104 = vmand %vm4848, %vm4976
      %vm5105 = vmand %vm4849, %vm4977
      %vm5106 = vmand %vm4850, %vm4978
      %vm5107 = vmand %vm4851, %vm4979
      %vm5108 = vmand %vm4852, %vm4980
      %vm5109 = vmand %vm4853, %vm4981
      %vm5110 = vmand %vm4854, %vm4982
      %vm5111 = vmand %vm4855, %vm4983
      %vm5112 = vmand %vm4856, %vm4984
      %vm5113 = vmand %vm4857, %vm4985
      %vm5114 = vmand %vm4858, %vm4986
      %vm5115 = vmand %vm4859, %vm4987
      %vm5116 = vmand %vm4860, %vm4988
      %vm5117 = vmand %vm4861, %vm4989
      %vm5118 = vmand %vm4862, %vm4990
      %vm5119 = vmand %vm4863, %vm4991
      %vm5120 = vmand %vm4864, %vm4992
      %vm5121 = vmand %vm4865, %vm4993
      %vm5122 = vmand %vm4866, %vm4994
      %vm5123 = vmand %vm4867, %vm4995
      %vm5124 = vmand %vm4868, %vm4996
      %vm5125 = vmand %vm4869, %vm4997
      %vm5126 = vmand %vm4870, %vm4998
      %vm5127 = vmand %vm4871, %vm4999
      %vm5128 = vmand %vm4872, %vm5000
      %vm5129 = vmand %vm4873, %vm5001
      %vm5130 = vmand %vm4874, %vm5002
      %vm5131 = vmand %vm4875, %vm5003
      %vm5132 = vmand %vm4876, %vm5004
      %vm5133 = vmand %vm4877, %vm5005
      %vm5134 = vmand %vm4878, %vm5006
      %vm5135 = vmand %vm4879, %vm5007
      %vm5136 = vmand %vm4880, %vm5008
      %vm5137 = vmand %vm4881, %vm5009
      %vm5138 = vmand %vm4882, %vm5010
      %vm5139 = vmand %vm4883, %vm5011
      %vm5140 = vmand %vm4884, %vm5012
      %vm5141 = vmand %vm4885, %vm5013
      %vm5142 = vmand %vm4886, %vm5014
      %vm5143 = vmand %vm4887, %vm5015
      %vm5144 = vmand %vm4888, %vm5016
      %vm5145 = vmand %vm4889, %vm5017
      %vm5146 = vmand %vm4890, %vm5018
      %vm5147 = vmand %vm4891, %vm5019
      %vm5148 = vmand %vm4892, %vm5020
      %vm5149 = vmand %vm4893, %vm5021
      %vm5150 = vmand %vm4894, %vm5022
      %vm5151 = vmand %vm4895, %vm5023
      %vm5152 = vmand %vm4896, %vm5024
      %vm5153 = vmand %vm4897, %vm5025
      %vm5154 = vmand %vm4898, %vm5026
      %vm5155 = vmand %vm4899, %vm5027
      %vm5156 = vmand %vm4900, %vm5028
      %vm5157 = vmand %vm4901, %vm5029
      %vm5158 = vmand %vm4902, %vm5030
      %vm5159 = vmand %vm4903, %vm5031
      %vm5160 = vmand %vm4904, %vm5032
      %vm5161 = vmand %vm4905, %vm5033
      %vm5162 = vmand %vm4906, %vm5034
      %vm5163 = vmand %vm4907, %vm5035
      %vm5164 = vmand %vm4908, %vm5036
      %vm5165 = vmand %vm4909, %vm5037
      %vm5166 = vmand %vm4910, %vm5038
      %vm5167 = vmand %vm4911, %vm5039
      %vm5168 = vmand %vm4912, %vm5040
      %vm5169 = vmand %vm4913, %vm5041
      %vm5170 = vmand %vm4914, %vm5042
      %vm5171 = vmand %vm4915, %vm5043
      %vm5172 = vmand %vm4916, %vm5044
      %vm5173 = vmand %vm4917, %vm5045
      %vm5174 = vmand %vm4918, %vm5046
      %vm5175 = vmand %vm4919, %vm5047
      %vm5176 = vmand %vm4920, %vm5048
      %vm5177 = vmand %vm4921, %vm5049
      %vm5178 = vmand %vm4922, %vm5050
      %vm5179 = vmand %vm4923, %vm5051
      %vm5180 = vmand %vm4924, %vm5052
      %vm5181 = vmand %vm4925, %vm5053
      %vm5182 = vmand %vm4926, %vm5054
      %vm5183 = vmand %vm4927, %vm5055
      %vm5184 = vmand %vm4928, %vm5056
      %vm5185 = vmand %vm4929, %vm5057
      %vm5186 = vmand %vm4930, %vm5058
      %vm5187 = vmand %vm4931, %vm5059
      %vm5188 = vmand %vm4932, %vm5060
      %vm5189 = vmand %vm4933, %vm5061
      %vm5190 = vmand %vm4934, %vm5062
      %vm5191 = vmand %vm4935, %vm5063
      %vm5192 = vmand %vm4936, %vm5064
      %vm5193 = vmand %vm4937, %vm5065
      %vm5194 = vmand %vm4938, %vm5066
      %vm5195 = vmand %vm4939, %vm5067
      %vm5196 = vmand %vm4940, %vm5068
      %vm5197 = vmand %vm4941, %vm5069
      %vm5198 = vmand %vm4942, %vm5070
      %vm5199 = vmand %vm4943, %vm5071
      %vm5200 = vmand %vm4944, %vm5072
      %vm5201 = vmand %vm4945, %vm5073
      %vm5202 = vmand %vm4946, %vm5074
      %vm5203 = vmand %vm4947, %vm5075
      %vm5204 = vmand %vm4948, %vm5076
      %vm5205 = vmand %vm4949, %vm5077
      %vm5206 = vmand %vm4950, %vm5078
      %vm5207 = vmand %vm4951, %vm5079
      %vm5208 = vmand %vm4952, %vm5080
      %vm5209 = vmand %vm4953, %vm5081
      %vm5210 = vmand %vm4954, %vm5082
      %vm5211 = vmand %vm4955, %vm5083
      %vm5212 = vmand %vm4956, %vm5084
      %vm5213 = vmand %vm4957, %vm5085
      %vm5214 = vmand %vm4958, %vm5086
      %vm5215 = vmand %vm4959, %vm5087
      %vm5216 = vmand %vm4960, %vm5088
      %vm5217 = vmand %vm4961, %vm5089
      %vm5218 = vmand %vm4962, %vm5090
      %vm5219 = vmand %vm4963, %vm5091
      %vm5220 = vmand %vm4964, %vm5092
      %vm5221 = vmand %vm4965, %vm5093
      %vm5222 = vmand %vm4966, %vm5094
      %vm5223 = vmand %vm4967, %vm5095
      %vm5224 = vmand %vm4968, %vm5096
      %vm5225 = vmand %vm4969, %vm5097
      %vm5226 = vmand %vm4970, %vm5098
      %vm5227 = vmand %vm4971, %vm5099
      %v5228 = vsel %vm5100, 1.0, 0.0
      %v5229 = vsel %vm5101, 1.0, 0.0
      %v5230 = vsel %vm5102, 1.0, 0.0
      %v5231 = vsel %vm5103, 1.0, 0.0
      %v5232 = vsel %vm5104, 1.0, 0.0
      %v5233 = vsel %vm5105, 1.0, 0.0
      %v5234 = vsel %vm5106, 1.0, 0.0
      %v5235 = vsel %vm5107, 1.0, 0.0
      %v5236 = vsel %vm5108, 1.0, 0.0
      %v5237 = vsel %vm5109, 1.0, 0.0
      %v5238 = vsel %vm5110, 1.0, 0.0
      %v5239 = vsel %vm5111, 1.0, 0.0
      %v5240 = vsel %vm5112, 1.0, 0.0
      %v5241 = vsel %vm5113, 1.0, 0.0
      %v5242 = vsel %vm5114, 1.0, 0.0
      %v5243 = vsel %vm5115, 1.0, 0.0
      %v5244 = vsel %vm5116, 1.0, 0.0
      %v5245 = vsel %vm5117, 1.0, 0.0
      %v5246 = vsel %vm5118, 1.0, 0.0
      %v5247 = vsel %vm5119, 1.0, 0.0
      %v5248 = vsel %vm5120, 1.0, 0.0
      %v5249 = vsel %vm5121, 1.0, 0.0
      %v5250 = vsel %vm5122, 1.0, 0.0
      %v5251 = vsel %vm5123, 1.0, 0.0
      %v5252 = vsel %vm5124, 1.0, 0.0
      %v5253 = vsel %vm5125, 1.0, 0.0
      %v5254 = vsel %vm5126, 1.0, 0.0
      %v5255 = vsel %vm5127, 1.0, 0.0
      %v5256 = vsel %vm5128, 1.0, 0.0
      %v5257 = vsel %vm5129, 1.0, 0.0
      %v5258 = vsel %vm5130, 1.0, 0.0
      %v5259 = vsel %vm5131, 1.0, 0.0
      %v5260 = vsel %vm5132, 1.0, 0.0
      %v5261 = vsel %vm5133, 1.0, 0.0
      %v5262 = vsel %vm5134, 1.0, 0.0
      %v5263 = vsel %vm5135, 1.0, 0.0
      %v5264 = vsel %vm5136, 1.0, 0.0
      %v5265 = vsel %vm5137, 1.0, 0.0
      %v5266 = vsel %vm5138, 1.0, 0.0
      %v5267 = vsel %vm5139, 1.0, 0.0
      %v5268 = vsel %vm5140, 1.0, 0.0
      %v5269 = vsel %vm5141, 1.0, 0.0
      %v5270 = vsel %vm5142, 1.0, 0.0
      %v5271 = vsel %vm5143, 1.0, 0.0
      %v5272 = vsel %vm5144, 1.0, 0.0
      %v5273 = vsel %vm5145, 1.0, 0.0
      %v5274 = vsel %vm5146, 1.0, 0.0
      %v5275 = vsel %vm5147, 1.0, 0.0
      %v5276 = vsel %vm5148, 1.0, 0.0
      %v5277 = vsel %vm5149, 1.0, 0.0
      %v5278 = vsel %vm5150, 1.0, 0.0
      %v5279 = vsel %vm5151, 1.0, 0.0
      %v5280 = vsel %vm5152, 1.0, 0.0
      %v5281 = vsel %vm5153, 1.0, 0.0
      %v5282 = vsel %vm5154, 1.0, 0.0
      %v5283 = vsel %vm5155, 1.0, 0.0
      %v5284 = vsel %vm5156, 1.0, 0.0
      %v5285 = vsel %vm5157, 1.0, 0.0
      %v5286 = vsel %vm5158, 1.0, 0.0
      %v5287 = vsel %vm5159, 1.0, 0.0
      %v5288 = vsel %vm5160, 1.0, 0.0
      %v5289 = vsel %vm5161, 1.0, 0.0
      %v5290 = vsel %vm5162, 1.0, 0.0
      %v5291 = vsel %vm5163, 1.0, 0.0
      %v5292 = vsel %vm5164, 1.0, 0.0
      %v5293 = vsel %vm5165, 1.0, 0.0
      %v5294 = vsel %vm5166, 1.0, 0.0
      %v5295 = vsel %vm5167, 1.0, 0.0
      %v5296 = vsel %vm5168, 1.0, 0.0
      %v5297 = vsel %vm5169, 1.0, 0.0
      %v5298 = vsel %vm5170, 1.0, 0.0
      %v5299 = vsel %vm5171, 1.0, 0.0
      %v5300 = vsel %vm5172, 1.0, 0.0
      %v5301 = vsel %vm5173, 1.0, 0.0
      %v5302 = vsel %vm5174, 1.0, 0.0
      %v5303 = vsel %vm5175, 1.0, 0.0
      %v5304 = vsel %vm5176, 1.0, 0.0
      %v5305 = vsel %vm5177, 1.0, 0.0
      %v5306 = vsel %vm5178, 1.0, 0.0
      %v5307 = vsel %vm5179, 1.0, 0.0
      %v5308 = vsel %vm5180, 1.0, 0.0
      %v5309 = vsel %vm5181, 1.0, 0.0
      %v5310 = vsel %vm5182, 1.0, 0.0
      %v5311 = vsel %vm5183, 1.0, 0.0
      %v5312 = vsel %vm5184, 1.0, 0.0
      %v5313 = vsel %vm5185, 1.0, 0.0
      %v5314 = vsel %vm5186, 1.0, 0.0
      %v5315 = vsel %vm5187, 1.0, 0.0
      %v5316 = vsel %vm5188, 1.0, 0.0
      %v5317 = vsel %vm5189, 1.0, 0.0
      %v5318 = vsel %vm5190, 1.0, 0.0
      %v5319 = vsel %vm5191, 1.0, 0.0
      %v5320 = vsel %vm5192, 1.0, 0.0
      %v5321 = vsel %vm5193, 1.0, 0.0
      %v5322 = vsel %vm5194, 1.0, 0.0
      %v5323 = vsel %vm5195, 1.0, 0.0
      %v5324 = vsel %vm5196, 1.0, 0.0
      %v5325 = vsel %vm5197, 1.0, 0.0
      %v5326 = vsel %vm5198, 1.0, 0.0
      %v5327 = vsel %vm5199, 1.0, 0.0
      %v5328 = vsel %vm5200, 1.0, 0.0
      %v5329 = vsel %vm5201, 1.0, 0.0
      %v5330 = vsel %vm5202, 1.0, 0.0
      %v5331 = vsel %vm5203, 1.0, 0.0
      %v5332 = vsel %vm5204, 1.0, 0.0
      %v5333 = vsel %vm5205, 1.0, 0.0
      %v5334 = vsel %vm5206, 1.0, 0.0
      %v5335 = vsel %vm5207, 1.0, 0.0
      %v5336 = vsel %vm5208, 1.0, 0.0
      %v5337 = vsel %vm5209, 1.0, 0.0
      %v5338 = vsel %vm5210, 1.0, 0.0
      %v5339 = vsel %vm5211, 1.0, 0.0
      %v5340 = vsel %vm5212, 1.0, 0.0
      %v5341 = vsel %vm5213, 1.0, 0.0
      %v5342 = vsel %vm5214, 1.0, 0.0
      %v5343 = vsel %vm5215, 1.0, 0.0
      %v5344 = vsel %vm5216, 1.0, 0.0
      %v5345 = vsel %vm5217, 1.0, 0.0
      %v5346 = vsel %vm5218, 1.0, 0.0
      %v5347 = vsel %vm5219, 1.0, 0.0
      %v5348 = vsel %vm5220, 1.0, 0.0
      %v5349 = vsel %vm5221, 1.0, 0.0
      %v5350 = vsel %vm5222, 1.0, 0.0
      %v5351 = vsel %vm5223, 1.0, 0.0
      %v5352 = vsel %vm5224, 1.0, 0.0
      %v5353 = vsel %vm5225, 1.0, 0.0
      %v5354 = vsel %vm5226, 1.0, 0.0
      %v5355 = vsel %vm5227, 1.0, 0.0
      %v5356 = vpack.c.bf16 %v5229, %v5228
      %v5357 = vpack.c.bf16 %v5231, %v5230
      %v5358 = vpack.c.bf16 %v5233, %v5232
      %v5359 = vpack.c.bf16 %v5235, %v5234
      %v5360 = vpack.c.bf16 %v5237, %v5236
      %v5361 = vpack.c.bf16 %v5239, %v5238
      %v5362 = vpack.c.bf16 %v5241, %v5240
      %v5363 = vpack.c.bf16 %v5243, %v5242
      %v5364 = vpack.c.bf16 %v5245, %v5244
      %v5365 = vpack.c.bf16 %v5247, %v5246
      %v5366 = vpack.c.bf16 %v5249, %v5248
      %v5367 = vpack.c.bf16 %v5251, %v5250
      %v5368 = vpack.c.bf16 %v5253, %v5252
      %v5369 = vpack.c.bf16 %v5255, %v5254
      %v5370 = vpack.c.bf16 %v5257, %v5256
      %v5371 = vpack.c.bf16 %v5259, %v5258
      %v5372 = vpack.c.bf16 %v5261, %v5260
      %v5373 = vpack.c.bf16 %v5263, %v5262
      %v5374 = vpack.c.bf16 %v5265, %v5264
      %v5375 = vpack.c.bf16 %v5267, %v5266
      %v5376 = vpack.c.bf16 %v5269, %v5268
      %v5377 = vpack.c.bf16 %v5271, %v5270
      %v5378 = vpack.c.bf16 %v5273, %v5272
      %v5379 = vpack.c.bf16 %v5275, %v5274
      %v5380 = vpack.c.bf16 %v5277, %v5276
      %v5381 = vpack.c.bf16 %v5279, %v5278
      %v5382 = vpack.c.bf16 %v5281, %v5280
      %v5383 = vpack.c.bf16 %v5283, %v5282
      %v5384 = vpack.c.bf16 %v5285, %v5284
      %v5385 = vpack.c.bf16 %v5287, %v5286
      %v5386 = vpack.c.bf16 %v5289, %v5288
      %v5387 = vpack.c.bf16 %v5291, %v5290
      %v5388 = vpack.c.bf16 %v5293, %v5292
      %v5389 = vpack.c.bf16 %v5295, %v5294
      %v5390 = vpack.c.bf16 %v5297, %v5296
      %v5391 = vpack.c.bf16 %v5299, %v5298
      %v5392 = vpack.c.bf16 %v5301, %v5300
      %v5393 = vpack.c.bf16 %v5303, %v5302
      %v5394 = vpack.c.bf16 %v5305, %v5304
      %v5395 = vpack.c.bf16 %v5307, %v5306
      %v5396 = vpack.c.bf16 %v5309, %v5308
      %v5397 = vpack.c.bf16 %v5311, %v5310
      %v5398 = vpack.c.bf16 %v5313, %v5312
      %v5399 = vpack.c.bf16 %v5315, %v5314
      %v5400 = vpack.c.bf16 %v5317, %v5316
      %v5401 = vpack.c.bf16 %v5319, %v5318
      %v5402 = vpack.c.bf16 %v5321, %v5320
      %v5403 = vpack.c.bf16 %v5323, %v5322
      %v5404 = vpack.c.bf16 %v5325, %v5324
      %v5405 = vpack.c.bf16 %v5327, %v5326
      %v5406 = vpack.c.bf16 %v5329, %v5328
      %v5407 = vpack.c.bf16 %v5331, %v5330
      %v5408 = vpack.c.bf16 %v5333, %v5332
      %v5409 = vpack.c.bf16 %v5335, %v5334
      %v5410 = vpack.c.bf16 %v5337, %v5336
      %v5411 = vpack.c.bf16 %v5339, %v5338
      %v5412 = vpack.c.bf16 %v5341, %v5340
      %v5413 = vpack.c.bf16 %v5343, %v5342
      %v5414 = vpack.c.bf16 %v5345, %v5344
      %v5415 = vpack.c.bf16 %v5347, %v5346
      %v5416 = vpack.c.bf16 %v5349, %v5348
      %v5417 = vpack.c.bf16 %v5351, %v5350
      %v5418 = vpack.c.bf16 %v5353, %v5352
      %v5419 = vpack.c.bf16 %v5355, %v5354
      %5420 = vst [vmem:[%s191] sm:$0xff] %v5356
      %5421 = vst [vmem:[%s191 + $0x8] sm:$0xff] %v5357
      %5422 = vst [vmem:[%s191 + $0x10] sm:$0xff] %v5358
      %5423 = vst [vmem:[%s191 + $0x18] sm:$0xff] %v5359
      %5424 = vst [vmem:[%s191 + $0x20] sm:$0xff] %v5360
      %5425 = vst [vmem:[%s191 + $0x28] sm:$0xff] %v5361
      %5426 = vst [vmem:[%s191 + $0x30] sm:$0xff] %v5362
      %5427 = vst [vmem:[%s191 + $0x38] sm:$0xff] %v5363
      %5428 = vst [vmem:[%s191 + $0x40] sm:$0xff] %v5364
      %5429 = vst [vmem:[%s191 + $0x48] sm:$0xff] %v5365
      %5430 = vst [vmem:[%s191 + $0x50] sm:$0xff] %v5366
      %5431 = vst [vmem:[%s191 + $0x58] sm:$0xff] %v5367
      %5432 = vst [vmem:[%s191 + $0x60] sm:$0xff] %v5368
      %5433 = vst [vmem:[%s191 + $0x68] sm:$0xff] %v5369
      %5434 = vst [vmem:[%s191 + $0x70] sm:$0xff] %v5370
      %5435 = vst [vmem:[%s191 + $0x78] sm:$0xff] %v5371
      %5436 = vst [vmem:[%s191 + $0x80] sm:$0xff] %v5372
      %5437 = vst [vmem:[%s191 + $0x88] sm:$0xff] %v5373
      %5438 = vst [vmem:[%s191 + $0x90] sm:$0xff] %v5374
      %5439 = vst [vmem:[%s191 + $0x98] sm:$0xff] %v5375
      %5440 = vst [vmem:[%s191 + $0xa0] sm:$0xff] %v5376
      %5441 = vst [vmem:[%s191 + $0xa8] sm:$0xff] %v5377
      %5442 = vst [vmem:[%s191 + $0xb0] sm:$0xff] %v5378
      %5443 = vst [vmem:[%s191 + $0xb8] sm:$0xff] %v5379
      %5444 = vst [vmem:[%s191 + $0xc0] sm:$0xff] %v5380
      %5445 = vst [vmem:[%s191 + $0xc8] sm:$0xff] %v5381
      %5446 = vst [vmem:[%s191 + $0xd0] sm:$0xff] %v5382
      %5447 = vst [vmem:[%s191 + $0xd8] sm:$0xff] %v5383
      %5448 = vst [vmem:[%s191 + $0xe0] sm:$0xff] %v5384
      %5449 = vst [vmem:[%s191 + $0xe8] sm:$0xff] %v5385
      %5450 = vst [vmem:[%s191 + $0xf0] sm:$0xff] %v5386
      %5451 = vst [vmem:[%s191 + $0xf8] sm:$0xff] %v5387
      %5452 = vst [vmem:[%s191 + $0x100] sm:$0xff] %v5388
      %5453 = vst [vmem:[%s191 + $0x108] sm:$0xff] %v5389
      %5454 = vst [vmem:[%s191 + $0x110] sm:$0xff] %v5390
      %5455 = vst [vmem:[%s191 + $0x118] sm:$0xff] %v5391
      %5456 = vst [vmem:[%s191 + $0x120] sm:$0xff] %v5392
      %5457 = vst [vmem:[%s191 + $0x128] sm:$0xff] %v5393
      %5458 = vst [vmem:[%s191 + $0x130] sm:$0xff] %v5394
      %5459 = vst [vmem:[%s191 + $0x138] sm:$0xff] %v5395
      %5460 = vst [vmem:[%s191 + $0x140] sm:$0xff] %v5396
      %5461 = vst [vmem:[%s191 + $0x148] sm:$0xff] %v5397
      %5462 = vst [vmem:[%s191 + $0x150] sm:$0xff] %v5398
      %5463 = vst [vmem:[%s191 + $0x158] sm:$0xff] %v5399
      %5464 = vst [vmem:[%s191 + $0x160] sm:$0xff] %v5400
      %5465 = vst [vmem:[%s191 + $0x168] sm:$0xff] %v5401
      %5466 = vst [vmem:[%s191 + $0x170] sm:$0xff] %v5402
      %5467 = vst [vmem:[%s191 + $0x178] sm:$0xff] %v5403
      %5468 = vst [vmem:[%s191 + $0x180] sm:$0xff] %v5404
      %5469 = vst [vmem:[%s191 + $0x188] sm:$0xff] %v5405
      %5470 = vst [vmem:[%s191 + $0x190] sm:$0xff] %v5406
      %5471 = vst [vmem:[%s191 + $0x198] sm:$0xff] %v5407
      %5472 = vst [vmem:[%s191 + $0x1a0] sm:$0xff] %v5408
      %5473 = vst [vmem:[%s191 + $0x1a8] sm:$0xff] %v5409
      %5474 = vst [vmem:[%s191 + $0x1b0] sm:$0xff] %v5410
      %5475 = vst [vmem:[%s191 + $0x1b8] sm:$0xff] %v5411
      %5476 = vst [vmem:[%s191 + $0x1c0] sm:$0xff] %v5412
      %5477 = vst [vmem:[%s191 + $0x1c8] sm:$0xff] %v5413
      %5478 = vst [vmem:[%s191 + $0x1d0] sm:$0xff] %v5414
      %5479 = vst [vmem:[%s191 + $0x1d8] sm:$0xff] %v5415
      %5480 = vst [vmem:[%s191 + $0x1e0] sm:$0xff] %v5416
      %5481 = vst [vmem:[%s191 + $0x1e8] sm:$0xff] %v5417
      %5482 = vst [vmem:[%s191 + $0x1f0] sm:$0xff] %v5418
      %5483 = vst [vmem:[%s191 + $0x1f8] sm:$0xff] %v5419
      %s5484 = smul.u32 32, %s17
      %s5485 = smul.u32 4, %s18
      %p5486 = scmp.lt.s32.totalorder %s5484, 63
      %s5487 = scalar_select %p5486, %s5484, 63
      %p5488 = scmp.lt.s32.totalorder %s5485, 3
      %s5489 = scalar_select %p5488, %s5485, 3
      %s5490 = smul.addr %s5487, 4
      %s5491 = sadd.s32 %s5489, %s5490
      %s5492 = smul.addr %s5491, 4
      %s5493 = scalar_lea.vmem %s2, %s5492
      // Predicated region
      $region29: #{object_detection_forward.6} parent=27 // pred_check
        %p5494 = pneg %p97
      $region30: #{object_detection_forward.6} parent=27 // pred_check_branch
        %5496 = sbr.rel (%p5494) target = $region32
      $region31: #{object_detection_forward.6} parent=27 // pred_region
        %s5497 = smul.u32 32, %s17
        %s5498 = smul.u32 4, %s18
      $region32: #{object_detection_forward.6} parent=27 // pred_fallthru
        _
    $region28: #{object_detection_forward.6} parent=5 // pred_fallthru
      _
    %p5499 = scmp.le.s32.totalorder 2, %s8
    // Predicated region
    $region33: #{object_detection_forward.6} parent=5 // pred_check
      %p5500 = pneg %p5499
    $region34: #{object_detection_forward.6} parent=5 // pred_check_branch
      %5502 = sbr.rel (%p5500) target = $region36
    $region35: #{object_detection_forward.6} parent=5 // pred_region
      %s5503 = ssub.s32 %s8, 2
      // Predicated region
      $region37: #{object_detection_forward.6} parent=35 // pred_check
        %p5504 = pneg %p103
      $region38: #{object_detection_forward.6} parent=35 // pred_check_branch
        %5506 = sbr.rel (%p5504) target = $region40
      $region39: #{object_detection_forward.6} parent=35 // pred_region
        %s5507 = smul.u32 32, %s19
        %s5508 = smul.u32 4, %s20
        %p5509 = scmp.lt.s32.totalorder %s5507, 63
        %s5510 = scalar_select %p5509, %s5507, 63
        %p5511 = scmp.lt.s32.totalorder %s5508, 3
        %s5512 = scalar_select %p5511, %s5508, 3
        %s5513 = smul.addr %s5510, 4
        %s5514 = sadd.s32 %s5512, %s5513
        %s5515 = smul.addr %s5514, 4
        %s5516 = scalar_lea.vmem %s2, %s5515
      $region40: #{object_detection_forward.6} parent=35 // pred_fallthru
        _
    $region36: #{object_detection_forward.6} parent=5 // pred_fallthru
      _
  $region6: #{object_detection_forward.6} parent=0 // loop_footer
    %s12 = sadd.s32 1, %s8
  $region7: #{object_detection_forward.6} parent=0 // loop_footer_branch
    %7 = sbr.rel target = $region3
  $region8: #{object_detection_forward.6} parent=0 // loop_exit
    _

</llo_original>
